<compile_context>
chip_gen: v5e
topology: v5e:2x2
jax: 0.10.0
libtpu: 0.0.40
codegen_flags: <defaults>
</compile_context>

<pallas_src>
import functools

import jax
import jax.numpy as jnp
from jax.experimental import pallas as pl
from jax.experimental.pallas import tpu as pltpu

EPS = 1e-5   # PyTorch InstanceNorm2d default eps
LANE = 128   # TPU lane width


def _round_up(x, m):
    return (x + m - 1) // m * m


def _inorm_scale_shift(h, gamma, beta, inv_hw):
    """Fold InstanceNorm(affine) into per-channel (1, C) scale/shift.

    Single-pass sum / sum-of-squares in f32.  NOTE: E[x^2]-E[x]^2 can cancel when
    |mean| >> std; inputs here are conv outputs of normalized activations, where the
    f32 error is orders of magnitude below the 1e-5 eps floor.
    """
    s = jnp.sum(h, axis=0, keepdims=True)
    ss = jnp.sum(h * h, axis=0, keepdims=True)
    mean = s * inv_hw
    var = jnp.maximum(ss * inv_hw - mean * mean, 0.0)   # biased variance (PyTorch)
    scale = gamma * jax.lax.rsqrt(var + EPS)
    shift = beta - mean * scale
    return scale, shift


def res_bottleneck_kernel(x_ref, w1_ref, g1_ref, b1_ref,
                          w2_ref, g2_ref, b2_ref,
                          w3_ref, g3_ref, b3_ref,
                          out_ref, h1pad_ref, acc_ref,
                          *, h, w, pad, mxu_dtype):
    """One grid step = one batch sample (InstanceNorm reduces over full H*W)."""
    hw = h * w
    cin = x_ref.shape[-1]      # padded to a multiple of 128
    cint = w1_ref.shape[-1]
    cout = w3_ref.shape[-1]
    inv_hw = jnp.float32(1.0 / hw)

    x2d = x_ref[...].reshape(hw, cin)        # activation dtype (bf16 in production)

    # ---- conv1: 1x1 -> InstanceNorm -> ReLU ---------------------------------
    h1 = jnp.dot(x2d, w1_ref[...], preferred_element_type=jnp.float32)
    sc1, sh1 = _inorm_scale_shift(h1, g1_ref[...], b1_ref[...], inv_hw)
    h1 = jnp.maximum(h1 * sc1 + sh1, 0.0)

    # ---- conv2: 3x3 (pad=1, stride=1) as 3 accumulating per-dh matmuls ------
    # Zero-pad the flattened spatial axis in a VMEM scratch, then for each dh in
    # {-1,0,+1} gather the three dw taps, mask the W-wraparound columns with a
    # (HW,1) mask, and accumulate a (HW,3C)@(3C,C) MXU matmul into acc_ref.
    zpad = jnp.zeros((pad, cint), jnp.float32)
    h1pad_ref[pl.ds(0, pad), :] = zpad
    h1pad_ref[pl.ds(pad, hw), :] = h1
    h1pad_ref[pl.ds(pad + hw, pad), :] = zpad

    col = jax.lax.broadcasted_iota(jnp.int32, (hw, 1), 0) % w
    not_first = (col >= 1).astype(jnp.float32)       # valid rows for dw == -1
    not_last = (col <= w - 2).astype(jnp.float32)    # valid rows for dw == +1

    acc_ref[...] = jnp.zeros_like(acc_ref)

    @pl.loop(0, 3)                                    # dh index: 0,1,2 -> dh=-1,0,+1
    def _(i):
        base = pad + (i - 1) * w
        left = h1pad_ref[pl.ds(base - 1, hw), :] * not_first    # dw = -1
        mid = h1pad_ref[pl.ds(base, hw), :]                     # dw =  0
        right = h1pad_ref[pl.ds(base + 1, hw), :] * not_last    # dw = +1
        group = jnp.concatenate(
            [left.astype(mxu_dtype), mid.astype(mxu_dtype), right.astype(mxu_dtype)],
            axis=1)                                             # (HW, 3C), lane-aligned
        k0 = pl.multiple_of(i * (3 * cint), LANE)
        acc_ref[...] += jnp.dot(group, w2_ref[pl.ds(k0, 3 * cint), :],
                                preferred_element_type=jnp.float32)

    h2 = acc_ref[...]
    sc2, sh2 = _inorm_scale_shift(h2, g2_ref[...], b2_ref[...], inv_hw)
    h2 = jnp.maximum(h2 * sc2 + sh2, 0.0).astype(mxu_dtype)

    # ---- conv3: 1x1 -> InstanceNorm (relu=None) ------------------------------
    h3 = jnp.dot(h2, w3_ref[...], preferred_element_type=jnp.float32)
    sc3, sh3 = _inorm_scale_shift(h3, g3_ref[...], b3_ref[...], inv_hw)

    # ---- identity residual + final ReLU ---------------------------------------
    out = jnp.maximum(h3 * sc3 + sh3 + x2d.astype(jnp.float32), 0.0)
    out_ref[...] = out.reshape(1, h, w, cout).astype(out_ref.dtype)


# ----------------------------- wrappers ----------------------------------------
def prepare_params(params, mxu_dtype=jnp.bfloat16):
    """One-time weight prep: pad channels to a multiple of 128 (lane-dense),
    flatten the 3x3 weights to tap-major im2col layout, cast to the MXU dtype."""
    cin, cint = params["w1"].shape
    cout = params["w3"].shape[1]
    cin_p = max(_round_up(cin, LANE), LANE)
    cint_p = max(_round_up(cint, LANE), LANE)
    cout_p = max(_round_up(cout, LANE), LANE)

    def pad2(a, r, c):
        return jnp.pad(a, ((0, r - a.shape[0]), (0, c - a.shape[1])))

    def padv(a, c):
        a = jnp.asarray(a).reshape(1, -1)
        # NOTE: padded gamma AND beta MUST stay zero -- together with zero-padded
        # weights this keeps padded lanes exactly 0 through every norm
        # (scale = 0 * rsqrt(eps), shift = 0) and through the residual add.
        return jnp.pad(a, ((0, 0), (0, c - a.shape[1]))).astype(jnp.float32)

    w2 = jnp.pad(params["w2_hwio"],
                 ((0, 0), (0, 0), (0, cint_p - cint), (0, cint_p - cint)))
    return {
        "w1": pad2(params["w1"], cin_p, cint_p).astype(mxu_dtype),
        "w2": w2.reshape(9 * cint_p, cint_p).astype(mxu_dtype),  # tap-major rows
        "w3": pad2(params["w3"], cint_p, cout_p).astype(mxu_dtype),
        "g1": padv(params["g1"], cint_p), "b1": padv(params["b1"], cint_p),
        "g2": padv(params["g2"], cint_p), "b2": padv(params["b2"], cint_p),
        "g3": padv(params["g3"], cout_p), "b3": padv(params["b3"], cout_p),
        "cin": cin, "cout": cout,
        "cin_p": cin_p, "cint_p": cint_p, "cout_p": cout_p,
        "mxu_dtype": mxu_dtype,
    }


def _vmem_limit_bytes():
    """Generation-aware VMEM limit: ~85% of physical (108 MiB on v5e/v6e, ~54 MiB
    on v7x), with a conservative 54 MiB fallback if the query is unavailable."""
    try:
        cap = int(pltpu.get_tpu_info().vmem_capacity_bytes)
    except Exception:
        cap = 64 << 20
    return int(min(0.85 * cap, cap - (8 << 20)))


def _estimate_step_vmem_bytes(hw, pad, cin_p, cint_p, cout_p, act_bytes):
    """Rough per-grid-step VMEM footprint (pipeline blocks + scratch + live temps)."""
    io_blocks = 2 * hw * (cin_p + cout_p) * act_bytes            # double-buffered x/out
    weights = 2 * (cin_p * cint_p + 9 * cint_p * cint_p + cint_p * cout_p) * act_bytes
    scratch = ((hw + 2 * pad) + hw) * cint_p * 4                 # h1pad + conv2 acc (f32)
    live = hw * (cint_p * 4                                      # h1 / h2 f32 value
                 + 3 * cint_p * act_bytes                        # per-dh im2col group
                 + cout_p * 4                                    # h3 / out f32
                 + cin_p * 4)                                    # residual upcast
    return int(1.25 * (io_blocks + weights + scratch + live))


def _pallas_forward(x_nhwc, pp, *, single_buffer_weights):
    n, hh, ww, cin_p = x_nhwc.shape
    cint_p, cout_p = pp["cint_p"], pp["cout_p"]
    assert cin_p == pp["cin_p"] == cout_p, "identity shortcut requires cin == cout"
    mxu_dtype = pp["mxu_dtype"]
    hw = hh * ww
    pad = _round_up(ww + 1, 16)                    # 16-aligned (bf16 sublane packing)
    act_bytes = jnp.dtype(mxu_dtype).itemsize

    vmem_limit = _vmem_limit_bytes()
    est = _estimate_step_vmem_bytes(hw, pad, cin_p, cint_p, cout_p, act_bytes)
    assert est <= vmem_limit, (
        f"per-sample VMEM footprint ~{est >> 20} MiB exceeds limit "
        f"{vmem_limit >> 20} MiB; spatial row-tiling (two-pass InstanceNorm stats) "
        "is required for this H*W")

    kern = functools.partial(res_bottleneck_kernel, h=hh, w=ww, pad=pad,
                             mxu_dtype=mxu_dtype)

    wkw = {"pipeline_mode": pl.Buffered(1)} if single_buffer_weights else {}

    def const(shape):
        return pl.BlockSpec(shape, lambda nidx: (0,) * len(shape), **wkw)

    return pl.pallas_call(
        kern,
        out_shape=jax.ShapeDtypeStruct((n, hh, ww, cout_p), mxu_dtype),
        grid=(n,),
        in_specs=[
            pl.BlockSpec((1, hh, ww, cin_p), lambda nidx: (nidx, 0, 0, 0)),
            const((cin_p, cint_p)), const((1, cint_p)), const((1, cint_p)),
            const((9 * cint_p, cint_p)), const((1, cint_p)), const((1, cint_p)),
            const((cint_p, cout_p)), const((1, cout_p)), const((1, cout_p)),
        ],
        out_specs=pl.BlockSpec((1, hh, ww, cout_p), lambda nidx: (nidx, 0, 0, 0)),
        scratch_shapes=[
            pltpu.VMEM((hw + 2 * pad, cint_p), jnp.float32),   # zero-padded conv2 input
            pltpu.VMEM((hw, cint_p), jnp.float32),             # conv2 f32 accumulator
        ],
        compiler_params=pltpu.CompilerParams(
            dimension_semantics=("parallel",),                 # megacore-shardable over N
            vmem_limit_bytes=vmem_limit,
        ),
    )(x_nhwc, pp["w1"], pp["g1"], pp["b1"],
      pp["w2"], pp["g2"], pp["b2"],
      pp["w3"], pp["g3"], pp["b3"])


def res_bottleneck_nhwc(x_nhwc, pp):
    """NHWC entry point (preferred).  x channels must already be padded to a
    128-multiple and cast to pp['mxu_dtype'] (bf16 in production -> halves HBM I/O)."""
    try:
        out = _pallas_forward(x_nhwc, pp, single_buffer_weights=True)
        jax.block_until_ready(out)
        return out
    except Exception:
        # pipeline_mode=pl.Buffered(1) on constant operands is a pure VMEM saving;
        # fall back to default double-buffering if this JAX/Mosaic build rejects it.
        return _pallas_forward(x_nhwc, pp, single_buffer_weights=False)


def res_bottleneck(x_nchw, params, mxu_dtype=jnp.bfloat16):
    """PyTorch-convention NCHW wrapper.  Production code should keep NHWC activations
    (already channel-padded, in the activation dtype) and call res_bottleneck_nhwc
    directly: the transposes/pad here are an extra HBM round trip, and the [:cout]
    slice implies up to cout_p/cout extra output writeback for small channel counts."""
    n, cin, hh, ww = x_nchw.shape
    pp = prepare_params(params, mxu_dtype)
    assert pp["cout"] == cin, "stride=1 / expansion=1 config requires identity shortcut"
    x = jnp.transpose(x_nchw, (0, 2, 3, 1)).astype(mxu_dtype)
    x = jnp.pad(x, ((0, 0), (0, 0), (0, 0), (0, pp["cin_p"] - cin)))
    out = res_bottleneck_nhwc(x, pp)[..., :pp["cout"]]
    return jnp.transpose(out, (0, 3, 1, 2))


# ----------------------------- plain-JAX reference ------------------------------
def reference(x_nchw, p, mxu_dtype=jnp.float32):
    # Mirrors the kernel's boundary casts: activations enter in mxu_dtype, matmul
    # operands are cast to mxu_dtype, all accumulation / norm math stays f32.
    x = jnp.transpose(x_nchw, (0, 2, 3, 1)).astype(mxu_dtype).astype(jnp.float32)

    def inorm(h, g, b):
        mean = jnp.mean(h, axis=(1, 2), keepdims=True)
        var = jnp.mean((h - mean) ** 2, axis=(1, 2), keepdims=True)
        return (h - mean) * jax.lax.rsqrt(var + EPS) * g.reshape(1, 1, 1, -1) \
            + b.reshape(1, 1, 1, -1)

    c = lambda a: a.astype(mxu_dtype)
    h = jnp.einsum("nhwc,cd->nhwd", c(x), c(p["w1"]),
                   preferred_element_type=jnp.float32)
    h = jax.nn.relu(inorm(h, p["g1"], p["b1"]))
    h = jax.lax.conv_general_dilated(c(h), c(p["w2_hwio"]), (1, 1), "SAME",
                                     dimension_numbers=("NHWC", "HWIO", "NHWC"),
                                     preferred_element_type=jnp.float32)
    h = jax.nn.relu(inorm(h, p["g2"], p["b2"]))
    h = jnp.einsum("nhwc,cd->nhwd", c(h), c(p["w3"]),
                   preferred_element_type=jnp.float32)
    h = inorm(h, p["g3"], p["b3"])
    out = jax.nn.relu(h + x)
    return jnp.transpose(out, (0, 3, 1, 2))


def init_params(key, cin, cint, cout):
    ks = jax.random.split(key, 8)
    p = {
        "w1": 0.3 * jax.random.normal(ks[0], (cin, cint), jnp.float32),
        "w2_hwio": 0.2 * jax.random.normal(ks[1], (3, 3, cint, cint), jnp.float32),
        "w3": 0.3 * jax.random.normal(ks[2], (cint, cout), jnp.float32),
        "g1": 1.0 + 0.1 * jax.random.normal(ks[3], (1, cint), jnp.float32),
        "b1": 0.1 * jax.random.normal(ks[4], (1, cint), jnp.float32),
        "b2": 0.1 * jax.random.normal(ks[5], (1, cint), jnp.float32),
        "g3": 1.0 + 0.1 * jax.random.normal(ks[6], (1, cout), jnp.float32),
        "b3": 0.1 * jax.random.normal(ks[7], (1, cout), jnp.float32),
    }
    # init_weights(): zero-init of conv2's norm weight (https://arxiv.org/abs/1706.02677)
    p["g2"] = jnp.zeros((1, cint), jnp.float32)
    return p


if __name__ == "__main__":
    key = jax.random.PRNGKey(0)
    N, Cin, H, W = 2, 8, 16, 16
    Cint, expansion = 8, 1
    Cout = Cint * expansion

    kx, kp, kchk = jax.random.split(key, 3)
    x = jax.random.normal(kx, (N, Cin, H, W), jnp.float32)
    params = init_params(kp, Cin, Cint, Cout)

    # 1) Module-faithful forward (conv2 norm weight zero-init), exact-math f32 MXU path.
    out1 = res_bottleneck(x, params, mxu_dtype=jnp.float32)
    jax.block_until_ready(out1)
    ref1 = reference(x, params, jnp.float32)
    ok1 = out1.shape == (N, Cout, H, W) and bool(
        jnp.allclose(out1, ref1, atol=1e-3, rtol=1e-3))

    # 2) Exercise conv2 numerically with a non-zero norm weight (f32 MXU path).
    params_chk = dict(params)
    params_chk["g2"] = 1.0 + 0.1 * jax.random.normal(kchk, (1, Cint), jnp.float32)
    out2 = res_bottleneck(x, params_chk, mxu_dtype=jnp.float32)
    ref2 = reference(x, params_chk, jnp.float32)
    ok2 = bool(jnp.allclose(out2, ref2, atol=1e-3, rtol=1e-3))

    # 3) Production bf16 path (bf16 HBM activations, bf16 MXU operands, f32
    #    accumulation / norm math), compared against a reference with the same casts.
    out3 = res_bottleneck(x, params_chk, mxu_dtype=jnp.bfloat16)
    jax.block_until_ready(out3)
    ref3 = reference(x, params_chk, jnp.bfloat16)
    ok3 = bool(jnp.allclose(out3.astype(jnp.float32), ref3, atol=2e-2, rtol=2e-2))

    if ok1 and ok2 and ok3:
        print("KERNEL_OK")
    else:
        raise SystemExit(
            "mismatch: "
            f"err1={float(jnp.max(jnp.abs(out1 - ref1)))}, "
            f"err2={float(jnp.max(jnp.abs(out2 - ref2)))}, "
            f"err3={float(jnp.max(jnp.abs(out3.astype(jnp.float32) - ref3)))}"
        )
</pallas_src>

<mosaic_0001>
module attributes {stable_mosaic.version = 11 : i64} {
  func.func @res_bottleneck_kernel(%arg0: i32, %arg1: memref<1x16x16x128xf32, #tpu.memory_space<vmem>>, %arg2: memref<128x128xf32, #tpu.memory_space<vmem>>, %arg3: memref<1x128xf32, #tpu.memory_space<vmem>>, %arg4: memref<1x128xf32, #tpu.memory_space<vmem>>, %arg5: memref<1152x128xf32, #tpu.memory_space<vmem>>, %arg6: memref<1x128xf32, #tpu.memory_space<vmem>>, %arg7: memref<1x128xf32, #tpu.memory_space<vmem>>, %arg8: memref<128x128xf32, #tpu.memory_space<vmem>>, %arg9: memref<1x128xf32, #tpu.memory_space<vmem>>, %arg10: memref<1x128xf32, #tpu.memory_space<vmem>>, %arg11: memref<1x16x16x128xf32, #tpu.memory_space<vmem>>, %arg12: memref<320x128xf32, #tpu.memory_space<vmem>>, %arg13: memref<256x128xf32, #tpu.memory_space<vmem>>) attributes {dimension_semantics = [#tpu.dimension_semantics<parallel>], iteration_bounds = array<i64: 2>, scalar_prefetch = 0 : i64, scratch_operands = 2 : i64, tpu.core_type = #tpu.core_type<tc>, window_params = [{transform_indices = @transform_0, window_bounds = array<i64: 1, 16, 16, 128>}, {pipeline_mode = #tpu.pipeline_mode<synchronous>, transform_indices = @transform_1, window_bounds = array<i64: 128, 128>}, {pipeline_mode = #tpu.pipeline_mode<synchronous>, transform_indices = @transform_2, window_bounds = array<i64: 1, 128>}, {pipeline_mode = #tpu.pipeline_mode<synchronous>, transform_indices = @transform_3, window_bounds = array<i64: 1, 128>}, {pipeline_mode = #tpu.pipeline_mode<synchronous>, transform_indices = @transform_4, window_bounds = array<i64: 1152, 128>}, {pipeline_mode = #tpu.pipeline_mode<synchronous>, transform_indices = @transform_5, window_bounds = array<i64: 1, 128>}, {pipeline_mode = #tpu.pipeline_mode<synchronous>, transform_indices = @transform_6, window_bounds = array<i64: 1, 128>}, {pipeline_mode = #tpu.pipeline_mode<synchronous>, transform_indices = @transform_7, window_bounds = array<i64: 128, 128>}, {pipeline_mode = #tpu.pipeline_mode<synchronous>, transform_indices = @transform_8, window_bounds = array<i64: 1, 128>}, {pipeline_mode = #tpu.pipeline_mode<synchronous>, transform_indices = @transform_9, window_bounds = array<i64: 1, 128>}, {transform_indices = @transform_10, window_bounds = array<i64: 1, 16, 16, 128>}]} {
    %c0 = arith.constant 0 : index
    %c0_0 = arith.constant 0 : index
    %c0_1 = arith.constant 0 : index
    %c0_2 = arith.constant 0 : index
    %0 = vector.load %arg1[%c0, %c0_0, %c0_1, %c0_2] : memref<1x16x16x128xf32, #tpu.memory_space<vmem>>, vector<1x16x16x128xf32>
    %1 = vector.shape_cast %0 : vector<1x16x16x128xf32> to vector<256x128xf32>
    %c0_3 = arith.constant 0 : index
    %c0_4 = arith.constant 0 : index
    %2 = vector.load %arg2[%c0_3, %c0_4] : memref<128x128xf32, #tpu.memory_space<vmem>>, vector<128x128xf32>
    %cst = arith.constant dense<0.000000e+00> : vector<256x128xf32>
    %3 = tpu.matmul %1, %2, %cst {dimension_numbers = #tpu.dot_dimension_numbers<[1], [0], [0], [1], [0, 0, 1, 1], [], []>} : vector<256x128xf32>, vector<128x128xf32>, vector<256x128xf32> -> vector<256x128xf32>
    %c0_5 = arith.constant 0 : index
    %c0_6 = arith.constant 0 : index
    %4 = vector.load %arg3[%c0_5, %c0_6] : memref<1x128xf32, #tpu.memory_space<vmem>>, vector<1x128xf32>
    %c0_7 = arith.constant 0 : index
    %c0_8 = arith.constant 0 : index
    %5 = vector.load %arg4[%c0_7, %c0_8] : memref<1x128xf32, #tpu.memory_space<vmem>>, vector<1x128xf32>
    %cst_9 = arith.constant dense<0.000000e+00> : vector<128xf32>
    %6 = vector.multi_reduction <add>, %3, %cst_9 [0] : vector<256x128xf32> to vector<128xf32>
    %7 = vector.shape_cast %6 : vector<128xf32> to vector<1x128xf32>
    %8 = arith.mulf %3, %3 : vector<256x128xf32>
    %cst_10 = arith.constant dense<0.000000e+00> : vector<128xf32>
    %9 = vector.multi_reduction <add>, %8, %cst_10 [0] : vector<256x128xf32> to vector<128xf32>
    %10 = vector.shape_cast %9 : vector<128xf32> to vector<1x128xf32>
    %cst_11 = arith.constant 3.906250e-03 : f32
    %11 = vector.broadcast %cst_11 : f32 to vector<1x128xf32>
    %12 = arith.mulf %7, %11 : vector<1x128xf32>
    %cst_12 = arith.constant 3.906250e-03 : f32
    %13 = vector.broadcast %cst_12 : f32 to vector<1x128xf32>
    %14 = arith.mulf %10, %13 : vector<1x128xf32>
    %15 = arith.mulf %12, %12 : vector<1x128xf32>
    %16 = arith.subf %14, %15 : vector<1x128xf32>
    %cst_13 = arith.constant 0.000000e+00 : f32
    %17 = vector.broadcast %cst_13 : f32 to vector<1x128xf32>
    %18 = arith.maximumf %16, %17 : vector<1x128xf32>
    %cst_14 = arith.constant 9.99999974E-6 : f32
    %19 = vector.broadcast %cst_14 : f32 to vector<1x128xf32>
    %20 = arith.addf %18, %19 : vector<1x128xf32>
    %21 = math.rsqrt %20 : vector<1x128xf32>
    %22 = arith.mulf %4, %21 : vector<1x128xf32>
    %23 = arith.mulf %12, %22 : vector<1x128xf32>
    %24 = arith.subf %5, %23 : vector<1x128xf32>
    %25 = vector.broadcast %22 : vector<1x128xf32> to vector<256x128xf32>
    %26 = arith.mulf %3, %25 : vector<256x128xf32>
    %27 = vector.broadcast %24 : vector<1x128xf32> to vector<256x128xf32>
    %28 = arith.addf %26, %27 : vector<256x128xf32>
    %cst_15 = arith.constant 0.000000e+00 : f32
    %29 = vector.broadcast %cst_15 : f32 to vector<256x128xf32>
    %30 = arith.maximumf %28, %29 : vector<256x128xf32>
    %cst_16 = arith.constant 0.000000e+00 : f32
    %31 = vector.broadcast %cst_16 : f32 to vector<32x128xf32>
    %c0_17 = arith.constant 0 : index
    %c0_18 = arith.constant 0 : index
    %32 = vector.load %arg12[%c0_17, %c0_18] : memref<320x128xf32, #tpu.memory_space<vmem>>, vector<32x128xf32>
    tpu.vector_store %arg12[%c0_17, %c0_18], %31 {strides = array<i32>} : memref<320x128xf32, #tpu.memory_space<vmem>>, vector<32x128xf32>,
    %c32 = arith.constant 32 : index
    %c0_19 = arith.constant 0 : index
    %33 = vector.load %arg12[%c32, %c0_19] : memref<320x128xf32, #tpu.memory_space<vmem>>, vector<256x128xf32>
    tpu.vector_store %arg12[%c32, %c0_19], %30 {strides = array<i32>} : memref<320x128xf32, #tpu.memory_space<vmem>>, vector<256x128xf32>,
    %c288 = arith.constant 288 : index
    %c0_20 = arith.constant 0 : index
    %34 = vector.load %arg12[%c288, %c0_20] : memref<320x128xf32, #tpu.memory_space<vmem>>, vector<32x128xf32>
    tpu.vector_store %arg12[%c288, %c0_20], %31 {strides = array<i32>} : memref<320x128xf32, #tpu.memory_space<vmem>>, vector<32x128xf32>,
    %35 = tpu.iota {dimensions = array<i32: 0>} : vector<256x1xi32>
    %c16_i32 = arith.constant 16 : i32
    %c0_i32 = arith.constant 0 : i32
    %36 = arith.cmpi eq, %c16_i32, %c0_i32 : i32
    %c1_i32 = arith.constant 1 : i32
    %37 = arith.select %36, %c1_i32, %c16_i32 : i32
    %38 = vector.broadcast %37 : i32 to vector<256x1xi32>
    %39 = arith.remsi %35, %38 : vector<256x1xi32>
    %c0_i32_21 = arith.constant 0 : i32
    %40 = vector.broadcast %c0_i32_21 : i32 to vector<256x1xi32>
    %41 = arith.cmpi ne, %39, %40 : vector<256x1xi32>
    %c0_i32_22 = arith.constant 0 : i32
    %42 = vector.broadcast %c0_i32_22 : i32 to vector<256x1xi32>
    %43 = arith.cmpi slt, %39, %42 : vector<256x1xi32>
    %c0_i32_23 = arith.constant 0 : i32
    %44 = arith.cmpi slt, %37, %c0_i32_23 : i32
    %45 = vector.broadcast %44 : i1 to vector<256x1xi1>
    %46 = vector.broadcast %45 : vector<256x1xi1> to vector<256x1xi1>
    %47 = arith.xori %43, %46 : vector<256x1xi1>
    %48 = arith.andi %47, %41 : vector<256x1xi1>
    %49 = vector.broadcast %37 : i32 to vector<256x1xi32>
    %50 = arith.addi %39, %49 : vector<256x1xi32>
    %51 = arith.select %48, %50, %39 : vector<256x1xi1>, vector<256x1xi32>
    %c1_i32_24 = arith.constant 1 : i32
    %52 = vector.broadcast %c1_i32_24 : i32 to vector<256x1xi32>
    %53 = arith.cmpi sge, %51, %52 : vector<256x1xi32>
    %54 = arith.extui %53 : vector<256x1xi1> to vector<256x1xi32>
    %55 = arith.sitofp %54 : vector<256x1xi32> to vector<256x1xf32>
    %c14_i32 = arith.constant 14 : i32
    %56 = vector.broadcast %c14_i32 : i32 to vector<256x1xi32>
    %57 = arith.cmpi sle, %51, %56 : vector<256x1xi32>
    %58 = arith.extui %57 : vector<256x1xi1> to vector<256x1xi32>
    %59 = arith.sitofp %58 : vector<256x1xi32> to vector<256x1xf32>
    %cst_25 = arith.constant 0.000000e+00 : f32
    %60 = vector.broadcast %cst_25 : f32 to vector<256x128xf32>
    %c0_26 = arith.constant 0 : index
    %c0_27 = arith.constant 0 : index
    %61 = vector.load %arg13[%c0_26, %c0_27] : memref<256x128xf32, #tpu.memory_space<vmem>>, vector<256x128xf32>
    tpu.vector_store %arg13[%c0_26, %c0_27], %60 {strides = array<i32>} : memref<256x128xf32, #tpu.memory_space<vmem>>, vector<256x128xf32>,
    %c0_i32_28 = arith.constant 0 : i32
    %c3_i32 = arith.constant 3 : i32
    %62 = arith.addi %c0_i32_28, %c3_i32 : i32
    %c1_i32_29 = arith.constant 1 : i32
    scf.for %arg14 = %c0_i32_28 to %62 step %c1_i32_29  : i32 {
      %c1_i32_62 = arith.constant 1 : i32
      %123 = arith.muli %arg14, %c1_i32_62 : i32
      %c0_i32_63 = arith.constant 0 : i32
      %124 = arith.addi %c0_i32_63, %123 : i32
      %c1_i32_64 = arith.constant 1 : i32
      %125 = arith.subi %124, %c1_i32_64 : i32
      %c16_i32_65 = arith.constant 16 : i32
      %126 = arith.muli %125, %c16_i32_65 : i32
      %c32_i32 = arith.constant 32 : i32
      %127 = arith.addi %c32_i32, %126 : i32
      %c1_i32_66 = arith.constant 1 : i32
      %128 = arith.subi %127, %c1_i32_66 : i32
      %129 = arith.index_cast %128 : i32 to index
      %c0_67 = arith.constant 0 : index
      %130 = vector.load %arg12[%129, %c0_67] : memref<320x128xf32, #tpu.memory_space<vmem>>, vector<256x128xf32>
      %131 = vector.broadcast %55 : vector<256x1xf32> to vector<256x128xf32>
      %132 = arith.mulf %130, %131 : vector<256x128xf32>
      %133 = arith.index_cast %127 : i32 to index
      %c0_68 = arith.constant 0 : index
      %134 = vector.load %arg12[%133, %c0_68] : memref<320x128xf32, #tpu.memory_space<vmem>>, vector<256x128xf32>
      %c1_i32_69 = arith.constant 1 : i32
      %135 = arith.addi %127, %c1_i32_69 : i32
      %136 = arith.index_cast %135 : i32 to index
      %c0_70 = arith.constant 0 : index
      %137 = vector.load %arg12[%136, %c0_70] : memref<320x128xf32, #tpu.memory_space<vmem>>, vector<256x128xf32>
      %138 = vector.broadcast %59 : vector<256x1xf32> to vector<256x128xf32>
      %139 = arith.mulf %137, %138 : vector<256x128xf32>
      %140 = tpu.concatenate %132, %134, %139 in 1 : vector<256x128xf32>, vector<256x128xf32>, vector<256x128xf32> -> vector<256x384xf32>
      %c384_i32 = arith.constant 384 : i32
      %141 = arith.muli %124, %c384_i32 : i32
      %142 = tpu.assume_multiple %141, 128 : i32
      %c0_71 = arith.constant 0 : index
      %c0_72 = arith.constant 0 : index
      %143 = vector.load %arg13[%c0_71, %c0_72] : memref<256x128xf32, #tpu.memory_space<vmem>>, vector<256x128xf32>
      %144 = arith.index_cast %142 : i32 to index
      %c0_73 = arith.constant 0 : index
      %145 = vector.load %arg5[%144, %c0_73] : memref<1152x128xf32, #tpu.memory_space<vmem>>, vector<384x128xf32>
      %cst_74 = arith.constant dense<0.000000e+00> : vector<256x128xf32>
      %146 = tpu.matmul %140, %145, %cst_74 {dimension_numbers = #tpu.dot_dimension_numbers<[1], [0], [0], [1], [0, 0, 1, 1], [], []>} : vector<256x384xf32>, vector<384x128xf32>, vector<256x128xf32> -> vector<256x128xf32>
      %147 = arith.addf %143, %146 : vector<256x128xf32>
      %c0_75 = arith.constant 0 : index
      %c0_76 = arith.constant 0 : index
      %148 = vector.load %arg13[%c0_75, %c0_76] : memref<256x128xf32, #tpu.memory_space<vmem>>, vector<256x128xf32>
      tpu.vector_store %arg13[%c0_75, %c0_76], %147 {strides = array<i32>} : memref<256x128xf32, #tpu.memory_space<vmem>>, vector<256x128xf32>,
    }
    %c3_i32_30 = arith.constant 3 : i32
    %c0_31 = arith.constant 0 : index
    %c0_32 = arith.constant 0 : index
    %63 = vector.load %arg13[%c0_31, %c0_32] : memref<256x128xf32, #tpu.memory_space<vmem>>, vector<256x128xf32>
    %c0_33 = arith.constant 0 : index
    %c0_34 = arith.constant 0 : index
    %64 = vector.load %arg6[%c0_33, %c0_34] : memref<1x128xf32, #tpu.memory_space<vmem>>, vector<1x128xf32>
    %c0_35 = arith.constant 0 : index
    %c0_36 = arith.constant 0 : index
    %65 = vector.load %arg7[%c0_35, %c0_36] : memref<1x128xf32, #tpu.memory_space<vmem>>, vector<1x128xf32>
    %cst_37 = arith.constant dense<0.000000e+00> : vector<128xf32>
    %66 = vector.multi_reduction <add>, %63, %cst_37 [0] : vector<256x128xf32> to vector<128xf32>
    %67 = vector.shape_cast %66 : vector<128xf32> to vector<1x128xf32>
    %68 = arith.mulf %63, %63 : vector<256x128xf32>
    %cst_38 = arith.constant dense<0.000000e+00> : vector<128xf32>
    %69 = vector.multi_reduction <add>, %68, %cst_38 [0] : vector<256x128xf32> to vector<128xf32>
    %70 = vector.shape_cast %69 : vector<128xf32> to vector<1x128xf32>
    %cst_39 = arith.constant 3.906250e-03 : f32
    %71 = vector.broadcast %cst_39 : f32 to vector<1x128xf32>
    %72 = arith.mulf %67, %71 : vector<1x128xf32>
    %cst_40 = arith.constant 3.906250e-03 : f32
    %73 = vector.broadcast %cst_40 : f32 to vector<1x128xf32>
    %74 = arith.mulf %70, %73 : vector<1x128xf32>
    %75 = arith.mulf %72, %72 : vector<1x128xf32>
    %76 = arith.subf %74, %75 : vector<1x128xf32>
    %cst_41 = arith.constant 0.000000e+00 : f32
    %77 = vector.broadcast %cst_41 : f32 to vector<1x128xf32>
    %78 = arith.maximumf %76, %77 : vector<1x128xf32>
    %cst_42 = arith.constant 9.99999974E-6 : f32
    %79 = vector.broadcast %cst_42 : f32 to vector<1x128xf32>
    %80 = arith.addf %78, %79 : vector<1x128xf32>
    %81 = math.rsqrt %80 : vector<1x128xf32>
    %82 = arith.mulf %64, %81 : vector<1x128xf32>
    %83 = arith.mulf %72, %82 : vector<1x128xf32>
    %84 = arith.subf %65, %83 : vector<1x128xf32>
    %85 = vector.broadcast %82 : vector<1x128xf32> to vector<256x128xf32>
    %86 = arith.mulf %63, %85 : vector<256x128xf32>
    %87 = vector.broadcast %84 : vector<1x128xf32> to vector<256x128xf32>
    %88 = arith.addf %86, %87 : vector<256x128xf32>
    %cst_43 = arith.constant 0.000000e+00 : f32
    %89 = vector.broadcast %cst_43 : f32 to vector<256x128xf32>
    %90 = arith.maximumf %88, %89 : vector<256x128xf32>
    %c0_44 = arith.constant 0 : index
    %c0_45 = arith.constant 0 : index
    %91 = vector.load %arg8[%c0_44, %c0_45] : memref<128x128xf32, #tpu.memory_space<vmem>>, vector<128x128xf32>
    %cst_46 = arith.constant dense<0.000000e+00> : vector<256x128xf32>
    %92 = tpu.matmul %90, %91, %cst_46 {dimension_numbers = #tpu.dot_dimension_numbers<[1], [0], [0], [1], [0, 0, 1, 1], [], []>} : vector<256x128xf32>, vector<128x128xf32>, vector<256x128xf32> -> vector<256x128xf32>
    %c0_47 = arith.constant 0 : index
    %c0_48 = arith.constant 0 : index
    %93 = vector.load %arg9[%c0_47, %c0_48] : memref<1x128xf32, #tpu.memory_space<vmem>>, vector<1x128xf32>
    %c0_49 = arith.constant 0 : index
    %c0_50 = arith.constant 0 : index
    %94 = vector.load %arg10[%c0_49, %c0_50] : memref<1x128xf32, #tpu.memory_space<vmem>>, vector<1x128xf32>
    %cst_51 = arith.constant dense<0.000000e+00> : vector<128xf32>
    %95 = vector.multi_reduction <add>, %92, %cst_51 [0] : vector<256x128xf32> to vector<128xf32>
    %96 = vector.shape_cast %95 : vector<128xf32> to vector<1x128xf32>
    %97 = arith.mulf %92, %92 : vector<256x128xf32>
    %cst_52 = arith.constant dense<0.000000e+00> : vector<128xf32>
    %98 = vector.multi_reduction <add>, %97, %cst_52 [0] : vector<256x128xf32> to vector<128xf32>
    %99 = vector.shape_cast %98 : vector<128xf32> to vector<1x128xf32>
    %cst_53 = arith.constant 3.906250e-03 : f32
    %100 = vector.broadcast %cst_53 : f32 to vector<1x128xf32>
    %101 = arith.mulf %96, %100 : vector<1x128xf32>
    %cst_54 = arith.constant 3.906250e-03 : f32
    %102 = vector.broadcast %cst_54 : f32 to vector<1x128xf32>
    %103 = arith.mulf %99, %102 : vector<1x128xf32>
    %104 = arith.mulf %101, %101 : vector<1x128xf32>
    %105 = arith.subf %103, %104 : vector<1x128xf32>
    %cst_55 = arith.constant 0.000000e+00 : f32
    %106 = vector.broadcast %cst_55 : f32 to vector<1x128xf32>
    %107 = arith.maximumf %105, %106 : vector<1x128xf32>
    %cst_56 = arith.constant 9.99999974E-6 : f32
    %108 = vector.broadcast %cst_56 : f32 to vector<1x128xf32>
    %109 = arith.addf %107, %108 : vector<1x128xf32>
    %110 = math.rsqrt %109 : vector<1x128xf32>
    %111 = arith.mulf %93, %110 : vector<1x128xf32>
    %112 = arith.mulf %101, %111 : vector<1x128xf32>
    %113 = arith.subf %94, %112 : vector<1x128xf32>
    %114 = vector.broadcast %111 : vector<1x128xf32> to vector<256x128xf32>
    %115 = arith.mulf %92, %114 : vector<256x128xf32>
    %116 = vector.broadcast %113 : vector<1x128xf32> to vector<256x128xf32>
    %117 = arith.addf %115, %116 : vector<256x128xf32>
    %118 = arith.addf %117, %1 : vector<256x128xf32>
    %cst_57 = arith.constant 0.000000e+00 : f32
    %119 = vector.broadcast %cst_57 : f32 to vector<256x128xf32>
    %120 = arith.maximumf %118, %119 : vector<256x128xf32>
    %121 = vector.shape_cast %120 : vector<256x128xf32> to vector<1x16x16x128xf32>
    %c0_58 = arith.constant 0 : index
    %c0_59 = arith.constant 0 : index
    %c0_60 = arith.constant 0 : index
    %c0_61 = arith.constant 0 : index
    %122 = vector.load %arg11[%c0_58, %c0_59, %c0_60, %c0_61] : memref<1x16x16x128xf32, #tpu.memory_space<vmem>>, vector<1x16x16x128xf32>
    tpu.vector_store %arg11[%c0_58, %c0_59, %c0_60, %c0_61], %121 {strides = array<i32>} : memref<1x16x16x128xf32, #tpu.memory_space<vmem>>, vector<1x16x16x128xf32>,
    return
  }
  func.func @transform_0(%arg0: i32) -> (i32, i32, i32, i32) {
    %c0_i32 = arith.constant 0 : i32
    %c0_i32_0 = arith.constant 0 : i32
    %c0_i32_1 = arith.constant 0 : i32
    %c0_i32_2 = arith.constant 0 : i32
    return %arg0, %c0_i32, %c0_i32_0, %c0_i32_1 : i32, i32, i32, i32
  }
  func.func @transform_1(%arg0: i32) -> (i32, i32) {
    %c0_i32 = arith.constant 0 : i32
    %c0_i32_0 = arith.constant 0 : i32
    %c0_i32_1 = arith.constant 0 : i32
    return %c0_i32, %c0_i32_0 : i32, i32
  }
  func.func @transform_2(%arg0: i32) -> (i32, i32) {
    %c0_i32 = arith.constant 0 : i32
    %c0_i32_0 = arith.constant 0 : i32
    %c0_i32_1 = arith.constant 0 : i32
    return %c0_i32, %c0_i32_0 : i32, i32
  }
  func.func @transform_3(%arg0: i32) -> (i32, i32) {
    %c0_i32 = arith.constant 0 : i32
    %c0_i32_0 = arith.constant 0 : i32
    %c0_i32_1 = arith.constant 0 : i32
    return %c0_i32, %c0_i32_0 : i32, i32
  }
  func.func @transform_4(%arg0: i32) -> (i32, i32) {
    %c0_i32 = arith.constant 0 : i32
    %c0_i32_0 = arith.constant 0 : i32
    %c0_i32_1 = arith.constant 0 : i32
    return %c0_i32, %c0_i32_0 : i32, i32
  }
  func.func @transform_5(%arg0: i32) -> (i32, i32) {
    %c0_i32 = arith.constant 0 : i32
    %c0_i32_0 = arith.constant 0 : i32
    %c0_i32_1 = arith.constant 0 : i32
    return %c0_i32, %c0_i32_0 : i32, i32
  }
  func.func @transform_6(%arg0: i32) -> (i32, i32) {
    %c0_i32 = arith.constant 0 : i32
    %c0_i32_0 = arith.constant 0 : i32
    %c0_i32_1 = arith.constant 0 : i32
    return %c0_i32, %c0_i32_0 : i32, i32
  }
  func.func @transform_7(%arg0: i32) -> (i32, i32) {
    %c0_i32 = arith.constant 0 : i32
    %c0_i32_0 = arith.constant 0 : i32
    %c0_i32_1 = arith.constant 0 : i32
    return %c0_i32, %c0_i32_0 : i32, i32
  }
  func.func @transform_8(%arg0: i32) -> (i32, i32) {
    %c0_i32 = arith.constant 0 : i32
    %c0_i32_0 = arith.constant 0 : i32
    %c0_i32_1 = arith.constant 0 : i32
    return %c0_i32, %c0_i32_0 : i32, i32
  }
  func.func @transform_9(%arg0: i32) -> (i32, i32) {
    %c0_i32 = arith.constant 0 : i32
    %c0_i32_0 = arith.constant 0 : i32
    %c0_i32_1 = arith.constant 0 : i32
    return %c0_i32, %c0_i32_0 : i32, i32
  }
  func.func @transform_10(%arg0: i32) -> (i32, i32, i32, i32) {
    %c0_i32 = arith.constant 0 : i32
    %c0_i32_0 = arith.constant 0 : i32
    %c0_i32_1 = arith.constant 0 : i32
    %c0_i32_2 = arith.constant 0 : i32
    return %arg0, %c0_i32, %c0_i32_0, %c0_i32_1 : i32, i32, i32, i32
  }
}

module attributes {stable_mosaic.version = 11 : i64} {
  func.func @res_bottleneck_kernel(%arg0: i32, %arg1: memref<1x16x16x128xf32, #tpu.memory_space<vmem>>, %arg2: memref<128x128xf32, #tpu.memory_space<vmem>>, %arg3: memref<1x128xf32, #tpu.memory_space<vmem>>, %arg4: memref<1x128xf32, #tpu.memory_space<vmem>>, %arg5: memref<1152x128xf32, #tpu.memory_space<vmem>>, %arg6: memref<1x128xf32, #tpu.memory_space<vmem>>, %arg7: memref<1x128xf32, #tpu.memory_space<vmem>>, %arg8: memref<128x128xf32, #tpu.memory_space<vmem>>, %arg9: memref<1x128xf32, #tpu.memory_space<vmem>>, %arg10: memref<1x128xf32, #tpu.memory_space<vmem>>, %arg11: memref<1x16x16x128xf32, #tpu.memory_space<vmem>>, %arg12: memref<320x128xf32, #tpu.memory_space<vmem>>, %arg13: memref<256x128xf32, #tpu.memory_space<vmem>>) attributes {dimension_semantics = [#tpu.dimension_semantics<parallel>], iteration_bounds = array<i64: 2>, scalar_prefetch = 0 : i64, scratch_operands = 2 : i64, tpu.core_type = #tpu.core_type<tc>, window_params = [{transform_indices = @transform_0, window_bounds = array<i64: 1, 16, 16, 128>}, {pipeline_mode = #tpu.pipeline_mode<synchronous>, transform_indices = @transform_1, window_bounds = array<i64: 128, 128>}, {pipeline_mode = #tpu.pipeline_mode<synchronous>, transform_indices = @transform_2, window_bounds = array<i64: 1, 128>}, {pipeline_mode = #tpu.pipeline_mode<synchronous>, transform_indices = @transform_3, window_bounds = array<i64: 1, 128>}, {pipeline_mode = #tpu.pipeline_mode<synchronous>, transform_indices = @transform_4, window_bounds = array<i64: 1152, 128>}, {pipeline_mode = #tpu.pipeline_mode<synchronous>, transform_indices = @transform_5, window_bounds = array<i64: 1, 128>}, {pipeline_mode = #tpu.pipeline_mode<synchronous>, transform_indices = @transform_6, window_bounds = array<i64: 1, 128>}, {pipeline_mode = #tpu.pipeline_mode<synchronous>, transform_indices = @transform_7, window_bounds = array<i64: 128, 128>}, {pipeline_mode = #tpu.pipeline_mode<synchronous>, transform_indices = @transform_8, window_bounds = array<i64: 1, 128>}, {pipeline_mode = #tpu.pipeline_mode<synchronous>, transform_indices = @transform_9, window_bounds = array<i64: 1, 128>}, {transform_indices = @transform_10, window_bounds = array<i64: 1, 16, 16, 128>}]} {
    %c0 = arith.constant 0 : index
    %c0_0 = arith.constant 0 : index
    %c0_1 = arith.constant 0 : index
    %c0_2 = arith.constant 0 : index
    %0 = vector.load %arg1[%c0, %c0_0, %c0_1, %c0_2] : memref<1x16x16x128xf32, #tpu.memory_space<vmem>>, vector<1x16x16x128xf32>
    %1 = vector.shape_cast %0 : vector<1x16x16x128xf32> to vector<256x128xf32>
    %c0_3 = arith.constant 0 : index
    %c0_4 = arith.constant 0 : index
    %2 = vector.load %arg2[%c0_3, %c0_4] : memref<128x128xf32, #tpu.memory_space<vmem>>, vector<128x128xf32>
    %cst = arith.constant dense<0.000000e+00> : vector<256x128xf32>
    %3 = tpu.matmul %1, %2, %cst {dimension_numbers = #tpu.dot_dimension_numbers<[1], [0], [0], [1], [0, 0, 1, 1], [], []>} : vector<256x128xf32>, vector<128x128xf32>, vector<256x128xf32> -> vector<256x128xf32>
    %c0_5 = arith.constant 0 : index
    %c0_6 = arith.constant 0 : index
    %4 = vector.load %arg3[%c0_5, %c0_6] : memref<1x128xf32, #tpu.memory_space<vmem>>, vector<1x128xf32>
    %c0_7 = arith.constant 0 : index
    %c0_8 = arith.constant 0 : index
    %5 = vector.load %arg4[%c0_7, %c0_8] : memref<1x128xf32, #tpu.memory_space<vmem>>, vector<1x128xf32>
    %cst_9 = arith.constant dense<0.000000e+00> : vector<128xf32>
    %6 = vector.multi_reduction <add>, %3, %cst_9 [0] : vector<256x128xf32> to vector<128xf32>
    %7 = vector.shape_cast %6 : vector<128xf32> to vector<1x128xf32>
    %8 = arith.mulf %3, %3 : vector<256x128xf32>
    %cst_10 = arith.constant dense<0.000000e+00> : vector<128xf32>
    %9 = vector.multi_reduction <add>, %8, %cst_10 [0] : vector<256x128xf32> to vector<128xf32>
    %10 = vector.shape_cast %9 : vector<128xf32> to vector<1x128xf32>
    %cst_11 = arith.constant 3.906250e-03 : f32
    %11 = vector.broadcast %cst_11 : f32 to vector<1x128xf32>
    %12 = arith.mulf %7, %11 : vector<1x128xf32>
    %cst_12 = arith.constant 3.906250e-03 : f32
    %13 = vector.broadcast %cst_12 : f32 to vector<1x128xf32>
    %14 = arith.mulf %10, %13 : vector<1x128xf32>
    %15 = arith.mulf %12, %12 : vector<1x128xf32>
    %16 = arith.subf %14, %15 : vector<1x128xf32>
    %cst_13 = arith.constant 0.000000e+00 : f32
    %17 = vector.broadcast %cst_13 : f32 to vector<1x128xf32>
    %18 = arith.maximumf %16, %17 : vector<1x128xf32>
    %cst_14 = arith.constant 9.99999974E-6 : f32
    %19 = vector.broadcast %cst_14 : f32 to vector<1x128xf32>
    %20 = arith.addf %18, %19 : vector<1x128xf32>
    %21 = math.rsqrt %20 : vector<1x128xf32>
    %22 = arith.mulf %4, %21 : vector<1x128xf32>
    %23 = arith.mulf %12, %22 : vector<1x128xf32>
    %24 = arith.subf %5, %23 : vector<1x128xf32>
    %25 = vector.broadcast %22 : vector<1x128xf32> to vector<256x128xf32>
    %26 = arith.mulf %3, %25 : vector<256x128xf32>
    %27 = vector.broadcast %24 : vector<1x128xf32> to vector<256x128xf32>
    %28 = arith.addf %26, %27 : vector<256x128xf32>
    %cst_15 = arith.constant 0.000000e+00 : f32
    %29 = vector.broadcast %cst_15 : f32 to vector<256x128xf32>
    %30 = arith.maximumf %28, %29 : vector<256x128xf32>
    %cst_16 = arith.constant 0.000000e+00 : f32
    %31 = vector.broadcast %cst_16 : f32 to vector<32x128xf32>
    %c0_17 = arith.constant 0 : index
    %c0_18 = arith.constant 0 : index
    %32 = vector.load %arg12[%c0_17, %c0_18] : memref<320x128xf32, #tpu.memory_space<vmem>>, vector<32x128xf32>
    tpu.vector_store %arg12[%c0_17, %c0_18], %31 {strides = array<i32>} : memref<320x128xf32, #tpu.memory_space<vmem>>, vector<32x128xf32>,
    %c32 = arith.constant 32 : index
    %c0_19 = arith.constant 0 : index
    %33 = vector.load %arg12[%c32, %c0_19] : memref<320x128xf32, #tpu.memory_space<vmem>>, vector<256x128xf32>
    tpu.vector_store %arg12[%c32, %c0_19], %30 {strides = array<i32>} : memref<320x128xf32, #tpu.memory_space<vmem>>, vector<256x128xf32>,
    %c288 = arith.constant 288 : index
    %c0_20 = arith.constant 0 : index
    %34 = vector.load %arg12[%c288, %c0_20] : memref<320x128xf32, #tpu.memory_space<vmem>>, vector<32x128xf32>
    tpu.vector_store %arg12[%c288, %c0_20], %31 {strides = array<i32>} : memref<320x128xf32, #tpu.memory_space<vmem>>, vector<32x128xf32>,
    %35 = tpu.iota {dimensions = array<i32: 0>} : vector<256x1xi32>
    %c16_i32 = arith.constant 16 : i32
    %c0_i32 = arith.constant 0 : i32
    %36 = arith.cmpi eq, %c16_i32, %c0_i32 : i32
    %c1_i32 = arith.constant 1 : i32
    %37 = arith.select %36, %c1_i32, %c16_i32 : i32
    %38 = vector.broadcast %37 : i32 to vector<256x1xi32>
    %39 = arith.remsi %35, %38 : vector<256x1xi32>
    %c0_i32_21 = arith.constant 0 : i32
    %40 = vector.broadcast %c0_i32_21 : i32 to vector<256x1xi32>
    %41 = arith.cmpi ne, %39, %40 : vector<256x1xi32>
    %c0_i32_22 = arith.constant 0 : i32
    %42 = vector.broadcast %c0_i32_22 : i32 to vector<256x1xi32>
    %43 = arith.cmpi slt, %39, %42 : vector<256x1xi32>
    %c0_i32_23 = arith.constant 0 : i32
    %44 = arith.cmpi slt, %37, %c0_i32_23 : i32
    %45 = vector.broadcast %44 : i1 to vector<256x1xi1>
    %46 = vector.broadcast %45 : vector<256x1xi1> to vector<256x1xi1>
    %47 = arith.xori %43, %46 : vector<256x1xi1>
    %48 = arith.andi %47, %41 : vector<256x1xi1>
    %49 = vector.broadcast %37 : i32 to vector<256x1xi32>
    %50 = arith.addi %39, %49 : vector<256x1xi32>
    %51 = arith.select %48, %50, %39 : vector<256x1xi1>, vector<256x1xi32>
    %c1_i32_24 = arith.constant 1 : i32
    %52 = vector.broadcast %c1_i32_24 : i32 to vector<256x1xi32>
    %53 = arith.cmpi sge, %51, %52 : vector<256x1xi32>
    %54 = arith.extui %53 : vector<256x1xi1> to vector<256x1xi32>
    %55 = arith.sitofp %54 : vector<256x1xi32> to vector<256x1xf32>
    %c14_i32 = arith.constant 14 : i32
    %56 = vector.broadcast %c14_i32 : i32 to vector<256x1xi32>
    %57 = arith.cmpi sle, %51, %56 : vector<256x1xi32>
    %58 = arith.extui %57 : vector<256x1xi1> to vector<256x1xi32>
    %59 = arith.sitofp %58 : vector<256x1xi32> to vector<256x1xf32>
    %cst_25 = arith.constant 0.000000e+00 : f32
    %60 = vector.broadcast %cst_25 : f32 to vector<256x128xf32>
    %c0_26 = arith.constant 0 : index
    %c0_27 = arith.constant 0 : index
    %61 = vector.load %arg13[%c0_26, %c0_27] : memref<256x128xf32, #tpu.memory_space<vmem>>, vector<256x128xf32>
    tpu.vector_store %arg13[%c0_26, %c0_27], %60 {strides = array<i32>} : memref<256x128xf32, #tpu.memory_space<vmem>>, vector<256x128xf32>,
    %c0_i32_28 = arith.constant 0 : i32
    %c3_i32 = arith.constant 3 : i32
    %62 = arith.addi %c0_i32_28, %c3_i32 : i32
    %c1_i32_29 = arith.constant 1 : i32
    scf.for %arg14 = %c0_i32_28 to %62 step %c1_i32_29  : i32 {
      %c1_i32_62 = arith.constant 1 : i32
      %123 = arith.muli %arg14, %c1_i32_62 : i32
      %c0_i32_63 = arith.constant 0 : i32
      %124 = arith.addi %c0_i32_63, %123 : i32
      %c1_i32_64 = arith.constant 1 : i32
      %125 = arith.subi %124, %c1_i32_64 : i32
      %c16_i32_65 = arith.constant 16 : i32
      %126 = arith.muli %125, %c16_i32_65 : i32
      %c32_i32 = arith.constant 32 : i32
      %127 = arith.addi %c32_i32, %126 : i32
      %c1_i32_66 = arith.constant 1 : i32
      %128 = arith.subi %127, %c1_i32_66 : i32
      %129 = arith.index_cast %128 : i32 to index
      %c0_67 = arith.constant 0 : index
      %130 = vector.load %arg12[%129, %c0_67] : memref<320x128xf32, #tpu.memory_space<vmem>>, vector<256x128xf32>
      %131 = vector.broadcast %55 : vector<256x1xf32> to vector<256x128xf32>
      %132 = arith.mulf %130, %131 : vector<256x128xf32>
      %133 = arith.index_cast %127 : i32 to index
      %c0_68 = arith.constant 0 : index
      %134 = vector.load %arg12[%133, %c0_68] : memref<320x128xf32, #tpu.memory_space<vmem>>, vector<256x128xf32>
      %c1_i32_69 = arith.constant 1 : i32
      %135 = arith.addi %127, %c1_i32_69 : i32
      %136 = arith.index_cast %135 : i32 to index
      %c0_70 = arith.constant 0 : index
      %137 = vector.load %arg12[%136, %c0_70] : memref<320x128xf32, #tpu.memory_space<vmem>>, vector<256x128xf32>
      %138 = vector.broadcast %59 : vector<256x1xf32> to vector<256x128xf32>
      %139 = arith.mulf %137, %138 : vector<256x128xf32>
      %140 = tpu.concatenate %132, %134, %139 in 1 : vector<256x128xf32>, vector<256x128xf32>, vector<256x128xf32> -> vector<256x384xf32>
      %c384_i32 = arith.constant 384 : i32
      %141 = arith.muli %124, %c384_i32 : i32
      %142 = tpu.assume_multiple %141, 128 : i32
      %c0_71 = arith.constant 0 : index
      %c0_72 = arith.constant 0 : index
      %143 = vector.load %arg13[%c0_71, %c0_72] : memref<256x128xf32, #tpu.memory_space<vmem>>, vector<256x128xf32>
      %144 = arith.index_cast %142 : i32 to index
      %c0_73 = arith.constant 0 : index
      %145 = vector.load %arg5[%144, %c0_73] : memref<1152x128xf32, #tpu.memory_space<vmem>>, vector<384x128xf32>
      %cst_74 = arith.constant dense<0.000000e+00> : vector<256x128xf32>
      %146 = tpu.matmul %140, %145, %cst_74 {dimension_numbers = #tpu.dot_dimension_numbers<[1], [0], [0], [1], [0, 0, 1, 1], [], []>} : vector<256x384xf32>, vector<384x128xf32>, vector<256x128xf32> -> vector<256x128xf32>
      %147 = arith.addf %143, %146 : vector<256x128xf32>
      %c0_75 = arith.constant 0 : index
      %c0_76 = arith.constant 0 : index
      %148 = vector.load %arg13[%c0_75, %c0_76] : memref<256x128xf32, #tpu.memory_space<vmem>>, vector<256x128xf32>
      tpu.vector_store %arg13[%c0_75, %c0_76], %147 {strides = array<i32>} : memref<256x128xf32, #tpu.memory_space<vmem>>, vector<256x128xf32>,
    }
    %c3_i32_30 = arith.constant 3 : i32
    %c0_31 = arith.constant 0 : index
    %c0_32 = arith.constant 0 : index
    %63 = vector.load %arg13[%c0_31, %c0_32] : memref<256x128xf32, #tpu.memory_space<vmem>>, vector<256x128xf32>
    %c0_33 = arith.constant 0 : index
    %c0_34 = arith.constant 0 : index
    %64 = vector.load %arg6[%c0_33, %c0_34] : memref<1x128xf32, #tpu.memory_space<vmem>>, vector<1x128xf32>
    %c0_35 = arith.constant 0 : index
    %c0_36 = arith.constant 0 : index
    %65 = vector.load %arg7[%c0_35, %c0_36] : memref<1x128xf32, #tpu.memory_space<vmem>>, vector<1x128xf32>
    %cst_37 = arith.constant dense<0.000000e+00> : vector<128xf32>
    %66 = vector.multi_reduction <add>, %63, %cst_37 [0] : vector<256x128xf32> to vector<128xf32>
    %67 = vector.shape_cast %66 : vector<128xf32> to vector<1x128xf32>
    %68 = arith.mulf %63, %63 : vector<256x128xf32>
    %cst_38 = arith.constant dense<0.000000e+00> : vector<128xf32>
    %69 = vector.multi_reduction <add>, %68, %cst_38 [0] : vector<256x128xf32> to vector<128xf32>
    %70 = vector.shape_cast %69 : vector<128xf32> to vector<1x128xf32>
    %cst_39 = arith.constant 3.906250e-03 : f32
    %71 = vector.broadcast %cst_39 : f32 to vector<1x128xf32>
    %72 = arith.mulf %67, %71 : vector<1x128xf32>
    %cst_40 = arith.constant 3.906250e-03 : f32
    %73 = vector.broadcast %cst_40 : f32 to vector<1x128xf32>
    %74 = arith.mulf %70, %73 : vector<1x128xf32>
    %75 = arith.mulf %72, %72 : vector<1x128xf32>
    %76 = arith.subf %74, %75 : vector<1x128xf32>
    %cst_41 = arith.constant 0.000000e+00 : f32
    %77 = vector.broadcast %cst_41 : f32 to vector<1x128xf32>
    %78 = arith.maximumf %76, %77 : vector<1x128xf32>
    %cst_42 = arith.constant 9.99999974E-6 : f32
    %79 = vector.broadcast %cst_42 : f32 to vector<1x128xf32>
    %80 = arith.addf %78, %79 : vector<1x128xf32>
    %81 = math.rsqrt %80 : vector<1x128xf32>
    %82 = arith.mulf %64, %81 : vector<1x128xf32>
    %83 = arith.mulf %72, %82 : vector<1x128xf32>
    %84 = arith.subf %65, %83 : vector<1x128xf32>
    %85 = vector.broadcast %82 : vector<1x128xf32> to vector<256x128xf32>
    %86 = arith.mulf %63, %85 : vector<256x128xf32>
    %87 = vector.broadcast %84 : vector<1x128xf32> to vector<256x128xf32>
    %88 = arith.addf %86, %87 : vector<256x128xf32>
    %cst_43 = arith.constant 0.000000e+00 : f32
    %89 = vector.broadcast %cst_43 : f32 to vector<256x128xf32>
    %90 = arith.maximumf %88, %89 : vector<256x128xf32>
    %c0_44 = arith.constant 0 : index
    %c0_45 = arith.constant 0 : index
    %91 = vector.load %arg8[%c0_44, %c0_45] : memref<128x128xf32, #tpu.memory_space<vmem>>, vector<128x128xf32>
    %cst_46 = arith.constant dense<0.000000e+00> : vector<256x128xf32>
    %92 = tpu.matmul %90, %91, %cst_46 {dimension_numbers = #tpu.dot_dimension_numbers<[1], [0], [0], [1], [0, 0, 1, 1], [], []>} : vector<256x128xf32>, vector<128x128xf32>, vector<256x128xf32> -> vector<256x128xf32>
    %c0_47 = arith.constant 0 : index
    %c0_48 = arith.constant 0 : index
    %93 = vector.load %arg9[%c0_47, %c0_48] : memref<1x128xf32, #tpu.memory_space<vmem>>, vector<1x128xf32>
    %c0_49 = arith.constant 0 : index
    %c0_50 = arith.constant 0 : index
    %94 = vector.load %arg10[%c0_49, %c0_50] : memref<1x128xf32, #tpu.memory_space<vmem>>, vector<1x128xf32>
    %cst_51 = arith.constant dense<0.000000e+00> : vector<128xf32>
    %95 = vector.multi_reduction <add>, %92, %cst_51 [0] : vector<256x128xf32> to vector<128xf32>
    %96 = vector.shape_cast %95 : vector<128xf32> to vector<1x128xf32>
    %97 = arith.mulf %92, %92 : vector<256x128xf32>
    %cst_52 = arith.constant dense<0.000000e+00> : vector<128xf32>
    %98 = vector.multi_reduction <add>, %97, %cst_52 [0] : vector<256x128xf32> to vector<128xf32>
    %99 = vector.shape_cast %98 : vector<128xf32> to vector<1x128xf32>
    %cst_53 = arith.constant 3.906250e-03 : f32
    %100 = vector.broadcast %cst_53 : f32 to vector<1x128xf32>
    %101 = arith.mulf %96, %100 : vector<1x128xf32>
    %cst_54 = arith.constant 3.906250e-03 : f32
    %102 = vector.broadcast %cst_54 : f32 to vector<1x128xf32>
    %103 = arith.mulf %99, %102 : vector<1x128xf32>
    %104 = arith.mulf %101, %101 : vector<1x128xf32>
    %105 = arith.subf %103, %104 : vector<1x128xf32>
    %cst_55 = arith.constant 0.000000e+00 : f32
    %106 = vector.broadcast %cst_55 : f32 to vector<1x128xf32>
    %107 = arith.maximumf %105, %106 : vector<1x128xf32>
    %cst_56 = arith.constant 9.99999974E-6 : f32
    %108 = vector.broadcast %cst_56 : f32 to vector<1x128xf32>
    %109 = arith.addf %107, %108 : vector<1x128xf32>
    %110 = math.rsqrt %109 : vector<1x128xf32>
    %111 = arith.mulf %93, %110 : vector<1x128xf32>
    %112 = arith.mulf %101, %111 : vector<1x128xf32>
    %113 = arith.subf %94, %112 : vector<1x128xf32>
    %114 = vector.broadcast %111 : vector<1x128xf32> to vector<256x128xf32>
    %115 = arith.mulf %92, %114 : vector<256x128xf32>
    %116 = vector.broadcast %113 : vector<1x128xf32> to vector<256x128xf32>
    %117 = arith.addf %115, %116 : vector<256x128xf32>
    %118 = arith.addf %117, %1 : vector<256x128xf32>
    %cst_57 = arith.constant 0.000000e+00 : f32
    %119 = vector.broadcast %cst_57 : f32 to vector<256x128xf32>
    %120 = arith.maximumf %118, %119 : vector<256x128xf32>
    %121 = vector.shape_cast %120 : vector<256x128xf32> to vector<1x16x16x128xf32>
    %c0_58 = arith.constant 0 : index
    %c0_59 = arith.constant 0 : index
    %c0_60 = arith.constant 0 : index
    %c0_61 = arith.constant 0 : index
    %122 = vector.load %arg11[%c0_58, %c0_59, %c0_60, %c0_61] : memref<1x16x16x128xf32, #tpu.memory_space<vmem>>, vector<1x16x16x128xf32>
    tpu.vector_store %arg11[%c0_58, %c0_59, %c0_60, %c0_61], %121 {strides = array<i32>} : memref<1x16x16x128xf32, #tpu.memory_space<vmem>>, vector<1x16x16x128xf32>,
    return
  }
  func.func @transform_0(%arg0: i32) -> (i32, i32, i32, i32) {
    %c0_i32 = arith.constant 0 : i32
    %c0_i32_0 = arith.constant 0 : i32
    %c0_i32_1 = arith.constant 0 : i32
    %c0_i32_2 = arith.constant 0 : i32
    return %arg0, %c0_i32, %c0_i32_0, %c0_i32_1 : i32, i32, i32, i32
  }
  func.func @transform_1(%arg0: i32) -> (i32, i32) {
    %c0_i32 = arith.constant 0 : i32
    %c0_i32_0 = arith.constant 0 : i32
    %c0_i32_1 = arith.constant 0 : i32
    return %c0_i32, %c0_i32_0 : i32, i32
  }
  func.func @transform_2(%arg0: i32) -> (i32, i32) {
    %c0_i32 = arith.constant 0 : i32
    %c0_i32_0 = arith.constant 0 : i32
    %c0_i32_1 = arith.constant 0 : i32
    return %c0_i32, %c0_i32_0 : i32, i32
  }
  func.func @transform_3(%arg0: i32) -> (i32, i32) {
    %c0_i32 = arith.constant 0 : i32
    %c0_i32_0 = arith.constant 0 : i32
    %c0_i32_1 = arith.constant 0 : i32
    return %c0_i32, %c0_i32_0 : i32, i32
  }
  func.func @transform_4(%arg0: i32) -> (i32, i32) {
    %c0_i32 = arith.constant 0 : i32
    %c0_i32_0 = arith.constant 0 : i32
    %c0_i32_1 = arith.constant 0 : i32
    return %c0_i32, %c0_i32_0 : i32, i32
  }
  func.func @transform_5(%arg0: i32) -> (i32, i32) {
    %c0_i32 = arith.constant 0 : i32
    %c0_i32_0 = arith.constant 0 : i32
    %c0_i32_1 = arith.constant 0 : i32
    return %c0_i32, %c0_i32_0 : i32, i32
  }
  func.func @transform_6(%arg0: i32) -> (i32, i32) {
    %c0_i32 = arith.constant 0 : i32
    %c0_i32_0 = arith.constant 0 : i32
    %c0_i32_1 = arith.constant 0 : i32
    return %c0_i32, %c0_i32_0 : i32, i32
  }
  func.func @transform_7(%arg0: i32) -> (i32, i32) {
    %c0_i32 = arith.constant 0 : i32
    %c0_i32_0 = arith.constant 0 : i32
    %c0_i32_1 = arith.constant 0 : i32
    return %c0_i32, %c0_i32_0 : i32, i32
  }
  func.func @transform_8(%arg0: i32) -> (i32, i32) {
    %c0_i32 = arith.constant 0 : i32
    %c0_i32_0 = arith.constant 0 : i32
    %c0_i32_1 = arith.constant 0 : i32
    return %c0_i32, %c0_i32_0 : i32, i32
  }
  func.func @transform_9(%arg0: i32) -> (i32, i32) {
    %c0_i32 = arith.constant 0 : i32
    %c0_i32_0 = arith.constant 0 : i32
    %c0_i32_1 = arith.constant 0 : i32
    return %c0_i32, %c0_i32_0 : i32, i32
  }
  func.func @transform_10(%arg0: i32) -> (i32, i32, i32, i32) {
    %c0_i32 = arith.constant 0 : i32
    %c0_i32_0 = arith.constant 0 : i32
    %c0_i32_1 = arith.constant 0 : i32
    %c0_i32_2 = arith.constant 0 : i32
    return %arg0, %c0_i32, %c0_i32_0, %c0_i32_1 : i32, i32, i32, i32
  }
}

</mosaic_0001>

<llo_original>
// kernel: tpu_custom_call.1
$region0: #{tpu_custom_call.1}
  #allocation0 [shape = 'u32[]', space=smem, size = 0x4, offset = 0x4, fixed_abs, tag = 'smem constant byte address 0x4 - core index']
  #allocation1 [shape = 'u32[72,128]{1,0:T(1,128)}', space=vmem, size = 0x9000, scoped, tag = 'internal scratch']
  #allocation2 [shape = 'f32[320,128]{1,0:T(8,128)}', space=vmem, size = 0x28000, scoped, tag = 'scratch operand']
  #allocation3 [shape = 'f32[256,128]{1,0:T(8,128)}', space=vmem, size = 0x20000, scoped, tag = 'scratch operand']
  %s0 = inlined_call_operand.hbm [shape: f32[2,16,16,128], index: 0, kind: input, shape index: {}]
  %s1 = inlined_call_operand.hbm [shape: f32[128,128], index: 1, kind: input, shape index: {}]
  %s2 = inlined_call_operand.vmem [shape: f32[1,128], index: 2, kind: input, shape index: {}]
  %s3 = inlined_call_operand.vmem [shape: f32[1,128], index: 3, kind: input, shape index: {}]
  %s4 = inlined_call_operand.hbm [shape: f32[1152,128], index: 4, kind: input, shape index: {}]
  %s5 = inlined_call_operand.vmem [shape: f32[1,128], index: 5, kind: input, shape index: {}]
  %s6 = inlined_call_operand.vmem [shape: f32[1,128], index: 6, kind: input, shape index: {}]
  %s7 = inlined_call_operand.hbm [shape: f32[128,128], index: 7, kind: input, shape index: {}]
  %s8 = inlined_call_operand.vmem [shape: f32[1,128], index: 8, kind: input, shape index: {}]
  %s9 = inlined_call_operand.vmem [shape: f32[1,128], index: 9, kind: input, shape index: {}]
  %s10 = inlined_call_operand.hbm [shape: f32[2,16,16,128], index: 10, kind: output, shape index: {}]
  %s11 = sld [smem:[#allocation0]]
  $region96: #{tpu_custom_call.1} parent=0
    _
  %s13 = ssub.s32 1, %s11
  %s14 = scalar_select 0, %s13, %s11
  $region1: #{tpu_custom_call.1} parent=0
    #allocation4 [shape = 'u8[262144]{0}', space=vmem, size = 0x40000, scoped, tag = 'input window, operand 0']
    #allocation5 [shape = 's32[2]{0}', space=sflag, size = 0x8, scoped, tag = 'scoped memory for tpu_custom_call.1']
    #allocation6 [shape = 's32[2]{0}', space=sflag, size = 0x8, scoped, tag = 'scoped memory for tpu_custom_call.1']
    #allocation7 [shape = 'u8[65536]{0}', space=vmem, size = 0x10000, scoped, tag = 'input window, operand 1, single buffered']
    #allocation8 [shape = 's32[1]{0}', space=sflag, size = 0x4, scoped, tag = 'scoped memory for tpu_custom_call.1']
    #allocation9 [shape = 'u8[589824]{0}', space=vmem, size = 0x90000, scoped, tag = 'input window, operand 4, single buffered']
    #allocation10 [shape = 'u8[65536]{0}', space=vmem, size = 0x10000, scoped, tag = 'input window, operand 7, single buffered']
    #allocation11 [shape = 's32[1]{0}', space=sflag, size = 0x4, scoped, tag = 'scoped memory for tpu_custom_call.1']
    #allocation12 [shape = 'u8[262144]{0}', space=vmem, size = 0x40000, scoped, tag = 'output window, operand 0']
    %15 = vsyncpa [#allocation5], 0
    %s16 = scalar_lea.sflag [#allocation5], 1
    %17 = vsyncpa %s16, 0
    %18 = vsyncpa [#allocation8], 0
    %19 = vsyncpa [#allocation11], 0
    %20 = vsyncpa [#allocation6], 0
    %s21 = scalar_lea.sflag [#allocation6], 1
    %22 = vsyncpa %s21, 0
    loop: start=0, step=1, limit=4
    $region2: #{tpu_custom_call.1} parent=1 // loop_pre_header
      _
    $region3: #{tpu_custom_call.1} parent=1 // loop_header
      %s24 = sphi 0, %s28
      %p25 = scmp.ge.s32.totalorder %s24, 4
      %s34 = sphi 0, %s36
      %s37 = sphi 0, %s34
      %s38 = sphi 0, %s37
      %s54 = sphi 0, %s38
      %s58 = sphi 0, %s58
      %s60 = sphi 0, %s58
      %s61 = sphi 0, %s60
      %s75 = sphi 0, %s61
      %s79 = sphi 0, %s79
      %s81 = sphi 0, %s79
      %s82 = sphi 0, %s81
      %s96 = sphi 0, %s82
      %s100 = sphi 0, %s100
      %s102 = sphi 0, %s100
      %s103 = sphi 0, %s102
      %s117 = sphi 0, %s103
      %s121 = sphi 0, %s121
      %s123 = sphi 0, %s121
      %s124 = sphi 0, %s123
      %s138 = sphi 0, %s124
      %s142 = sphi 0, %s142
      %s144 = sphi 0, %s142
      %s145 = sphi 0, %s144
      %s159 = sphi 0, %s145
      %s163 = sphi 0, %s163
      %s165 = sphi 0, %s163
      %s166 = sphi 0, %s165
      %s180 = sphi 0, %s166
      %s184 = sphi 0, %s184
      %s186 = sphi 0, %s184
      %s187 = sphi 0, %s186
      %s201 = sphi 0, %s187
      %s205 = sphi 0, %s205
      %s207 = sphi 0, %s205
      %s208 = sphi 0, %s207
      %s222 = sphi 0, %s208
      %s226 = sphi 0, %s226
      %s228 = sphi 0, %s226
      %s229 = sphi 0, %s228
      %s243 = sphi 0, %s229
      %s249 = sphi 0, %s251
      %s252 = sphi 0, %s249
      %s253 = sphi 0, %s252
      %s269 = sphi 0, %s253
    $region4: #{tpu_custom_call.1} parent=1 // loop_header_branch
      %27 = sbr.rel (%p25) target = $region8
    $region5: #{tpu_custom_call.1} parent=1 // loop_body
      %s29 = ssub.s32 %s24, 1
      %s30 = ssub.s32 %s24, 2
      %s31 = sadd.s32 %s24, 1
      %s32 = ssub.s32 %s24, %s31
      %p33 = scmp.eq.s32.totalorder %s32, 0
      %s35 = sadd.s32 %s34, 1
      %s36 = scalar_select %p33, %s34, %s35
      %p39 = pneg %p33
      %p40 = scmp.eq.s32.totalorder %s24, 1
      %p41 = por %p39, %p40
      %p42 = scmp.ne.s32.totalorder %s34, %s37
      %p43 = scmp.eq.s32.totalorder %s24, 0
      %p44 = por %p42, %p43
      %p45 = scmp.ne.s32.totalorder %s34, %s37
      %p46 = scmp.eq.s32.totalorder %s29, 1
      %p47 = por %p45, %p46
      %p48 = scmp.ne.s32.totalorder %s37, %s38
      %p49 = scmp.eq.s32.totalorder %s29, 0
      %p50 = por %p48, %p49
      %p51 = scmp.ne.s32.totalorder %s37, %s38
      %p52 = scmp.eq.s32.totalorder %s30, 1
      %p53 = por %p51, %p52
      %p55 = scmp.ne.s32.totalorder %s38, %s54
      %p56 = scmp.eq.s32.totalorder %s30, 0
      %p57 = por %p55, %p56
      %s59 = sadd.s32 %s58, 1
      %p62 = scmp.eq.s32.totalorder %s24, 1
      %p63 = scmp.ne.s32.totalorder %s58, %s60
      %p64 = scmp.eq.s32.totalorder %s24, 0
      %p65 = por %p63, %p64
      %p66 = scmp.ne.s32.totalorder %s58, %s60
      %p67 = scmp.eq.s32.totalorder %s29, 1
      %p68 = por %p66, %p67
      %p69 = scmp.ne.s32.totalorder %s60, %s61
      %p70 = scmp.eq.s32.totalorder %s29, 0
      %p71 = por %p69, %p70
      %p72 = scmp.ne.s32.totalorder %s60, %s61
      %p73 = scmp.eq.s32.totalorder %s30, 1
      %p74 = por %p72, %p73
      %p76 = scmp.ne.s32.totalorder %s61, %s75
      %p77 = scmp.eq.s32.totalorder %s30, 0
      %p78 = por %p76, %p77
      %s80 = sadd.s32 %s79, 1
      %p83 = scmp.eq.s32.totalorder %s24, 1
      %p84 = scmp.ne.s32.totalorder %s79, %s81
      %p85 = scmp.eq.s32.totalorder %s24, 0
      %p86 = por %p84, %p85
      %p87 = scmp.ne.s32.totalorder %s79, %s81
      %p88 = scmp.eq.s32.totalorder %s29, 1
      %p89 = por %p87, %p88
      %p90 = scmp.ne.s32.totalorder %s81, %s82
      %p91 = scmp.eq.s32.totalorder %s29, 0
      %p92 = por %p90, %p91
      %p93 = scmp.ne.s32.totalorder %s81, %s82
      %p94 = scmp.eq.s32.totalorder %s30, 1
      %p95 = por %p93, %p94
      %p97 = scmp.ne.s32.totalorder %s82, %s96
      %p98 = scmp.eq.s32.totalorder %s30, 0
      %p99 = por %p97, %p98
      %s101 = sadd.s32 %s100, 1
      %p104 = scmp.eq.s32.totalorder %s24, 1
      %p105 = scmp.ne.s32.totalorder %s100, %s102
      %p106 = scmp.eq.s32.totalorder %s24, 0
      %p107 = por %p105, %p106
      %p108 = scmp.ne.s32.totalorder %s100, %s102
      %p109 = scmp.eq.s32.totalorder %s29, 1
      %p110 = por %p108, %p109
      %p111 = scmp.ne.s32.totalorder %s102, %s103
      %p112 = scmp.eq.s32.totalorder %s29, 0
      %p113 = por %p111, %p112
      %p114 = scmp.ne.s32.totalorder %s102, %s103
      %p115 = scmp.eq.s32.totalorder %s30, 1
      %p116 = por %p114, %p115
      %p118 = scmp.ne.s32.totalorder %s103, %s117
      %p119 = scmp.eq.s32.totalorder %s30, 0
      %p120 = por %p118, %p119
      %s122 = sadd.s32 %s121, 1
      %p125 = scmp.eq.s32.totalorder %s24, 1
      %p126 = scmp.ne.s32.totalorder %s121, %s123
      %p127 = scmp.eq.s32.totalorder %s24, 0
      %p128 = por %p126, %p127
      %p129 = scmp.ne.s32.totalorder %s121, %s123
      %p130 = scmp.eq.s32.totalorder %s29, 1
      %p131 = por %p129, %p130
      %p132 = scmp.ne.s32.totalorder %s123, %s124
      %p133 = scmp.eq.s32.totalorder %s29, 0
      %p134 = por %p132, %p133
      %p135 = scmp.ne.s32.totalorder %s123, %s124
      %p136 = scmp.eq.s32.totalorder %s30, 1
      %p137 = por %p135, %p136
      %p139 = scmp.ne.s32.totalorder %s124, %s138
      %p140 = scmp.eq.s32.totalorder %s30, 0
      %p141 = por %p139, %p140
      %s143 = sadd.s32 %s142, 1
      %p146 = scmp.eq.s32.totalorder %s24, 1
      %p147 = scmp.ne.s32.totalorder %s142, %s144
      %p148 = scmp.eq.s32.totalorder %s24, 0
      %p149 = por %p147, %p148
      %p150 = scmp.ne.s32.totalorder %s142, %s144
      %p151 = scmp.eq.s32.totalorder %s29, 1
      %p152 = por %p150, %p151
      %p153 = scmp.ne.s32.totalorder %s144, %s145
      %p154 = scmp.eq.s32.totalorder %s29, 0
      %p155 = por %p153, %p154
      %p156 = scmp.ne.s32.totalorder %s144, %s145
      %p157 = scmp.eq.s32.totalorder %s30, 1
      %p158 = por %p156, %p157
      %p160 = scmp.ne.s32.totalorder %s145, %s159
      %p161 = scmp.eq.s32.totalorder %s30, 0
      %p162 = por %p160, %p161
      %s164 = sadd.s32 %s163, 1
      %p167 = scmp.eq.s32.totalorder %s24, 1
      %p168 = scmp.ne.s32.totalorder %s163, %s165
      %p169 = scmp.eq.s32.totalorder %s24, 0
      %p170 = por %p168, %p169
      %p171 = scmp.ne.s32.totalorder %s163, %s165
      %p172 = scmp.eq.s32.totalorder %s29, 1
      %p173 = por %p171, %p172
      %p174 = scmp.ne.s32.totalorder %s165, %s166
      %p175 = scmp.eq.s32.totalorder %s29, 0
      %p176 = por %p174, %p175
      %p177 = scmp.ne.s32.totalorder %s165, %s166
      %p178 = scmp.eq.s32.totalorder %s30, 1
      %p179 = por %p177, %p178
      %p181 = scmp.ne.s32.totalorder %s166, %s180
      %p182 = scmp.eq.s32.totalorder %s30, 0
      %p183 = por %p181, %p182
      %s185 = sadd.s32 %s184, 1
      %p188 = scmp.eq.s32.totalorder %s24, 1
      %p189 = scmp.ne.s32.totalorder %s184, %s186
      %p190 = scmp.eq.s32.totalorder %s24, 0
      %p191 = por %p189, %p190
      %p192 = scmp.ne.s32.totalorder %s184, %s186
      %p193 = scmp.eq.s32.totalorder %s29, 1
      %p194 = por %p192, %p193
      %p195 = scmp.ne.s32.totalorder %s186, %s187
      %p196 = scmp.eq.s32.totalorder %s29, 0
      %p197 = por %p195, %p196
      %p198 = scmp.ne.s32.totalorder %s186, %s187
      %p199 = scmp.eq.s32.totalorder %s30, 1
      %p200 = por %p198, %p199
      %p202 = scmp.ne.s32.totalorder %s187, %s201
      %p203 = scmp.eq.s32.totalorder %s30, 0
      %p204 = por %p202, %p203
      %s206 = sadd.s32 %s205, 1
      %p209 = scmp.eq.s32.totalorder %s24, 1
      %p210 = scmp.ne.s32.totalorder %s205, %s207
      %p211 = scmp.eq.s32.totalorder %s24, 0
      %p212 = por %p210, %p211
      %p213 = scmp.ne.s32.totalorder %s205, %s207
      %p214 = scmp.eq.s32.totalorder %s29, 1
      %p215 = por %p213, %p214
      %p216 = scmp.ne.s32.totalorder %s207, %s208
      %p217 = scmp.eq.s32.totalorder %s29, 0
      %p218 = por %p216, %p217
      %p219 = scmp.ne.s32.totalorder %s207, %s208
      %p220 = scmp.eq.s32.totalorder %s30, 1
      %p221 = por %p219, %p220
      %p223 = scmp.ne.s32.totalorder %s208, %s222
      %p224 = scmp.eq.s32.totalorder %s30, 0
      %p225 = por %p223, %p224
      %s227 = sadd.s32 %s226, 1
      %p230 = scmp.eq.s32.totalorder %s24, 1
      %p231 = scmp.ne.s32.totalorder %s226, %s228
      %p232 = scmp.eq.s32.totalorder %s24, 0
      %p233 = por %p231, %p232
      %p234 = scmp.ne.s32.totalorder %s226, %s228
      %p235 = scmp.eq.s32.totalorder %s29, 1
      %p236 = por %p234, %p235
      %p237 = scmp.ne.s32.totalorder %s228, %s229
      %p238 = scmp.eq.s32.totalorder %s29, 0
      %p239 = por %p237, %p238
      %p240 = scmp.ne.s32.totalorder %s228, %s229
      %p241 = scmp.eq.s32.totalorder %s30, 1
      %p242 = por %p240, %p241
      %p244 = scmp.ne.s32.totalorder %s229, %s243
      %p245 = scmp.eq.s32.totalorder %s30, 0
      %p246 = por %p244, %p245
      %s247 = ssub.s32 %s24, %s31
      %p248 = scmp.eq.s32.totalorder %s247, 0
      %s250 = sadd.s32 %s249, 1
      %s251 = scalar_select %p248, %s249, %s250
      %p254 = pneg %p248
      %p255 = scmp.eq.s32.totalorder %s24, 1
      %p256 = por %p254, %p255
      %p257 = scmp.ne.s32.totalorder %s249, %s252
      %p258 = scmp.eq.s32.totalorder %s24, 0
      %p259 = por %p257, %p258
      %p260 = scmp.ne.s32.totalorder %s249, %s252
      %p261 = scmp.eq.s32.totalorder %s29, 1
      %p262 = por %p260, %p261
      %p263 = scmp.ne.s32.totalorder %s252, %s253
      %p264 = scmp.eq.s32.totalorder %s29, 0
      %p265 = por %p263, %p264
      %p266 = scmp.ne.s32.totalorder %s252, %s253
      %p267 = scmp.eq.s32.totalorder %s30, 1
      %p268 = por %p266, %p267
      %p270 = scmp.ne.s32.totalorder %s253, %s269
      %p271 = scmp.eq.s32.totalorder %s30, 0
      %p272 = por %p270, %p271
      %p273 = scmp.le.s32.totalorder 1, %s24
      %p274 = scmp.lt.s32.totalorder %s24, 3
      %p275 = pnand %p273, %p274
      %p276 = pneg %p275
      // Predicated region
      $region9: #{tpu_custom_call.1} parent=5 // pred_check
        _
      $region10: #{tpu_custom_call.1} parent=5 // pred_check_branch
        %278 = sbr.rel (%p275) target = $region12
      $region11: #{tpu_custom_call.1} parent=5 // pred_region
        %s279 = ssub.s32 %s24, 1
        // Predicated region
        $region13: #{tpu_custom_call.1} parent=11 // pred_check
          %p280 = pneg %p71
        $region14: #{tpu_custom_call.1} parent=11 // pred_check_branch
          %282 = sbr.rel (%p280) target = $region16
        $region15: #{tpu_custom_call.1} parent=11 // pred_region
          %284 = vsyncadd [#allocation8], 0
          %s285 = sshll.u32 %s1, 4
          %s286 = int_to_ptr.hbm [resolvable:$true] %s285
          %s287 = sshll.u32 [#allocation7], 4
          %s288 = int_to_ptr.vmem [resolvable:$true] %s287
          %293 = dma.hbm_to_vmem [thread:$0]  %s286, 2048, %s288, [#allocation8], 128, 128, 8
        $region16: #{tpu_custom_call.1} parent=11 // pred_fallthru
          _
        // Predicated region
        $region17: #{tpu_custom_call.1} parent=11 // pred_check
          %p294 = pneg %p92
        $region18: #{tpu_custom_call.1} parent=11 // pred_check_branch
          %296 = sbr.rel (%p294) target = $region20
        $region19: #{tpu_custom_call.1} parent=11 // pred_region
          _
        $region20: #{tpu_custom_call.1} parent=11 // pred_fallthru
          _
        // Predicated region
        $region21: #{tpu_custom_call.1} parent=11 // pred_check
          %p297 = pneg %p113
        $region22: #{tpu_custom_call.1} parent=11 // pred_check_branch
          %299 = sbr.rel (%p297) target = $region24
        $region23: #{tpu_custom_call.1} parent=11 // pred_region
          _
        $region24: #{tpu_custom_call.1} parent=11 // pred_fallthru
          _
        // Predicated region
        $region25: #{tpu_custom_call.1} parent=11 // pred_check
          %p300 = pneg %p134
        $region26: #{tpu_custom_call.1} parent=11 // pred_check_branch
          %302 = sbr.rel (%p300) target = $region28
        $region27: #{tpu_custom_call.1} parent=11 // pred_region
          %304 = vsyncadd [#allocation8], 0
          %s305 = sshll.u32 %s4, 4
          %s306 = int_to_ptr.hbm [resolvable:$true] %s305
          %s307 = sshll.u32 [#allocation9], 4
          %s308 = int_to_ptr.vmem [resolvable:$true] %s307
          %313 = dma.hbm_to_vmem [thread:$0]  %s306, 18432, %s308, [#allocation8], 128, 128, 8
        $region28: #{tpu_custom_call.1} parent=11 // pred_fallthru
          _
        // Predicated region
        $region29: #{tpu_custom_call.1} parent=11 // pred_check
          %p314 = pneg %p155
        $region30: #{tpu_custom_call.1} parent=11 // pred_check_branch
          %316 = sbr.rel (%p314) target = $region32
        $region31: #{tpu_custom_call.1} parent=11 // pred_region
          _
        $region32: #{tpu_custom_call.1} parent=11 // pred_fallthru
          _
        // Predicated region
        $region33: #{tpu_custom_call.1} parent=11 // pred_check
          %p317 = pneg %p176
        $region34: #{tpu_custom_call.1} parent=11 // pred_check_branch
          %319 = sbr.rel (%p317) target = $region36
        $region35: #{tpu_custom_call.1} parent=11 // pred_region
          _
        $region36: #{tpu_custom_call.1} parent=11 // pred_fallthru
          _
        // Predicated region
        $region37: #{tpu_custom_call.1} parent=11 // pred_check
          %p320 = pneg %p197
        $region38: #{tpu_custom_call.1} parent=11 // pred_check_branch
          %322 = sbr.rel (%p320) target = $region40
        $region39: #{tpu_custom_call.1} parent=11 // pred_region
          %324 = vsyncadd [#allocation11], 0
          %s325 = sshll.u32 %s7, 4
          %s326 = int_to_ptr.hbm [resolvable:$true] %s325
          %s327 = sshll.u32 [#allocation10], 4
          %s328 = int_to_ptr.vmem [resolvable:$true] %s327
          %333 = dma.hbm_to_vmem [thread:$0]  %s326, 2048, %s328, [#allocation11], 128, 128, 8
        $region40: #{tpu_custom_call.1} parent=11 // pred_fallthru
          _
        // Predicated region
        $region41: #{tpu_custom_call.1} parent=11 // pred_check
          %p334 = pneg %p218
        $region42: #{tpu_custom_call.1} parent=11 // pred_check_branch
          %336 = sbr.rel (%p334) target = $region44
        $region43: #{tpu_custom_call.1} parent=11 // pred_region
          _
        $region44: #{tpu_custom_call.1} parent=11 // pred_fallthru
          _
        // Predicated region
        $region45: #{tpu_custom_call.1} parent=11 // pred_check
          %p337 = pneg %p239
        $region46: #{tpu_custom_call.1} parent=11 // pred_check_branch
          %339 = sbr.rel (%p337) target = $region48
        $region47: #{tpu_custom_call.1} parent=11 // pred_region
          _
        $region48: #{tpu_custom_call.1} parent=11 // pred_fallthru
          _
      $region12: #{tpu_custom_call.1} parent=5 // pred_fallthru
        _
      %p340 = scmp.lt.s32.totalorder %s24, 2
      // Predicated region
      $region49: #{tpu_custom_call.1} parent=5 // pred_check
        %p341 = pneg %p340
      $region50: #{tpu_custom_call.1} parent=5 // pred_check_branch
        %343 = sbr.rel (%p341) target = $region52
      $region51: #{tpu_custom_call.1} parent=5 // pred_region
        // Predicated region
        $region53: #{tpu_custom_call.1} parent=51 // pred_check
          %p344 = pneg %p44
        $region54: #{tpu_custom_call.1} parent=51 // pred_check_branch
          %346 = sbr.rel (%p344) target = $region56
        $region55: #{tpu_custom_call.1} parent=51 // pred_region
          %s347 = sand.u32 %s34, 1
          %s348 = scalar_lea.sflag [#allocation5], %s347
          %s349 = sand.u32 %s34, 1
          %s350 = smul.addr %s349, 256
          %s351 = scalar_lea.vmem [#allocation4], %s350
          %353 = vsyncadd %s348, 0
          %s354 = smul.addr %s24, 32
          %s355 = smul.addr %s354, 8
          %s356 = scalar_lea.hbm %s0, %s355
          %s357 = sshll.u32 %s356, 4
          %s358 = int_to_ptr.hbm [resolvable:$true] %s357
          %s359 = sshll.u32 %s351, 4
          %s360 = int_to_ptr.vmem [resolvable:$true] %s359
          %365 = dma.hbm_to_vmem [thread:$0]  %s358, 4096, %s360, %s348, 128, 128, 8
        $region56: #{tpu_custom_call.1} parent=51 // pred_fallthru
          _
      $region52: #{tpu_custom_call.1} parent=5 // pred_fallthru
        _
      %p366 = scmp.le.s32.totalorder 1, %s24
      %p367 = scmp.lt.s32.totalorder %s24, 3
      %p368 = pnand %p366, %p367
      %p369 = pneg %p368
      // Predicated region
      $region57: #{tpu_custom_call.1} parent=5 // pred_check
        _
      $region58: #{tpu_custom_call.1} parent=5 // pred_check_branch
        %371 = sbr.rel (%p368) target = $region60
      $region59: #{tpu_custom_call.1} parent=5 // pred_region
        %s372 = ssub.s32 %s24, 1
        %s373 = sand.u32 %s37, 1
        %s374 = scalar_lea.sflag [#allocation5], %s373
        %s375 = sand.u32 %s37, 1
        %s376 = smul.addr %s375, 256
        %s377 = scalar_lea.vmem [#allocation4], %s376
        // Predicated region
        $region61: #{tpu_custom_call.1} parent=59 // pred_check
          %p378 = pneg %p50
        $region62: #{tpu_custom_call.1} parent=59 // pred_check_branch
          %380 = sbr.rel (%p378) target = $region64
        $region63: #{tpu_custom_call.1} parent=59 // pred_region
          %382 = dma.done %s374, 4096
        $region64: #{tpu_custom_call.1} parent=59 // pred_fallthru
          _
        // Predicated region
        $region65: #{tpu_custom_call.1} parent=59 // pred_check
          %p383 = pneg %p71
        $region66: #{tpu_custom_call.1} parent=59 // pred_check_branch
          %385 = sbr.rel (%p383) target = $region68
        $region67: #{tpu_custom_call.1} parent=59 // pred_region
          %387 = dma.done [#allocation8], 2048
        $region68: #{tpu_custom_call.1} parent=59 // pred_fallthru
          _
        // Predicated region
        $region69: #{tpu_custom_call.1} parent=59 // pred_check
          %p388 = pneg %p134
        $region70: #{tpu_custom_call.1} parent=59 // pred_check_branch
          %390 = sbr.rel (%p388) target = $region72
        $region71: #{tpu_custom_call.1} parent=59 // pred_region
          %392 = dma.done [#allocation8], 18432
        $region72: #{tpu_custom_call.1} parent=59 // pred_fallthru
          _
        // Predicated region
        $region73: #{tpu_custom_call.1} parent=59 // pred_check
          %p393 = pneg %p197
        $region74: #{tpu_custom_call.1} parent=59 // pred_check_branch
          %395 = sbr.rel (%p393) target = $region76
        $region75: #{tpu_custom_call.1} parent=59 // pred_region
          %397 = dma.done [#allocation11], 2048
        $region76: #{tpu_custom_call.1} parent=59 // pred_fallthru
          _
        %s398 = sand.u32 %s37, 1
        %s399 = scalar_lea.sflag [#allocation5], %s398
        %s400 = sand.u32 %s37, 1
        %s401 = smul.addr %s400, 256
        %s402 = scalar_lea.vmem [#allocation4], %s401
        %p403 = pneg %p50
        %p404 = pneg %p47
        %p405 = pneg %p71
        %p406 = pneg %p68
        %p407 = pneg %p92
        %p408 = pneg %p89
        %p409 = pneg %p113
        %p410 = pneg %p110
        %p411 = pneg %p134
        %p412 = pneg %p131
        %p413 = pneg %p155
        %p414 = pneg %p152
        %p415 = pneg %p176
        %p416 = pneg %p173
        %p417 = pneg %p197
        %p418 = pneg %p194
        %p419 = pneg %p218
        %p420 = pneg %p215
        %p421 = pneg %p239
        %p422 = pneg %p236
        %p423 = pneg %p265
        %p424 = pneg %p262
        %s425 = sand.u32 %s252, 1
        %s426 = scalar_lea.sflag [#allocation6], %s425
        %s427 = sand.u32 %s252, 1
        %s428 = smul.addr %s427, 256
        %s429 = scalar_lea.vmem [#allocation12], %s428
        %v430 = vld [vmem:[%s377] sm:$0xff]
        %v431 = vld [vmem:[%s377 + $0x8] sm:$0xff]
        %v432 = vld [vmem:[%s377 + $0x10] sm:$0xff]
        %v433 = vld [vmem:[%s377 + $0x18] sm:$0xff]
        %v434 = vld [vmem:[%s377 + $0x20] sm:$0xff]
        %v435 = vld [vmem:[%s377 + $0x28] sm:$0xff]
        %v436 = vld [vmem:[%s377 + $0x30] sm:$0xff]
        %v437 = vld [vmem:[%s377 + $0x38] sm:$0xff]
        %v438 = vld [vmem:[%s377 + $0x40] sm:$0xff]
        %v439 = vld [vmem:[%s377 + $0x48] sm:$0xff]
        %v440 = vld [vmem:[%s377 + $0x50] sm:$0xff]
        %v441 = vld [vmem:[%s377 + $0x58] sm:$0xff]
        %v442 = vld [vmem:[%s377 + $0x60] sm:$0xff]
        %v443 = vld [vmem:[%s377 + $0x68] sm:$0xff]
        %v444 = vld [vmem:[%s377 + $0x70] sm:$0xff]
        %v445 = vld [vmem:[%s377 + $0x78] sm:$0xff]
        %v446 = vld [vmem:[%s377 + $0x80] sm:$0xff]
        %v447 = vld [vmem:[%s377 + $0x88] sm:$0xff]
        %v448 = vld [vmem:[%s377 + $0x90] sm:$0xff]
        %v449 = vld [vmem:[%s377 + $0x98] sm:$0xff]
        %v450 = vld [vmem:[%s377 + $0xa0] sm:$0xff]
        %v451 = vld [vmem:[%s377 + $0xa8] sm:$0xff]
        %v452 = vld [vmem:[%s377 + $0xb0] sm:$0xff]
        %v453 = vld [vmem:[%s377 + $0xb8] sm:$0xff]
        %v454 = vld [vmem:[%s377 + $0xc0] sm:$0xff]
        %v455 = vld [vmem:[%s377 + $0xc8] sm:$0xff]
        %v456 = vld [vmem:[%s377 + $0xd0] sm:$0xff]
        %v457 = vld [vmem:[%s377 + $0xd8] sm:$0xff]
        %v458 = vld [vmem:[%s377 + $0xe0] sm:$0xff]
        %v459 = vld [vmem:[%s377 + $0xe8] sm:$0xff]
        %v460 = vld [vmem:[%s377 + $0xf0] sm:$0xff]
        %v461 = vld [vmem:[%s377 + $0xf8] sm:$0xff]
        %v462 = vld [vmem:[#allocation7] sm:$0xff]
        %v463 = vld [vmem:[#allocation7 + $0x8] sm:$0xff]
        %v464 = vld [vmem:[#allocation7 + $0x10] sm:$0xff]
        %v465 = vld [vmem:[#allocation7 + $0x18] sm:$0xff]
        %v466 = vld [vmem:[#allocation7 + $0x20] sm:$0xff]
        %v467 = vld [vmem:[#allocation7 + $0x28] sm:$0xff]
        %v468 = vld [vmem:[#allocation7 + $0x30] sm:$0xff]
        %v469 = vld [vmem:[#allocation7 + $0x38] sm:$0xff]
        %v470 = vld [vmem:[#allocation7 + $0x40] sm:$0xff]
        %v471 = vld [vmem:[#allocation7 + $0x48] sm:$0xff]
        %v472 = vld [vmem:[#allocation7 + $0x50] sm:$0xff]
        %v473 = vld [vmem:[#allocation7 + $0x58] sm:$0xff]
        %v474 = vld [vmem:[#allocation7 + $0x60] sm:$0xff]
        %v475 = vld [vmem:[#allocation7 + $0x68] sm:$0xff]
        %v476 = vld [vmem:[#allocation7 + $0x70] sm:$0xff]
        %v477 = vld [vmem:[#allocation7 + $0x78] sm:$0xff]
        %478 = vmatpush.msra.mxu0 %v477
        %479 = vmatpush.msra.mxu0 %v476
        %480 = vmatpush.msra.mxu0 %v475
        %481 = vmatpush.msra.mxu0 %v474
        %482 = vmatpush.msra.mxu0 %v473
        %483 = vmatpush.msra.mxu0 %v472
        %484 = vmatpush.msra.mxu0 %v471
        %485 = vmatpush.msra.mxu0 %v470
        %486 = vmatpush.msra.mxu0 %v469
        %487 = vmatpush.msra.mxu0 %v468
        %488 = vmatpush.msra.mxu0 %v467
        %489 = vmatpush.msra.mxu0 %v466
        %490 = vmatpush.msra.mxu0 %v465
        %491 = vmatpush.msra.mxu0 %v464
        %492 = vmatpush.msra.mxu0 %v463
        %493 = vmatpush.msra.mxu0 %v462
        %494 = vmatmul.f32.gmra.mxu0 %v430
        %v495 = vpop.f32.mrf.mxu0
        %v496 = vadd.f32 0.0, %v495
        %497 = vmatmul.f32.gmra.mxu0 %v431
        %v498 = vpop.f32.mrf.mxu0
        %v499 = vadd.f32 0.0, %v498
        %500 = vmatmul.f32.gmra.mxu0 %v432
        %v501 = vpop.f32.mrf.mxu0
        %v502 = vadd.f32 0.0, %v501
        %503 = vmatmul.f32.gmra.mxu0 %v433
        %v504 = vpop.f32.mrf.mxu0
        %v505 = vadd.f32 0.0, %v504
        %506 = vmatmul.f32.gmra.mxu0 %v434
        %v507 = vpop.f32.mrf.mxu0
        %v508 = vadd.f32 0.0, %v507
        %509 = vmatmul.f32.gmra.mxu0 %v435
        %v510 = vpop.f32.mrf.mxu0
        %v511 = vadd.f32 0.0, %v510
        %512 = vmatmul.f32.gmra.mxu0 %v436
        %v513 = vpop.f32.mrf.mxu0
        %v514 = vadd.f32 0.0, %v513
        %515 = vmatmul.f32.gmra.mxu0 %v437
        %v516 = vpop.f32.mrf.mxu0
        %v517 = vadd.f32 0.0, %v516
        %518 = vmatmul.f32.gmra.mxu0 %v438
        %v519 = vpop.f32.mrf.mxu0
        %v520 = vadd.f32 0.0, %v519
        %521 = vmatmul.f32.gmra.mxu0 %v439
        %v522 = vpop.f32.mrf.mxu0
        %v523 = vadd.f32 0.0, %v522
        %524 = vmatmul.f32.gmra.mxu0 %v440
        %v525 = vpop.f32.mrf.mxu0
        %v526 = vadd.f32 0.0, %v525
        %527 = vmatmul.f32.gmra.mxu0 %v441
        %v528 = vpop.f32.mrf.mxu0
        %v529 = vadd.f32 0.0, %v528
        %530 = vmatmul.f32.gmra.mxu0 %v442
        %v531 = vpop.f32.mrf.mxu0
        %v532 = vadd.f32 0.0, %v531
        %533 = vmatmul.f32.gmra.mxu0 %v443
        %v534 = vpop.f32.mrf.mxu0
        %v535 = vadd.f32 0.0, %v534
        %536 = vmatmul.f32.gmra.mxu0 %v444
        %v537 = vpop.f32.mrf.mxu0
        %v538 = vadd.f32 0.0, %v537
        %539 = vmatmul.f32.gmra.mxu0 %v445
        %v540 = vpop.f32.mrf.mxu0
        %v541 = vadd.f32 0.0, %v540
        %542 = vmatmul.f32.gmra.mxu0 %v446
        %v543 = vpop.f32.mrf.mxu0
        %v544 = vadd.f32 0.0, %v543
        %545 = vmatmul.f32.gmra.mxu0 %v447
        %v546 = vpop.f32.mrf.mxu0
        %v547 = vadd.f32 0.0, %v546
        %548 = vmatmul.f32.gmra.mxu0 %v448
        %v549 = vpop.f32.mrf.mxu0
        %v550 = vadd.f32 0.0, %v549
        %551 = vmatmul.f32.gmra.mxu0 %v449
        %v552 = vpop.f32.mrf.mxu0
        %v553 = vadd.f32 0.0, %v552
        %554 = vmatmul.f32.gmra.mxu0 %v450
        %v555 = vpop.f32.mrf.mxu0
        %v556 = vadd.f32 0.0, %v555
        %557 = vmatmul.f32.gmra.mxu0 %v451
        %v558 = vpop.f32.mrf.mxu0
        %v559 = vadd.f32 0.0, %v558
        %560 = vmatmul.f32.gmra.mxu0 %v452
        %v561 = vpop.f32.mrf.mxu0
        %v562 = vadd.f32 0.0, %v561
        %563 = vmatmul.f32.gmra.mxu0 %v453
        %v564 = vpop.f32.mrf.mxu0
        %v565 = vadd.f32 0.0, %v564
        %566 = vmatmul.f32.gmra.mxu0 %v454
        %v567 = vpop.f32.mrf.mxu0
        %v568 = vadd.f32 0.0, %v567
        %569 = vmatmul.f32.gmra.mxu0 %v455
        %v570 = vpop.f32.mrf.mxu0
        %v571 = vadd.f32 0.0, %v570
        %572 = vmatmul.f32.gmra.mxu0 %v456
        %v573 = vpop.f32.mrf.mxu0
        %v574 = vadd.f32 0.0, %v573
        %575 = vmatmul.f32.gmra.mxu0 %v457
        %v576 = vpop.f32.mrf.mxu0
        %v577 = vadd.f32 0.0, %v576
        %578 = vmatmul.f32.gmra.mxu0 %v458
        %v579 = vpop.f32.mrf.mxu0
        %v580 = vadd.f32 0.0, %v579
        %581 = vmatmul.f32.gmra.mxu0 %v459
        %v582 = vpop.f32.mrf.mxu0
        %v583 = vadd.f32 0.0, %v582
        %584 = vmatmul.f32.gmra.mxu0 %v460
        %v585 = vpop.f32.mrf.mxu0
        %v586 = vadd.f32 0.0, %v585
        %587 = vmatmul.f32.gmra.mxu0 %v461
        %v588 = vpop.f32.mrf.mxu0
        %v589 = vadd.f32 0.0, %v588
        %590 = vdwg.mxu0
        %v591 = vld [vmem:[%s2] sm:$0x1]
        %v592 = vld [vmem:[%s3] sm:$0x1]
        %v593 = vadd.f32 %v496, %v499
        %v594 = vadd.f32 %v593, %v502
        %v595 = vadd.f32 %v594, %v505
        %v596 = vadd.f32 %v595, %v508
        %v597 = vadd.f32 %v596, %v511
        %v598 = vadd.f32 %v597, %v514
        %v599 = vadd.f32 %v598, %v517
        %v600 = vadd.f32 %v599, %v520
        %v601 = vadd.f32 %v600, %v523
        %v602 = vadd.f32 %v601, %v526
        %v603 = vadd.f32 %v602, %v529
        %v604 = vadd.f32 %v603, %v532
        %v605 = vadd.f32 %v604, %v535
        %v606 = vadd.f32 %v605, %v538
        %v607 = vadd.f32 %v606, %v541
        %v608 = vadd.f32 %v607, %v544
        %v609 = vadd.f32 %v608, %v547
        %v610 = vadd.f32 %v609, %v550
        %v611 = vadd.f32 %v610, %v553
        %v612 = vadd.f32 %v611, %v556
        %v613 = vadd.f32 %v612, %v559
        %v614 = vadd.f32 %v613, %v562
        %v615 = vadd.f32 %v614, %v565
        %v616 = vadd.f32 %v615, %v568
        %v617 = vadd.f32 %v616, %v571
        %v618 = vadd.f32 %v617, %v574
        %v619 = vadd.f32 %v618, %v577
        %v620 = vadd.f32 %v619, %v580
        %v621 = vadd.f32 %v620, %v583
        %v622 = vadd.f32 %v621, %v586
        %v623 = vadd.f32 %v622, %v589
        %v624 = vrot.slane %v623, 4
        %v625 = vadd.f32 %v623, %v624
        %v626 = vrot.slane %v625, 2
        %v627 = vadd.f32 %v625, %v626
        %v628 = vrot.slane %v627, 1
        %v629 = vadd.f32 %v627, %v628
        %v630 = vmul.f32 %v496, %v496
        %v631 = vmul.f32 %v499, %v499
        %v632 = vmul.f32 %v502, %v502
        %v633 = vmul.f32 %v505, %v505
        %v634 = vmul.f32 %v508, %v508
        %v635 = vmul.f32 %v511, %v511
        %v636 = vmul.f32 %v514, %v514
        %v637 = vmul.f32 %v517, %v517
        %v638 = vmul.f32 %v520, %v520
        %v639 = vmul.f32 %v523, %v523
        %v640 = vmul.f32 %v526, %v526
        %v641 = vmul.f32 %v529, %v529
        %v642 = vmul.f32 %v532, %v532
        %v643 = vmul.f32 %v535, %v535
        %v644 = vmul.f32 %v538, %v538
        %v645 = vmul.f32 %v541, %v541
        %v646 = vmul.f32 %v544, %v544
        %v647 = vmul.f32 %v547, %v547
        %v648 = vmul.f32 %v550, %v550
        %v649 = vmul.f32 %v553, %v553
        %v650 = vmul.f32 %v556, %v556
        %v651 = vmul.f32 %v559, %v559
        %v652 = vmul.f32 %v562, %v562
        %v653 = vmul.f32 %v565, %v565
        %v654 = vmul.f32 %v568, %v568
        %v655 = vmul.f32 %v571, %v571
        %v656 = vmul.f32 %v574, %v574
        %v657 = vmul.f32 %v577, %v577
        %v658 = vmul.f32 %v580, %v580
        %v659 = vmul.f32 %v583, %v583
        %v660 = vmul.f32 %v586, %v586
        %v661 = vmul.f32 %v589, %v589
        %v662 = vadd.f32 %v630, %v631
        %v663 = vadd.f32 %v662, %v632
        %v664 = vadd.f32 %v663, %v633
        %v665 = vadd.f32 %v664, %v634
        %v666 = vadd.f32 %v665, %v635
        %v667 = vadd.f32 %v666, %v636
        %v668 = vadd.f32 %v667, %v637
        %v669 = vadd.f32 %v668, %v638
        %v670 = vadd.f32 %v669, %v639
        %v671 = vadd.f32 %v670, %v640
        %v672 = vadd.f32 %v671, %v641
        %v673 = vadd.f32 %v672, %v642
        %v674 = vadd.f32 %v673, %v643
        %v675 = vadd.f32 %v674, %v644
        %v676 = vadd.f32 %v675, %v645
        %v677 = vadd.f32 %v676, %v646
        %v678 = vadd.f32 %v677, %v647
        %v679 = vadd.f32 %v678, %v648
        %v680 = vadd.f32 %v679, %v649
        %v681 = vadd.f32 %v680, %v650
        %v682 = vadd.f32 %v681, %v651
        %v683 = vadd.f32 %v682, %v652
        %v684 = vadd.f32 %v683, %v653
        %v685 = vadd.f32 %v684, %v654
        %v686 = vadd.f32 %v685, %v655
        %v687 = vadd.f32 %v686, %v656
        %v688 = vadd.f32 %v687, %v657
        %v689 = vadd.f32 %v688, %v658
        %v690 = vadd.f32 %v689, %v659
        %v691 = vadd.f32 %v690, %v660
        %v692 = vadd.f32 %v691, %v661
        %v693 = vrot.slane %v692, 4
        %v694 = vadd.f32 %v692, %v693
        %v695 = vrot.slane %v694, 2
        %v696 = vadd.f32 %v694, %v695
        %v697 = vrot.slane %v696, 1
        %v698 = vadd.f32 %v696, %v697
        %v699 = vmul.f32 %v629, 0.00390625
        %v700 = vmul.f32 %v698, 0.00390625
        %v701 = vmul.f32 %v699, %v699
        %v702 = vsub.f32 %v700, %v701
        %v703 = vmax.f32 %v702, 0.0
        %v704 = vadd.f32 %v703, 1e-05
        %v705 = vrsqrt.pop %v704
        %v706 = vmul.f32 %v705, %v704
        %v707 = vmul.f32 %v706, %v705
        %v708 = vmul.f32 0.5, %v707
        %v709 = vsub.f32 1.5, %v708
        %v710 = vmul.f32 %v705, %v709
        %vm711 = vweird.f32 %v704
        %vm712 = vweird.f32 %v705
        %vm713 = vmor %vm711, %vm712
        %v714 = vsel %vm713, %v705, %v710
        %v715 = vmul.f32 %v591, %v714
        %v716 = vmul.f32 %v699, %v715
        %v717 = vsub.f32 %v592, %v716
        %v719 = vperm.slane %v715, 0
        %v721 = vmul.f32 %v496, %v719
        %v722 = vmul.f32 %v499, %v719
        %v723 = vmul.f32 %v502, %v719
        %v724 = vmul.f32 %v505, %v719
        %v725 = vmul.f32 %v508, %v719
        %v726 = vmul.f32 %v511, %v719
        %v727 = vmul.f32 %v514, %v719
        %v728 = vmul.f32 %v517, %v719
        %v729 = vmul.f32 %v520, %v719
        %v730 = vmul.f32 %v523, %v719
        %v731 = vmul.f32 %v526, %v719
        %v732 = vmul.f32 %v529, %v719
        %v733 = vmul.f32 %v532, %v719
        %v734 = vmul.f32 %v535, %v719
        %v735 = vmul.f32 %v538, %v719
        %v736 = vmul.f32 %v541, %v719
        %v737 = vmul.f32 %v544, %v719
        %v738 = vmul.f32 %v547, %v719
        %v739 = vmul.f32 %v550, %v719
        %v740 = vmul.f32 %v553, %v719
        %v741 = vmul.f32 %v556, %v719
        %v742 = vmul.f32 %v559, %v719
        %v743 = vmul.f32 %v562, %v719
        %v744 = vmul.f32 %v565, %v719
        %v745 = vmul.f32 %v568, %v719
        %v746 = vmul.f32 %v571, %v719
        %v747 = vmul.f32 %v574, %v719
        %v748 = vmul.f32 %v577, %v719
        %v749 = vmul.f32 %v580, %v719
        %v750 = vmul.f32 %v583, %v719
        %v751 = vmul.f32 %v586, %v719
        %v752 = vmul.f32 %v589, %v719
        %v754 = vperm.slane %v717, 0
        %v756 = vadd.f32 %v721, %v754
        %v757 = vadd.f32 %v722, %v754
        %v758 = vadd.f32 %v723, %v754
        %v759 = vadd.f32 %v724, %v754
        %v760 = vadd.f32 %v725, %v754
        %v761 = vadd.f32 %v726, %v754
        %v762 = vadd.f32 %v727, %v754
        %v763 = vadd.f32 %v728, %v754
        %v764 = vadd.f32 %v729, %v754
        %v765 = vadd.f32 %v730, %v754
        %v766 = vadd.f32 %v731, %v754
        %v767 = vadd.f32 %v732, %v754
        %v768 = vadd.f32 %v733, %v754
        %v769 = vadd.f32 %v734, %v754
        %v770 = vadd.f32 %v735, %v754
        %v771 = vadd.f32 %v736, %v754
        %v772 = vadd.f32 %v737, %v754
        %v773 = vadd.f32 %v738, %v754
        %v774 = vadd.f32 %v739, %v754
        %v775 = vadd.f32 %v740, %v754
        %v776 = vadd.f32 %v741, %v754
        %v777 = vadd.f32 %v742, %v754
        %v778 = vadd.f32 %v743, %v754
        %v779 = vadd.f32 %v744, %v754
        %v780 = vadd.f32 %v745, %v754
        %v781 = vadd.f32 %v746, %v754
        %v782 = vadd.f32 %v747, %v754
        %v783 = vadd.f32 %v748, %v754
        %v784 = vadd.f32 %v749, %v754
        %v785 = vadd.f32 %v750, %v754
        %v786 = vadd.f32 %v751, %v754
        %v787 = vadd.f32 %v752, %v754
        %v788 = vmax.f32 %v756, 0.0
        %v789 = vmax.f32 %v757, 0.0
        %v790 = vmax.f32 %v758, 0.0
        %v791 = vmax.f32 %v759, 0.0
        %v792 = vmax.f32 %v760, 0.0
        %v793 = vmax.f32 %v761, 0.0
        %v794 = vmax.f32 %v762, 0.0
        %v795 = vmax.f32 %v763, 0.0
        %v796 = vmax.f32 %v764, 0.0
        %v797 = vmax.f32 %v765, 0.0
        %v798 = vmax.f32 %v766, 0.0
        %v799 = vmax.f32 %v767, 0.0
        %v800 = vmax.f32 %v768, 0.0
        %v801 = vmax.f32 %v769, 0.0
        %v802 = vmax.f32 %v770, 0.0
        %v803 = vmax.f32 %v771, 0.0
        %v804 = vmax.f32 %v772, 0.0
        %v805 = vmax.f32 %v773, 0.0
        %v806 = vmax.f32 %v774, 0.0
        %v807 = vmax.f32 %v775, 0.0
        %v808 = vmax.f32 %v776, 0.0
        %v809 = vmax.f32 %v777, 0.0
        %v810 = vmax.f32 %v778, 0.0
        %v811 = vmax.f32 %v779, 0.0
        %v812 = vmax.f32 %v780, 0.0
        %v813 = vmax.f32 %v781, 0.0
        %v814 = vmax.f32 %v782, 0.0
        %v815 = vmax.f32 %v783, 0.0
        %v816 = vmax.f32 %v784, 0.0
        %v817 = vmax.f32 %v785, 0.0
        %v818 = vmax.f32 %v786, 0.0
        %v819 = vmax.f32 %v787, 0.0
        %820 = vst [vmem:[#allocation2] sm:$0xff] 0.0
        %821 = vst [vmem:[#allocation2 + $0x8] sm:$0xff] 0.0
        %822 = vst [vmem:[#allocation2 + $0x10] sm:$0xff] 0.0
        %823 = vst [vmem:[#allocation2 + $0x18] sm:$0xff] 0.0
        %824 = vst [vmem:[#allocation2 + $0x20] sm:$0xff] %v788
        %825 = vst [vmem:[#allocation2 + $0x28] sm:$0xff] %v789
        %826 = vst [vmem:[#allocation2 + $0x30] sm:$0xff] %v790
        %827 = vst [vmem:[#allocation2 + $0x38] sm:$0xff] %v791
        %828 = vst [vmem:[#allocation2 + $0x40] sm:$0xff] %v792
        %829 = vst [vmem:[#allocation2 + $0x48] sm:$0xff] %v793
        %830 = vst [vmem:[#allocation2 + $0x50] sm:$0xff] %v794
        %831 = vst [vmem:[#allocation2 + $0x58] sm:$0xff] %v795
        %832 = vst [vmem:[#allocation2 + $0x60] sm:$0xff] %v796
        %833 = vst [vmem:[#allocation2 + $0x68] sm:$0xff] %v797
        %834 = vst [vmem:[#allocation2 + $0x70] sm:$0xff] %v798
        %835 = vst [vmem:[#allocation2 + $0x78] sm:$0xff] %v799
        %836 = vst [vmem:[#allocation2 + $0x80] sm:$0xff] %v800
        %837 = vst [vmem:[#allocation2 + $0x88] sm:$0xff] %v801
        %838 = vst [vmem:[#allocation2 + $0x90] sm:$0xff] %v802
        %839 = vst [vmem:[#allocation2 + $0x98] sm:$0xff] %v803
        %840 = vst [vmem:[#allocation2 + $0xa0] sm:$0xff] %v804
        %841 = vst [vmem:[#allocation2 + $0xa8] sm:$0xff] %v805
        %842 = vst [vmem:[#allocation2 + $0xb0] sm:$0xff] %v806
        %843 = vst [vmem:[#allocation2 + $0xb8] sm:$0xff] %v807
        %844 = vst [vmem:[#allocation2 + $0xc0] sm:$0xff] %v808
        %845 = vst [vmem:[#allocation2 + $0xc8] sm:$0xff] %v809
        %846 = vst [vmem:[#allocation2 + $0xd0] sm:$0xff] %v810
        %847 = vst [vmem:[#allocation2 + $0xd8] sm:$0xff] %v811
        %848 = vst [vmem:[#allocation2 + $0xe0] sm:$0xff] %v812
        %849 = vst [vmem:[#allocation2 + $0xe8] sm:$0xff] %v813
        %850 = vst [vmem:[#allocation2 + $0xf0] sm:$0xff] %v814
        %851 = vst [vmem:[#allocation2 + $0xf8] sm:$0xff] %v815
        %852 = vst [vmem:[#allocation2 + $0x100] sm:$0xff] %v816
        %853 = vst [vmem:[#allocation2 + $0x108] sm:$0xff] %v817
        %854 = vst [vmem:[#allocation2 + $0x110] sm:$0xff] %v818
        %855 = vst [vmem:[#allocation2 + $0x118] sm:$0xff] %v819
        %856 = vst [vmem:[#allocation2 + $0x120] sm:$0xff] 0.0
        %857 = vst [vmem:[#allocation2 + $0x128] sm:$0xff] 0.0
        %858 = vst [vmem:[#allocation2 + $0x130] sm:$0xff] 0.0
        %859 = vst [vmem:[#allocation2 + $0x138] sm:$0xff] 0.0
        %v860 = vlaneseq
        %v861 = vshrl.u32 %v860, 7
        %v862 = vadd.s32 %v861, 8
        %v863 = vadd.s32 %v861, 16
        %v864 = vadd.s32 %v861, 24
        %v865 = vadd.s32 %v861, 32
        %v866 = vadd.s32 %v861, 40
        %v867 = vadd.s32 %v861, 48
        %v868 = vadd.s32 %v861, 56
        %v869 = vadd.s32 %v861, 64
        %v870 = vadd.s32 %v861, 72
        %v871 = vadd.s32 %v861, 80
        %v872 = vadd.s32 %v861, 88
        %v873 = vadd.s32 %v861, 96
        %v874 = vadd.s32 %v861, 104
        %v875 = vadd.s32 %v861, 112
        %v876 = vadd.s32 %v861, 120
        %v877 = vadd.s32 %v861, 128
        %v878 = vadd.s32 %v861, 136
        %v879 = vadd.s32 %v861, 144
        %v880 = vadd.s32 %v861, 152
        %v881 = vadd.s32 %v861, 160
        %v882 = vadd.s32 %v861, 168
        %v883 = vadd.s32 %v861, 176
        %v884 = vadd.s32 %v861, 184
        %v885 = vadd.s32 %v861, 192
        %v886 = vadd.s32 %v861, 200
        %v887 = vadd.s32 %v861, 208
        %v888 = vadd.s32 %v861, 216
        %v889 = vadd.s32 %v861, 224
        %v890 = vadd.s32 %v861, 232
        %v891 = vadd.s32 %v861, 240
        %v892 = vadd.s32 %v861, 248
        %vm893 = vcmp.lt.s32.totalorder %v861, 0
        %v894 = vsub.s32 0, %v861
        %v895 = vsel %vm893, %v894, %v861
        %v896 = vshrl.u32 %v895, 4
        %v897 = vand.u32 %v895, 15
        %v898 = vsub.s32 0, %v897
        %v899 = vsel %vm893, %v898, %v897
        %vm900 = vcmp.lt.s32.totalorder %v862, 0
        %v901 = vsub.s32 0, %v862
        %v902 = vsel %vm900, %v901, %v862
        %v903 = vshrl.u32 %v902, 4
        %v904 = vand.u32 %v902, 15
        %v905 = vsub.s32 0, %v904
        %v906 = vsel %vm900, %v905, %v904
        %vm907 = vcmp.lt.s32.totalorder %v863, 0
        %v908 = vsub.s32 0, %v863
        %v909 = vsel %vm907, %v908, %v863
        %v910 = vshrl.u32 %v909, 4
        %v911 = vand.u32 %v909, 15
        %v912 = vsub.s32 0, %v911
        %v913 = vsel %vm907, %v912, %v911
        %vm914 = vcmp.lt.s32.totalorder %v864, 0
        %v915 = vsub.s32 0, %v864
        %v916 = vsel %vm914, %v915, %v864
        %v917 = vshrl.u32 %v916, 4
        %v918 = vand.u32 %v916, 15
        %v919 = vsub.s32 0, %v918
        %v920 = vsel %vm914, %v919, %v918
        %vm921 = vcmp.lt.s32.totalorder %v865, 0
        %v922 = vsub.s32 0, %v865
        %v923 = vsel %vm921, %v922, %v865
        %v924 = vshrl.u32 %v923, 4
        %v925 = vand.u32 %v923, 15
        %v926 = vsub.s32 0, %v925
        %v927 = vsel %vm921, %v926, %v925
        %vm928 = vcmp.lt.s32.totalorder %v866, 0
        %v929 = vsub.s32 0, %v866
        %v930 = vsel %vm928, %v929, %v866
        %v931 = vshrl.u32 %v930, 4
        %v932 = vand.u32 %v930, 15
        %v933 = vsub.s32 0, %v932
        %v934 = vsel %vm928, %v933, %v932
        %vm935 = vcmp.lt.s32.totalorder %v867, 0
        %v936 = vsub.s32 0, %v867
        %v937 = vsel %vm935, %v936, %v867
        %v938 = vshrl.u32 %v937, 4
        %v939 = vand.u32 %v937, 15
        %v940 = vsub.s32 0, %v939
        %v941 = vsel %vm935, %v940, %v939
        %vm942 = vcmp.lt.s32.totalorder %v868, 0
        %v943 = vsub.s32 0, %v868
        %v944 = vsel %vm942, %v943, %v868
        %v945 = vshrl.u32 %v944, 4
        %v946 = vand.u32 %v944, 15
        %v947 = vsub.s32 0, %v946
        %v948 = vsel %vm942, %v947, %v946
        %vm949 = vcmp.lt.s32.totalorder %v869, 0
        %v950 = vsub.s32 0, %v869
        %v951 = vsel %vm949, %v950, %v869
        %v952 = vshrl.u32 %v951, 4
        %v953 = vand.u32 %v951, 15
        %v954 = vsub.s32 0, %v953
        %v955 = vsel %vm949, %v954, %v953
        %vm956 = vcmp.lt.s32.totalorder %v870, 0
        %v957 = vsub.s32 0, %v870
        %v958 = vsel %vm956, %v957, %v870
        %v959 = vshrl.u32 %v958, 4
        %v960 = vand.u32 %v958, 15
        %v961 = vsub.s32 0, %v960
        %v962 = vsel %vm956, %v961, %v960
        %vm963 = vcmp.lt.s32.totalorder %v871, 0
        %v964 = vsub.s32 0, %v871
        %v965 = vsel %vm963, %v964, %v871
        %v966 = vshrl.u32 %v965, 4
        %v967 = vand.u32 %v965, 15
        %v968 = vsub.s32 0, %v967
        %v969 = vsel %vm963, %v968, %v967
        %vm970 = vcmp.lt.s32.totalorder %v872, 0
        %v971 = vsub.s32 0, %v872
        %v972 = vsel %vm970, %v971, %v872
        %v973 = vshrl.u32 %v972, 4
        %v974 = vand.u32 %v972, 15
        %v975 = vsub.s32 0, %v974
        %v976 = vsel %vm970, %v975, %v974
        %vm977 = vcmp.lt.s32.totalorder %v873, 0
        %v978 = vsub.s32 0, %v873
        %v979 = vsel %vm977, %v978, %v873
        %v980 = vshrl.u32 %v979, 4
        %v981 = vand.u32 %v979, 15
        %v982 = vsub.s32 0, %v981
        %v983 = vsel %vm977, %v982, %v981
        %vm984 = vcmp.lt.s32.totalorder %v874, 0
        %v985 = vsub.s32 0, %v874
        %v986 = vsel %vm984, %v985, %v874
        %v987 = vshrl.u32 %v986, 4
        %v988 = vand.u32 %v986, 15
        %v989 = vsub.s32 0, %v988
        %v990 = vsel %vm984, %v989, %v988
        %vm991 = vcmp.lt.s32.totalorder %v875, 0
        %v992 = vsub.s32 0, %v875
        %v993 = vsel %vm991, %v992, %v875
        %v994 = vshrl.u32 %v993, 4
        %v995 = vand.u32 %v993, 15
        %v996 = vsub.s32 0, %v995
        %v997 = vsel %vm991, %v996, %v995
        %vm998 = vcmp.lt.s32.totalorder %v876, 0
        %v999 = vsub.s32 0, %v876
        %v1000 = vsel %vm998, %v999, %v876
        %v1001 = vshrl.u32 %v1000, 4
        %v1002 = vand.u32 %v1000, 15
        %v1003 = vsub.s32 0, %v1002
        %v1004 = vsel %vm998, %v1003, %v1002
        %vm1005 = vcmp.lt.s32.totalorder %v877, 0
        %v1006 = vsub.s32 0, %v877
        %v1007 = vsel %vm1005, %v1006, %v877
        %v1008 = vshrl.u32 %v1007, 4
        %v1009 = vand.u32 %v1007, 15
        %v1010 = vsub.s32 0, %v1009
        %v1011 = vsel %vm1005, %v1010, %v1009
        %vm1012 = vcmp.lt.s32.totalorder %v878, 0
        %v1013 = vsub.s32 0, %v878
        %v1014 = vsel %vm1012, %v1013, %v878
        %v1015 = vshrl.u32 %v1014, 4
        %v1016 = vand.u32 %v1014, 15
        %v1017 = vsub.s32 0, %v1016
        %v1018 = vsel %vm1012, %v1017, %v1016
        %vm1019 = vcmp.lt.s32.totalorder %v879, 0
        %v1020 = vsub.s32 0, %v879
        %v1021 = vsel %vm1019, %v1020, %v879
        %v1022 = vshrl.u32 %v1021, 4
        %v1023 = vand.u32 %v1021, 15
        %v1024 = vsub.s32 0, %v1023
        %v1025 = vsel %vm1019, %v1024, %v1023
        %vm1026 = vcmp.lt.s32.totalorder %v880, 0
        %v1027 = vsub.s32 0, %v880
        %v1028 = vsel %vm1026, %v1027, %v880
        %v1029 = vshrl.u32 %v1028, 4
        %v1030 = vand.u32 %v1028, 15
        %v1031 = vsub.s32 0, %v1030
        %v1032 = vsel %vm1026, %v1031, %v1030
        %vm1033 = vcmp.lt.s32.totalorder %v881, 0
        %v1034 = vsub.s32 0, %v881
        %v1035 = vsel %vm1033, %v1034, %v881
        %v1036 = vshrl.u32 %v1035, 4
        %v1037 = vand.u32 %v1035, 15
        %v1038 = vsub.s32 0, %v1037
        %v1039 = vsel %vm1033, %v1038, %v1037
        %vm1040 = vcmp.lt.s32.totalorder %v882, 0
        %v1041 = vsub.s32 0, %v882
        %v1042 = vsel %vm1040, %v1041, %v882
        %v1043 = vshrl.u32 %v1042, 4
        %v1044 = vand.u32 %v1042, 15
        %v1045 = vsub.s32 0, %v1044
        %v1046 = vsel %vm1040, %v1045, %v1044
        %vm1047 = vcmp.lt.s32.totalorder %v883, 0
        %v1048 = vsub.s32 0, %v883
        %v1049 = vsel %vm1047, %v1048, %v883
        %v1050 = vshrl.u32 %v1049, 4
        %v1051 = vand.u32 %v1049, 15
        %v1052 = vsub.s32 0, %v1051
        %v1053 = vsel %vm1047, %v1052, %v1051
        %vm1054 = vcmp.lt.s32.totalorder %v884, 0
        %v1055 = vsub.s32 0, %v884
        %v1056 = vsel %vm1054, %v1055, %v884
        %v1057 = vshrl.u32 %v1056, 4
        %v1058 = vand.u32 %v1056, 15
        %v1059 = vsub.s32 0, %v1058
        %v1060 = vsel %vm1054, %v1059, %v1058
        %vm1061 = vcmp.lt.s32.totalorder %v885, 0
        %v1062 = vsub.s32 0, %v885
        %v1063 = vsel %vm1061, %v1062, %v885
        %v1064 = vshrl.u32 %v1063, 4
        %v1065 = vand.u32 %v1063, 15
        %v1066 = vsub.s32 0, %v1065
        %v1067 = vsel %vm1061, %v1066, %v1065
        %vm1068 = vcmp.lt.s32.totalorder %v886, 0
        %v1069 = vsub.s32 0, %v886
        %v1070 = vsel %vm1068, %v1069, %v886
        %v1071 = vshrl.u32 %v1070, 4
        %v1072 = vand.u32 %v1070, 15
        %v1073 = vsub.s32 0, %v1072
        %v1074 = vsel %vm1068, %v1073, %v1072
        %vm1075 = vcmp.lt.s32.totalorder %v887, 0
        %v1076 = vsub.s32 0, %v887
        %v1077 = vsel %vm1075, %v1076, %v887
        %v1078 = vshrl.u32 %v1077, 4
        %v1079 = vand.u32 %v1077, 15
        %v1080 = vsub.s32 0, %v1079
        %v1081 = vsel %vm1075, %v1080, %v1079
        %vm1082 = vcmp.lt.s32.totalorder %v888, 0
        %v1083 = vsub.s32 0, %v888
        %v1084 = vsel %vm1082, %v1083, %v888
        %v1085 = vshrl.u32 %v1084, 4
        %v1086 = vand.u32 %v1084, 15
        %v1087 = vsub.s32 0, %v1086
        %v1088 = vsel %vm1082, %v1087, %v1086
        %vm1089 = vcmp.lt.s32.totalorder %v889, 0
        %v1090 = vsub.s32 0, %v889
        %v1091 = vsel %vm1089, %v1090, %v889
        %v1092 = vshrl.u32 %v1091, 4
        %v1093 = vand.u32 %v1091, 15
        %v1094 = vsub.s32 0, %v1093
        %v1095 = vsel %vm1089, %v1094, %v1093
        %vm1096 = vcmp.lt.s32.totalorder %v890, 0
        %v1097 = vsub.s32 0, %v890
        %v1098 = vsel %vm1096, %v1097, %v890
        %v1099 = vshrl.u32 %v1098, 4
        %v1100 = vand.u32 %v1098, 15
        %v1101 = vsub.s32 0, %v1100
        %v1102 = vsel %vm1096, %v1101, %v1100
        %vm1103 = vcmp.lt.s32.totalorder %v891, 0
        %v1104 = vsub.s32 0, %v891
        %v1105 = vsel %vm1103, %v1104, %v891
        %v1106 = vshrl.u32 %v1105, 4
        %v1107 = vand.u32 %v1105, 15
        %v1108 = vsub.s32 0, %v1107
        %v1109 = vsel %vm1103, %v1108, %v1107
        %vm1110 = vcmp.lt.s32.totalorder %v892, 0
        %v1111 = vsub.s32 0, %v892
        %v1112 = vsel %vm1110, %v1111, %v892
        %v1113 = vshrl.u32 %v1112, 4
        %v1114 = vand.u32 %v1112, 15
        %v1115 = vsub.s32 0, %v1114
        %v1116 = vsel %vm1110, %v1115, %v1114
        %vm1117 = vcmp.ne.s32.totalorder %v899, 0
        %vm1118 = vcmp.ne.s32.totalorder %v906, 0
        %vm1119 = vcmp.ne.s32.totalorder %v913, 0
        %vm1120 = vcmp.ne.s32.totalorder %v920, 0
        %vm1121 = vcmp.ne.s32.totalorder %v927, 0
        %vm1122 = vcmp.ne.s32.totalorder %v934, 0
        %vm1123 = vcmp.ne.s32.totalorder %v941, 0
        %vm1124 = vcmp.ne.s32.totalorder %v948, 0
        %vm1125 = vcmp.ne.s32.totalorder %v955, 0
        %vm1126 = vcmp.ne.s32.totalorder %v962, 0
        %vm1127 = vcmp.ne.s32.totalorder %v969, 0
        %vm1128 = vcmp.ne.s32.totalorder %v976, 0
        %vm1129 = vcmp.ne.s32.totalorder %v983, 0
        %vm1130 = vcmp.ne.s32.totalorder %v990, 0
        %vm1131 = vcmp.ne.s32.totalorder %v997, 0
        %vm1132 = vcmp.ne.s32.totalorder %v1004, 0
        %vm1133 = vcmp.ne.s32.totalorder %v1011, 0
        %vm1134 = vcmp.ne.s32.totalorder %v1018, 0
        %vm1135 = vcmp.ne.s32.totalorder %v1025, 0
        %vm1136 = vcmp.ne.s32.totalorder %v1032, 0
        %vm1137 = vcmp.ne.s32.totalorder %v1039, 0
        %vm1138 = vcmp.ne.s32.totalorder %v1046, 0
        %vm1139 = vcmp.ne.s32.totalorder %v1053, 0
        %vm1140 = vcmp.ne.s32.totalorder %v1060, 0
        %vm1141 = vcmp.ne.s32.totalorder %v1067, 0
        %vm1142 = vcmp.ne.s32.totalorder %v1074, 0
        %vm1143 = vcmp.ne.s32.totalorder %v1081, 0
        %vm1144 = vcmp.ne.s32.totalorder %v1088, 0
        %vm1145 = vcmp.ne.s32.totalorder %v1095, 0
        %vm1146 = vcmp.ne.s32.totalorder %v1102, 0
        %vm1147 = vcmp.ne.s32.totalorder %v1109, 0
        %vm1148 = vcmp.ne.s32.totalorder %v1116, 0
        %vm1149 = vcmp.lt.s32.totalorder %v899, 0
        %vm1150 = vcmp.lt.s32.totalorder %v906, 0
        %vm1151 = vcmp.lt.s32.totalorder %v913, 0
        %vm1152 = vcmp.lt.s32.totalorder %v920, 0
        %vm1153 = vcmp.lt.s32.totalorder %v927, 0
        %vm1154 = vcmp.lt.s32.totalorder %v934, 0
        %vm1155 = vcmp.lt.s32.totalorder %v941, 0
        %vm1156 = vcmp.lt.s32.totalorder %v948, 0
        %vm1157 = vcmp.lt.s32.totalorder %v955, 0
        %vm1158 = vcmp.lt.s32.totalorder %v962, 0
        %vm1159 = vcmp.lt.s32.totalorder %v969, 0
        %vm1160 = vcmp.lt.s32.totalorder %v976, 0
        %vm1161 = vcmp.lt.s32.totalorder %v983, 0
        %vm1162 = vcmp.lt.s32.totalorder %v990, 0
        %vm1163 = vcmp.lt.s32.totalorder %v997, 0
        %vm1164 = vcmp.lt.s32.totalorder %v1004, 0
        %vm1165 = vcmp.lt.s32.totalorder %v1011, 0
        %vm1166 = vcmp.lt.s32.totalorder %v1018, 0
        %vm1167 = vcmp.lt.s32.totalorder %v1025, 0
        %vm1168 = vcmp.lt.s32.totalorder %v1032, 0
        %vm1169 = vcmp.lt.s32.totalorder %v1039, 0
        %vm1170 = vcmp.lt.s32.totalorder %v1046, 0
        %vm1171 = vcmp.lt.s32.totalorder %v1053, 0
        %vm1172 = vcmp.lt.s32.totalorder %v1060, 0
        %vm1173 = vcmp.lt.s32.totalorder %v1067, 0
        %vm1174 = vcmp.lt.s32.totalorder %v1074, 0
        %vm1175 = vcmp.lt.s32.totalorder %v1081, 0
        %vm1176 = vcmp.lt.s32.totalorder %v1088, 0
        %vm1177 = vcmp.lt.s32.totalorder %v1095, 0
        %vm1178 = vcmp.lt.s32.totalorder %v1102, 0
        %vm1179 = vcmp.lt.s32.totalorder %v1109, 0
        %vm1180 = vcmp.lt.s32.totalorder %v1116, 0
        %vm1181 = vmand %vm1149, %vm1117
        %vm1182 = vmand %vm1150, %vm1118
        %vm1183 = vmand %vm1151, %vm1119
        %vm1184 = vmand %vm1152, %vm1120
        %vm1185 = vmand %vm1153, %vm1121
        %vm1186 = vmand %vm1154, %vm1122
        %vm1187 = vmand %vm1155, %vm1123
        %vm1188 = vmand %vm1156, %vm1124
        %vm1189 = vmand %vm1157, %vm1125
        %vm1190 = vmand %vm1158, %vm1126
        %vm1191 = vmand %vm1159, %vm1127
        %vm1192 = vmand %vm1160, %vm1128
        %vm1193 = vmand %vm1161, %vm1129
        %vm1194 = vmand %vm1162, %vm1130
        %vm1195 = vmand %vm1163, %vm1131
        %vm1196 = vmand %vm1164, %vm1132
        %vm1197 = vmand %vm1165, %vm1133
        %vm1198 = vmand %vm1166, %vm1134
        %vm1199 = vmand %vm1167, %vm1135
        %vm1200 = vmand %vm1168, %vm1136
        %vm1201 = vmand %vm1169, %vm1137
        %vm1202 = vmand %vm1170, %vm1138
        %vm1203 = vmand %vm1171, %vm1139
        %vm1204 = vmand %vm1172, %vm1140
        %vm1205 = vmand %vm1173, %vm1141
        %vm1206 = vmand %vm1174, %vm1142
        %vm1207 = vmand %vm1175, %vm1143
        %vm1208 = vmand %vm1176, %vm1144
        %vm1209 = vmand %vm1177, %vm1145
        %vm1210 = vmand %vm1178, %vm1146
        %vm1211 = vmand %vm1179, %vm1147
        %vm1212 = vmand %vm1180, %vm1148
        %v1213 = vadd.s32 %v899, 16
        %v1214 = vadd.s32 %v906, 16
        %v1215 = vadd.s32 %v913, 16
        %v1216 = vadd.s32 %v920, 16
        %v1217 = vadd.s32 %v927, 16
        %v1218 = vadd.s32 %v934, 16
        %v1219 = vadd.s32 %v941, 16
        %v1220 = vadd.s32 %v948, 16
        %v1221 = vadd.s32 %v955, 16
        %v1222 = vadd.s32 %v962, 16
        %v1223 = vadd.s32 %v969, 16
        %v1224 = vadd.s32 %v976, 16
        %v1225 = vadd.s32 %v983, 16
        %v1226 = vadd.s32 %v990, 16
        %v1227 = vadd.s32 %v997, 16
        %v1228 = vadd.s32 %v1004, 16
        %v1229 = vadd.s32 %v1011, 16
        %v1230 = vadd.s32 %v1018, 16
        %v1231 = vadd.s32 %v1025, 16
        %v1232 = vadd.s32 %v1032, 16
        %v1233 = vadd.s32 %v1039, 16
        %v1234 = vadd.s32 %v1046, 16
        %v1235 = vadd.s32 %v1053, 16
        %v1236 = vadd.s32 %v1060, 16
        %v1237 = vadd.s32 %v1067, 16
        %v1238 = vadd.s32 %v1074, 16
        %v1239 = vadd.s32 %v1081, 16
        %v1240 = vadd.s32 %v1088, 16
        %v1241 = vadd.s32 %v1095, 16
        %v1242 = vadd.s32 %v1102, 16
        %v1243 = vadd.s32 %v1109, 16
        %v1244 = vadd.s32 %v1116, 16
        %v1245 = vsel %vm1181, %v1213, %v899
        %v1246 = vsel %vm1182, %v1214, %v906
        %v1247 = vsel %vm1183, %v1215, %v913
        %v1248 = vsel %vm1184, %v1216, %v920
        %v1249 = vsel %vm1185, %v1217, %v927
        %v1250 = vsel %vm1186, %v1218, %v934
        %v1251 = vsel %vm1187, %v1219, %v941
        %v1252 = vsel %vm1188, %v1220, %v948
        %v1253 = vsel %vm1189, %v1221, %v955
        %v1254 = vsel %vm1190, %v1222, %v962
        %v1255 = vsel %vm1191, %v1223, %v969
        %v1256 = vsel %vm1192, %v1224, %v976
        %v1257 = vsel %vm1193, %v1225, %v983
        %v1258 = vsel %vm1194, %v1226, %v990
        %v1259 = vsel %vm1195, %v1227, %v997
        %v1260 = vsel %vm1196, %v1228, %v1004
        %v1261 = vsel %vm1197, %v1229, %v1011
        %v1262 = vsel %vm1198, %v1230, %v1018
        %v1263 = vsel %vm1199, %v1231, %v1025
        %v1264 = vsel %vm1200, %v1232, %v1032
        %v1265 = vsel %vm1201, %v1233, %v1039
        %v1266 = vsel %vm1202, %v1234, %v1046
        %v1267 = vsel %vm1203, %v1235, %v1053
        %v1268 = vsel %vm1204, %v1236, %v1060
        %v1269 = vsel %vm1205, %v1237, %v1067
        %v1270 = vsel %vm1206, %v1238, %v1074
        %v1271 = vsel %vm1207, %v1239, %v1081
        %v1272 = vsel %vm1208, %v1240, %v1088
        %v1273 = vsel %vm1209, %v1241, %v1095
        %v1274 = vsel %vm1210, %v1242, %v1102
        %v1275 = vsel %vm1211, %v1243, %v1109
        %v1276 = vsel %vm1212, %v1244, %v1116
        %vm1277 = vcmp.ge.s32.totalorder %v1245, 1
        %vm1278 = vcmp.ge.s32.totalorder %v1246, 1
        %vm1279 = vcmp.ge.s32.totalorder %v1247, 1
        %vm1280 = vcmp.ge.s32.totalorder %v1248, 1
        %vm1281 = vcmp.ge.s32.totalorder %v1249, 1
        %vm1282 = vcmp.ge.s32.totalorder %v1250, 1
        %vm1283 = vcmp.ge.s32.totalorder %v1251, 1
        %vm1284 = vcmp.ge.s32.totalorder %v1252, 1
        %vm1285 = vcmp.ge.s32.totalorder %v1253, 1
        %vm1286 = vcmp.ge.s32.totalorder %v1254, 1
        %vm1287 = vcmp.ge.s32.totalorder %v1255, 1
        %vm1288 = vcmp.ge.s32.totalorder %v1256, 1
        %vm1289 = vcmp.ge.s32.totalorder %v1257, 1
        %vm1290 = vcmp.ge.s32.totalorder %v1258, 1
        %vm1291 = vcmp.ge.s32.totalorder %v1259, 1
        %vm1292 = vcmp.ge.s32.totalorder %v1260, 1
        %vm1293 = vcmp.ge.s32.totalorder %v1261, 1
        %vm1294 = vcmp.ge.s32.totalorder %v1262, 1
        %vm1295 = vcmp.ge.s32.totalorder %v1263, 1
        %vm1296 = vcmp.ge.s32.totalorder %v1264, 1
        %vm1297 = vcmp.ge.s32.totalorder %v1265, 1
        %vm1298 = vcmp.ge.s32.totalorder %v1266, 1
        %vm1299 = vcmp.ge.s32.totalorder %v1267, 1
        %vm1300 = vcmp.ge.s32.totalorder %v1268, 1
        %vm1301 = vcmp.ge.s32.totalorder %v1269, 1
        %vm1302 = vcmp.ge.s32.totalorder %v1270, 1
        %vm1303 = vcmp.ge.s32.totalorder %v1271, 1
        %vm1304 = vcmp.ge.s32.totalorder %v1272, 1
        %vm1305 = vcmp.ge.s32.totalorder %v1273, 1
        %vm1306 = vcmp.ge.s32.totalorder %v1274, 1
        %vm1307 = vcmp.ge.s32.totalorder %v1275, 1
        %vm1308 = vcmp.ge.s32.totalorder %v1276, 1
        %v1309 = vsel %vm1277, 1, 0
        %v1310 = vsel %vm1278, 1, 0
        %v1311 = vsel %vm1279, 1, 0
        %v1312 = vsel %vm1280, 1, 0
        %v1313 = vsel %vm1281, 1, 0
        %v1314 = vsel %vm1282, 1, 0
        %v1315 = vsel %vm1283, 1, 0
        %v1316 = vsel %vm1284, 1, 0
        %v1317 = vsel %vm1285, 1, 0
        %v1318 = vsel %vm1286, 1, 0
        %v1319 = vsel %vm1287, 1, 0
        %v1320 = vsel %vm1288, 1, 0
        %v1321 = vsel %vm1289, 1, 0
        %v1322 = vsel %vm1290, 1, 0
        %v1323 = vsel %vm1291, 1, 0
        %v1324 = vsel %vm1292, 1, 0
        %v1325 = vsel %vm1293, 1, 0
        %v1326 = vsel %vm1294, 1, 0
        %v1327 = vsel %vm1295, 1, 0
        %v1328 = vsel %vm1296, 1, 0
        %v1329 = vsel %vm1297, 1, 0
        %v1330 = vsel %vm1298, 1, 0
        %v1331 = vsel %vm1299, 1, 0
        %v1332 = vsel %vm1300, 1, 0
        %v1333 = vsel %vm1301, 1, 0
        %v1334 = vsel %vm1302, 1, 0
        %v1335 = vsel %vm1303, 1, 0
        %v1336 = vsel %vm1304, 1, 0
        %v1337 = vsel %vm1305, 1, 0
        %v1338 = vsel %vm1306, 1, 0
        %v1339 = vsel %vm1307, 1, 0
        %v1340 = vsel %vm1308, 1, 0
        %v1341 = vcvt.s32.f32 %v1309
        %v1342 = vcvt.s32.f32 %v1310
        %v1343 = vcvt.s32.f32 %v1311
        %v1344 = vcvt.s32.f32 %v1312
        %v1345 = vcvt.s32.f32 %v1313
        %v1346 = vcvt.s32.f32 %v1314
        %v1347 = vcvt.s32.f32 %v1315
        %v1348 = vcvt.s32.f32 %v1316
        %v1349 = vcvt.s32.f32 %v1317
        %v1350 = vcvt.s32.f32 %v1318
        %v1351 = vcvt.s32.f32 %v1319
        %v1352 = vcvt.s32.f32 %v1320
        %v1353 = vcvt.s32.f32 %v1321
        %v1354 = vcvt.s32.f32 %v1322
        %v1355 = vcvt.s32.f32 %v1323
        %v1356 = vcvt.s32.f32 %v1324
        %v1357 = vcvt.s32.f32 %v1325
        %v1358 = vcvt.s32.f32 %v1326
        %v1359 = vcvt.s32.f32 %v1327
        %v1360 = vcvt.s32.f32 %v1328
        %v1361 = vcvt.s32.f32 %v1329
        %v1362 = vcvt.s32.f32 %v1330
        %v1363 = vcvt.s32.f32 %v1331
        %v1364 = vcvt.s32.f32 %v1332
        %v1365 = vcvt.s32.f32 %v1333
        %v1366 = vcvt.s32.f32 %v1334
        %v1367 = vcvt.s32.f32 %v1335
        %v1368 = vcvt.s32.f32 %v1336
        %v1369 = vcvt.s32.f32 %v1337
        %v1370 = vcvt.s32.f32 %v1338
        %v1371 = vcvt.s32.f32 %v1339
        %v1372 = vcvt.s32.f32 %v1340
        %vm1373 = vcmp.le.s32.totalorder %v1245, 14
        %vm1374 = vcmp.le.s32.totalorder %v1246, 14
        %vm1375 = vcmp.le.s32.totalorder %v1247, 14
        %vm1376 = vcmp.le.s32.totalorder %v1248, 14
        %vm1377 = vcmp.le.s32.totalorder %v1249, 14
        %vm1378 = vcmp.le.s32.totalorder %v1250, 14
        %vm1379 = vcmp.le.s32.totalorder %v1251, 14
        %vm1380 = vcmp.le.s32.totalorder %v1252, 14
        %vm1381 = vcmp.le.s32.totalorder %v1253, 14
        %vm1382 = vcmp.le.s32.totalorder %v1254, 14
        %vm1383 = vcmp.le.s32.totalorder %v1255, 14
        %vm1384 = vcmp.le.s32.totalorder %v1256, 14
        %vm1385 = vcmp.le.s32.totalorder %v1257, 14
        %vm1386 = vcmp.le.s32.totalorder %v1258, 14
        %vm1387 = vcmp.le.s32.totalorder %v1259, 14
        %vm1388 = vcmp.le.s32.totalorder %v1260, 14
        %vm1389 = vcmp.le.s32.totalorder %v1261, 14
        %vm1390 = vcmp.le.s32.totalorder %v1262, 14
        %vm1391 = vcmp.le.s32.totalorder %v1263, 14
        %vm1392 = vcmp.le.s32.totalorder %v1264, 14
        %vm1393 = vcmp.le.s32.totalorder %v1265, 14
        %vm1394 = vcmp.le.s32.totalorder %v1266, 14
        %vm1395 = vcmp.le.s32.totalorder %v1267, 14
        %vm1396 = vcmp.le.s32.totalorder %v1268, 14
        %vm1397 = vcmp.le.s32.totalorder %v1269, 14
        %vm1398 = vcmp.le.s32.totalorder %v1270, 14
        %vm1399 = vcmp.le.s32.totalorder %v1271, 14
        %vm1400 = vcmp.le.s32.totalorder %v1272, 14
        %vm1401 = vcmp.le.s32.totalorder %v1273, 14
        %vm1402 = vcmp.le.s32.totalorder %v1274, 14
        %vm1403 = vcmp.le.s32.totalorder %v1275, 14
        %vm1404 = vcmp.le.s32.totalorder %v1276, 14
        %v1405 = vsel %vm1373, 1, 0
        %v1406 = vsel %vm1374, 1, 0
        %v1407 = vsel %vm1375, 1, 0
        %v1408 = vsel %vm1376, 1, 0
        %v1409 = vsel %vm1377, 1, 0
        %v1410 = vsel %vm1378, 1, 0
        %v1411 = vsel %vm1379, 1, 0
        %v1412 = vsel %vm1380, 1, 0
        %v1413 = vsel %vm1381, 1, 0
        %v1414 = vsel %vm1382, 1, 0
        %v1415 = vsel %vm1383, 1, 0
        %v1416 = vsel %vm1384, 1, 0
        %v1417 = vsel %vm1385, 1, 0
        %v1418 = vsel %vm1386, 1, 0
        %v1419 = vsel %vm1387, 1, 0
        %v1420 = vsel %vm1388, 1, 0
        %v1421 = vsel %vm1389, 1, 0
        %v1422 = vsel %vm1390, 1, 0
        %v1423 = vsel %vm1391, 1, 0
        %v1424 = vsel %vm1392, 1, 0
        %v1425 = vsel %vm1393, 1, 0
        %v1426 = vsel %vm1394, 1, 0
        %v1427 = vsel %vm1395, 1, 0
        %v1428 = vsel %vm1396, 1, 0
        %v1429 = vsel %vm1397, 1, 0
        %v1430 = vsel %vm1398, 1, 0
        %v1431 = vsel %vm1399, 1, 0
        %v1432 = vsel %vm1400, 1, 0
        %v1433 = vsel %vm1401, 1, 0
        %v1434 = vsel %vm1402, 1, 0
        %v1435 = vsel %vm1403, 1, 0
        %v1436 = vsel %vm1404, 1, 0
        %v1437 = vcvt.s32.f32 %v1405
        %v1438 = vcvt.s32.f32 %v1406
        %v1439 = vcvt.s32.f32 %v1407
        %v1440 = vcvt.s32.f32 %v1408
        %v1441 = vcvt.s32.f32 %v1409
        %v1442 = vcvt.s32.f32 %v1410
        %v1443 = vcvt.s32.f32 %v1411
        %v1444 = vcvt.s32.f32 %v1412
        %v1445 = vcvt.s32.f32 %v1413
        %v1446 = vcvt.s32.f32 %v1414
        %v1447 = vcvt.s32.f32 %v1415
        %v1448 = vcvt.s32.f32 %v1416
        %v1449 = vcvt.s32.f32 %v1417
        %v1450 = vcvt.s32.f32 %v1418
        %v1451 = vcvt.s32.f32 %v1419
        %v1452 = vcvt.s32.f32 %v1420
        %v1453 = vcvt.s32.f32 %v1421
        %v1454 = vcvt.s32.f32 %v1422
        %v1455 = vcvt.s32.f32 %v1423
        %v1456 = vcvt.s32.f32 %v1424
        %v1457 = vcvt.s32.f32 %v1425
        %v1458 = vcvt.s32.f32 %v1426
        %v1459 = vcvt.s32.f32 %v1427
        %v1460 = vcvt.s32.f32 %v1428
        %v1461 = vcvt.s32.f32 %v1429
        %v1462 = vcvt.s32.f32 %v1430
        %v1463 = vcvt.s32.f32 %v1431
        %v1464 = vcvt.s32.f32 %v1432
        %v1465 = vcvt.s32.f32 %v1433
        %v1466 = vcvt.s32.f32 %v1434
        %v1467 = vcvt.s32.f32 %v1435
        %v1468 = vcvt.s32.f32 %v1436
        %1469 = vst [vmem:[#allocation3] sm:$0xff] 0.0
        %1470 = vst [vmem:[#allocation3 + $0x8] sm:$0xff] 0.0
        %1471 = vst [vmem:[#allocation3 + $0x10] sm:$0xff] 0.0
        %1472 = vst [vmem:[#allocation3 + $0x18] sm:$0xff] 0.0
        %1473 = vst [vmem:[#allocation3 + $0x20] sm:$0xff] 0.0
        %1474 = vst [vmem:[#allocation3 + $0x28] sm:$0xff] 0.0
        %1475 = vst [vmem:[#allocation3 + $0x30] sm:$0xff] 0.0
        %1476 = vst [vmem:[#allocation3 + $0x38] sm:$0xff] 0.0
        %1477 = vst [vmem:[#allocation3 + $0x40] sm:$0xff] 0.0
        %1478 = vst [vmem:[#allocation3 + $0x48] sm:$0xff] 0.0
        %1479 = vst [vmem:[#allocation3 + $0x50] sm:$0xff] 0.0
        %1480 = vst [vmem:[#allocation3 + $0x58] sm:$0xff] 0.0
        %1481 = vst [vmem:[#allocation3 + $0x60] sm:$0xff] 0.0
        %1482 = vst [vmem:[#allocation3 + $0x68] sm:$0xff] 0.0
        %1483 = vst [vmem:[#allocation3 + $0x70] sm:$0xff] 0.0
        %1484 = vst [vmem:[#allocation3 + $0x78] sm:$0xff] 0.0
        %1485 = vst [vmem:[#allocation3 + $0x80] sm:$0xff] 0.0
        %1486 = vst [vmem:[#allocation3 + $0x88] sm:$0xff] 0.0
        %1487 = vst [vmem:[#allocation3 + $0x90] sm:$0xff] 0.0
        %1488 = vst [vmem:[#allocation3 + $0x98] sm:$0xff] 0.0
        %1489 = vst [vmem:[#allocation3 + $0xa0] sm:$0xff] 0.0
        %1490 = vst [vmem:[#allocation3 + $0xa8] sm:$0xff] 0.0
        %1491 = vst [vmem:[#allocation3 + $0xb0] sm:$0xff] 0.0
        %1492 = vst [vmem:[#allocation3 + $0xb8] sm:$0xff] 0.0
        %1493 = vst [vmem:[#allocation3 + $0xc0] sm:$0xff] 0.0
        %1494 = vst [vmem:[#allocation3 + $0xc8] sm:$0xff] 0.0
        %1495 = vst [vmem:[#allocation3 + $0xd0] sm:$0xff] 0.0
        %1496 = vst [vmem:[#allocation3 + $0xd8] sm:$0xff] 0.0
        %1497 = vst [vmem:[#allocation3 + $0xe0] sm:$0xff] 0.0
        %1498 = vst [vmem:[#allocation3 + $0xe8] sm:$0xff] 0.0
        %1499 = vst [vmem:[#allocation3 + $0xf0] sm:$0xff] 0.0
        %1500 = vst [vmem:[#allocation3 + $0xf8] sm:$0xff] 0.0
        loop: start=0, step=1, limit=3
        $region77: #{tpu_custom_call.1} parent=59 // loop_pre_header
          _
        $region78: #{tpu_custom_call.1} parent=59 // loop_header
          %s1502 = sphi 0, %s1506
          %p1503 = scmp.ge.s32.totalorder %s1502, 3
        $region79: #{tpu_custom_call.1} parent=59 // loop_header_branch
          %1505 = sbr.rel (%p1503) target = $region83
        $region80: #{tpu_custom_call.1} parent=59 // loop_body
          %s1507 = ssub.s32 %s1502, 1
          %s1508 = smul.u32 %s1507, 16
          %s1509 = sadd.s32 %s1508, 32
          %s1510 = sadd.s32 %s1508, 31
          %s1511 = scalar_lea.vmem [#allocation2], %s1510
          %v1512 = vld [vmem:[%s1511] sm:$0xff]
          %v1513 = vld [vmem:[%s1511 + $0x8] sm:$0xff]
          %v1514 = vld [vmem:[%s1511 + $0x10] sm:$0xff]
          %v1515 = vld [vmem:[%s1511 + $0x18] sm:$0xff]
          %v1516 = vld [vmem:[%s1511 + $0x20] sm:$0xff]
          %v1517 = vld [vmem:[%s1511 + $0x28] sm:$0xff]
          %v1518 = vld [vmem:[%s1511 + $0x30] sm:$0xff]
          %v1519 = vld [vmem:[%s1511 + $0x38] sm:$0xff]
          %v1520 = vld [vmem:[%s1511 + $0x40] sm:$0xff]
          %v1521 = vld [vmem:[%s1511 + $0x48] sm:$0xff]
          %v1522 = vld [vmem:[%s1511 + $0x50] sm:$0xff]
          %v1523 = vld [vmem:[%s1511 + $0x58] sm:$0xff]
          %v1524 = vld [vmem:[%s1511 + $0x60] sm:$0xff]
          %v1525 = vld [vmem:[%s1511 + $0x68] sm:$0xff]
          %v1526 = vld [vmem:[%s1511 + $0x70] sm:$0xff]
          %v1527 = vld [vmem:[%s1511 + $0x78] sm:$0xff]
          %v1528 = vld [vmem:[%s1511 + $0x80] sm:$0xff]
          %v1529 = vld [vmem:[%s1511 + $0x88] sm:$0xff]
          %v1530 = vld [vmem:[%s1511 + $0x90] sm:$0xff]
          %v1531 = vld [vmem:[%s1511 + $0x98] sm:$0xff]
          %v1532 = vld [vmem:[%s1511 + $0xa0] sm:$0xff]
          %v1533 = vld [vmem:[%s1511 + $0xa8] sm:$0xff]
          %v1534 = vld [vmem:[%s1511 + $0xb0] sm:$0xff]
          %v1535 = vld [vmem:[%s1511 + $0xb8] sm:$0xff]
          %v1536 = vld [vmem:[%s1511 + $0xc0] sm:$0xff]
          %v1537 = vld [vmem:[%s1511 + $0xc8] sm:$0xff]
          %v1538 = vld [vmem:[%s1511 + $0xd0] sm:$0xff]
          %v1539 = vld [vmem:[%s1511 + $0xd8] sm:$0xff]
          %v1540 = vld [vmem:[%s1511 + $0xe0] sm:$0xff]
          %v1541 = vld [vmem:[%s1511 + $0xe8] sm:$0xff]
          %v1542 = vld [vmem:[%s1511 + $0xf0] sm:$0xff]
          %v1543 = vld [vmem:[%s1511 + $0xf8] sm:$0xff]
          %v1544 = vmul.f32 %v1512, %v1341
          %v1545 = vmul.f32 %v1513, %v1342
          %v1546 = vmul.f32 %v1514, %v1343
          %v1547 = vmul.f32 %v1515, %v1344
          %v1548 = vmul.f32 %v1516, %v1345
          %v1549 = vmul.f32 %v1517, %v1346
          %v1550 = vmul.f32 %v1518, %v1347
          %v1551 = vmul.f32 %v1519, %v1348
          %v1552 = vmul.f32 %v1520, %v1349
          %v1553 = vmul.f32 %v1521, %v1350
          %v1554 = vmul.f32 %v1522, %v1351
          %v1555 = vmul.f32 %v1523, %v1352
          %v1556 = vmul.f32 %v1524, %v1353
          %v1557 = vmul.f32 %v1525, %v1354
          %v1558 = vmul.f32 %v1526, %v1355
          %v1559 = vmul.f32 %v1527, %v1356
          %v1560 = vmul.f32 %v1528, %v1357
          %v1561 = vmul.f32 %v1529, %v1358
          %v1562 = vmul.f32 %v1530, %v1359
          %v1563 = vmul.f32 %v1531, %v1360
          %v1564 = vmul.f32 %v1532, %v1361
          %v1565 = vmul.f32 %v1533, %v1362
          %v1566 = vmul.f32 %v1534, %v1363
          %v1567 = vmul.f32 %v1535, %v1364
          %v1568 = vmul.f32 %v1536, %v1365
          %v1569 = vmul.f32 %v1537, %v1366
          %v1570 = vmul.f32 %v1538, %v1367
          %v1571 = vmul.f32 %v1539, %v1368
          %v1572 = vmul.f32 %v1540, %v1369
          %v1573 = vmul.f32 %v1541, %v1370
          %v1574 = vmul.f32 %v1542, %v1371
          %v1575 = vmul.f32 %v1543, %v1372
          %s1576 = scalar_lea.vmem [#allocation2], %s1509
          %v1577 = vld [vmem:[%s1576] sm:$0xff]
          %v1578 = vld [vmem:[%s1576 + $0x8] sm:$0xff]
          %v1579 = vld [vmem:[%s1576 + $0x10] sm:$0xff]
          %v1580 = vld [vmem:[%s1576 + $0x18] sm:$0xff]
          %v1581 = vld [vmem:[%s1576 + $0x20] sm:$0xff]
          %v1582 = vld [vmem:[%s1576 + $0x28] sm:$0xff]
          %v1583 = vld [vmem:[%s1576 + $0x30] sm:$0xff]
          %v1584 = vld [vmem:[%s1576 + $0x38] sm:$0xff]
          %v1585 = vld [vmem:[%s1576 + $0x40] sm:$0xff]
          %v1586 = vld [vmem:[%s1576 + $0x48] sm:$0xff]
          %v1587 = vld [vmem:[%s1576 + $0x50] sm:$0xff]
          %v1588 = vld [vmem:[%s1576 + $0x58] sm:$0xff]
          %v1589 = vld [vmem:[%s1576 + $0x60] sm:$0xff]
          %v1590 = vld [vmem:[%s1576 + $0x68] sm:$0xff]
          %v1591 = vld [vmem:[%s1576 + $0x70] sm:$0xff]
          %v1592 = vld [vmem:[%s1576 + $0x78] sm:$0xff]
          %v1593 = vld [vmem:[%s1576 + $0x80] sm:$0xff]
          %v1594 = vld [vmem:[%s1576 + $0x88] sm:$0xff]
          %v1595 = vld [vmem:[%s1576 + $0x90] sm:$0xff]
          %v1596 = vld [vmem:[%s1576 + $0x98] sm:$0xff]
          %v1597 = vld [vmem:[%s1576 + $0xa0] sm:$0xff]
          %v1598 = vld [vmem:[%s1576 + $0xa8] sm:$0xff]
          %v1599 = vld [vmem:[%s1576 + $0xb0] sm:$0xff]
          %v1600 = vld [vmem:[%s1576 + $0xb8] sm:$0xff]
          %v1601 = vld [vmem:[%s1576 + $0xc0] sm:$0xff]
          %v1602 = vld [vmem:[%s1576 + $0xc8] sm:$0xff]
          %v1603 = vld [vmem:[%s1576 + $0xd0] sm:$0xff]
          %v1604 = vld [vmem:[%s1576 + $0xd8] sm:$0xff]
          %v1605 = vld [vmem:[%s1576 + $0xe0] sm:$0xff]
          %v1606 = vld [vmem:[%s1576 + $0xe8] sm:$0xff]
          %v1607 = vld [vmem:[%s1576 + $0xf0] sm:$0xff]
          %v1608 = vld [vmem:[%s1576 + $0xf8] sm:$0xff]
          %s1609 = sadd.s32 %s1508, 33
          %s1610 = scalar_lea.vmem [#allocation2], %s1609
          %v1611 = vld [vmem:[%s1610] sm:$0xff]
          %v1612 = vld [vmem:[%s1610 + $0x8] sm:$0xff]
          %v1613 = vld [vmem:[%s1610 + $0x10] sm:$0xff]
          %v1614 = vld [vmem:[%s1610 + $0x18] sm:$0xff]
          %v1615 = vld [vmem:[%s1610 + $0x20] sm:$0xff]
          %v1616 = vld [vmem:[%s1610 + $0x28] sm:$0xff]
          %v1617 = vld [vmem:[%s1610 + $0x30] sm:$0xff]
          %v1618 = vld [vmem:[%s1610 + $0x38] sm:$0xff]
          %v1619 = vld [vmem:[%s1610 + $0x40] sm:$0xff]
          %v1620 = vld [vmem:[%s1610 + $0x48] sm:$0xff]
          %v1621 = vld [vmem:[%s1610 + $0x50] sm:$0xff]
          %v1622 = vld [vmem:[%s1610 + $0x58] sm:$0xff]
          %v1623 = vld [vmem:[%s1610 + $0x60] sm:$0xff]
          %v1624 = vld [vmem:[%s1610 + $0x68] sm:$0xff]
          %v1625 = vld [vmem:[%s1610 + $0x70] sm:$0xff]
          %v1626 = vld [vmem:[%s1610 + $0x78] sm:$0xff]
          %v1627 = vld [vmem:[%s1610 + $0x80] sm:$0xff]
          %v1628 = vld [vmem:[%s1610 + $0x88] sm:$0xff]
          %v1629 = vld [vmem:[%s1610 + $0x90] sm:$0xff]
          %v1630 = vld [vmem:[%s1610 + $0x98] sm:$0xff]
          %v1631 = vld [vmem:[%s1610 + $0xa0] sm:$0xff]
          %v1632 = vld [vmem:[%s1610 + $0xa8] sm:$0xff]
          %v1633 = vld [vmem:[%s1610 + $0xb0] sm:$0xff]
          %v1634 = vld [vmem:[%s1610 + $0xb8] sm:$0xff]
          %v1635 = vld [vmem:[%s1610 + $0xc0] sm:$0xff]
          %v1636 = vld [vmem:[%s1610 + $0xc8] sm:$0xff]
          %v1637 = vld [vmem:[%s1610 + $0xd0] sm:$0xff]
          %v1638 = vld [vmem:[%s1610 + $0xd8] sm:$0xff]
          %v1639 = vld [vmem:[%s1610 + $0xe0] sm:$0xff]
          %v1640 = vld [vmem:[%s1610 + $0xe8] sm:$0xff]
          %v1641 = vld [vmem:[%s1610 + $0xf0] sm:$0xff]
          %v1642 = vld [vmem:[%s1610 + $0xf8] sm:$0xff]
          %v1643 = vmul.f32 %v1611, %v1437
          %v1644 = vmul.f32 %v1612, %v1438
          %v1645 = vmul.f32 %v1613, %v1439
          %v1646 = vmul.f32 %v1614, %v1440
          %v1647 = vmul.f32 %v1615, %v1441
          %v1648 = vmul.f32 %v1616, %v1442
          %v1649 = vmul.f32 %v1617, %v1443
          %v1650 = vmul.f32 %v1618, %v1444
          %v1651 = vmul.f32 %v1619, %v1445
          %v1652 = vmul.f32 %v1620, %v1446
          %v1653 = vmul.f32 %v1621, %v1447
          %v1654 = vmul.f32 %v1622, %v1448
          %v1655 = vmul.f32 %v1623, %v1449
          %v1656 = vmul.f32 %v1624, %v1450
          %v1657 = vmul.f32 %v1625, %v1451
          %v1658 = vmul.f32 %v1626, %v1452
          %v1659 = vmul.f32 %v1627, %v1453
          %v1660 = vmul.f32 %v1628, %v1454
          %v1661 = vmul.f32 %v1629, %v1455
          %v1662 = vmul.f32 %v1630, %v1456
          %v1663 = vmul.f32 %v1631, %v1457
          %v1664 = vmul.f32 %v1632, %v1458
          %v1665 = vmul.f32 %v1633, %v1459
          %v1666 = vmul.f32 %v1634, %v1460
          %v1667 = vmul.f32 %v1635, %v1461
          %v1668 = vmul.f32 %v1636, %v1462
          %v1669 = vmul.f32 %v1637, %v1463
          %v1670 = vmul.f32 %v1638, %v1464
          %v1671 = vmul.f32 %v1639, %v1465
          %v1672 = vmul.f32 %v1640, %v1466
          %v1673 = vmul.f32 %v1641, %v1467
          %v1674 = vmul.f32 %v1642, %v1468
          %s1675 = smul.u32 %s1502, 384
          %v1676 = vld [vmem:[#allocation3] sm:$0xff]
          %v1677 = vld [vmem:[#allocation3 + $0x8] sm:$0xff]
          %v1678 = vld [vmem:[#allocation3 + $0x10] sm:$0xff]
          %v1679 = vld [vmem:[#allocation3 + $0x18] sm:$0xff]
          %v1680 = vld [vmem:[#allocation3 + $0x20] sm:$0xff]
          %v1681 = vld [vmem:[#allocation3 + $0x28] sm:$0xff]
          %v1682 = vld [vmem:[#allocation3 + $0x30] sm:$0xff]
          %v1683 = vld [vmem:[#allocation3 + $0x38] sm:$0xff]
          %v1684 = vld [vmem:[#allocation3 + $0x40] sm:$0xff]
          %v1685 = vld [vmem:[#allocation3 + $0x48] sm:$0xff]
          %v1686 = vld [vmem:[#allocation3 + $0x50] sm:$0xff]
          %v1687 = vld [vmem:[#allocation3 + $0x58] sm:$0xff]
          %v1688 = vld [vmem:[#allocation3 + $0x60] sm:$0xff]
          %v1689 = vld [vmem:[#allocation3 + $0x68] sm:$0xff]
          %v1690 = vld [vmem:[#allocation3 + $0x70] sm:$0xff]
          %v1691 = vld [vmem:[#allocation3 + $0x78] sm:$0xff]
          %v1692 = vld [vmem:[#allocation3 + $0x80] sm:$0xff]
          %v1693 = vld [vmem:[#allocation3 + $0x88] sm:$0xff]
          %v1694 = vld [vmem:[#allocation3 + $0x90] sm:$0xff]
          %v1695 = vld [vmem:[#allocation3 + $0x98] sm:$0xff]
          %v1696 = vld [vmem:[#allocation3 + $0xa0] sm:$0xff]
          %v1697 = vld [vmem:[#allocation3 + $0xa8] sm:$0xff]
          %v1698 = vld [vmem:[#allocation3 + $0xb0] sm:$0xff]
          %v1699 = vld [vmem:[#allocation3 + $0xb8] sm:$0xff]
          %v1700 = vld [vmem:[#allocation3 + $0xc0] sm:$0xff]
          %v1701 = vld [vmem:[#allocation3 + $0xc8] sm:$0xff]
          %v1702 = vld [vmem:[#allocation3 + $0xd0] sm:$0xff]
          %v1703 = vld [vmem:[#allocation3 + $0xd8] sm:$0xff]
          %v1704 = vld [vmem:[#allocation3 + $0xe0] sm:$0xff]
          %v1705 = vld [vmem:[#allocation3 + $0xe8] sm:$0xff]
          %v1706 = vld [vmem:[#allocation3 + $0xf0] sm:$0xff]
          %v1707 = vld [vmem:[#allocation3 + $0xf8] sm:$0xff]
          %s1708 = scalar_lea.vmem [#allocation9], %s1675
          %v1709 = vld [vmem:[%s1708] sm:$0xff]
          %v1710 = vld [vmem:[%s1708 + $0x8] sm:$0xff]
          %v1711 = vld [vmem:[%s1708 + $0x10] sm:$0xff]
          %v1712 = vld [vmem:[%s1708 + $0x18] sm:$0xff]
          %v1713 = vld [vmem:[%s1708 + $0x20] sm:$0xff]
          %v1714 = vld [vmem:[%s1708 + $0x28] sm:$0xff]
          %v1715 = vld [vmem:[%s1708 + $0x30] sm:$0xff]
          %v1716 = vld [vmem:[%s1708 + $0x38] sm:$0xff]
          %v1717 = vld [vmem:[%s1708 + $0x40] sm:$0xff]
          %v1718 = vld [vmem:[%s1708 + $0x48] sm:$0xff]
          %v1719 = vld [vmem:[%s1708 + $0x50] sm:$0xff]
          %v1720 = vld [vmem:[%s1708 + $0x58] sm:$0xff]
          %v1721 = vld [vmem:[%s1708 + $0x60] sm:$0xff]
          %v1722 = vld [vmem:[%s1708 + $0x68] sm:$0xff]
          %v1723 = vld [vmem:[%s1708 + $0x70] sm:$0xff]
          %v1724 = vld [vmem:[%s1708 + $0x78] sm:$0xff]
          %v1725 = vld [vmem:[%s1708 + $0x80] sm:$0xff]
          %v1726 = vld [vmem:[%s1708 + $0x88] sm:$0xff]
          %v1727 = vld [vmem:[%s1708 + $0x90] sm:$0xff]
          %v1728 = vld [vmem:[%s1708 + $0x98] sm:$0xff]
          %v1729 = vld [vmem:[%s1708 + $0xa0] sm:$0xff]
          %v1730 = vld [vmem:[%s1708 + $0xa8] sm:$0xff]
          %v1731 = vld [vmem:[%s1708 + $0xb0] sm:$0xff]
          %v1732 = vld [vmem:[%s1708 + $0xb8] sm:$0xff]
          %v1733 = vld [vmem:[%s1708 + $0xc0] sm:$0xff]
          %v1734 = vld [vmem:[%s1708 + $0xc8] sm:$0xff]
          %v1735 = vld [vmem:[%s1708 + $0xd0] sm:$0xff]
          %v1736 = vld [vmem:[%s1708 + $0xd8] sm:$0xff]
          %v1737 = vld [vmem:[%s1708 + $0xe0] sm:$0xff]
          %v1738 = vld [vmem:[%s1708 + $0xe8] sm:$0xff]
          %v1739 = vld [vmem:[%s1708 + $0xf0] sm:$0xff]
          %v1740 = vld [vmem:[%s1708 + $0xf8] sm:$0xff]
          %v1741 = vld [vmem:[%s1708 + $0x100] sm:$0xff]
          %v1742 = vld [vmem:[%s1708 + $0x108] sm:$0xff]
          %v1743 = vld [vmem:[%s1708 + $0x110] sm:$0xff]
          %v1744 = vld [vmem:[%s1708 + $0x118] sm:$0xff]
          %v1745 = vld [vmem:[%s1708 + $0x120] sm:$0xff]
          %v1746 = vld [vmem:[%s1708 + $0x128] sm:$0xff]
          %v1747 = vld [vmem:[%s1708 + $0x130] sm:$0xff]
          %v1748 = vld [vmem:[%s1708 + $0x138] sm:$0xff]
          %v1749 = vld [vmem:[%s1708 + $0x140] sm:$0xff]
          %v1750 = vld [vmem:[%s1708 + $0x148] sm:$0xff]
          %v1751 = vld [vmem:[%s1708 + $0x150] sm:$0xff]
          %v1752 = vld [vmem:[%s1708 + $0x158] sm:$0xff]
          %v1753 = vld [vmem:[%s1708 + $0x160] sm:$0xff]
          %v1754 = vld [vmem:[%s1708 + $0x168] sm:$0xff]
          %v1755 = vld [vmem:[%s1708 + $0x170] sm:$0xff]
          %v1756 = vld [vmem:[%s1708 + $0x178] sm:$0xff]
          %1757 = vmatpush.msra.mxu0 %v1724
          %1758 = vmatpush.msra.mxu0 %v1723
          %1759 = vmatpush.msra.mxu0 %v1722
          %1760 = vmatpush.msra.mxu0 %v1721
          %1761 = vmatpush.msra.mxu0 %v1720
          %1762 = vmatpush.msra.mxu0 %v1719
          %1763 = vmatpush.msra.mxu0 %v1718
          %1764 = vmatpush.msra.mxu0 %v1717
          %1765 = vmatpush.msra.mxu0 %v1716
          %1766 = vmatpush.msra.mxu0 %v1715
          %1767 = vmatpush.msra.mxu0 %v1714
          %1768 = vmatpush.msra.mxu0 %v1713
          %1769 = vmatpush.msra.mxu0 %v1712
          %1770 = vmatpush.msra.mxu0 %v1711
          %1771 = vmatpush.msra.mxu0 %v1710
          %1772 = vmatpush.msra.mxu0 %v1709
          %1773 = vmatmul.f32.gmra.mxu0 %v1544
          %v1774 = vpop.f32.mrf.mxu0
          %v1775 = vadd.f32 0.0, %v1774
          %1776 = vmatmul.f32.gmra.mxu0 %v1545
          %v1777 = vpop.f32.mrf.mxu0
          %v1778 = vadd.f32 0.0, %v1777
          %1779 = vmatmul.f32.gmra.mxu0 %v1546
          %v1780 = vpop.f32.mrf.mxu0
          %v1781 = vadd.f32 0.0, %v1780
          %1782 = vmatmul.f32.gmra.mxu0 %v1547
          %v1783 = vpop.f32.mrf.mxu0
          %v1784 = vadd.f32 0.0, %v1783
          %1785 = vmatmul.f32.gmra.mxu0 %v1548
          %v1786 = vpop.f32.mrf.mxu0
          %v1787 = vadd.f32 0.0, %v1786
          %1788 = vmatmul.f32.gmra.mxu0 %v1549
          %v1789 = vpop.f32.mrf.mxu0
          %v1790 = vadd.f32 0.0, %v1789
          %1791 = vmatmul.f32.gmra.mxu0 %v1550
          %v1792 = vpop.f32.mrf.mxu0
          %v1793 = vadd.f32 0.0, %v1792
          %1794 = vmatmul.f32.gmra.mxu0 %v1551
          %v1795 = vpop.f32.mrf.mxu0
          %v1796 = vadd.f32 0.0, %v1795
          %1797 = vmatmul.f32.gmra.mxu0 %v1552
          %v1798 = vpop.f32.mrf.mxu0
          %v1799 = vadd.f32 0.0, %v1798
          %1800 = vmatmul.f32.gmra.mxu0 %v1553
          %v1801 = vpop.f32.mrf.mxu0
          %v1802 = vadd.f32 0.0, %v1801
          %1803 = vmatmul.f32.gmra.mxu0 %v1554
          %v1804 = vpop.f32.mrf.mxu0
          %v1805 = vadd.f32 0.0, %v1804
          %1806 = vmatmul.f32.gmra.mxu0 %v1555
          %v1807 = vpop.f32.mrf.mxu0
          %v1808 = vadd.f32 0.0, %v1807
          %1809 = vmatmul.f32.gmra.mxu0 %v1556
          %v1810 = vpop.f32.mrf.mxu0
          %v1811 = vadd.f32 0.0, %v1810
          %1812 = vmatmul.f32.gmra.mxu0 %v1557
          %v1813 = vpop.f32.mrf.mxu0
          %v1814 = vadd.f32 0.0, %v1813
          %1815 = vmatmul.f32.gmra.mxu0 %v1558
          %v1816 = vpop.f32.mrf.mxu0
          %v1817 = vadd.f32 0.0, %v1816
          %1818 = vmatmul.f32.gmra.mxu0 %v1559
          %v1819 = vpop.f32.mrf.mxu0
          %v1820 = vadd.f32 0.0, %v1819
          %1821 = vmatmul.f32.gmra.mxu0 %v1560
          %v1822 = vpop.f32.mrf.mxu0
          %v1823 = vadd.f32 0.0, %v1822
          %1824 = vmatmul.f32.gmra.mxu0 %v1561
          %v1825 = vpop.f32.mrf.mxu0
          %v1826 = vadd.f32 0.0, %v1825
          %1827 = vmatmul.f32.gmra.mxu0 %v1562
          %v1828 = vpop.f32.mrf.mxu0
          %v1829 = vadd.f32 0.0, %v1828
          %1830 = vmatmul.f32.gmra.mxu0 %v1563
          %v1831 = vpop.f32.mrf.mxu0
          %v1832 = vadd.f32 0.0, %v1831
          %1833 = vmatmul.f32.gmra.mxu0 %v1564
          %v1834 = vpop.f32.mrf.mxu0
          %v1835 = vadd.f32 0.0, %v1834
          %1836 = vmatmul.f32.gmra.mxu0 %v1565
          %v1837 = vpop.f32.mrf.mxu0
          %v1838 = vadd.f32 0.0, %v1837
          %1839 = vmatmul.f32.gmra.mxu0 %v1566
          %v1840 = vpop.f32.mrf.mxu0
          %v1841 = vadd.f32 0.0, %v1840
          %1842 = vmatmul.f32.gmra.mxu0 %v1567
          %v1843 = vpop.f32.mrf.mxu0
          %v1844 = vadd.f32 0.0, %v1843
          %1845 = vmatmul.f32.gmra.mxu0 %v1568
          %v1846 = vpop.f32.mrf.mxu0
          %v1847 = vadd.f32 0.0, %v1846
          %1848 = vmatmul.f32.gmra.mxu0 %v1569
          %v1849 = vpop.f32.mrf.mxu0
          %v1850 = vadd.f32 0.0, %v1849
          %1851 = vmatmul.f32.gmra.mxu0 %v1570
          %v1852 = vpop.f32.mrf.mxu0
          %v1853 = vadd.f32 0.0, %v1852
          %1854 = vmatmul.f32.gmra.mxu0 %v1571
          %v1855 = vpop.f32.mrf.mxu0
          %v1856 = vadd.f32 0.0, %v1855
          %1857 = vmatmul.f32.gmra.mxu0 %v1572
          %v1858 = vpop.f32.mrf.mxu0
          %v1859 = vadd.f32 0.0, %v1858
          %1860 = vmatmul.f32.gmra.mxu0 %v1573
          %v1861 = vpop.f32.mrf.mxu0
          %v1862 = vadd.f32 0.0, %v1861
          %1863 = vmatmul.f32.gmra.mxu0 %v1574
          %v1864 = vpop.f32.mrf.mxu0
          %v1865 = vadd.f32 0.0, %v1864
          %1866 = vmatmul.f32.gmra.mxu0 %v1575
          %v1867 = vpop.f32.mrf.mxu0
          %v1868 = vadd.f32 0.0, %v1867
          %1869 = vdwg.mxu0
          %1870 = vmatpush.msra.mxu0 %v1740
          %1871 = vmatpush.msra.mxu0 %v1739
          %1872 = vmatpush.msra.mxu0 %v1738
          %1873 = vmatpush.msra.mxu0 %v1737
          %1874 = vmatpush.msra.mxu0 %v1736
          %1875 = vmatpush.msra.mxu0 %v1735
          %1876 = vmatpush.msra.mxu0 %v1734
          %1877 = vmatpush.msra.mxu0 %v1733
          %1878 = vmatpush.msra.mxu0 %v1732
          %1879 = vmatpush.msra.mxu0 %v1731
          %1880 = vmatpush.msra.mxu0 %v1730
          %1881 = vmatpush.msra.mxu0 %v1729
          %1882 = vmatpush.msra.mxu0 %v1728
          %1883 = vmatpush.msra.mxu0 %v1727
          %1884 = vmatpush.msra.mxu0 %v1726
          %1885 = vmatpush.msra.mxu0 %v1725
          %1886 = vmatmul.f32.gmra.mxu0 %v1577
          %v1887 = vpop.f32.mrf.mxu0
          %v1888 = vadd.f32 %v1775, %v1887
          %1889 = vmatmul.f32.gmra.mxu0 %v1578
          %v1890 = vpop.f32.mrf.mxu0
          %v1891 = vadd.f32 %v1778, %v1890
          %1892 = vmatmul.f32.gmra.mxu0 %v1579
          %v1893 = vpop.f32.mrf.mxu0
          %v1894 = vadd.f32 %v1781, %v1893
          %1895 = vmatmul.f32.gmra.mxu0 %v1580
          %v1896 = vpop.f32.mrf.mxu0
          %v1897 = vadd.f32 %v1784, %v1896
          %1898 = vmatmul.f32.gmra.mxu0 %v1581
          %v1899 = vpop.f32.mrf.mxu0
          %v1900 = vadd.f32 %v1787, %v1899
          %1901 = vmatmul.f32.gmra.mxu0 %v1582
          %v1902 = vpop.f32.mrf.mxu0
          %v1903 = vadd.f32 %v1790, %v1902
          %1904 = vmatmul.f32.gmra.mxu0 %v1583
          %v1905 = vpop.f32.mrf.mxu0
          %v1906 = vadd.f32 %v1793, %v1905
          %1907 = vmatmul.f32.gmra.mxu0 %v1584
          %v1908 = vpop.f32.mrf.mxu0
          %v1909 = vadd.f32 %v1796, %v1908
          %1910 = vmatmul.f32.gmra.mxu0 %v1585
          %v1911 = vpop.f32.mrf.mxu0
          %v1912 = vadd.f32 %v1799, %v1911
          %1913 = vmatmul.f32.gmra.mxu0 %v1586
          %v1914 = vpop.f32.mrf.mxu0
          %v1915 = vadd.f32 %v1802, %v1914
          %1916 = vmatmul.f32.gmra.mxu0 %v1587
          %v1917 = vpop.f32.mrf.mxu0
          %v1918 = vadd.f32 %v1805, %v1917
          %1919 = vmatmul.f32.gmra.mxu0 %v1588
          %v1920 = vpop.f32.mrf.mxu0
          %v1921 = vadd.f32 %v1808, %v1920
          %1922 = vmatmul.f32.gmra.mxu0 %v1589
          %v1923 = vpop.f32.mrf.mxu0
          %v1924 = vadd.f32 %v1811, %v1923
          %1925 = vmatmul.f32.gmra.mxu0 %v1590
          %v1926 = vpop.f32.mrf.mxu0
          %v1927 = vadd.f32 %v1814, %v1926
          %1928 = vmatmul.f32.gmra.mxu0 %v1591
          %v1929 = vpop.f32.mrf.mxu0
          %v1930 = vadd.f32 %v1817, %v1929
          %1931 = vmatmul.f32.gmra.mxu0 %v1592
          %v1932 = vpop.f32.mrf.mxu0
          %v1933 = vadd.f32 %v1820, %v1932
          %1934 = vmatmul.f32.gmra.mxu0 %v1593
          %v1935 = vpop.f32.mrf.mxu0
          %v1936 = vadd.f32 %v1823, %v1935
          %1937 = vmatmul.f32.gmra.mxu0 %v1594
          %v1938 = vpop.f32.mrf.mxu0
          %v1939 = vadd.f32 %v1826, %v1938
          %1940 = vmatmul.f32.gmra.mxu0 %v1595
          %v1941 = vpop.f32.mrf.mxu0
          %v1942 = vadd.f32 %v1829, %v1941
          %1943 = vmatmul.f32.gmra.mxu0 %v1596
          %v1944 = vpop.f32.mrf.mxu0
          %v1945 = vadd.f32 %v1832, %v1944
          %1946 = vmatmul.f32.gmra.mxu0 %v1597
          %v1947 = vpop.f32.mrf.mxu0
          %v1948 = vadd.f32 %v1835, %v1947
          %1949 = vmatmul.f32.gmra.mxu0 %v1598
          %v1950 = vpop.f32.mrf.mxu0
          %v1951 = vadd.f32 %v1838, %v1950
          %1952 = vmatmul.f32.gmra.mxu0 %v1599
          %v1953 = vpop.f32.mrf.mxu0
          %v1954 = vadd.f32 %v1841, %v1953
          %1955 = vmatmul.f32.gmra.mxu0 %v1600
          %v1956 = vpop.f32.mrf.mxu0
          %v1957 = vadd.f32 %v1844, %v1956
          %1958 = vmatmul.f32.gmra.mxu0 %v1601
          %v1959 = vpop.f32.mrf.mxu0
          %v1960 = vadd.f32 %v1847, %v1959
          %1961 = vmatmul.f32.gmra.mxu0 %v1602
          %v1962 = vpop.f32.mrf.mxu0
          %v1963 = vadd.f32 %v1850, %v1962
          %1964 = vmatmul.f32.gmra.mxu0 %v1603
          %v1965 = vpop.f32.mrf.mxu0
          %v1966 = vadd.f32 %v1853, %v1965
          %1967 = vmatmul.f32.gmra.mxu0 %v1604
          %v1968 = vpop.f32.mrf.mxu0
          %v1969 = vadd.f32 %v1856, %v1968
          %1970 = vmatmul.f32.gmra.mxu0 %v1605
          %v1971 = vpop.f32.mrf.mxu0
          %v1972 = vadd.f32 %v1859, %v1971
          %1973 = vmatmul.f32.gmra.mxu0 %v1606
          %v1974 = vpop.f32.mrf.mxu0
          %v1975 = vadd.f32 %v1862, %v1974
          %1976 = vmatmul.f32.gmra.mxu0 %v1607
          %v1977 = vpop.f32.mrf.mxu0
          %v1978 = vadd.f32 %v1865, %v1977
          %1979 = vmatmul.f32.gmra.mxu0 %v1608
          %v1980 = vpop.f32.mrf.mxu0
          %v1981 = vadd.f32 %v1868, %v1980
          %1982 = vdwg.mxu0
          %1983 = vmatpush.msra.mxu0 %v1756
          %1984 = vmatpush.msra.mxu0 %v1755
          %1985 = vmatpush.msra.mxu0 %v1754
          %1986 = vmatpush.msra.mxu0 %v1753
          %1987 = vmatpush.msra.mxu0 %v1752
          %1988 = vmatpush.msra.mxu0 %v1751
          %1989 = vmatpush.msra.mxu0 %v1750
          %1990 = vmatpush.msra.mxu0 %v1749
          %1991 = vmatpush.msra.mxu0 %v1748
          %1992 = vmatpush.msra.mxu0 %v1747
          %1993 = vmatpush.msra.mxu0 %v1746
          %1994 = vmatpush.msra.mxu0 %v1745
          %1995 = vmatpush.msra.mxu0 %v1744
          %1996 = vmatpush.msra.mxu0 %v1743
          %1997 = vmatpush.msra.mxu0 %v1742
          %1998 = vmatpush.msra.mxu0 %v1741
          %1999 = vmatmul.f32.gmra.mxu0 %v1643
          %v2000 = vpop.f32.mrf.mxu0
          %v2001 = vadd.f32 %v1888, %v2000
          %2002 = vmatmul.f32.gmra.mxu0 %v1644
          %v2003 = vpop.f32.mrf.mxu0
          %v2004 = vadd.f32 %v1891, %v2003
          %2005 = vmatmul.f32.gmra.mxu0 %v1645
          %v2006 = vpop.f32.mrf.mxu0
          %v2007 = vadd.f32 %v1894, %v2006
          %2008 = vmatmul.f32.gmra.mxu0 %v1646
          %v2009 = vpop.f32.mrf.mxu0
          %v2010 = vadd.f32 %v1897, %v2009
          %2011 = vmatmul.f32.gmra.mxu0 %v1647
          %v2012 = vpop.f32.mrf.mxu0
          %v2013 = vadd.f32 %v1900, %v2012
          %2014 = vmatmul.f32.gmra.mxu0 %v1648
          %v2015 = vpop.f32.mrf.mxu0
          %v2016 = vadd.f32 %v1903, %v2015
          %2017 = vmatmul.f32.gmra.mxu0 %v1649
          %v2018 = vpop.f32.mrf.mxu0
          %v2019 = vadd.f32 %v1906, %v2018
          %2020 = vmatmul.f32.gmra.mxu0 %v1650
          %v2021 = vpop.f32.mrf.mxu0
          %v2022 = vadd.f32 %v1909, %v2021
          %2023 = vmatmul.f32.gmra.mxu0 %v1651
          %v2024 = vpop.f32.mrf.mxu0
          %v2025 = vadd.f32 %v1912, %v2024
          %2026 = vmatmul.f32.gmra.mxu0 %v1652
          %v2027 = vpop.f32.mrf.mxu0
          %v2028 = vadd.f32 %v1915, %v2027
          %2029 = vmatmul.f32.gmra.mxu0 %v1653
          %v2030 = vpop.f32.mrf.mxu0
          %v2031 = vadd.f32 %v1918, %v2030
          %2032 = vmatmul.f32.gmra.mxu0 %v1654
          %v2033 = vpop.f32.mrf.mxu0
          %v2034 = vadd.f32 %v1921, %v2033
          %2035 = vmatmul.f32.gmra.mxu0 %v1655
          %v2036 = vpop.f32.mrf.mxu0
          %v2037 = vadd.f32 %v1924, %v2036
          %2038 = vmatmul.f32.gmra.mxu0 %v1656
          %v2039 = vpop.f32.mrf.mxu0
          %v2040 = vadd.f32 %v1927, %v2039
          %2041 = vmatmul.f32.gmra.mxu0 %v1657
          %v2042 = vpop.f32.mrf.mxu0
          %v2043 = vadd.f32 %v1930, %v2042
          %2044 = vmatmul.f32.gmra.mxu0 %v1658
          %v2045 = vpop.f32.mrf.mxu0
          %v2046 = vadd.f32 %v1933, %v2045
          %2047 = vmatmul.f32.gmra.mxu0 %v1659
          %v2048 = vpop.f32.mrf.mxu0
          %v2049 = vadd.f32 %v1936, %v2048
          %2050 = vmatmul.f32.gmra.mxu0 %v1660
          %v2051 = vpop.f32.mrf.mxu0
          %v2052 = vadd.f32 %v1939, %v2051
          %2053 = vmatmul.f32.gmra.mxu0 %v1661
          %v2054 = vpop.f32.mrf.mxu0
          %v2055 = vadd.f32 %v1942, %v2054
          %2056 = vmatmul.f32.gmra.mxu0 %v1662
          %v2057 = vpop.f32.mrf.mxu0
          %v2058 = vadd.f32 %v1945, %v2057
          %2059 = vmatmul.f32.gmra.mxu0 %v1663
          %v2060 = vpop.f32.mrf.mxu0
          %v2061 = vadd.f32 %v1948, %v2060
          %2062 = vmatmul.f32.gmra.mxu0 %v1664
          %v2063 = vpop.f32.mrf.mxu0
          %v2064 = vadd.f32 %v1951, %v2063
          %2065 = vmatmul.f32.gmra.mxu0 %v1665
          %v2066 = vpop.f32.mrf.mxu0
          %v2067 = vadd.f32 %v1954, %v2066
          %2068 = vmatmul.f32.gmra.mxu0 %v1666
          %v2069 = vpop.f32.mrf.mxu0
          %v2070 = vadd.f32 %v1957, %v2069
          %2071 = vmatmul.f32.gmra.mxu0 %v1667
          %v2072 = vpop.f32.mrf.mxu0
          %v2073 = vadd.f32 %v1960, %v2072
          %2074 = vmatmul.f32.gmra.mxu0 %v1668
          %v2075 = vpop.f32.mrf.mxu0
          %v2076 = vadd.f32 %v1963, %v2075
          %2077 = vmatmul.f32.gmra.mxu0 %v1669
          %v2078 = vpop.f32.mrf.mxu0
          %v2079 = vadd.f32 %v1966, %v2078
          %2080 = vmatmul.f32.gmra.mxu0 %v1670
          %v2081 = vpop.f32.mrf.mxu0
          %v2082 = vadd.f32 %v1969, %v2081
          %2083 = vmatmul.f32.gmra.mxu0 %v1671
          %v2084 = vpop.f32.mrf.mxu0
          %v2085 = vadd.f32 %v1972, %v2084
          %2086 = vmatmul.f32.gmra.mxu0 %v1672
          %v2087 = vpop.f32.mrf.mxu0
          %v2088 = vadd.f32 %v1975, %v2087
          %2089 = vmatmul.f32.gmra.mxu0 %v1673
          %v2090 = vpop.f32.mrf.mxu0
          %v2091 = vadd.f32 %v1978, %v2090
          %2092 = vmatmul.f32.gmra.mxu0 %v1674
          %v2093 = vpop.f32.mrf.mxu0
          %v2094 = vadd.f32 %v1981, %v2093
          %2095 = vdwg.mxu0
          %v2096 = vadd.f32 %v1676, %v2001
          %v2097 = vadd.f32 %v1677, %v2004
          %v2098 = vadd.f32 %v1678, %v2007
          %v2099 = vadd.f32 %v1679, %v2010
          %v2100 = vadd.f32 %v1680, %v2013
          %v2101 = vadd.f32 %v1681, %v2016
          %v2102 = vadd.f32 %v1682, %v2019
          %v2103 = vadd.f32 %v1683, %v2022
          %v2104 = vadd.f32 %v1684, %v2025
          %v2105 = vadd.f32 %v1685, %v2028
          %v2106 = vadd.f32 %v1686, %v2031
          %v2107 = vadd.f32 %v1687, %v2034
          %v2108 = vadd.f32 %v1688, %v2037
          %v2109 = vadd.f32 %v1689, %v2040
          %v2110 = vadd.f32 %v1690, %v2043
          %v2111 = vadd.f32 %v1691, %v2046
          %v2112 = vadd.f32 %v1692, %v2049
          %v2113 = vadd.f32 %v1693, %v2052
          %v2114 = vadd.f32 %v1694, %v2055
          %v2115 = vadd.f32 %v1695, %v2058
          %v2116 = vadd.f32 %v1696, %v2061
          %v2117 = vadd.f32 %v1697, %v2064
          %v2118 = vadd.f32 %v1698, %v2067
          %v2119 = vadd.f32 %v1699, %v2070
          %v2120 = vadd.f32 %v1700, %v2073
          %v2121 = vadd.f32 %v1701, %v2076
          %v2122 = vadd.f32 %v1702, %v2079
          %v2123 = vadd.f32 %v1703, %v2082
          %v2124 = vadd.f32 %v1704, %v2085
          %v2125 = vadd.f32 %v1705, %v2088
          %v2126 = vadd.f32 %v1706, %v2091
          %v2127 = vadd.f32 %v1707, %v2094
          %2128 = vst [vmem:[#allocation3] sm:$0xff] %v2096
          %2129 = vst [vmem:[#allocation3 + $0x8] sm:$0xff] %v2097
          %2130 = vst [vmem:[#allocation3 + $0x10] sm:$0xff] %v2098
          %2131 = vst [vmem:[#allocation3 + $0x18] sm:$0xff] %v2099
          %2132 = vst [vmem:[#allocation3 + $0x20] sm:$0xff] %v2100
          %2133 = vst [vmem:[#allocation3 + $0x28] sm:$0xff] %v2101
          %2134 = vst [vmem:[#allocation3 + $0x30] sm:$0xff] %v2102
          %2135 = vst [vmem:[#allocation3 + $0x38] sm:$0xff] %v2103
          %2136 = vst [vmem:[#allocation3 + $0x40] sm:$0xff] %v2104
          %2137 = vst [vmem:[#allocation3 + $0x48] sm:$0xff] %v2105
          %2138 = vst [vmem:[#allocation3 + $0x50] sm:$0xff] %v2106
          %2139 = vst [vmem:[#allocation3 + $0x58] sm:$0xff] %v2107
          %2140 = vst [vmem:[#allocation3 + $0x60] sm:$0xff] %v2108
          %2141 = vst [vmem:[#allocation3 + $0x68] sm:$0xff] %v2109
          %2142 = vst [vmem:[#allocation3 + $0x70] sm:$0xff] %v2110
          %2143 = vst [vmem:[#allocation3 + $0x78] sm:$0xff] %v2111
          %2144 = vst [vmem:[#allocation3 + $0x80] sm:$0xff] %v2112
          %2145 = vst [vmem:[#allocation3 + $0x88] sm:$0xff] %v2113
          %2146 = vst [vmem:[#allocation3 + $0x90] sm:$0xff] %v2114
          %2147 = vst [vmem:[#allocation3 + $0x98] sm:$0xff] %v2115
          %2148 = vst [vmem:[#allocation3 + $0xa0] sm:$0xff] %v2116
          %2149 = vst [vmem:[#allocation3 + $0xa8] sm:$0xff] %v2117
          %2150 = vst [vmem:[#allocation3 + $0xb0] sm:$0xff] %v2118
          %2151 = vst [vmem:[#allocation3 + $0xb8] sm:$0xff] %v2119
          %2152 = vst [vmem:[#allocation3 + $0xc0] sm:$0xff] %v2120
          %2153 = vst [vmem:[#allocation3 + $0xc8] sm:$0xff] %v2121
          %2154 = vst [vmem:[#allocation3 + $0xd0] sm:$0xff] %v2122
          %2155 = vst [vmem:[#allocation3 + $0xd8] sm:$0xff] %v2123
          %2156 = vst [vmem:[#allocation3 + $0xe0] sm:$0xff] %v2124
          %2157 = vst [vmem:[#allocation3 + $0xe8] sm:$0xff] %v2125
          %2158 = vst [vmem:[#allocation3 + $0xf0] sm:$0xff] %v2126
          %2159 = vst [vmem:[#allocation3 + $0xf8] sm:$0xff] %v2127
        $region81: #{tpu_custom_call.1} parent=59 // loop_footer
          %s1506 = sadd.s32 1, %s1502
        $region82: #{tpu_custom_call.1} parent=59 // loop_footer_branch
          %1501 = sbr.rel target = $region78
        $region83: #{tpu_custom_call.1} parent=59 // loop_exit
          _
        %v2160 = vld [vmem:[#allocation3] sm:$0xff]
        %v2161 = vld [vmem:[#allocation3 + $0x8] sm:$0xff]
        %v2162 = vld [vmem:[#allocation3 + $0x10] sm:$0xff]
        %v2163 = vld [vmem:[#allocation3 + $0x18] sm:$0xff]
        %v2164 = vld [vmem:[#allocation3 + $0x20] sm:$0xff]
        %v2165 = vld [vmem:[#allocation3 + $0x28] sm:$0xff]
        %v2166 = vld [vmem:[#allocation3 + $0x30] sm:$0xff]
        %v2167 = vld [vmem:[#allocation3 + $0x38] sm:$0xff]
        %v2168 = vld [vmem:[#allocation3 + $0x40] sm:$0xff]
        %v2169 = vld [vmem:[#allocation3 + $0x48] sm:$0xff]
        %v2170 = vld [vmem:[#allocation3 + $0x50] sm:$0xff]
        %v2171 = vld [vmem:[#allocation3 + $0x58] sm:$0xff]
        %v2172 = vld [vmem:[#allocation3 + $0x60] sm:$0xff]
        %v2173 = vld [vmem:[#allocation3 + $0x68] sm:$0xff]
        %v2174 = vld [vmem:[#allocation3 + $0x70] sm:$0xff]
        %v2175 = vld [vmem:[#allocation3 + $0x78] sm:$0xff]
        %v2176 = vld [vmem:[#allocation3 + $0x80] sm:$0xff]
        %v2177 = vld [vmem:[#allocation3 + $0x88] sm:$0xff]
        %v2178 = vld [vmem:[#allocation3 + $0x90] sm:$0xff]
        %v2179 = vld [vmem:[#allocation3 + $0x98] sm:$0xff]
        %v2180 = vld [vmem:[#allocation3 + $0xa0] sm:$0xff]
        %v2181 = vld [vmem:[#allocation3 + $0xa8] sm:$0xff]
        %v2182 = vld [vmem:[#allocation3 + $0xb0] sm:$0xff]
        %v2183 = vld [vmem:[#allocation3 + $0xb8] sm:$0xff]
        %v2184 = vld [vmem:[#allocation3 + $0xc0] sm:$0xff]
        %v2185 = vld [vmem:[#allocation3 + $0xc8] sm:$0xff]
        %v2186 = vld [vmem:[#allocation3 + $0xd0] sm:$0xff]
        %v2187 = vld [vmem:[#allocation3 + $0xd8] sm:$0xff]
        %v2188 = vld [vmem:[#allocation3 + $0xe0] sm:$0xff]
        %v2189 = vld [vmem:[#allocation3 + $0xe8] sm:$0xff]
        %v2190 = vld [vmem:[#allocation3 + $0xf0] sm:$0xff]
        %v2191 = vld [vmem:[#allocation3 + $0xf8] sm:$0xff]
        %v2192 = vld [vmem:[%s5] sm:$0x1]
        %v2193 = vld [vmem:[%s6] sm:$0x1]
        %v2194 = vadd.f32 %v2160, %v2161
        %v2195 = vadd.f32 %v2194, %v2162
        %v2196 = vadd.f32 %v2195, %v2163
        %v2197 = vadd.f32 %v2196, %v2164
        %v2198 = vadd.f32 %v2197, %v2165
        %v2199 = vadd.f32 %v2198, %v2166
        %v2200 = vadd.f32 %v2199, %v2167
        %v2201 = vadd.f32 %v2200, %v2168
        %v2202 = vadd.f32 %v2201, %v2169
        %v2203 = vadd.f32 %v2202, %v2170
        %v2204 = vadd.f32 %v2203, %v2171
        %v2205 = vadd.f32 %v2204, %v2172
        %v2206 = vadd.f32 %v2205, %v2173
        %v2207 = vadd.f32 %v2206, %v2174
        %v2208 = vadd.f32 %v2207, %v2175
        %v2209 = vadd.f32 %v2208, %v2176
        %v2210 = vadd.f32 %v2209, %v2177
        %v2211 = vadd.f32 %v2210, %v2178
        %v2212 = vadd.f32 %v2211, %v2179
        %v2213 = vadd.f32 %v2212, %v2180
        %v2214 = vadd.f32 %v2213, %v2181
        %v2215 = vadd.f32 %v2214, %v2182
        %v2216 = vadd.f32 %v2215, %v2183
        %v2217 = vadd.f32 %v2216, %v2184
        %v2218 = vadd.f32 %v2217, %v2185
        %v2219 = vadd.f32 %v2218, %v2186
        %v2220 = vadd.f32 %v2219, %v2187
        %v2221 = vadd.f32 %v2220, %v2188
        %v2222 = vadd.f32 %v2221, %v2189
        %v2223 = vadd.f32 %v2222, %v2190
        %v2224 = vadd.f32 %v2223, %v2191
        %v2225 = vrot.slane %v2224, 4
        %v2226 = vadd.f32 %v2224, %v2225
        %v2227 = vrot.slane %v2226, 2
        %v2228 = vadd.f32 %v2226, %v2227
        %v2229 = vrot.slane %v2228, 1
        %v2230 = vadd.f32 %v2228, %v2229
        %v2231 = vmul.f32 %v2160, %v2160
        %v2232 = vmul.f32 %v2161, %v2161
        %v2233 = vmul.f32 %v2162, %v2162
        %v2234 = vmul.f32 %v2163, %v2163
        %v2235 = vmul.f32 %v2164, %v2164
        %v2236 = vmul.f32 %v2165, %v2165
        %v2237 = vmul.f32 %v2166, %v2166
        %v2238 = vmul.f32 %v2167, %v2167
        %v2239 = vmul.f32 %v2168, %v2168
        %v2240 = vmul.f32 %v2169, %v2169
        %v2241 = vmul.f32 %v2170, %v2170
        %v2242 = vmul.f32 %v2171, %v2171
        %v2243 = vmul.f32 %v2172, %v2172
        %v2244 = vmul.f32 %v2173, %v2173
        %v2245 = vmul.f32 %v2174, %v2174
        %v2246 = vmul.f32 %v2175, %v2175
        %v2247 = vmul.f32 %v2176, %v2176
        %v2248 = vmul.f32 %v2177, %v2177
        %v2249 = vmul.f32 %v2178, %v2178
        %v2250 = vmul.f32 %v2179, %v2179
        %v2251 = vmul.f32 %v2180, %v2180
        %v2252 = vmul.f32 %v2181, %v2181
        %v2253 = vmul.f32 %v2182, %v2182
        %v2254 = vmul.f32 %v2183, %v2183
        %v2255 = vmul.f32 %v2184, %v2184
        %v2256 = vmul.f32 %v2185, %v2185
        %v2257 = vmul.f32 %v2186, %v2186
        %v2258 = vmul.f32 %v2187, %v2187
        %v2259 = vmul.f32 %v2188, %v2188
        %v2260 = vmul.f32 %v2189, %v2189
        %v2261 = vmul.f32 %v2190, %v2190
        %v2262 = vmul.f32 %v2191, %v2191
        %v2263 = vadd.f32 %v2231, %v2232
        %v2264 = vadd.f32 %v2263, %v2233
        %v2265 = vadd.f32 %v2264, %v2234
        %v2266 = vadd.f32 %v2265, %v2235
        %v2267 = vadd.f32 %v2266, %v2236
        %v2268 = vadd.f32 %v2267, %v2237
        %v2269 = vadd.f32 %v2268, %v2238
        %v2270 = vadd.f32 %v2269, %v2239
        %v2271 = vadd.f32 %v2270, %v2240
        %v2272 = vadd.f32 %v2271, %v2241
        %v2273 = vadd.f32 %v2272, %v2242
        %v2274 = vadd.f32 %v2273, %v2243
        %v2275 = vadd.f32 %v2274, %v2244
        %v2276 = vadd.f32 %v2275, %v2245
        %v2277 = vadd.f32 %v2276, %v2246
        %v2278 = vadd.f32 %v2277, %v2247
        %v2279 = vadd.f32 %v2278, %v2248
        %v2280 = vadd.f32 %v2279, %v2249
        %v2281 = vadd.f32 %v2280, %v2250
        %v2282 = vadd.f32 %v2281, %v2251
        %v2283 = vadd.f32 %v2282, %v2252
        %v2284 = vadd.f32 %v2283, %v2253
        %v2285 = vadd.f32 %v2284, %v2254
        %v2286 = vadd.f32 %v2285, %v2255
        %v2287 = vadd.f32 %v2286, %v2256
        %v2288 = vadd.f32 %v2287, %v2257
        %v2289 = vadd.f32 %v2288, %v2258
        %v2290 = vadd.f32 %v2289, %v2259
        %v2291 = vadd.f32 %v2290, %v2260
        %v2292 = vadd.f32 %v2291, %v2261
        %v2293 = vadd.f32 %v2292, %v2262
        %v2294 = vrot.slane %v2293, 4
        %v2295 = vadd.f32 %v2293, %v2294
        %v2296 = vrot.slane %v2295, 2
        %v2297 = vadd.f32 %v2295, %v2296
        %v2298 = vrot.slane %v2297, 1
        %v2299 = vadd.f32 %v2297, %v2298
        %v2300 = vmul.f32 %v2230, 0.00390625
        %v2301 = vmul.f32 %v2299, 0.00390625
        %v2302 = vmul.f32 %v2300, %v2300
        %v2303 = vsub.f32 %v2301, %v2302
        %v2304 = vmax.f32 %v2303, 0.0
        %v2305 = vadd.f32 %v2304, 1e-05
        %v2306 = vrsqrt.pop %v2305
        %v2307 = vmul.f32 %v2306, %v2305
        %v2308 = vmul.f32 %v2307, %v2306
        %v2309 = vmul.f32 0.5, %v2308
        %v2310 = vsub.f32 1.5, %v2309
        %v2311 = vmul.f32 %v2306, %v2310
        %vm2312 = vweird.f32 %v2305
        %vm2313 = vweird.f32 %v2306
        %vm2314 = vmor %vm2312, %vm2313
        %v2315 = vsel %vm2314, %v2306, %v2311
        %v2316 = vmul.f32 %v2192, %v2315
        %v2317 = vmul.f32 %v2300, %v2316
        %v2318 = vsub.f32 %v2193, %v2317
        %v2320 = vperm.slane %v2316, 0
        %v2322 = vmul.f32 %v2160, %v2320
        %v2323 = vmul.f32 %v2161, %v2320
        %v2324 = vmul.f32 %v2162, %v2320
        %v2325 = vmul.f32 %v2163, %v2320
        %v2326 = vmul.f32 %v2164, %v2320
        %v2327 = vmul.f32 %v2165, %v2320
        %v2328 = vmul.f32 %v2166, %v2320
        %v2329 = vmul.f32 %v2167, %v2320
        %v2330 = vmul.f32 %v2168, %v2320
        %v2331 = vmul.f32 %v2169, %v2320
        %v2332 = vmul.f32 %v2170, %v2320
        %v2333 = vmul.f32 %v2171, %v2320
        %v2334 = vmul.f32 %v2172, %v2320
        %v2335 = vmul.f32 %v2173, %v2320
        %v2336 = vmul.f32 %v2174, %v2320
        %v2337 = vmul.f32 %v2175, %v2320
        %v2338 = vmul.f32 %v2176, %v2320
        %v2339 = vmul.f32 %v2177, %v2320
        %v2340 = vmul.f32 %v2178, %v2320
        %v2341 = vmul.f32 %v2179, %v2320
        %v2342 = vmul.f32 %v2180, %v2320
        %v2343 = vmul.f32 %v2181, %v2320
        %v2344 = vmul.f32 %v2182, %v2320
        %v2345 = vmul.f32 %v2183, %v2320
        %v2346 = vmul.f32 %v2184, %v2320
        %v2347 = vmul.f32 %v2185, %v2320
        %v2348 = vmul.f32 %v2186, %v2320
        %v2349 = vmul.f32 %v2187, %v2320
        %v2350 = vmul.f32 %v2188, %v2320
        %v2351 = vmul.f32 %v2189, %v2320
        %v2352 = vmul.f32 %v2190, %v2320
        %v2353 = vmul.f32 %v2191, %v2320
        %v2355 = vperm.slane %v2318, 0
        %v2357 = vadd.f32 %v2322, %v2355
        %v2358 = vadd.f32 %v2323, %v2355
        %v2359 = vadd.f32 %v2324, %v2355
        %v2360 = vadd.f32 %v2325, %v2355
        %v2361 = vadd.f32 %v2326, %v2355
        %v2362 = vadd.f32 %v2327, %v2355
        %v2363 = vadd.f32 %v2328, %v2355
        %v2364 = vadd.f32 %v2329, %v2355
        %v2365 = vadd.f32 %v2330, %v2355
        %v2366 = vadd.f32 %v2331, %v2355
        %v2367 = vadd.f32 %v2332, %v2355
        %v2368 = vadd.f32 %v2333, %v2355
        %v2369 = vadd.f32 %v2334, %v2355
        %v2370 = vadd.f32 %v2335, %v2355
        %v2371 = vadd.f32 %v2336, %v2355
        %v2372 = vadd.f32 %v2337, %v2355
        %v2373 = vadd.f32 %v2338, %v2355
        %v2374 = vadd.f32 %v2339, %v2355
        %v2375 = vadd.f32 %v2340, %v2355
        %v2376 = vadd.f32 %v2341, %v2355
        %v2377 = vadd.f32 %v2342, %v2355
        %v2378 = vadd.f32 %v2343, %v2355
        %v2379 = vadd.f32 %v2344, %v2355
        %v2380 = vadd.f32 %v2345, %v2355
        %v2381 = vadd.f32 %v2346, %v2355
        %v2382 = vadd.f32 %v2347, %v2355
        %v2383 = vadd.f32 %v2348, %v2355
        %v2384 = vadd.f32 %v2349, %v2355
        %v2385 = vadd.f32 %v2350, %v2355
        %v2386 = vadd.f32 %v2351, %v2355
        %v2387 = vadd.f32 %v2352, %v2355
        %v2388 = vadd.f32 %v2353, %v2355
        %v2389 = vmax.f32 %v2357, 0.0
        %v2390 = vmax.f32 %v2358, 0.0
        %v2391 = vmax.f32 %v2359, 0.0
        %v2392 = vmax.f32 %v2360, 0.0
        %v2393 = vmax.f32 %v2361, 0.0
        %v2394 = vmax.f32 %v2362, 0.0
        %v2395 = vmax.f32 %v2363, 0.0
        %v2396 = vmax.f32 %v2364, 0.0
        %v2397 = vmax.f32 %v2365, 0.0
        %v2398 = vmax.f32 %v2366, 0.0
        %v2399 = vmax.f32 %v2367, 0.0
        %v2400 = vmax.f32 %v2368, 0.0
        %v2401 = vmax.f32 %v2369, 0.0
        %v2402 = vmax.f32 %v2370, 0.0
        %v2403 = vmax.f32 %v2371, 0.0
        %v2404 = vmax.f32 %v2372, 0.0
        %v2405 = vmax.f32 %v2373, 0.0
        %v2406 = vmax.f32 %v2374, 0.0
        %v2407 = vmax.f32 %v2375, 0.0
        %v2408 = vmax.f32 %v2376, 0.0
        %v2409 = vmax.f32 %v2377, 0.0
        %v2410 = vmax.f32 %v2378, 0.0
        %v2411 = vmax.f32 %v2379, 0.0
        %v2412 = vmax.f32 %v2380, 0.0
        %v2413 = vmax.f32 %v2381, 0.0
        %v2414 = vmax.f32 %v2382, 0.0
        %v2415 = vmax.f32 %v2383, 0.0
        %v2416 = vmax.f32 %v2384, 0.0
        %v2417 = vmax.f32 %v2385, 0.0
        %v2418 = vmax.f32 %v2386, 0.0
        %v2419 = vmax.f32 %v2387, 0.0
        %v2420 = vmax.f32 %v2388, 0.0
        %v2421 = vld [vmem:[#allocation10] sm:$0xff]
        %v2422 = vld [vmem:[#allocation10 + $0x8] sm:$0xff]
        %v2423 = vld [vmem:[#allocation10 + $0x10] sm:$0xff]
        %v2424 = vld [vmem:[#allocation10 + $0x18] sm:$0xff]
        %v2425 = vld [vmem:[#allocation10 + $0x20] sm:$0xff]
        %v2426 = vld [vmem:[#allocation10 + $0x28] sm:$0xff]
        %v2427 = vld [vmem:[#allocation10 + $0x30] sm:$0xff]
        %v2428 = vld [vmem:[#allocation10 + $0x38] sm:$0xff]
        %v2429 = vld [vmem:[#allocation10 + $0x40] sm:$0xff]
        %v2430 = vld [vmem:[#allocation10 + $0x48] sm:$0xff]
        %v2431 = vld [vmem:[#allocation10 + $0x50] sm:$0xff]
        %v2432 = vld [vmem:[#allocation10 + $0x58] sm:$0xff]
        %v2433 = vld [vmem:[#allocation10 + $0x60] sm:$0xff]
        %v2434 = vld [vmem:[#allocation10 + $0x68] sm:$0xff]
        %v2435 = vld [vmem:[#allocation10 + $0x70] sm:$0xff]
        %v2436 = vld [vmem:[#allocation10 + $0x78] sm:$0xff]
        %2437 = vmatpush.msra.mxu0 %v2436
        %2438 = vmatpush.msra.mxu0 %v2435
        %2439 = vmatpush.msra.mxu0 %v2434
        %2440 = vmatpush.msra.mxu0 %v2433
        %2441 = vmatpush.msra.mxu0 %v2432
        %2442 = vmatpush.msra.mxu0 %v2431
        %2443 = vmatpush.msra.mxu0 %v2430
        %2444 = vmatpush.msra.mxu0 %v2429
        %2445 = vmatpush.msra.mxu0 %v2428
        %2446 = vmatpush.msra.mxu0 %v2427
        %2447 = vmatpush.msra.mxu0 %v2426
        %2448 = vmatpush.msra.mxu0 %v2425
        %2449 = vmatpush.msra.mxu0 %v2424
        %2450 = vmatpush.msra.mxu0 %v2423
        %2451 = vmatpush.msra.mxu0 %v2422
        %2452 = vmatpush.msra.mxu0 %v2421
        %2453 = vmatmul.f32.gmra.mxu0 %v2389
        %v2454 = vpop.f32.mrf.mxu0
        %v2455 = vadd.f32 0.0, %v2454
        %2456 = vmatmul.f32.gmra.mxu0 %v2390
        %v2457 = vpop.f32.mrf.mxu0
        %v2458 = vadd.f32 0.0, %v2457
        %2459 = vmatmul.f32.gmra.mxu0 %v2391
        %v2460 = vpop.f32.mrf.mxu0
        %v2461 = vadd.f32 0.0, %v2460
        %2462 = vmatmul.f32.gmra.mxu0 %v2392
        %v2463 = vpop.f32.mrf.mxu0
        %v2464 = vadd.f32 0.0, %v2463
        %2465 = vmatmul.f32.gmra.mxu0 %v2393
        %v2466 = vpop.f32.mrf.mxu0
        %v2467 = vadd.f32 0.0, %v2466
        %2468 = vmatmul.f32.gmra.mxu0 %v2394
        %v2469 = vpop.f32.mrf.mxu0
        %v2470 = vadd.f32 0.0, %v2469
        %2471 = vmatmul.f32.gmra.mxu0 %v2395
        %v2472 = vpop.f32.mrf.mxu0
        %v2473 = vadd.f32 0.0, %v2472
        %2474 = vmatmul.f32.gmra.mxu0 %v2396
        %v2475 = vpop.f32.mrf.mxu0
        %v2476 = vadd.f32 0.0, %v2475
        %2477 = vmatmul.f32.gmra.mxu0 %v2397
        %v2478 = vpop.f32.mrf.mxu0
        %v2479 = vadd.f32 0.0, %v2478
        %2480 = vmatmul.f32.gmra.mxu0 %v2398
        %v2481 = vpop.f32.mrf.mxu0
        %v2482 = vadd.f32 0.0, %v2481
        %2483 = vmatmul.f32.gmra.mxu0 %v2399
        %v2484 = vpop.f32.mrf.mxu0
        %v2485 = vadd.f32 0.0, %v2484
        %2486 = vmatmul.f32.gmra.mxu0 %v2400
        %v2487 = vpop.f32.mrf.mxu0
        %v2488 = vadd.f32 0.0, %v2487
        %2489 = vmatmul.f32.gmra.mxu0 %v2401
        %v2490 = vpop.f32.mrf.mxu0
        %v2491 = vadd.f32 0.0, %v2490
        %2492 = vmatmul.f32.gmra.mxu0 %v2402
        %v2493 = vpop.f32.mrf.mxu0
        %v2494 = vadd.f32 0.0, %v2493
        %2495 = vmatmul.f32.gmra.mxu0 %v2403
        %v2496 = vpop.f32.mrf.mxu0
        %v2497 = vadd.f32 0.0, %v2496
        %2498 = vmatmul.f32.gmra.mxu0 %v2404
        %v2499 = vpop.f32.mrf.mxu0
        %v2500 = vadd.f32 0.0, %v2499
        %2501 = vmatmul.f32.gmra.mxu0 %v2405
        %v2502 = vpop.f32.mrf.mxu0
        %v2503 = vadd.f32 0.0, %v2502
        %2504 = vmatmul.f32.gmra.mxu0 %v2406
        %v2505 = vpop.f32.mrf.mxu0
        %v2506 = vadd.f32 0.0, %v2505
        %2507 = vmatmul.f32.gmra.mxu0 %v2407
        %v2508 = vpop.f32.mrf.mxu0
        %v2509 = vadd.f32 0.0, %v2508
        %2510 = vmatmul.f32.gmra.mxu0 %v2408
        %v2511 = vpop.f32.mrf.mxu0
        %v2512 = vadd.f32 0.0, %v2511
        %2513 = vmatmul.f32.gmra.mxu0 %v2409
        %v2514 = vpop.f32.mrf.mxu0
        %v2515 = vadd.f32 0.0, %v2514
        %2516 = vmatmul.f32.gmra.mxu0 %v2410
        %v2517 = vpop.f32.mrf.mxu0
        %v2518 = vadd.f32 0.0, %v2517
        %2519 = vmatmul.f32.gmra.mxu0 %v2411
        %v2520 = vpop.f32.mrf.mxu0
        %v2521 = vadd.f32 0.0, %v2520
        %2522 = vmatmul.f32.gmra.mxu0 %v2412
        %v2523 = vpop.f32.mrf.mxu0
        %v2524 = vadd.f32 0.0, %v2523
        %2525 = vmatmul.f32.gmra.mxu0 %v2413
        %v2526 = vpop.f32.mrf.mxu0
        %v2527 = vadd.f32 0.0, %v2526
        %2528 = vmatmul.f32.gmra.mxu0 %v2414
        %v2529 = vpop.f32.mrf.mxu0
        %v2530 = vadd.f32 0.0, %v2529
        %2531 = vmatmul.f32.gmra.mxu0 %v2415
        %v2532 = vpop.f32.mrf.mxu0
        %v2533 = vadd.f32 0.0, %v2532
        %2534 = vmatmul.f32.gmra.mxu0 %v2416
        %v2535 = vpop.f32.mrf.mxu0
        %v2536 = vadd.f32 0.0, %v2535
        %2537 = vmatmul.f32.gmra.mxu0 %v2417
        %v2538 = vpop.f32.mrf.mxu0
        %v2539 = vadd.f32 0.0, %v2538
        %2540 = vmatmul.f32.gmra.mxu0 %v2418
        %v2541 = vpop.f32.mrf.mxu0
        %v2542 = vadd.f32 0.0, %v2541
        %2543 = vmatmul.f32.gmra.mxu0 %v2419
        %v2544 = vpop.f32.mrf.mxu0
        %v2545 = vadd.f32 0.0, %v2544
        %2546 = vmatmul.f32.gmra.mxu0 %v2420
        %v2547 = vpop.f32.mrf.mxu0
        %v2548 = vadd.f32 0.0, %v2547
        %2549 = vdwg.mxu0
        %v2550 = vld [vmem:[%s8] sm:$0x1]
        %v2551 = vld [vmem:[%s9] sm:$0x1]
        %v2552 = vadd.f32 %v2455, %v2458
        %v2553 = vadd.f32 %v2552, %v2461
        %v2554 = vadd.f32 %v2553, %v2464
        %v2555 = vadd.f32 %v2554, %v2467
        %v2556 = vadd.f32 %v2555, %v2470
        %v2557 = vadd.f32 %v2556, %v2473
        %v2558 = vadd.f32 %v2557, %v2476
        %v2559 = vadd.f32 %v2558, %v2479
        %v2560 = vadd.f32 %v2559, %v2482
        %v2561 = vadd.f32 %v2560, %v2485
        %v2562 = vadd.f32 %v2561, %v2488
        %v2563 = vadd.f32 %v2562, %v2491
        %v2564 = vadd.f32 %v2563, %v2494
        %v2565 = vadd.f32 %v2564, %v2497
        %v2566 = vadd.f32 %v2565, %v2500
        %v2567 = vadd.f32 %v2566, %v2503
        %v2568 = vadd.f32 %v2567, %v2506
        %v2569 = vadd.f32 %v2568, %v2509
        %v2570 = vadd.f32 %v2569, %v2512
        %v2571 = vadd.f32 %v2570, %v2515
        %v2572 = vadd.f32 %v2571, %v2518
        %v2573 = vadd.f32 %v2572, %v2521
        %v2574 = vadd.f32 %v2573, %v2524
        %v2575 = vadd.f32 %v2574, %v2527
        %v2576 = vadd.f32 %v2575, %v2530
        %v2577 = vadd.f32 %v2576, %v2533
        %v2578 = vadd.f32 %v2577, %v2536
        %v2579 = vadd.f32 %v2578, %v2539
        %v2580 = vadd.f32 %v2579, %v2542
        %v2581 = vadd.f32 %v2580, %v2545
        %v2582 = vadd.f32 %v2581, %v2548
        %v2583 = vrot.slane %v2582, 4
        %v2584 = vadd.f32 %v2582, %v2583
        %v2585 = vrot.slane %v2584, 2
        %v2586 = vadd.f32 %v2584, %v2585
        %v2587 = vrot.slane %v2586, 1
        %v2588 = vadd.f32 %v2586, %v2587
        %v2589 = vmul.f32 %v2455, %v2455
        %v2590 = vmul.f32 %v2458, %v2458
        %v2591 = vmul.f32 %v2461, %v2461
        %v2592 = vmul.f32 %v2464, %v2464
        %v2593 = vmul.f32 %v2467, %v2467
        %v2594 = vmul.f32 %v2470, %v2470
        %v2595 = vmul.f32 %v2473, %v2473
        %v2596 = vmul.f32 %v2476, %v2476
        %v2597 = vmul.f32 %v2479, %v2479
        %v2598 = vmul.f32 %v2482, %v2482
        %v2599 = vmul.f32 %v2485, %v2485
        %v2600 = vmul.f32 %v2488, %v2488
        %v2601 = vmul.f32 %v2491, %v2491
        %v2602 = vmul.f32 %v2494, %v2494
        %v2603 = vmul.f32 %v2497, %v2497
        %v2604 = vmul.f32 %v2500, %v2500
        %v2605 = vmul.f32 %v2503, %v2503
        %v2606 = vmul.f32 %v2506, %v2506
        %v2607 = vmul.f32 %v2509, %v2509
        %v2608 = vmul.f32 %v2512, %v2512
        %v2609 = vmul.f32 %v2515, %v2515
        %v2610 = vmul.f32 %v2518, %v2518
        %v2611 = vmul.f32 %v2521, %v2521
        %v2612 = vmul.f32 %v2524, %v2524
        %v2613 = vmul.f32 %v2527, %v2527
        %v2614 = vmul.f32 %v2530, %v2530
        %v2615 = vmul.f32 %v2533, %v2533
        %v2616 = vmul.f32 %v2536, %v2536
        %v2617 = vmul.f32 %v2539, %v2539
        %v2618 = vmul.f32 %v2542, %v2542
        %v2619 = vmul.f32 %v2545, %v2545
        %v2620 = vmul.f32 %v2548, %v2548
        %v2621 = vadd.f32 %v2589, %v2590
        %v2622 = vadd.f32 %v2621, %v2591
        %v2623 = vadd.f32 %v2622, %v2592
        %v2624 = vadd.f32 %v2623, %v2593
        %v2625 = vadd.f32 %v2624, %v2594
        %v2626 = vadd.f32 %v2625, %v2595
        %v2627 = vadd.f32 %v2626, %v2596
        %v2628 = vadd.f32 %v2627, %v2597
        %v2629 = vadd.f32 %v2628, %v2598
        %v2630 = vadd.f32 %v2629, %v2599
        %v2631 = vadd.f32 %v2630, %v2600
        %v2632 = vadd.f32 %v2631, %v2601
        %v2633 = vadd.f32 %v2632, %v2602
        %v2634 = vadd.f32 %v2633, %v2603
        %v2635 = vadd.f32 %v2634, %v2604
        %v2636 = vadd.f32 %v2635, %v2605
        %v2637 = vadd.f32 %v2636, %v2606
        %v2638 = vadd.f32 %v2637, %v2607
        %v2639 = vadd.f32 %v2638, %v2608
        %v2640 = vadd.f32 %v2639, %v2609
        %v2641 = vadd.f32 %v2640, %v2610
        %v2642 = vadd.f32 %v2641, %v2611
        %v2643 = vadd.f32 %v2642, %v2612
        %v2644 = vadd.f32 %v2643, %v2613
        %v2645 = vadd.f32 %v2644, %v2614
        %v2646 = vadd.f32 %v2645, %v2615
        %v2647 = vadd.f32 %v2646, %v2616
        %v2648 = vadd.f32 %v2647, %v2617
        %v2649 = vadd.f32 %v2648, %v2618
        %v2650 = vadd.f32 %v2649, %v2619
        %v2651 = vadd.f32 %v2650, %v2620
        %v2652 = vrot.slane %v2651, 4
        %v2653 = vadd.f32 %v2651, %v2652
        %v2654 = vrot.slane %v2653, 2
        %v2655 = vadd.f32 %v2653, %v2654
        %v2656 = vrot.slane %v2655, 1
        %v2657 = vadd.f32 %v2655, %v2656
        %v2658 = vmul.f32 %v2588, 0.00390625
        %v2659 = vmul.f32 %v2657, 0.00390625
        %v2660 = vmul.f32 %v2658, %v2658
        %v2661 = vsub.f32 %v2659, %v2660
        %v2662 = vmax.f32 %v2661, 0.0
        %v2663 = vadd.f32 %v2662, 1e-05
        %v2664 = vrsqrt.pop %v2663
        %v2665 = vmul.f32 %v2664, %v2663
        %v2666 = vmul.f32 %v2665, %v2664
        %v2667 = vmul.f32 0.5, %v2666
        %v2668 = vsub.f32 1.5, %v2667
        %v2669 = vmul.f32 %v2664, %v2668
        %vm2670 = vweird.f32 %v2663
        %vm2671 = vweird.f32 %v2664
        %vm2672 = vmor %vm2670, %vm2671
        %v2673 = vsel %vm2672, %v2664, %v2669
        %v2674 = vmul.f32 %v2550, %v2673
        %v2675 = vmul.f32 %v2658, %v2674
        %v2676 = vsub.f32 %v2551, %v2675
        %v2678 = vperm.slane %v2674, 0
        %v2680 = vmul.f32 %v2455, %v2678
        %v2681 = vmul.f32 %v2458, %v2678
        %v2682 = vmul.f32 %v2461, %v2678
        %v2683 = vmul.f32 %v2464, %v2678
        %v2684 = vmul.f32 %v2467, %v2678
        %v2685 = vmul.f32 %v2470, %v2678
        %v2686 = vmul.f32 %v2473, %v2678
        %v2687 = vmul.f32 %v2476, %v2678
        %v2688 = vmul.f32 %v2479, %v2678
        %v2689 = vmul.f32 %v2482, %v2678
        %v2690 = vmul.f32 %v2485, %v2678
        %v2691 = vmul.f32 %v2488, %v2678
        %v2692 = vmul.f32 %v2491, %v2678
        %v2693 = vmul.f32 %v2494, %v2678
        %v2694 = vmul.f32 %v2497, %v2678
        %v2695 = vmul.f32 %v2500, %v2678
        %v2696 = vmul.f32 %v2503, %v2678
        %v2697 = vmul.f32 %v2506, %v2678
        %v2698 = vmul.f32 %v2509, %v2678
        %v2699 = vmul.f32 %v2512, %v2678
        %v2700 = vmul.f32 %v2515, %v2678
        %v2701 = vmul.f32 %v2518, %v2678
        %v2702 = vmul.f32 %v2521, %v2678
        %v2703 = vmul.f32 %v2524, %v2678
        %v2704 = vmul.f32 %v2527, %v2678
        %v2705 = vmul.f32 %v2530, %v2678
        %v2706 = vmul.f32 %v2533, %v2678
        %v2707 = vmul.f32 %v2536, %v2678
        %v2708 = vmul.f32 %v2539, %v2678
        %v2709 = vmul.f32 %v2542, %v2678
        %v2710 = vmul.f32 %v2545, %v2678
        %v2711 = vmul.f32 %v2548, %v2678
        %v2713 = vperm.slane %v2676, 0
        %v2715 = vadd.f32 %v2680, %v2713
        %v2716 = vadd.f32 %v2681, %v2713
        %v2717 = vadd.f32 %v2682, %v2713
        %v2718 = vadd.f32 %v2683, %v2713
        %v2719 = vadd.f32 %v2684, %v2713
        %v2720 = vadd.f32 %v2685, %v2713
        %v2721 = vadd.f32 %v2686, %v2713
        %v2722 = vadd.f32 %v2687, %v2713
        %v2723 = vadd.f32 %v2688, %v2713
        %v2724 = vadd.f32 %v2689, %v2713
        %v2725 = vadd.f32 %v2690, %v2713
        %v2726 = vadd.f32 %v2691, %v2713
        %v2727 = vadd.f32 %v2692, %v2713
        %v2728 = vadd.f32 %v2693, %v2713
        %v2729 = vadd.f32 %v2694, %v2713
        %v2730 = vadd.f32 %v2695, %v2713
        %v2731 = vadd.f32 %v2696, %v2713
        %v2732 = vadd.f32 %v2697, %v2713
        %v2733 = vadd.f32 %v2698, %v2713
        %v2734 = vadd.f32 %v2699, %v2713
        %v2735 = vadd.f32 %v2700, %v2713
        %v2736 = vadd.f32 %v2701, %v2713
        %v2737 = vadd.f32 %v2702, %v2713
        %v2738 = vadd.f32 %v2703, %v2713
        %v2739 = vadd.f32 %v2704, %v2713
        %v2740 = vadd.f32 %v2705, %v2713
        %v2741 = vadd.f32 %v2706, %v2713
        %v2742 = vadd.f32 %v2707, %v2713
        %v2743 = vadd.f32 %v2708, %v2713
        %v2744 = vadd.f32 %v2709, %v2713
        %v2745 = vadd.f32 %v2710, %v2713
        %v2746 = vadd.f32 %v2711, %v2713
        %v2747 = vadd.f32 %v2715, %v430
        %v2748 = vadd.f32 %v2716, %v431
        %v2749 = vadd.f32 %v2717, %v432
        %v2750 = vadd.f32 %v2718, %v433
        %v2751 = vadd.f32 %v2719, %v434
        %v2752 = vadd.f32 %v2720, %v435
        %v2753 = vadd.f32 %v2721, %v436
        %v2754 = vadd.f32 %v2722, %v437
        %v2755 = vadd.f32 %v2723, %v438
        %v2756 = vadd.f32 %v2724, %v439
        %v2757 = vadd.f32 %v2725, %v440
        %v2758 = vadd.f32 %v2726, %v441
        %v2759 = vadd.f32 %v2727, %v442
        %v2760 = vadd.f32 %v2728, %v443
        %v2761 = vadd.f32 %v2729, %v444
        %v2762 = vadd.f32 %v2730, %v445
        %v2763 = vadd.f32 %v2731, %v446
        %v2764 = vadd.f32 %v2732, %v447
        %v2765 = vadd.f32 %v2733, %v448
        %v2766 = vadd.f32 %v2734, %v449
        %v2767 = vadd.f32 %v2735, %v450
        %v2768 = vadd.f32 %v2736, %v451
        %v2769 = vadd.f32 %v2737, %v452
        %v2770 = vadd.f32 %v2738, %v453
        %v2771 = vadd.f32 %v2739, %v454
        %v2772 = vadd.f32 %v2740, %v455
        %v2773 = vadd.f32 %v2741, %v456
        %v2774 = vadd.f32 %v2742, %v457
        %v2775 = vadd.f32 %v2743, %v458
        %v2776 = vadd.f32 %v2744, %v459
        %v2777 = vadd.f32 %v2745, %v460
        %v2778 = vadd.f32 %v2746, %v461
        %v2779 = vmax.f32 %v2747, 0.0
        %v2780 = vmax.f32 %v2748, 0.0
        %v2781 = vmax.f32 %v2749, 0.0
        %v2782 = vmax.f32 %v2750, 0.0
        %v2783 = vmax.f32 %v2751, 0.0
        %v2784 = vmax.f32 %v2752, 0.0
        %v2785 = vmax.f32 %v2753, 0.0
        %v2786 = vmax.f32 %v2754, 0.0
        %v2787 = vmax.f32 %v2755, 0.0
        %v2788 = vmax.f32 %v2756, 0.0
        %v2789 = vmax.f32 %v2757, 0.0
        %v2790 = vmax.f32 %v2758, 0.0
        %v2791 = vmax.f32 %v2759, 0.0
        %v2792 = vmax.f32 %v2760, 0.0
        %v2793 = vmax.f32 %v2761, 0.0
        %v2794 = vmax.f32 %v2762, 0.0
        %v2795 = vmax.f32 %v2763, 0.0
        %v2796 = vmax.f32 %v2764, 0.0
        %v2797 = vmax.f32 %v2765, 0.0
        %v2798 = vmax.f32 %v2766, 0.0
        %v2799 = vmax.f32 %v2767, 0.0
        %v2800 = vmax.f32 %v2768, 0.0
        %v2801 = vmax.f32 %v2769, 0.0
        %v2802 = vmax.f32 %v2770, 0.0
        %v2803 = vmax.f32 %v2771, 0.0
        %v2804 = vmax.f32 %v2772, 0.0
        %v2805 = vmax.f32 %v2773, 0.0
        %v2806 = vmax.f32 %v2774, 0.0
        %v2807 = vmax.f32 %v2775, 0.0
        %v2808 = vmax.f32 %v2776, 0.0
        %v2809 = vmax.f32 %v2777, 0.0
        %v2810 = vmax.f32 %v2778, 0.0
        %2811 = vst [vmem:[%s429] sm:$0xff] %v2779
        %2812 = vst [vmem:[%s429 + $0x8] sm:$0xff] %v2780
        %2813 = vst [vmem:[%s429 + $0x10] sm:$0xff] %v2781
        %2814 = vst [vmem:[%s429 + $0x18] sm:$0xff] %v2782
        %2815 = vst [vmem:[%s429 + $0x20] sm:$0xff] %v2783
        %2816 = vst [vmem:[%s429 + $0x28] sm:$0xff] %v2784
        %2817 = vst [vmem:[%s429 + $0x30] sm:$0xff] %v2785
        %2818 = vst [vmem:[%s429 + $0x38] sm:$0xff] %v2786
        %2819 = vst [vmem:[%s429 + $0x40] sm:$0xff] %v2787
        %2820 = vst [vmem:[%s429 + $0x48] sm:$0xff] %v2788
        %2821 = vst [vmem:[%s429 + $0x50] sm:$0xff] %v2789
        %2822 = vst [vmem:[%s429 + $0x58] sm:$0xff] %v2790
        %2823 = vst [vmem:[%s429 + $0x60] sm:$0xff] %v2791
        %2824 = vst [vmem:[%s429 + $0x68] sm:$0xff] %v2792
        %2825 = vst [vmem:[%s429 + $0x70] sm:$0xff] %v2793
        %2826 = vst [vmem:[%s429 + $0x78] sm:$0xff] %v2794
        %2827 = vst [vmem:[%s429 + $0x80] sm:$0xff] %v2795
        %2828 = vst [vmem:[%s429 + $0x88] sm:$0xff] %v2796
        %2829 = vst [vmem:[%s429 + $0x90] sm:$0xff] %v2797
        %2830 = vst [vmem:[%s429 + $0x98] sm:$0xff] %v2798
        %2831 = vst [vmem:[%s429 + $0xa0] sm:$0xff] %v2799
        %2832 = vst [vmem:[%s429 + $0xa8] sm:$0xff] %v2800
        %2833 = vst [vmem:[%s429 + $0xb0] sm:$0xff] %v2801
        %2834 = vst [vmem:[%s429 + $0xb8] sm:$0xff] %v2802
        %2835 = vst [vmem:[%s429 + $0xc0] sm:$0xff] %v2803
        %2836 = vst [vmem:[%s429 + $0xc8] sm:$0xff] %v2804
        %2837 = vst [vmem:[%s429 + $0xd0] sm:$0xff] %v2805
        %2838 = vst [vmem:[%s429 + $0xd8] sm:$0xff] %v2806
        %2839 = vst [vmem:[%s429 + $0xe0] sm:$0xff] %v2807
        %2840 = vst [vmem:[%s429 + $0xe8] sm:$0xff] %v2808
        %2841 = vst [vmem:[%s429 + $0xf0] sm:$0xff] %v2809
        %2842 = vst [vmem:[%s429 + $0xf8] sm:$0xff] %v2810
        %s2843 = sand.u32 %s252, 1
        %s2844 = scalar_lea.sflag [#allocation6], %s2843
        %s2845 = sand.u32 %s252, 1
        %s2846 = smul.addr %s2845, 256
        %s2847 = scalar_lea.vmem [#allocation12], %s2846
        // Predicated region
        $region84: #{tpu_custom_call.1} parent=59 // pred_check
          %p2848 = pneg %p262
        $region85: #{tpu_custom_call.1} parent=59 // pred_check_branch
          %2850 = sbr.rel (%p2848) target = $region87
        $region86: #{tpu_custom_call.1} parent=59 // pred_region
          %2852 = vsyncadd %s2844, 0
          %s2853 = smul.addr %s29, 32
          %s2854 = smul.addr %s2853, 8
          %s2855 = scalar_lea.hbm %s10, %s2854
          %s2856 = sshll.u32 %s2847, 4
          %s2857 = int_to_ptr.vmem [resolvable:$true] %s2856
          %s2858 = sshll.u32 %s2855, 4
          %s2859 = int_to_ptr.hbm [resolvable:$true] %s2858
          %2864 = dma.vmem_to_hbm [thread:$0]  %s2857, 4096, %s2859, %s2844, 128, 128, 8
        $region87: #{tpu_custom_call.1} parent=59 // pred_fallthru
          _
      $region60: #{tpu_custom_call.1} parent=5 // pred_fallthru
        _
      %p2865 = scmp.le.s32.totalorder 2, %s24
      // Predicated region
      $region88: #{tpu_custom_call.1} parent=5 // pred_check
        %p2866 = pneg %p2865
      $region89: #{tpu_custom_call.1} parent=5 // pred_check_branch
        %2868 = sbr.rel (%p2866) target = $region91
      $region90: #{tpu_custom_call.1} parent=5 // pred_region
        %s2869 = ssub.s32 %s24, 2
        // Predicated region
        $region92: #{tpu_custom_call.1} parent=90 // pred_check
          %p2870 = pneg %p268
        $region93: #{tpu_custom_call.1} parent=90 // pred_check_branch
          %2872 = sbr.rel (%p2870) target = $region95
        $region94: #{tpu_custom_call.1} parent=90 // pred_region
          %s2873 = sand.u32 %s253, 1
          %s2874 = scalar_lea.sflag [#allocation6], %s2873
          %s2875 = sand.u32 %s253, 1
          %s2876 = smul.addr %s2875, 256
          %s2877 = scalar_lea.vmem [#allocation12], %s2876
          %2879 = dma.done %s2874, 4096
        $region95: #{tpu_custom_call.1} parent=90 // pred_fallthru
          _
      $region91: #{tpu_custom_call.1} parent=5 // pred_fallthru
        _
    $region6: #{tpu_custom_call.1} parent=1 // loop_footer
      %s28 = sadd.s32 1, %s24
    $region7: #{tpu_custom_call.1} parent=1 // loop_footer_branch
      %23 = sbr.rel target = $region3
    $region8: #{tpu_custom_call.1} parent=1 // loop_exit
      _
    %2880 = vsyncpa [#allocation5], 1
    %s2881 = scalar_lea.sflag [#allocation5], 1
    %2882 = vsyncpa %s2881, 1
    %2883 = vsyncpa [#allocation8], 1
    %2884 = vsyncpa [#allocation11], 1
    %2885 = vsyncpa [#allocation6], 1
    %s2886 = scalar_lea.sflag [#allocation6], 1
    %2887 = vsyncpa %s2886, 1

// kernel: tpu_custom_call.1
$region0: #{tpu_custom_call.1}
  #allocation0 [shape = 'u32[]', space=smem, size = 0x4, offset = 0x4, fixed_abs, tag = 'smem constant byte address 0x4 - core index']
  #allocation1 [shape = 'u32[72,128]{1,0:T(1,128)}', space=vmem, size = 0x9000, scoped, tag = 'internal scratch']
  #allocation2 [shape = 'f32[320,128]{1,0:T(8,128)}', space=vmem, size = 0x28000, scoped, tag = 'scratch operand']
  #allocation3 [shape = 'f32[256,128]{1,0:T(8,128)}', space=vmem, size = 0x20000, scoped, tag = 'scratch operand']
  %s0 = inlined_call_operand.hbm [shape: f32[2,16,16,128], index: 0, kind: input, shape index: {}]
  %s1 = inlined_call_operand.hbm [shape: f32[128,128], index: 1, kind: input, shape index: {}]
  %s2 = inlined_call_operand.vmem [shape: f32[1,128], index: 2, kind: input, shape index: {}]
  %s3 = inlined_call_operand.vmem [shape: f32[1,128], index: 3, kind: input, shape index: {}]
  %s4 = inlined_call_operand.hbm [shape: f32[1152,128], index: 4, kind: input, shape index: {}]
  %s5 = inlined_call_operand.vmem [shape: f32[1,128], index: 5, kind: input, shape index: {}]
  %s6 = inlined_call_operand.vmem [shape: f32[1,128], index: 6, kind: input, shape index: {}]
  %s7 = inlined_call_operand.hbm [shape: f32[128,128], index: 7, kind: input, shape index: {}]
  %s8 = inlined_call_operand.vmem [shape: f32[1,128], index: 8, kind: input, shape index: {}]
  %s9 = inlined_call_operand.vmem [shape: f32[1,128], index: 9, kind: input, shape index: {}]
  %s10 = inlined_call_operand.hbm [shape: f32[2,16,16,128], index: 10, kind: output, shape index: {}]
  %s11 = sld [smem:[#allocation0]]
  $region96: #{tpu_custom_call.1} parent=0
    _
  %s13 = ssub.s32 1, %s11
  %s14 = scalar_select 0, %s13, %s11
  $region1: #{tpu_custom_call.1} parent=0
    #allocation4 [shape = 'u8[262144]{0}', space=vmem, size = 0x40000, scoped, tag = 'input window, operand 0']
    #allocation5 [shape = 's32[2]{0}', space=sflag, size = 0x8, scoped, tag = 'scoped memory for tpu_custom_call.1']
    #allocation6 [shape = 's32[2]{0}', space=sflag, size = 0x8, scoped, tag = 'scoped memory for tpu_custom_call.1']
    #allocation7 [shape = 'u8[65536]{0}', space=vmem, size = 0x10000, scoped, tag = 'input window, operand 1, single buffered']
    #allocation8 [shape = 's32[1]{0}', space=sflag, size = 0x4, scoped, tag = 'scoped memory for tpu_custom_call.1']
    #allocation9 [shape = 'u8[589824]{0}', space=vmem, size = 0x90000, scoped, tag = 'input window, operand 4, single buffered']
    #allocation10 [shape = 'u8[65536]{0}', space=vmem, size = 0x10000, scoped, tag = 'input window, operand 7, single buffered']
    #allocation11 [shape = 's32[1]{0}', space=sflag, size = 0x4, scoped, tag = 'scoped memory for tpu_custom_call.1']
    #allocation12 [shape = 'u8[262144]{0}', space=vmem, size = 0x40000, scoped, tag = 'output window, operand 0']
    %15 = vsyncpa [#allocation5], 0
    %s16 = scalar_lea.sflag [#allocation5], 1
    %17 = vsyncpa %s16, 0
    %18 = vsyncpa [#allocation8], 0
    %19 = vsyncpa [#allocation11], 0
    %20 = vsyncpa [#allocation6], 0
    %s21 = scalar_lea.sflag [#allocation6], 1
    %22 = vsyncpa %s21, 0
    loop: start=0, step=1, limit=4
    $region2: #{tpu_custom_call.1} parent=1 // loop_pre_header
      _
    $region3: #{tpu_custom_call.1} parent=1 // loop_header
      %s24 = sphi 0, %s28
      %p25 = scmp.ge.s32.totalorder %s24, 4
      %s34 = sphi 0, %s36
      %s37 = sphi 0, %s34
      %s38 = sphi 0, %s37
      %s54 = sphi 0, %s38
      %s58 = sphi 0, %s58
      %s60 = sphi 0, %s58
      %s61 = sphi 0, %s60
      %s75 = sphi 0, %s61
      %s79 = sphi 0, %s79
      %s81 = sphi 0, %s79
      %s82 = sphi 0, %s81
      %s96 = sphi 0, %s82
      %s100 = sphi 0, %s100
      %s102 = sphi 0, %s100
      %s103 = sphi 0, %s102
      %s117 = sphi 0, %s103
      %s121 = sphi 0, %s121
      %s123 = sphi 0, %s121
      %s124 = sphi 0, %s123
      %s138 = sphi 0, %s124
      %s142 = sphi 0, %s142
      %s144 = sphi 0, %s142
      %s145 = sphi 0, %s144
      %s159 = sphi 0, %s145
      %s163 = sphi 0, %s163
      %s165 = sphi 0, %s163
      %s166 = sphi 0, %s165
      %s180 = sphi 0, %s166
      %s184 = sphi 0, %s184
      %s186 = sphi 0, %s184
      %s187 = sphi 0, %s186
      %s201 = sphi 0, %s187
      %s205 = sphi 0, %s205
      %s207 = sphi 0, %s205
      %s208 = sphi 0, %s207
      %s222 = sphi 0, %s208
      %s226 = sphi 0, %s226
      %s228 = sphi 0, %s226
      %s229 = sphi 0, %s228
      %s243 = sphi 0, %s229
      %s249 = sphi 0, %s251
      %s252 = sphi 0, %s249
      %s253 = sphi 0, %s252
      %s269 = sphi 0, %s253
    $region4: #{tpu_custom_call.1} parent=1 // loop_header_branch
      %27 = sbr.rel (%p25) target = $region8
    $region5: #{tpu_custom_call.1} parent=1 // loop_body
      %s29 = ssub.s32 %s24, 1
      %s30 = ssub.s32 %s24, 2
      %s31 = sadd.s32 %s24, 1
      %s32 = ssub.s32 %s24, %s31
      %p33 = scmp.eq.s32.totalorder %s32, 0
      %s35 = sadd.s32 %s34, 1
      %s36 = scalar_select %p33, %s34, %s35
      %p39 = pneg %p33
      %p40 = scmp.eq.s32.totalorder %s24, 1
      %p41 = por %p39, %p40
      %p42 = scmp.ne.s32.totalorder %s34, %s37
      %p43 = scmp.eq.s32.totalorder %s24, 0
      %p44 = por %p42, %p43
      %p45 = scmp.ne.s32.totalorder %s34, %s37
      %p46 = scmp.eq.s32.totalorder %s29, 1
      %p47 = por %p45, %p46
      %p48 = scmp.ne.s32.totalorder %s37, %s38
      %p49 = scmp.eq.s32.totalorder %s29, 0
      %p50 = por %p48, %p49
      %p51 = scmp.ne.s32.totalorder %s37, %s38
      %p52 = scmp.eq.s32.totalorder %s30, 1
      %p53 = por %p51, %p52
      %p55 = scmp.ne.s32.totalorder %s38, %s54
      %p56 = scmp.eq.s32.totalorder %s30, 0
      %p57 = por %p55, %p56
      %s59 = sadd.s32 %s58, 1
      %p62 = scmp.eq.s32.totalorder %s24, 1
      %p63 = scmp.ne.s32.totalorder %s58, %s60
      %p64 = scmp.eq.s32.totalorder %s24, 0
      %p65 = por %p63, %p64
      %p66 = scmp.ne.s32.totalorder %s58, %s60
      %p67 = scmp.eq.s32.totalorder %s29, 1
      %p68 = por %p66, %p67
      %p69 = scmp.ne.s32.totalorder %s60, %s61
      %p70 = scmp.eq.s32.totalorder %s29, 0
      %p71 = por %p69, %p70
      %p72 = scmp.ne.s32.totalorder %s60, %s61
      %p73 = scmp.eq.s32.totalorder %s30, 1
      %p74 = por %p72, %p73
      %p76 = scmp.ne.s32.totalorder %s61, %s75
      %p77 = scmp.eq.s32.totalorder %s30, 0
      %p78 = por %p76, %p77
      %s80 = sadd.s32 %s79, 1
      %p83 = scmp.eq.s32.totalorder %s24, 1
      %p84 = scmp.ne.s32.totalorder %s79, %s81
      %p85 = scmp.eq.s32.totalorder %s24, 0
      %p86 = por %p84, %p85
      %p87 = scmp.ne.s32.totalorder %s79, %s81
      %p88 = scmp.eq.s32.totalorder %s29, 1
      %p89 = por %p87, %p88
      %p90 = scmp.ne.s32.totalorder %s81, %s82
      %p91 = scmp.eq.s32.totalorder %s29, 0
      %p92 = por %p90, %p91
      %p93 = scmp.ne.s32.totalorder %s81, %s82
      %p94 = scmp.eq.s32.totalorder %s30, 1
      %p95 = por %p93, %p94
      %p97 = scmp.ne.s32.totalorder %s82, %s96
      %p98 = scmp.eq.s32.totalorder %s30, 0
      %p99 = por %p97, %p98
      %s101 = sadd.s32 %s100, 1
      %p104 = scmp.eq.s32.totalorder %s24, 1
      %p105 = scmp.ne.s32.totalorder %s100, %s102
      %p106 = scmp.eq.s32.totalorder %s24, 0
      %p107 = por %p105, %p106
      %p108 = scmp.ne.s32.totalorder %s100, %s102
      %p109 = scmp.eq.s32.totalorder %s29, 1
      %p110 = por %p108, %p109
      %p111 = scmp.ne.s32.totalorder %s102, %s103
      %p112 = scmp.eq.s32.totalorder %s29, 0
      %p113 = por %p111, %p112
      %p114 = scmp.ne.s32.totalorder %s102, %s103
      %p115 = scmp.eq.s32.totalorder %s30, 1
      %p116 = por %p114, %p115
      %p118 = scmp.ne.s32.totalorder %s103, %s117
      %p119 = scmp.eq.s32.totalorder %s30, 0
      %p120 = por %p118, %p119
      %s122 = sadd.s32 %s121, 1
      %p125 = scmp.eq.s32.totalorder %s24, 1
      %p126 = scmp.ne.s32.totalorder %s121, %s123
      %p127 = scmp.eq.s32.totalorder %s24, 0
      %p128 = por %p126, %p127
      %p129 = scmp.ne.s32.totalorder %s121, %s123
      %p130 = scmp.eq.s32.totalorder %s29, 1
      %p131 = por %p129, %p130
      %p132 = scmp.ne.s32.totalorder %s123, %s124
      %p133 = scmp.eq.s32.totalorder %s29, 0
      %p134 = por %p132, %p133
      %p135 = scmp.ne.s32.totalorder %s123, %s124
      %p136 = scmp.eq.s32.totalorder %s30, 1
      %p137 = por %p135, %p136
      %p139 = scmp.ne.s32.totalorder %s124, %s138
      %p140 = scmp.eq.s32.totalorder %s30, 0
      %p141 = por %p139, %p140
      %s143 = sadd.s32 %s142, 1
      %p146 = scmp.eq.s32.totalorder %s24, 1
      %p147 = scmp.ne.s32.totalorder %s142, %s144
      %p148 = scmp.eq.s32.totalorder %s24, 0
      %p149 = por %p147, %p148
      %p150 = scmp.ne.s32.totalorder %s142, %s144
      %p151 = scmp.eq.s32.totalorder %s29, 1
      %p152 = por %p150, %p151
      %p153 = scmp.ne.s32.totalorder %s144, %s145
      %p154 = scmp.eq.s32.totalorder %s29, 0
      %p155 = por %p153, %p154
      %p156 = scmp.ne.s32.totalorder %s144, %s145
      %p157 = scmp.eq.s32.totalorder %s30, 1
      %p158 = por %p156, %p157
      %p160 = scmp.ne.s32.totalorder %s145, %s159
      %p161 = scmp.eq.s32.totalorder %s30, 0
      %p162 = por %p160, %p161
      %s164 = sadd.s32 %s163, 1
      %p167 = scmp.eq.s32.totalorder %s24, 1
      %p168 = scmp.ne.s32.totalorder %s163, %s165
      %p169 = scmp.eq.s32.totalorder %s24, 0
      %p170 = por %p168, %p169
      %p171 = scmp.ne.s32.totalorder %s163, %s165
      %p172 = scmp.eq.s32.totalorder %s29, 1
      %p173 = por %p171, %p172
      %p174 = scmp.ne.s32.totalorder %s165, %s166
      %p175 = scmp.eq.s32.totalorder %s29, 0
      %p176 = por %p174, %p175
      %p177 = scmp.ne.s32.totalorder %s165, %s166
      %p178 = scmp.eq.s32.totalorder %s30, 1
      %p179 = por %p177, %p178
      %p181 = scmp.ne.s32.totalorder %s166, %s180
      %p182 = scmp.eq.s32.totalorder %s30, 0
      %p183 = por %p181, %p182
      %s185 = sadd.s32 %s184, 1
      %p188 = scmp.eq.s32.totalorder %s24, 1
      %p189 = scmp.ne.s32.totalorder %s184, %s186
      %p190 = scmp.eq.s32.totalorder %s24, 0
      %p191 = por %p189, %p190
      %p192 = scmp.ne.s32.totalorder %s184, %s186
      %p193 = scmp.eq.s32.totalorder %s29, 1
      %p194 = por %p192, %p193
      %p195 = scmp.ne.s32.totalorder %s186, %s187
      %p196 = scmp.eq.s32.totalorder %s29, 0
      %p197 = por %p195, %p196
      %p198 = scmp.ne.s32.totalorder %s186, %s187
      %p199 = scmp.eq.s32.totalorder %s30, 1
      %p200 = por %p198, %p199
      %p202 = scmp.ne.s32.totalorder %s187, %s201
      %p203 = scmp.eq.s32.totalorder %s30, 0
      %p204 = por %p202, %p203
      %s206 = sadd.s32 %s205, 1
      %p209 = scmp.eq.s32.totalorder %s24, 1
      %p210 = scmp.ne.s32.totalorder %s205, %s207
      %p211 = scmp.eq.s32.totalorder %s24, 0
      %p212 = por %p210, %p211
      %p213 = scmp.ne.s32.totalorder %s205, %s207
      %p214 = scmp.eq.s32.totalorder %s29, 1
      %p215 = por %p213, %p214
      %p216 = scmp.ne.s32.totalorder %s207, %s208
      %p217 = scmp.eq.s32.totalorder %s29, 0
      %p218 = por %p216, %p217
      %p219 = scmp.ne.s32.totalorder %s207, %s208
      %p220 = scmp.eq.s32.totalorder %s30, 1
      %p221 = por %p219, %p220
      %p223 = scmp.ne.s32.totalorder %s208, %s222
      %p224 = scmp.eq.s32.totalorder %s30, 0
      %p225 = por %p223, %p224
      %s227 = sadd.s32 %s226, 1
      %p230 = scmp.eq.s32.totalorder %s24, 1
      %p231 = scmp.ne.s32.totalorder %s226, %s228
      %p232 = scmp.eq.s32.totalorder %s24, 0
      %p233 = por %p231, %p232
      %p234 = scmp.ne.s32.totalorder %s226, %s228
      %p235 = scmp.eq.s32.totalorder %s29, 1
      %p236 = por %p234, %p235
      %p237 = scmp.ne.s32.totalorder %s228, %s229
      %p238 = scmp.eq.s32.totalorder %s29, 0
      %p239 = por %p237, %p238
      %p240 = scmp.ne.s32.totalorder %s228, %s229
      %p241 = scmp.eq.s32.totalorder %s30, 1
      %p242 = por %p240, %p241
      %p244 = scmp.ne.s32.totalorder %s229, %s243
      %p245 = scmp.eq.s32.totalorder %s30, 0
      %p246 = por %p244, %p245
      %s247 = ssub.s32 %s24, %s31
      %p248 = scmp.eq.s32.totalorder %s247, 0
      %s250 = sadd.s32 %s249, 1
      %s251 = scalar_select %p248, %s249, %s250
      %p254 = pneg %p248
      %p255 = scmp.eq.s32.totalorder %s24, 1
      %p256 = por %p254, %p255
      %p257 = scmp.ne.s32.totalorder %s249, %s252
      %p258 = scmp.eq.s32.totalorder %s24, 0
      %p259 = por %p257, %p258
      %p260 = scmp.ne.s32.totalorder %s249, %s252
      %p261 = scmp.eq.s32.totalorder %s29, 1
      %p262 = por %p260, %p261
      %p263 = scmp.ne.s32.totalorder %s252, %s253
      %p264 = scmp.eq.s32.totalorder %s29, 0
      %p265 = por %p263, %p264
      %p266 = scmp.ne.s32.totalorder %s252, %s253
      %p267 = scmp.eq.s32.totalorder %s30, 1
      %p268 = por %p266, %p267
      %p270 = scmp.ne.s32.totalorder %s253, %s269
      %p271 = scmp.eq.s32.totalorder %s30, 0
      %p272 = por %p270, %p271
      %p273 = scmp.le.s32.totalorder 1, %s24
      %p274 = scmp.lt.s32.totalorder %s24, 3
      %p275 = pnand %p273, %p274
      %p276 = pneg %p275
      // Predicated region
      $region9: #{tpu_custom_call.1} parent=5 // pred_check
        _
      $region10: #{tpu_custom_call.1} parent=5 // pred_check_branch
        %278 = sbr.rel (%p275) target = $region12
      $region11: #{tpu_custom_call.1} parent=5 // pred_region
        %s279 = ssub.s32 %s24, 1
        // Predicated region
        $region13: #{tpu_custom_call.1} parent=11 // pred_check
          %p280 = pneg %p71
        $region14: #{tpu_custom_call.1} parent=11 // pred_check_branch
          %282 = sbr.rel (%p280) target = $region16
        $region15: #{tpu_custom_call.1} parent=11 // pred_region
          %284 = vsyncadd [#allocation8], 0
          %s285 = sshll.u32 %s1, 4
          %s286 = int_to_ptr.hbm [resolvable:$true] %s285
          %s287 = sshll.u32 [#allocation7], 4
          %s288 = int_to_ptr.vmem [resolvable:$true] %s287
          %293 = dma.hbm_to_vmem [thread:$0]  %s286, 2048, %s288, [#allocation8], 128, 128, 8
        $region16: #{tpu_custom_call.1} parent=11 // pred_fallthru
          _
        // Predicated region
        $region17: #{tpu_custom_call.1} parent=11 // pred_check
          %p294 = pneg %p92
        $region18: #{tpu_custom_call.1} parent=11 // pred_check_branch
          %296 = sbr.rel (%p294) target = $region20
        $region19: #{tpu_custom_call.1} parent=11 // pred_region
          _
        $region20: #{tpu_custom_call.1} parent=11 // pred_fallthru
          _
        // Predicated region
        $region21: #{tpu_custom_call.1} parent=11 // pred_check
          %p297 = pneg %p113
        $region22: #{tpu_custom_call.1} parent=11 // pred_check_branch
          %299 = sbr.rel (%p297) target = $region24
        $region23: #{tpu_custom_call.1} parent=11 // pred_region
          _
        $region24: #{tpu_custom_call.1} parent=11 // pred_fallthru
          _
        // Predicated region
        $region25: #{tpu_custom_call.1} parent=11 // pred_check
          %p300 = pneg %p134
        $region26: #{tpu_custom_call.1} parent=11 // pred_check_branch
          %302 = sbr.rel (%p300) target = $region28
        $region27: #{tpu_custom_call.1} parent=11 // pred_region
          %304 = vsyncadd [#allocation8], 0
          %s305 = sshll.u32 %s4, 4
          %s306 = int_to_ptr.hbm [resolvable:$true] %s305
          %s307 = sshll.u32 [#allocation9], 4
          %s308 = int_to_ptr.vmem [resolvable:$true] %s307
          %313 = dma.hbm_to_vmem [thread:$0]  %s306, 18432, %s308, [#allocation8], 128, 128, 8
        $region28: #{tpu_custom_call.1} parent=11 // pred_fallthru
          _
        // Predicated region
        $region29: #{tpu_custom_call.1} parent=11 // pred_check
          %p314 = pneg %p155
        $region30: #{tpu_custom_call.1} parent=11 // pred_check_branch
          %316 = sbr.rel (%p314) target = $region32
        $region31: #{tpu_custom_call.1} parent=11 // pred_region
          _
        $region32: #{tpu_custom_call.1} parent=11 // pred_fallthru
          _
        // Predicated region
        $region33: #{tpu_custom_call.1} parent=11 // pred_check
          %p317 = pneg %p176
        $region34: #{tpu_custom_call.1} parent=11 // pred_check_branch
          %319 = sbr.rel (%p317) target = $region36
        $region35: #{tpu_custom_call.1} parent=11 // pred_region
          _
        $region36: #{tpu_custom_call.1} parent=11 // pred_fallthru
          _
        // Predicated region
        $region37: #{tpu_custom_call.1} parent=11 // pred_check
          %p320 = pneg %p197
        $region38: #{tpu_custom_call.1} parent=11 // pred_check_branch
          %322 = sbr.rel (%p320) target = $region40
        $region39: #{tpu_custom_call.1} parent=11 // pred_region
          %324 = vsyncadd [#allocation11], 0
          %s325 = sshll.u32 %s7, 4
          %s326 = int_to_ptr.hbm [resolvable:$true] %s325
          %s327 = sshll.u32 [#allocation10], 4
          %s328 = int_to_ptr.vmem [resolvable:$true] %s327
          %333 = dma.hbm_to_vmem [thread:$0]  %s326, 2048, %s328, [#allocation11], 128, 128, 8
        $region40: #{tpu_custom_call.1} parent=11 // pred_fallthru
          _
        // Predicated region
        $region41: #{tpu_custom_call.1} parent=11 // pred_check
          %p334 = pneg %p218
        $region42: #{tpu_custom_call.1} parent=11 // pred_check_branch
          %336 = sbr.rel (%p334) target = $region44
        $region43: #{tpu_custom_call.1} parent=11 // pred_region
          _
        $region44: #{tpu_custom_call.1} parent=11 // pred_fallthru
          _
        // Predicated region
        $region45: #{tpu_custom_call.1} parent=11 // pred_check
          %p337 = pneg %p239
        $region46: #{tpu_custom_call.1} parent=11 // pred_check_branch
          %339 = sbr.rel (%p337) target = $region48
        $region47: #{tpu_custom_call.1} parent=11 // pred_region
          _
        $region48: #{tpu_custom_call.1} parent=11 // pred_fallthru
          _
      $region12: #{tpu_custom_call.1} parent=5 // pred_fallthru
        _
      %p340 = scmp.lt.s32.totalorder %s24, 2
      // Predicated region
      $region49: #{tpu_custom_call.1} parent=5 // pred_check
        %p341 = pneg %p340
      $region50: #{tpu_custom_call.1} parent=5 // pred_check_branch
        %343 = sbr.rel (%p341) target = $region52
      $region51: #{tpu_custom_call.1} parent=5 // pred_region
        // Predicated region
        $region53: #{tpu_custom_call.1} parent=51 // pred_check
          %p344 = pneg %p44
        $region54: #{tpu_custom_call.1} parent=51 // pred_check_branch
          %346 = sbr.rel (%p344) target = $region56
        $region55: #{tpu_custom_call.1} parent=51 // pred_region
          %s347 = sand.u32 %s34, 1
          %s348 = scalar_lea.sflag [#allocation5], %s347
          %s349 = sand.u32 %s34, 1
          %s350 = smul.addr %s349, 256
          %s351 = scalar_lea.vmem [#allocation4], %s350
          %353 = vsyncadd %s348, 0
          %s354 = smul.addr %s24, 32
          %s355 = smul.addr %s354, 8
          %s356 = scalar_lea.hbm %s0, %s355
          %s357 = sshll.u32 %s356, 4
          %s358 = int_to_ptr.hbm [resolvable:$true] %s357
          %s359 = sshll.u32 %s351, 4
          %s360 = int_to_ptr.vmem [resolvable:$true] %s359
          %365 = dma.hbm_to_vmem [thread:$0]  %s358, 4096, %s360, %s348, 128, 128, 8
        $region56: #{tpu_custom_call.1} parent=51 // pred_fallthru
          _
      $region52: #{tpu_custom_call.1} parent=5 // pred_fallthru
        _
      %p366 = scmp.le.s32.totalorder 1, %s24
      %p367 = scmp.lt.s32.totalorder %s24, 3
      %p368 = pnand %p366, %p367
      %p369 = pneg %p368
      // Predicated region
      $region57: #{tpu_custom_call.1} parent=5 // pred_check
        _
      $region58: #{tpu_custom_call.1} parent=5 // pred_check_branch
        %371 = sbr.rel (%p368) target = $region60
      $region59: #{tpu_custom_call.1} parent=5 // pred_region
        %s372 = ssub.s32 %s24, 1
        %s373 = sand.u32 %s37, 1
        %s374 = scalar_lea.sflag [#allocation5], %s373
        %s375 = sand.u32 %s37, 1
        %s376 = smul.addr %s375, 256
        %s377 = scalar_lea.vmem [#allocation4], %s376
        // Predicated region
        $region61: #{tpu_custom_call.1} parent=59 // pred_check
          %p378 = pneg %p50
        $region62: #{tpu_custom_call.1} parent=59 // pred_check_branch
          %380 = sbr.rel (%p378) target = $region64
        $region63: #{tpu_custom_call.1} parent=59 // pred_region
          %382 = dma.done %s374, 4096
        $region64: #{tpu_custom_call.1} parent=59 // pred_fallthru
          _
        // Predicated region
        $region65: #{tpu_custom_call.1} parent=59 // pred_check
          %p383 = pneg %p71
        $region66: #{tpu_custom_call.1} parent=59 // pred_check_branch
          %385 = sbr.rel (%p383) target = $region68
        $region67: #{tpu_custom_call.1} parent=59 // pred_region
          %387 = dma.done [#allocation8], 2048
        $region68: #{tpu_custom_call.1} parent=59 // pred_fallthru
          _
        // Predicated region
        $region69: #{tpu_custom_call.1} parent=59 // pred_check
          %p388 = pneg %p134
        $region70: #{tpu_custom_call.1} parent=59 // pred_check_branch
          %390 = sbr.rel (%p388) target = $region72
        $region71: #{tpu_custom_call.1} parent=59 // pred_region
          %392 = dma.done [#allocation8], 18432
        $region72: #{tpu_custom_call.1} parent=59 // pred_fallthru
          _
        // Predicated region
        $region73: #{tpu_custom_call.1} parent=59 // pred_check
          %p393 = pneg %p197
        $region74: #{tpu_custom_call.1} parent=59 // pred_check_branch
          %395 = sbr.rel (%p393) target = $region76
        $region75: #{tpu_custom_call.1} parent=59 // pred_region
          %397 = dma.done [#allocation11], 2048
        $region76: #{tpu_custom_call.1} parent=59 // pred_fallthru
          _
        %s398 = sand.u32 %s37, 1
        %s399 = scalar_lea.sflag [#allocation5], %s398
        %s400 = sand.u32 %s37, 1
        %s401 = smul.addr %s400, 256
        %s402 = scalar_lea.vmem [#allocation4], %s401
        %p403 = pneg %p50
        %p404 = pneg %p47
        %p405 = pneg %p71
        %p406 = pneg %p68
        %p407 = pneg %p92
        %p408 = pneg %p89
        %p409 = pneg %p113
        %p410 = pneg %p110
        %p411 = pneg %p134
        %p412 = pneg %p131
        %p413 = pneg %p155
        %p414 = pneg %p152
        %p415 = pneg %p176
        %p416 = pneg %p173
        %p417 = pneg %p197
        %p418 = pneg %p194
        %p419 = pneg %p218
        %p420 = pneg %p215
        %p421 = pneg %p239
        %p422 = pneg %p236
        %p423 = pneg %p265
        %p424 = pneg %p262
        %s425 = sand.u32 %s252, 1
        %s426 = scalar_lea.sflag [#allocation6], %s425
        %s427 = sand.u32 %s252, 1
        %s428 = smul.addr %s427, 256
        %s429 = scalar_lea.vmem [#allocation12], %s428
        %v430 = vld [vmem:[%s377] sm:$0xff]
        %v431 = vld [vmem:[%s377 + $0x8] sm:$0xff]
        %v432 = vld [vmem:[%s377 + $0x10] sm:$0xff]
        %v433 = vld [vmem:[%s377 + $0x18] sm:$0xff]
        %v434 = vld [vmem:[%s377 + $0x20] sm:$0xff]
        %v435 = vld [vmem:[%s377 + $0x28] sm:$0xff]
        %v436 = vld [vmem:[%s377 + $0x30] sm:$0xff]
        %v437 = vld [vmem:[%s377 + $0x38] sm:$0xff]
        %v438 = vld [vmem:[%s377 + $0x40] sm:$0xff]
        %v439 = vld [vmem:[%s377 + $0x48] sm:$0xff]
        %v440 = vld [vmem:[%s377 + $0x50] sm:$0xff]
        %v441 = vld [vmem:[%s377 + $0x58] sm:$0xff]
        %v442 = vld [vmem:[%s377 + $0x60] sm:$0xff]
        %v443 = vld [vmem:[%s377 + $0x68] sm:$0xff]
        %v444 = vld [vmem:[%s377 + $0x70] sm:$0xff]
        %v445 = vld [vmem:[%s377 + $0x78] sm:$0xff]
        %v446 = vld [vmem:[%s377 + $0x80] sm:$0xff]
        %v447 = vld [vmem:[%s377 + $0x88] sm:$0xff]
        %v448 = vld [vmem:[%s377 + $0x90] sm:$0xff]
        %v449 = vld [vmem:[%s377 + $0x98] sm:$0xff]
        %v450 = vld [vmem:[%s377 + $0xa0] sm:$0xff]
        %v451 = vld [vmem:[%s377 + $0xa8] sm:$0xff]
        %v452 = vld [vmem:[%s377 + $0xb0] sm:$0xff]
        %v453 = vld [vmem:[%s377 + $0xb8] sm:$0xff]
        %v454 = vld [vmem:[%s377 + $0xc0] sm:$0xff]
        %v455 = vld [vmem:[%s377 + $0xc8] sm:$0xff]
        %v456 = vld [vmem:[%s377 + $0xd0] sm:$0xff]
        %v457 = vld [vmem:[%s377 + $0xd8] sm:$0xff]
        %v458 = vld [vmem:[%s377 + $0xe0] sm:$0xff]
        %v459 = vld [vmem:[%s377 + $0xe8] sm:$0xff]
        %v460 = vld [vmem:[%s377 + $0xf0] sm:$0xff]
        %v461 = vld [vmem:[%s377 + $0xf8] sm:$0xff]
        %v462 = vld [vmem:[#allocation7] sm:$0xff]
        %v463 = vld [vmem:[#allocation7 + $0x8] sm:$0xff]
        %v464 = vld [vmem:[#allocation7 + $0x10] sm:$0xff]
        %v465 = vld [vmem:[#allocation7 + $0x18] sm:$0xff]
        %v466 = vld [vmem:[#allocation7 + $0x20] sm:$0xff]
        %v467 = vld [vmem:[#allocation7 + $0x28] sm:$0xff]
        %v468 = vld [vmem:[#allocation7 + $0x30] sm:$0xff]
        %v469 = vld [vmem:[#allocation7 + $0x38] sm:$0xff]
        %v470 = vld [vmem:[#allocation7 + $0x40] sm:$0xff]
        %v471 = vld [vmem:[#allocation7 + $0x48] sm:$0xff]
        %v472 = vld [vmem:[#allocation7 + $0x50] sm:$0xff]
        %v473 = vld [vmem:[#allocation7 + $0x58] sm:$0xff]
        %v474 = vld [vmem:[#allocation7 + $0x60] sm:$0xff]
        %v475 = vld [vmem:[#allocation7 + $0x68] sm:$0xff]
        %v476 = vld [vmem:[#allocation7 + $0x70] sm:$0xff]
        %v477 = vld [vmem:[#allocation7 + $0x78] sm:$0xff]
        %478 = vmatpush.msra.mxu0 %v477
        %479 = vmatpush.msra.mxu0 %v476
        %480 = vmatpush.msra.mxu0 %v475
        %481 = vmatpush.msra.mxu0 %v474
        %482 = vmatpush.msra.mxu0 %v473
        %483 = vmatpush.msra.mxu0 %v472
        %484 = vmatpush.msra.mxu0 %v471
        %485 = vmatpush.msra.mxu0 %v470
        %486 = vmatpush.msra.mxu0 %v469
        %487 = vmatpush.msra.mxu0 %v468
        %488 = vmatpush.msra.mxu0 %v467
        %489 = vmatpush.msra.mxu0 %v466
        %490 = vmatpush.msra.mxu0 %v465
        %491 = vmatpush.msra.mxu0 %v464
        %492 = vmatpush.msra.mxu0 %v463
        %493 = vmatpush.msra.mxu0 %v462
        %494 = vmatmul.f32.gmra.mxu0 %v430
        %v495 = vpop.f32.mrf.mxu0
        %v496 = vadd.f32 0.0, %v495
        %497 = vmatmul.f32.gmra.mxu0 %v431
        %v498 = vpop.f32.mrf.mxu0
        %v499 = vadd.f32 0.0, %v498
        %500 = vmatmul.f32.gmra.mxu0 %v432
        %v501 = vpop.f32.mrf.mxu0
        %v502 = vadd.f32 0.0, %v501
        %503 = vmatmul.f32.gmra.mxu0 %v433
        %v504 = vpop.f32.mrf.mxu0
        %v505 = vadd.f32 0.0, %v504
        %506 = vmatmul.f32.gmra.mxu0 %v434
        %v507 = vpop.f32.mrf.mxu0
        %v508 = vadd.f32 0.0, %v507
        %509 = vmatmul.f32.gmra.mxu0 %v435
        %v510 = vpop.f32.mrf.mxu0
        %v511 = vadd.f32 0.0, %v510
        %512 = vmatmul.f32.gmra.mxu0 %v436
        %v513 = vpop.f32.mrf.mxu0
        %v514 = vadd.f32 0.0, %v513
        %515 = vmatmul.f32.gmra.mxu0 %v437
        %v516 = vpop.f32.mrf.mxu0
        %v517 = vadd.f32 0.0, %v516
        %518 = vmatmul.f32.gmra.mxu0 %v438
        %v519 = vpop.f32.mrf.mxu0
        %v520 = vadd.f32 0.0, %v519
        %521 = vmatmul.f32.gmra.mxu0 %v439
        %v522 = vpop.f32.mrf.mxu0
        %v523 = vadd.f32 0.0, %v522
        %524 = vmatmul.f32.gmra.mxu0 %v440
        %v525 = vpop.f32.mrf.mxu0
        %v526 = vadd.f32 0.0, %v525
        %527 = vmatmul.f32.gmra.mxu0 %v441
        %v528 = vpop.f32.mrf.mxu0
        %v529 = vadd.f32 0.0, %v528
        %530 = vmatmul.f32.gmra.mxu0 %v442
        %v531 = vpop.f32.mrf.mxu0
        %v532 = vadd.f32 0.0, %v531
        %533 = vmatmul.f32.gmra.mxu0 %v443
        %v534 = vpop.f32.mrf.mxu0
        %v535 = vadd.f32 0.0, %v534
        %536 = vmatmul.f32.gmra.mxu0 %v444
        %v537 = vpop.f32.mrf.mxu0
        %v538 = vadd.f32 0.0, %v537
        %539 = vmatmul.f32.gmra.mxu0 %v445
        %v540 = vpop.f32.mrf.mxu0
        %v541 = vadd.f32 0.0, %v540
        %542 = vmatmul.f32.gmra.mxu0 %v446
        %v543 = vpop.f32.mrf.mxu0
        %v544 = vadd.f32 0.0, %v543
        %545 = vmatmul.f32.gmra.mxu0 %v447
        %v546 = vpop.f32.mrf.mxu0
        %v547 = vadd.f32 0.0, %v546
        %548 = vmatmul.f32.gmra.mxu0 %v448
        %v549 = vpop.f32.mrf.mxu0
        %v550 = vadd.f32 0.0, %v549
        %551 = vmatmul.f32.gmra.mxu0 %v449
        %v552 = vpop.f32.mrf.mxu0
        %v553 = vadd.f32 0.0, %v552
        %554 = vmatmul.f32.gmra.mxu0 %v450
        %v555 = vpop.f32.mrf.mxu0
        %v556 = vadd.f32 0.0, %v555
        %557 = vmatmul.f32.gmra.mxu0 %v451
        %v558 = vpop.f32.mrf.mxu0
        %v559 = vadd.f32 0.0, %v558
        %560 = vmatmul.f32.gmra.mxu0 %v452
        %v561 = vpop.f32.mrf.mxu0
        %v562 = vadd.f32 0.0, %v561
        %563 = vmatmul.f32.gmra.mxu0 %v453
        %v564 = vpop.f32.mrf.mxu0
        %v565 = vadd.f32 0.0, %v564
        %566 = vmatmul.f32.gmra.mxu0 %v454
        %v567 = vpop.f32.mrf.mxu0
        %v568 = vadd.f32 0.0, %v567
        %569 = vmatmul.f32.gmra.mxu0 %v455
        %v570 = vpop.f32.mrf.mxu0
        %v571 = vadd.f32 0.0, %v570
        %572 = vmatmul.f32.gmra.mxu0 %v456
        %v573 = vpop.f32.mrf.mxu0
        %v574 = vadd.f32 0.0, %v573
        %575 = vmatmul.f32.gmra.mxu0 %v457
        %v576 = vpop.f32.mrf.mxu0
        %v577 = vadd.f32 0.0, %v576
        %578 = vmatmul.f32.gmra.mxu0 %v458
        %v579 = vpop.f32.mrf.mxu0
        %v580 = vadd.f32 0.0, %v579
        %581 = vmatmul.f32.gmra.mxu0 %v459
        %v582 = vpop.f32.mrf.mxu0
        %v583 = vadd.f32 0.0, %v582
        %584 = vmatmul.f32.gmra.mxu0 %v460
        %v585 = vpop.f32.mrf.mxu0
        %v586 = vadd.f32 0.0, %v585
        %587 = vmatmul.f32.gmra.mxu0 %v461
        %v588 = vpop.f32.mrf.mxu0
        %v589 = vadd.f32 0.0, %v588
        %590 = vdwg.mxu0
        %v591 = vld [vmem:[%s2] sm:$0x1]
        %v592 = vld [vmem:[%s3] sm:$0x1]
        %v593 = vadd.f32 %v496, %v499
        %v594 = vadd.f32 %v593, %v502
        %v595 = vadd.f32 %v594, %v505
        %v596 = vadd.f32 %v595, %v508
        %v597 = vadd.f32 %v596, %v511
        %v598 = vadd.f32 %v597, %v514
        %v599 = vadd.f32 %v598, %v517
        %v600 = vadd.f32 %v599, %v520
        %v601 = vadd.f32 %v600, %v523
        %v602 = vadd.f32 %v601, %v526
        %v603 = vadd.f32 %v602, %v529
        %v604 = vadd.f32 %v603, %v532
        %v605 = vadd.f32 %v604, %v535
        %v606 = vadd.f32 %v605, %v538
        %v607 = vadd.f32 %v606, %v541
        %v608 = vadd.f32 %v607, %v544
        %v609 = vadd.f32 %v608, %v547
        %v610 = vadd.f32 %v609, %v550
        %v611 = vadd.f32 %v610, %v553
        %v612 = vadd.f32 %v611, %v556
        %v613 = vadd.f32 %v612, %v559
        %v614 = vadd.f32 %v613, %v562
        %v615 = vadd.f32 %v614, %v565
        %v616 = vadd.f32 %v615, %v568
        %v617 = vadd.f32 %v616, %v571
        %v618 = vadd.f32 %v617, %v574
        %v619 = vadd.f32 %v618, %v577
        %v620 = vadd.f32 %v619, %v580
        %v621 = vadd.f32 %v620, %v583
        %v622 = vadd.f32 %v621, %v586
        %v623 = vadd.f32 %v622, %v589
        %v624 = vrot.slane %v623, 4
        %v625 = vadd.f32 %v623, %v624
        %v626 = vrot.slane %v625, 2
        %v627 = vadd.f32 %v625, %v626
        %v628 = vrot.slane %v627, 1
        %v629 = vadd.f32 %v627, %v628
        %v630 = vmul.f32 %v496, %v496
        %v631 = vmul.f32 %v499, %v499
        %v632 = vmul.f32 %v502, %v502
        %v633 = vmul.f32 %v505, %v505
        %v634 = vmul.f32 %v508, %v508
        %v635 = vmul.f32 %v511, %v511
        %v636 = vmul.f32 %v514, %v514
        %v637 = vmul.f32 %v517, %v517
        %v638 = vmul.f32 %v520, %v520
        %v639 = vmul.f32 %v523, %v523
        %v640 = vmul.f32 %v526, %v526
        %v641 = vmul.f32 %v529, %v529
        %v642 = vmul.f32 %v532, %v532
        %v643 = vmul.f32 %v535, %v535
        %v644 = vmul.f32 %v538, %v538
        %v645 = vmul.f32 %v541, %v541
        %v646 = vmul.f32 %v544, %v544
        %v647 = vmul.f32 %v547, %v547
        %v648 = vmul.f32 %v550, %v550
        %v649 = vmul.f32 %v553, %v553
        %v650 = vmul.f32 %v556, %v556
        %v651 = vmul.f32 %v559, %v559
        %v652 = vmul.f32 %v562, %v562
        %v653 = vmul.f32 %v565, %v565
        %v654 = vmul.f32 %v568, %v568
        %v655 = vmul.f32 %v571, %v571
        %v656 = vmul.f32 %v574, %v574
        %v657 = vmul.f32 %v577, %v577
        %v658 = vmul.f32 %v580, %v580
        %v659 = vmul.f32 %v583, %v583
        %v660 = vmul.f32 %v586, %v586
        %v661 = vmul.f32 %v589, %v589
        %v662 = vadd.f32 %v630, %v631
        %v663 = vadd.f32 %v662, %v632
        %v664 = vadd.f32 %v663, %v633
        %v665 = vadd.f32 %v664, %v634
        %v666 = vadd.f32 %v665, %v635
        %v667 = vadd.f32 %v666, %v636
        %v668 = vadd.f32 %v667, %v637
        %v669 = vadd.f32 %v668, %v638
        %v670 = vadd.f32 %v669, %v639
        %v671 = vadd.f32 %v670, %v640
        %v672 = vadd.f32 %v671, %v641
        %v673 = vadd.f32 %v672, %v642
        %v674 = vadd.f32 %v673, %v643
        %v675 = vadd.f32 %v674, %v644
        %v676 = vadd.f32 %v675, %v645
        %v677 = vadd.f32 %v676, %v646
        %v678 = vadd.f32 %v677, %v647
        %v679 = vadd.f32 %v678, %v648
        %v680 = vadd.f32 %v679, %v649
        %v681 = vadd.f32 %v680, %v650
        %v682 = vadd.f32 %v681, %v651
        %v683 = vadd.f32 %v682, %v652
        %v684 = vadd.f32 %v683, %v653
        %v685 = vadd.f32 %v684, %v654
        %v686 = vadd.f32 %v685, %v655
        %v687 = vadd.f32 %v686, %v656
        %v688 = vadd.f32 %v687, %v657
        %v689 = vadd.f32 %v688, %v658
        %v690 = vadd.f32 %v689, %v659
        %v691 = vadd.f32 %v690, %v660
        %v692 = vadd.f32 %v691, %v661
        %v693 = vrot.slane %v692, 4
        %v694 = vadd.f32 %v692, %v693
        %v695 = vrot.slane %v694, 2
        %v696 = vadd.f32 %v694, %v695
        %v697 = vrot.slane %v696, 1
        %v698 = vadd.f32 %v696, %v697
        %v699 = vmul.f32 %v629, 0.00390625
        %v700 = vmul.f32 %v698, 0.00390625
        %v701 = vmul.f32 %v699, %v699
        %v702 = vsub.f32 %v700, %v701
        %v703 = vmax.f32 %v702, 0.0
        %v704 = vadd.f32 %v703, 1e-05
        %v705 = vrsqrt.pop %v704
        %v706 = vmul.f32 %v705, %v704
        %v707 = vmul.f32 %v706, %v705
        %v708 = vmul.f32 0.5, %v707
        %v709 = vsub.f32 1.5, %v708
        %v710 = vmul.f32 %v705, %v709
        %vm711 = vweird.f32 %v704
        %vm712 = vweird.f32 %v705
        %vm713 = vmor %vm711, %vm712
        %v714 = vsel %vm713, %v705, %v710
        %v715 = vmul.f32 %v591, %v714
        %v716 = vmul.f32 %v699, %v715
        %v717 = vsub.f32 %v592, %v716
        %v719 = vperm.slane %v715, 0
        %v721 = vmul.f32 %v496, %v719
        %v722 = vmul.f32 %v499, %v719
        %v723 = vmul.f32 %v502, %v719
        %v724 = vmul.f32 %v505, %v719
        %v725 = vmul.f32 %v508, %v719
        %v726 = vmul.f32 %v511, %v719
        %v727 = vmul.f32 %v514, %v719
        %v728 = vmul.f32 %v517, %v719
        %v729 = vmul.f32 %v520, %v719
        %v730 = vmul.f32 %v523, %v719
        %v731 = vmul.f32 %v526, %v719
        %v732 = vmul.f32 %v529, %v719
        %v733 = vmul.f32 %v532, %v719
        %v734 = vmul.f32 %v535, %v719
        %v735 = vmul.f32 %v538, %v719
        %v736 = vmul.f32 %v541, %v719
        %v737 = vmul.f32 %v544, %v719
        %v738 = vmul.f32 %v547, %v719
        %v739 = vmul.f32 %v550, %v719
        %v740 = vmul.f32 %v553, %v719
        %v741 = vmul.f32 %v556, %v719
        %v742 = vmul.f32 %v559, %v719
        %v743 = vmul.f32 %v562, %v719
        %v744 = vmul.f32 %v565, %v719
        %v745 = vmul.f32 %v568, %v719
        %v746 = vmul.f32 %v571, %v719
        %v747 = vmul.f32 %v574, %v719
        %v748 = vmul.f32 %v577, %v719
        %v749 = vmul.f32 %v580, %v719
        %v750 = vmul.f32 %v583, %v719
        %v751 = vmul.f32 %v586, %v719
        %v752 = vmul.f32 %v589, %v719
        %v754 = vperm.slane %v717, 0
        %v756 = vadd.f32 %v721, %v754
        %v757 = vadd.f32 %v722, %v754
        %v758 = vadd.f32 %v723, %v754
        %v759 = vadd.f32 %v724, %v754
        %v760 = vadd.f32 %v725, %v754
        %v761 = vadd.f32 %v726, %v754
        %v762 = vadd.f32 %v727, %v754
        %v763 = vadd.f32 %v728, %v754
        %v764 = vadd.f32 %v729, %v754
        %v765 = vadd.f32 %v730, %v754
        %v766 = vadd.f32 %v731, %v754
        %v767 = vadd.f32 %v732, %v754
        %v768 = vadd.f32 %v733, %v754
        %v769 = vadd.f32 %v734, %v754
        %v770 = vadd.f32 %v735, %v754
        %v771 = vadd.f32 %v736, %v754
        %v772 = vadd.f32 %v737, %v754
        %v773 = vadd.f32 %v738, %v754
        %v774 = vadd.f32 %v739, %v754
        %v775 = vadd.f32 %v740, %v754
        %v776 = vadd.f32 %v741, %v754
        %v777 = vadd.f32 %v742, %v754
        %v778 = vadd.f32 %v743, %v754
        %v779 = vadd.f32 %v744, %v754
        %v780 = vadd.f32 %v745, %v754
        %v781 = vadd.f32 %v746, %v754
        %v782 = vadd.f32 %v747, %v754
        %v783 = vadd.f32 %v748, %v754
        %v784 = vadd.f32 %v749, %v754
        %v785 = vadd.f32 %v750, %v754
        %v786 = vadd.f32 %v751, %v754
        %v787 = vadd.f32 %v752, %v754
        %v788 = vmax.f32 %v756, 0.0
        %v789 = vmax.f32 %v757, 0.0
        %v790 = vmax.f32 %v758, 0.0
        %v791 = vmax.f32 %v759, 0.0
        %v792 = vmax.f32 %v760, 0.0
        %v793 = vmax.f32 %v761, 0.0
        %v794 = vmax.f32 %v762, 0.0
        %v795 = vmax.f32 %v763, 0.0
        %v796 = vmax.f32 %v764, 0.0
        %v797 = vmax.f32 %v765, 0.0
        %v798 = vmax.f32 %v766, 0.0
        %v799 = vmax.f32 %v767, 0.0
        %v800 = vmax.f32 %v768, 0.0
        %v801 = vmax.f32 %v769, 0.0
        %v802 = vmax.f32 %v770, 0.0
        %v803 = vmax.f32 %v771, 0.0
        %v804 = vmax.f32 %v772, 0.0
        %v805 = vmax.f32 %v773, 0.0
        %v806 = vmax.f32 %v774, 0.0
        %v807 = vmax.f32 %v775, 0.0
        %v808 = vmax.f32 %v776, 0.0
        %v809 = vmax.f32 %v777, 0.0
        %v810 = vmax.f32 %v778, 0.0
        %v811 = vmax.f32 %v779, 0.0
        %v812 = vmax.f32 %v780, 0.0
        %v813 = vmax.f32 %v781, 0.0
        %v814 = vmax.f32 %v782, 0.0
        %v815 = vmax.f32 %v783, 0.0
        %v816 = vmax.f32 %v784, 0.0
        %v817 = vmax.f32 %v785, 0.0
        %v818 = vmax.f32 %v786, 0.0
        %v819 = vmax.f32 %v787, 0.0
        %820 = vst [vmem:[#allocation2] sm:$0xff] 0.0
        %821 = vst [vmem:[#allocation2 + $0x8] sm:$0xff] 0.0
        %822 = vst [vmem:[#allocation2 + $0x10] sm:$0xff] 0.0
        %823 = vst [vmem:[#allocation2 + $0x18] sm:$0xff] 0.0
        %824 = vst [vmem:[#allocation2 + $0x20] sm:$0xff] %v788
        %825 = vst [vmem:[#allocation2 + $0x28] sm:$0xff] %v789
        %826 = vst [vmem:[#allocation2 + $0x30] sm:$0xff] %v790
        %827 = vst [vmem:[#allocation2 + $0x38] sm:$0xff] %v791
        %828 = vst [vmem:[#allocation2 + $0x40] sm:$0xff] %v792
        %829 = vst [vmem:[#allocation2 + $0x48] sm:$0xff] %v793
        %830 = vst [vmem:[#allocation2 + $0x50] sm:$0xff] %v794
        %831 = vst [vmem:[#allocation2 + $0x58] sm:$0xff] %v795
        %832 = vst [vmem:[#allocation2 + $0x60] sm:$0xff] %v796
        %833 = vst [vmem:[#allocation2 + $0x68] sm:$0xff] %v797
        %834 = vst [vmem:[#allocation2 + $0x70] sm:$0xff] %v798
        %835 = vst [vmem:[#allocation2 + $0x78] sm:$0xff] %v799
        %836 = vst [vmem:[#allocation2 + $0x80] sm:$0xff] %v800
        %837 = vst [vmem:[#allocation2 + $0x88] sm:$0xff] %v801
        %838 = vst [vmem:[#allocation2 + $0x90] sm:$0xff] %v802
        %839 = vst [vmem:[#allocation2 + $0x98] sm:$0xff] %v803
        %840 = vst [vmem:[#allocation2 + $0xa0] sm:$0xff] %v804
        %841 = vst [vmem:[#allocation2 + $0xa8] sm:$0xff] %v805
        %842 = vst [vmem:[#allocation2 + $0xb0] sm:$0xff] %v806
        %843 = vst [vmem:[#allocation2 + $0xb8] sm:$0xff] %v807
        %844 = vst [vmem:[#allocation2 + $0xc0] sm:$0xff] %v808
        %845 = vst [vmem:[#allocation2 + $0xc8] sm:$0xff] %v809
        %846 = vst [vmem:[#allocation2 + $0xd0] sm:$0xff] %v810
        %847 = vst [vmem:[#allocation2 + $0xd8] sm:$0xff] %v811
        %848 = vst [vmem:[#allocation2 + $0xe0] sm:$0xff] %v812
        %849 = vst [vmem:[#allocation2 + $0xe8] sm:$0xff] %v813
        %850 = vst [vmem:[#allocation2 + $0xf0] sm:$0xff] %v814
        %851 = vst [vmem:[#allocation2 + $0xf8] sm:$0xff] %v815
        %852 = vst [vmem:[#allocation2 + $0x100] sm:$0xff] %v816
        %853 = vst [vmem:[#allocation2 + $0x108] sm:$0xff] %v817
        %854 = vst [vmem:[#allocation2 + $0x110] sm:$0xff] %v818
        %855 = vst [vmem:[#allocation2 + $0x118] sm:$0xff] %v819
        %856 = vst [vmem:[#allocation2 + $0x120] sm:$0xff] 0.0
        %857 = vst [vmem:[#allocation2 + $0x128] sm:$0xff] 0.0
        %858 = vst [vmem:[#allocation2 + $0x130] sm:$0xff] 0.0
        %859 = vst [vmem:[#allocation2 + $0x138] sm:$0xff] 0.0
        %v860 = vlaneseq
        %v861 = vshrl.u32 %v860, 7
        %v862 = vadd.s32 %v861, 8
        %v863 = vadd.s32 %v861, 16
        %v864 = vadd.s32 %v861, 24
        %v865 = vadd.s32 %v861, 32
        %v866 = vadd.s32 %v861, 40
        %v867 = vadd.s32 %v861, 48
        %v868 = vadd.s32 %v861, 56
        %v869 = vadd.s32 %v861, 64
        %v870 = vadd.s32 %v861, 72
        %v871 = vadd.s32 %v861, 80
        %v872 = vadd.s32 %v861, 88
        %v873 = vadd.s32 %v861, 96
        %v874 = vadd.s32 %v861, 104
        %v875 = vadd.s32 %v861, 112
        %v876 = vadd.s32 %v861, 120
        %v877 = vadd.s32 %v861, 128
        %v878 = vadd.s32 %v861, 136
        %v879 = vadd.s32 %v861, 144
        %v880 = vadd.s32 %v861, 152
        %v881 = vadd.s32 %v861, 160
        %v882 = vadd.s32 %v861, 168
        %v883 = vadd.s32 %v861, 176
        %v884 = vadd.s32 %v861, 184
        %v885 = vadd.s32 %v861, 192
        %v886 = vadd.s32 %v861, 200
        %v887 = vadd.s32 %v861, 208
        %v888 = vadd.s32 %v861, 216
        %v889 = vadd.s32 %v861, 224
        %v890 = vadd.s32 %v861, 232
        %v891 = vadd.s32 %v861, 240
        %v892 = vadd.s32 %v861, 248
        %vm893 = vcmp.lt.s32.totalorder %v861, 0
        %v894 = vsub.s32 0, %v861
        %v895 = vsel %vm893, %v894, %v861
        %v896 = vshrl.u32 %v895, 4
        %v897 = vand.u32 %v895, 15
        %v898 = vsub.s32 0, %v897
        %v899 = vsel %vm893, %v898, %v897
        %vm900 = vcmp.lt.s32.totalorder %v862, 0
        %v901 = vsub.s32 0, %v862
        %v902 = vsel %vm900, %v901, %v862
        %v903 = vshrl.u32 %v902, 4
        %v904 = vand.u32 %v902, 15
        %v905 = vsub.s32 0, %v904
        %v906 = vsel %vm900, %v905, %v904
        %vm907 = vcmp.lt.s32.totalorder %v863, 0
        %v908 = vsub.s32 0, %v863
        %v909 = vsel %vm907, %v908, %v863
        %v910 = vshrl.u32 %v909, 4
        %v911 = vand.u32 %v909, 15
        %v912 = vsub.s32 0, %v911
        %v913 = vsel %vm907, %v912, %v911
        %vm914 = vcmp.lt.s32.totalorder %v864, 0
        %v915 = vsub.s32 0, %v864
        %v916 = vsel %vm914, %v915, %v864
        %v917 = vshrl.u32 %v916, 4
        %v918 = vand.u32 %v916, 15
        %v919 = vsub.s32 0, %v918
        %v920 = vsel %vm914, %v919, %v918
        %vm921 = vcmp.lt.s32.totalorder %v865, 0
        %v922 = vsub.s32 0, %v865
        %v923 = vsel %vm921, %v922, %v865
        %v924 = vshrl.u32 %v923, 4
        %v925 = vand.u32 %v923, 15
        %v926 = vsub.s32 0, %v925
        %v927 = vsel %vm921, %v926, %v925
        %vm928 = vcmp.lt.s32.totalorder %v866, 0
        %v929 = vsub.s32 0, %v866
        %v930 = vsel %vm928, %v929, %v866
        %v931 = vshrl.u32 %v930, 4
        %v932 = vand.u32 %v930, 15
        %v933 = vsub.s32 0, %v932
        %v934 = vsel %vm928, %v933, %v932
        %vm935 = vcmp.lt.s32.totalorder %v867, 0
        %v936 = vsub.s32 0, %v867
        %v937 = vsel %vm935, %v936, %v867
        %v938 = vshrl.u32 %v937, 4
        %v939 = vand.u32 %v937, 15
        %v940 = vsub.s32 0, %v939
        %v941 = vsel %vm935, %v940, %v939
        %vm942 = vcmp.lt.s32.totalorder %v868, 0
        %v943 = vsub.s32 0, %v868
        %v944 = vsel %vm942, %v943, %v868
        %v945 = vshrl.u32 %v944, 4
        %v946 = vand.u32 %v944, 15
        %v947 = vsub.s32 0, %v946
        %v948 = vsel %vm942, %v947, %v946
        %vm949 = vcmp.lt.s32.totalorder %v869, 0
        %v950 = vsub.s32 0, %v869
        %v951 = vsel %vm949, %v950, %v869
        %v952 = vshrl.u32 %v951, 4
        %v953 = vand.u32 %v951, 15
        %v954 = vsub.s32 0, %v953
        %v955 = vsel %vm949, %v954, %v953
        %vm956 = vcmp.lt.s32.totalorder %v870, 0
        %v957 = vsub.s32 0, %v870
        %v958 = vsel %vm956, %v957, %v870
        %v959 = vshrl.u32 %v958, 4
        %v960 = vand.u32 %v958, 15
        %v961 = vsub.s32 0, %v960
        %v962 = vsel %vm956, %v961, %v960
        %vm963 = vcmp.lt.s32.totalorder %v871, 0
        %v964 = vsub.s32 0, %v871
        %v965 = vsel %vm963, %v964, %v871
        %v966 = vshrl.u32 %v965, 4
        %v967 = vand.u32 %v965, 15
        %v968 = vsub.s32 0, %v967
        %v969 = vsel %vm963, %v968, %v967
        %vm970 = vcmp.lt.s32.totalorder %v872, 0
        %v971 = vsub.s32 0, %v872
        %v972 = vsel %vm970, %v971, %v872
        %v973 = vshrl.u32 %v972, 4
        %v974 = vand.u32 %v972, 15
        %v975 = vsub.s32 0, %v974
        %v976 = vsel %vm970, %v975, %v974
        %vm977 = vcmp.lt.s32.totalorder %v873, 0
        %v978 = vsub.s32 0, %v873
        %v979 = vsel %vm977, %v978, %v873
        %v980 = vshrl.u32 %v979, 4
        %v981 = vand.u32 %v979, 15
        %v982 = vsub.s32 0, %v981
        %v983 = vsel %vm977, %v982, %v981
        %vm984 = vcmp.lt.s32.totalorder %v874, 0
        %v985 = vsub.s32 0, %v874
        %v986 = vsel %vm984, %v985, %v874
        %v987 = vshrl.u32 %v986, 4
        %v988 = vand.u32 %v986, 15
        %v989 = vsub.s32 0, %v988
        %v990 = vsel %vm984, %v989, %v988
        %vm991 = vcmp.lt.s32.totalorder %v875, 0
        %v992 = vsub.s32 0, %v875
        %v993 = vsel %vm991, %v992, %v875
        %v994 = vshrl.u32 %v993, 4
        %v995 = vand.u32 %v993, 15
        %v996 = vsub.s32 0, %v995
        %v997 = vsel %vm991, %v996, %v995
        %vm998 = vcmp.lt.s32.totalorder %v876, 0
        %v999 = vsub.s32 0, %v876
        %v1000 = vsel %vm998, %v999, %v876
        %v1001 = vshrl.u32 %v1000, 4
        %v1002 = vand.u32 %v1000, 15
        %v1003 = vsub.s32 0, %v1002
        %v1004 = vsel %vm998, %v1003, %v1002
        %vm1005 = vcmp.lt.s32.totalorder %v877, 0
        %v1006 = vsub.s32 0, %v877
        %v1007 = vsel %vm1005, %v1006, %v877
        %v1008 = vshrl.u32 %v1007, 4
        %v1009 = vand.u32 %v1007, 15
        %v1010 = vsub.s32 0, %v1009
        %v1011 = vsel %vm1005, %v1010, %v1009
        %vm1012 = vcmp.lt.s32.totalorder %v878, 0
        %v1013 = vsub.s32 0, %v878
        %v1014 = vsel %vm1012, %v1013, %v878
        %v1015 = vshrl.u32 %v1014, 4
        %v1016 = vand.u32 %v1014, 15
        %v1017 = vsub.s32 0, %v1016
        %v1018 = vsel %vm1012, %v1017, %v1016
        %vm1019 = vcmp.lt.s32.totalorder %v879, 0
        %v1020 = vsub.s32 0, %v879
        %v1021 = vsel %vm1019, %v1020, %v879
        %v1022 = vshrl.u32 %v1021, 4
        %v1023 = vand.u32 %v1021, 15
        %v1024 = vsub.s32 0, %v1023
        %v1025 = vsel %vm1019, %v1024, %v1023
        %vm1026 = vcmp.lt.s32.totalorder %v880, 0
        %v1027 = vsub.s32 0, %v880
        %v1028 = vsel %vm1026, %v1027, %v880
        %v1029 = vshrl.u32 %v1028, 4
        %v1030 = vand.u32 %v1028, 15
        %v1031 = vsub.s32 0, %v1030
        %v1032 = vsel %vm1026, %v1031, %v1030
        %vm1033 = vcmp.lt.s32.totalorder %v881, 0
        %v1034 = vsub.s32 0, %v881
        %v1035 = vsel %vm1033, %v1034, %v881
        %v1036 = vshrl.u32 %v1035, 4
        %v1037 = vand.u32 %v1035, 15
        %v1038 = vsub.s32 0, %v1037
        %v1039 = vsel %vm1033, %v1038, %v1037
        %vm1040 = vcmp.lt.s32.totalorder %v882, 0
        %v1041 = vsub.s32 0, %v882
        %v1042 = vsel %vm1040, %v1041, %v882
        %v1043 = vshrl.u32 %v1042, 4
        %v1044 = vand.u32 %v1042, 15
        %v1045 = vsub.s32 0, %v1044
        %v1046 = vsel %vm1040, %v1045, %v1044
        %vm1047 = vcmp.lt.s32.totalorder %v883, 0
        %v1048 = vsub.s32 0, %v883
        %v1049 = vsel %vm1047, %v1048, %v883
        %v1050 = vshrl.u32 %v1049, 4
        %v1051 = vand.u32 %v1049, 15
        %v1052 = vsub.s32 0, %v1051
        %v1053 = vsel %vm1047, %v1052, %v1051
        %vm1054 = vcmp.lt.s32.totalorder %v884, 0
        %v1055 = vsub.s32 0, %v884
        %v1056 = vsel %vm1054, %v1055, %v884
        %v1057 = vshrl.u32 %v1056, 4
        %v1058 = vand.u32 %v1056, 15
        %v1059 = vsub.s32 0, %v1058
        %v1060 = vsel %vm1054, %v1059, %v1058
        %vm1061 = vcmp.lt.s32.totalorder %v885, 0
        %v1062 = vsub.s32 0, %v885
        %v1063 = vsel %vm1061, %v1062, %v885
        %v1064 = vshrl.u32 %v1063, 4
        %v1065 = vand.u32 %v1063, 15
        %v1066 = vsub.s32 0, %v1065
        %v1067 = vsel %vm1061, %v1066, %v1065
        %vm1068 = vcmp.lt.s32.totalorder %v886, 0
        %v1069 = vsub.s32 0, %v886
        %v1070 = vsel %vm1068, %v1069, %v886
        %v1071 = vshrl.u32 %v1070, 4
        %v1072 = vand.u32 %v1070, 15
        %v1073 = vsub.s32 0, %v1072
        %v1074 = vsel %vm1068, %v1073, %v1072
        %vm1075 = vcmp.lt.s32.totalorder %v887, 0
        %v1076 = vsub.s32 0, %v887
        %v1077 = vsel %vm1075, %v1076, %v887
        %v1078 = vshrl.u32 %v1077, 4
        %v1079 = vand.u32 %v1077, 15
        %v1080 = vsub.s32 0, %v1079
        %v1081 = vsel %vm1075, %v1080, %v1079
        %vm1082 = vcmp.lt.s32.totalorder %v888, 0
        %v1083 = vsub.s32 0, %v888
        %v1084 = vsel %vm1082, %v1083, %v888
        %v1085 = vshrl.u32 %v1084, 4
        %v1086 = vand.u32 %v1084, 15
        %v1087 = vsub.s32 0, %v1086
        %v1088 = vsel %vm1082, %v1087, %v1086
        %vm1089 = vcmp.lt.s32.totalorder %v889, 0
        %v1090 = vsub.s32 0, %v889
        %v1091 = vsel %vm1089, %v1090, %v889
        %v1092 = vshrl.u32 %v1091, 4
        %v1093 = vand.u32 %v1091, 15
        %v1094 = vsub.s32 0, %v1093
        %v1095 = vsel %vm1089, %v1094, %v1093
        %vm1096 = vcmp.lt.s32.totalorder %v890, 0
        %v1097 = vsub.s32 0, %v890
        %v1098 = vsel %vm1096, %v1097, %v890
        %v1099 = vshrl.u32 %v1098, 4
        %v1100 = vand.u32 %v1098, 15
        %v1101 = vsub.s32 0, %v1100
        %v1102 = vsel %vm1096, %v1101, %v1100
        %vm1103 = vcmp.lt.s32.totalorder %v891, 0
        %v1104 = vsub.s32 0, %v891
        %v1105 = vsel %vm1103, %v1104, %v891
        %v1106 = vshrl.u32 %v1105, 4
        %v1107 = vand.u32 %v1105, 15
        %v1108 = vsub.s32 0, %v1107
        %v1109 = vsel %vm1103, %v1108, %v1107
        %vm1110 = vcmp.lt.s32.totalorder %v892, 0
        %v1111 = vsub.s32 0, %v892
        %v1112 = vsel %vm1110, %v1111, %v892
        %v1113 = vshrl.u32 %v1112, 4
        %v1114 = vand.u32 %v1112, 15
        %v1115 = vsub.s32 0, %v1114
        %v1116 = vsel %vm1110, %v1115, %v1114
        %vm1117 = vcmp.ne.s32.totalorder %v899, 0
        %vm1118 = vcmp.ne.s32.totalorder %v906, 0
        %vm1119 = vcmp.ne.s32.totalorder %v913, 0
        %vm1120 = vcmp.ne.s32.totalorder %v920, 0
        %vm1121 = vcmp.ne.s32.totalorder %v927, 0
        %vm1122 = vcmp.ne.s32.totalorder %v934, 0
        %vm1123 = vcmp.ne.s32.totalorder %v941, 0
        %vm1124 = vcmp.ne.s32.totalorder %v948, 0
        %vm1125 = vcmp.ne.s32.totalorder %v955, 0
        %vm1126 = vcmp.ne.s32.totalorder %v962, 0
        %vm1127 = vcmp.ne.s32.totalorder %v969, 0
        %vm1128 = vcmp.ne.s32.totalorder %v976, 0
        %vm1129 = vcmp.ne.s32.totalorder %v983, 0
        %vm1130 = vcmp.ne.s32.totalorder %v990, 0
        %vm1131 = vcmp.ne.s32.totalorder %v997, 0
        %vm1132 = vcmp.ne.s32.totalorder %v1004, 0
        %vm1133 = vcmp.ne.s32.totalorder %v1011, 0
        %vm1134 = vcmp.ne.s32.totalorder %v1018, 0
        %vm1135 = vcmp.ne.s32.totalorder %v1025, 0
        %vm1136 = vcmp.ne.s32.totalorder %v1032, 0
        %vm1137 = vcmp.ne.s32.totalorder %v1039, 0
        %vm1138 = vcmp.ne.s32.totalorder %v1046, 0
        %vm1139 = vcmp.ne.s32.totalorder %v1053, 0
        %vm1140 = vcmp.ne.s32.totalorder %v1060, 0
        %vm1141 = vcmp.ne.s32.totalorder %v1067, 0
        %vm1142 = vcmp.ne.s32.totalorder %v1074, 0
        %vm1143 = vcmp.ne.s32.totalorder %v1081, 0
        %vm1144 = vcmp.ne.s32.totalorder %v1088, 0
        %vm1145 = vcmp.ne.s32.totalorder %v1095, 0
        %vm1146 = vcmp.ne.s32.totalorder %v1102, 0
        %vm1147 = vcmp.ne.s32.totalorder %v1109, 0
        %vm1148 = vcmp.ne.s32.totalorder %v1116, 0
        %vm1149 = vcmp.lt.s32.totalorder %v899, 0
        %vm1150 = vcmp.lt.s32.totalorder %v906, 0
        %vm1151 = vcmp.lt.s32.totalorder %v913, 0
        %vm1152 = vcmp.lt.s32.totalorder %v920, 0
        %vm1153 = vcmp.lt.s32.totalorder %v927, 0
        %vm1154 = vcmp.lt.s32.totalorder %v934, 0
        %vm1155 = vcmp.lt.s32.totalorder %v941, 0
        %vm1156 = vcmp.lt.s32.totalorder %v948, 0
        %vm1157 = vcmp.lt.s32.totalorder %v955, 0
        %vm1158 = vcmp.lt.s32.totalorder %v962, 0
        %vm1159 = vcmp.lt.s32.totalorder %v969, 0
        %vm1160 = vcmp.lt.s32.totalorder %v976, 0
        %vm1161 = vcmp.lt.s32.totalorder %v983, 0
        %vm1162 = vcmp.lt.s32.totalorder %v990, 0
        %vm1163 = vcmp.lt.s32.totalorder %v997, 0
        %vm1164 = vcmp.lt.s32.totalorder %v1004, 0
        %vm1165 = vcmp.lt.s32.totalorder %v1011, 0
        %vm1166 = vcmp.lt.s32.totalorder %v1018, 0
        %vm1167 = vcmp.lt.s32.totalorder %v1025, 0
        %vm1168 = vcmp.lt.s32.totalorder %v1032, 0
        %vm1169 = vcmp.lt.s32.totalorder %v1039, 0
        %vm1170 = vcmp.lt.s32.totalorder %v1046, 0
        %vm1171 = vcmp.lt.s32.totalorder %v1053, 0
        %vm1172 = vcmp.lt.s32.totalorder %v1060, 0
        %vm1173 = vcmp.lt.s32.totalorder %v1067, 0
        %vm1174 = vcmp.lt.s32.totalorder %v1074, 0
        %vm1175 = vcmp.lt.s32.totalorder %v1081, 0
        %vm1176 = vcmp.lt.s32.totalorder %v1088, 0
        %vm1177 = vcmp.lt.s32.totalorder %v1095, 0
        %vm1178 = vcmp.lt.s32.totalorder %v1102, 0
        %vm1179 = vcmp.lt.s32.totalorder %v1109, 0
        %vm1180 = vcmp.lt.s32.totalorder %v1116, 0
        %vm1181 = vmand %vm1149, %vm1117
        %vm1182 = vmand %vm1150, %vm1118
        %vm1183 = vmand %vm1151, %vm1119
        %vm1184 = vmand %vm1152, %vm1120
        %vm1185 = vmand %vm1153, %vm1121
        %vm1186 = vmand %vm1154, %vm1122
        %vm1187 = vmand %vm1155, %vm1123
        %vm1188 = vmand %vm1156, %vm1124
        %vm1189 = vmand %vm1157, %vm1125
        %vm1190 = vmand %vm1158, %vm1126
        %vm1191 = vmand %vm1159, %vm1127
        %vm1192 = vmand %vm1160, %vm1128
        %vm1193 = vmand %vm1161, %vm1129
        %vm1194 = vmand %vm1162, %vm1130
        %vm1195 = vmand %vm1163, %vm1131
        %vm1196 = vmand %vm1164, %vm1132
        %vm1197 = vmand %vm1165, %vm1133
        %vm1198 = vmand %vm1166, %vm1134
        %vm1199 = vmand %vm1167, %vm1135
        %vm1200 = vmand %vm1168, %vm1136
        %vm1201 = vmand %vm1169, %vm1137
        %vm1202 = vmand %vm1170, %vm1138
        %vm1203 = vmand %vm1171, %vm1139
        %vm1204 = vmand %vm1172, %vm1140
        %vm1205 = vmand %vm1173, %vm1141
        %vm1206 = vmand %vm1174, %vm1142
        %vm1207 = vmand %vm1175, %vm1143
        %vm1208 = vmand %vm1176, %vm1144
        %vm1209 = vmand %vm1177, %vm1145
        %vm1210 = vmand %vm1178, %vm1146
        %vm1211 = vmand %vm1179, %vm1147
        %vm1212 = vmand %vm1180, %vm1148
        %v1213 = vadd.s32 %v899, 16
        %v1214 = vadd.s32 %v906, 16
        %v1215 = vadd.s32 %v913, 16
        %v1216 = vadd.s32 %v920, 16
        %v1217 = vadd.s32 %v927, 16
        %v1218 = vadd.s32 %v934, 16
        %v1219 = vadd.s32 %v941, 16
        %v1220 = vadd.s32 %v948, 16
        %v1221 = vadd.s32 %v955, 16
        %v1222 = vadd.s32 %v962, 16
        %v1223 = vadd.s32 %v969, 16
        %v1224 = vadd.s32 %v976, 16
        %v1225 = vadd.s32 %v983, 16
        %v1226 = vadd.s32 %v990, 16
        %v1227 = vadd.s32 %v997, 16
        %v1228 = vadd.s32 %v1004, 16
        %v1229 = vadd.s32 %v1011, 16
        %v1230 = vadd.s32 %v1018, 16
        %v1231 = vadd.s32 %v1025, 16
        %v1232 = vadd.s32 %v1032, 16
        %v1233 = vadd.s32 %v1039, 16
        %v1234 = vadd.s32 %v1046, 16
        %v1235 = vadd.s32 %v1053, 16
        %v1236 = vadd.s32 %v1060, 16
        %v1237 = vadd.s32 %v1067, 16
        %v1238 = vadd.s32 %v1074, 16
        %v1239 = vadd.s32 %v1081, 16
        %v1240 = vadd.s32 %v1088, 16
        %v1241 = vadd.s32 %v1095, 16
        %v1242 = vadd.s32 %v1102, 16
        %v1243 = vadd.s32 %v1109, 16
        %v1244 = vadd.s32 %v1116, 16
        %v1245 = vsel %vm1181, %v1213, %v899
        %v1246 = vsel %vm1182, %v1214, %v906
        %v1247 = vsel %vm1183, %v1215, %v913
        %v1248 = vsel %vm1184, %v1216, %v920
        %v1249 = vsel %vm1185, %v1217, %v927
        %v1250 = vsel %vm1186, %v1218, %v934
        %v1251 = vsel %vm1187, %v1219, %v941
        %v1252 = vsel %vm1188, %v1220, %v948
        %v1253 = vsel %vm1189, %v1221, %v955
        %v1254 = vsel %vm1190, %v1222, %v962
        %v1255 = vsel %vm1191, %v1223, %v969
        %v1256 = vsel %vm1192, %v1224, %v976
        %v1257 = vsel %vm1193, %v1225, %v983
        %v1258 = vsel %vm1194, %v1226, %v990
        %v1259 = vsel %vm1195, %v1227, %v997
        %v1260 = vsel %vm1196, %v1228, %v1004
        %v1261 = vsel %vm1197, %v1229, %v1011
        %v1262 = vsel %vm1198, %v1230, %v1018
        %v1263 = vsel %vm1199, %v1231, %v1025
        %v1264 = vsel %vm1200, %v1232, %v1032
        %v1265 = vsel %vm1201, %v1233, %v1039
        %v1266 = vsel %vm1202, %v1234, %v1046
        %v1267 = vsel %vm1203, %v1235, %v1053
        %v1268 = vsel %vm1204, %v1236, %v1060
        %v1269 = vsel %vm1205, %v1237, %v1067
        %v1270 = vsel %vm1206, %v1238, %v1074
        %v1271 = vsel %vm1207, %v1239, %v1081
        %v1272 = vsel %vm1208, %v1240, %v1088
        %v1273 = vsel %vm1209, %v1241, %v1095
        %v1274 = vsel %vm1210, %v1242, %v1102
        %v1275 = vsel %vm1211, %v1243, %v1109
        %v1276 = vsel %vm1212, %v1244, %v1116
        %vm1277 = vcmp.ge.s32.totalorder %v1245, 1
        %vm1278 = vcmp.ge.s32.totalorder %v1246, 1
        %vm1279 = vcmp.ge.s32.totalorder %v1247, 1
        %vm1280 = vcmp.ge.s32.totalorder %v1248, 1
        %vm1281 = vcmp.ge.s32.totalorder %v1249, 1
        %vm1282 = vcmp.ge.s32.totalorder %v1250, 1
        %vm1283 = vcmp.ge.s32.totalorder %v1251, 1
        %vm1284 = vcmp.ge.s32.totalorder %v1252, 1
        %vm1285 = vcmp.ge.s32.totalorder %v1253, 1
        %vm1286 = vcmp.ge.s32.totalorder %v1254, 1
        %vm1287 = vcmp.ge.s32.totalorder %v1255, 1
        %vm1288 = vcmp.ge.s32.totalorder %v1256, 1
        %vm1289 = vcmp.ge.s32.totalorder %v1257, 1
        %vm1290 = vcmp.ge.s32.totalorder %v1258, 1
        %vm1291 = vcmp.ge.s32.totalorder %v1259, 1
        %vm1292 = vcmp.ge.s32.totalorder %v1260, 1
        %vm1293 = vcmp.ge.s32.totalorder %v1261, 1
        %vm1294 = vcmp.ge.s32.totalorder %v1262, 1
        %vm1295 = vcmp.ge.s32.totalorder %v1263, 1
        %vm1296 = vcmp.ge.s32.totalorder %v1264, 1
        %vm1297 = vcmp.ge.s32.totalorder %v1265, 1
        %vm1298 = vcmp.ge.s32.totalorder %v1266, 1
        %vm1299 = vcmp.ge.s32.totalorder %v1267, 1
        %vm1300 = vcmp.ge.s32.totalorder %v1268, 1
        %vm1301 = vcmp.ge.s32.totalorder %v1269, 1
        %vm1302 = vcmp.ge.s32.totalorder %v1270, 1
        %vm1303 = vcmp.ge.s32.totalorder %v1271, 1
        %vm1304 = vcmp.ge.s32.totalorder %v1272, 1
        %vm1305 = vcmp.ge.s32.totalorder %v1273, 1
        %vm1306 = vcmp.ge.s32.totalorder %v1274, 1
        %vm1307 = vcmp.ge.s32.totalorder %v1275, 1
        %vm1308 = vcmp.ge.s32.totalorder %v1276, 1
        %v1309 = vsel %vm1277, 1, 0
        %v1310 = vsel %vm1278, 1, 0
        %v1311 = vsel %vm1279, 1, 0
        %v1312 = vsel %vm1280, 1, 0
        %v1313 = vsel %vm1281, 1, 0
        %v1314 = vsel %vm1282, 1, 0
        %v1315 = vsel %vm1283, 1, 0
        %v1316 = vsel %vm1284, 1, 0
        %v1317 = vsel %vm1285, 1, 0
        %v1318 = vsel %vm1286, 1, 0
        %v1319 = vsel %vm1287, 1, 0
        %v1320 = vsel %vm1288, 1, 0
        %v1321 = vsel %vm1289, 1, 0
        %v1322 = vsel %vm1290, 1, 0
        %v1323 = vsel %vm1291, 1, 0
        %v1324 = vsel %vm1292, 1, 0
        %v1325 = vsel %vm1293, 1, 0
        %v1326 = vsel %vm1294, 1, 0
        %v1327 = vsel %vm1295, 1, 0
        %v1328 = vsel %vm1296, 1, 0
        %v1329 = vsel %vm1297, 1, 0
        %v1330 = vsel %vm1298, 1, 0
        %v1331 = vsel %vm1299, 1, 0
        %v1332 = vsel %vm1300, 1, 0
        %v1333 = vsel %vm1301, 1, 0
        %v1334 = vsel %vm1302, 1, 0
        %v1335 = vsel %vm1303, 1, 0
        %v1336 = vsel %vm1304, 1, 0
        %v1337 = vsel %vm1305, 1, 0
        %v1338 = vsel %vm1306, 1, 0
        %v1339 = vsel %vm1307, 1, 0
        %v1340 = vsel %vm1308, 1, 0
        %v1341 = vcvt.s32.f32 %v1309
        %v1342 = vcvt.s32.f32 %v1310
        %v1343 = vcvt.s32.f32 %v1311
        %v1344 = vcvt.s32.f32 %v1312
        %v1345 = vcvt.s32.f32 %v1313
        %v1346 = vcvt.s32.f32 %v1314
        %v1347 = vcvt.s32.f32 %v1315
        %v1348 = vcvt.s32.f32 %v1316
        %v1349 = vcvt.s32.f32 %v1317
        %v1350 = vcvt.s32.f32 %v1318
        %v1351 = vcvt.s32.f32 %v1319
        %v1352 = vcvt.s32.f32 %v1320
        %v1353 = vcvt.s32.f32 %v1321
        %v1354 = vcvt.s32.f32 %v1322
        %v1355 = vcvt.s32.f32 %v1323
        %v1356 = vcvt.s32.f32 %v1324
        %v1357 = vcvt.s32.f32 %v1325
        %v1358 = vcvt.s32.f32 %v1326
        %v1359 = vcvt.s32.f32 %v1327
        %v1360 = vcvt.s32.f32 %v1328
        %v1361 = vcvt.s32.f32 %v1329
        %v1362 = vcvt.s32.f32 %v1330
        %v1363 = vcvt.s32.f32 %v1331
        %v1364 = vcvt.s32.f32 %v1332
        %v1365 = vcvt.s32.f32 %v1333
        %v1366 = vcvt.s32.f32 %v1334
        %v1367 = vcvt.s32.f32 %v1335
        %v1368 = vcvt.s32.f32 %v1336
        %v1369 = vcvt.s32.f32 %v1337
        %v1370 = vcvt.s32.f32 %v1338
        %v1371 = vcvt.s32.f32 %v1339
        %v1372 = vcvt.s32.f32 %v1340
        %vm1373 = vcmp.le.s32.totalorder %v1245, 14
        %vm1374 = vcmp.le.s32.totalorder %v1246, 14
        %vm1375 = vcmp.le.s32.totalorder %v1247, 14
        %vm1376 = vcmp.le.s32.totalorder %v1248, 14
        %vm1377 = vcmp.le.s32.totalorder %v1249, 14
        %vm1378 = vcmp.le.s32.totalorder %v1250, 14
        %vm1379 = vcmp.le.s32.totalorder %v1251, 14
        %vm1380 = vcmp.le.s32.totalorder %v1252, 14
        %vm1381 = vcmp.le.s32.totalorder %v1253, 14
        %vm1382 = vcmp.le.s32.totalorder %v1254, 14
        %vm1383 = vcmp.le.s32.totalorder %v1255, 14
        %vm1384 = vcmp.le.s32.totalorder %v1256, 14
        %vm1385 = vcmp.le.s32.totalorder %v1257, 14
        %vm1386 = vcmp.le.s32.totalorder %v1258, 14
        %vm1387 = vcmp.le.s32.totalorder %v1259, 14
        %vm1388 = vcmp.le.s32.totalorder %v1260, 14
        %vm1389 = vcmp.le.s32.totalorder %v1261, 14
        %vm1390 = vcmp.le.s32.totalorder %v1262, 14
        %vm1391 = vcmp.le.s32.totalorder %v1263, 14
        %vm1392 = vcmp.le.s32.totalorder %v1264, 14
        %vm1393 = vcmp.le.s32.totalorder %v1265, 14
        %vm1394 = vcmp.le.s32.totalorder %v1266, 14
        %vm1395 = vcmp.le.s32.totalorder %v1267, 14
        %vm1396 = vcmp.le.s32.totalorder %v1268, 14
        %vm1397 = vcmp.le.s32.totalorder %v1269, 14
        %vm1398 = vcmp.le.s32.totalorder %v1270, 14
        %vm1399 = vcmp.le.s32.totalorder %v1271, 14
        %vm1400 = vcmp.le.s32.totalorder %v1272, 14
        %vm1401 = vcmp.le.s32.totalorder %v1273, 14
        %vm1402 = vcmp.le.s32.totalorder %v1274, 14
        %vm1403 = vcmp.le.s32.totalorder %v1275, 14
        %vm1404 = vcmp.le.s32.totalorder %v1276, 14
        %v1405 = vsel %vm1373, 1, 0
        %v1406 = vsel %vm1374, 1, 0
        %v1407 = vsel %vm1375, 1, 0
        %v1408 = vsel %vm1376, 1, 0
        %v1409 = vsel %vm1377, 1, 0
        %v1410 = vsel %vm1378, 1, 0
        %v1411 = vsel %vm1379, 1, 0
        %v1412 = vsel %vm1380, 1, 0
        %v1413 = vsel %vm1381, 1, 0
        %v1414 = vsel %vm1382, 1, 0
        %v1415 = vsel %vm1383, 1, 0
        %v1416 = vsel %vm1384, 1, 0
        %v1417 = vsel %vm1385, 1, 0
        %v1418 = vsel %vm1386, 1, 0
        %v1419 = vsel %vm1387, 1, 0
        %v1420 = vsel %vm1388, 1, 0
        %v1421 = vsel %vm1389, 1, 0
        %v1422 = vsel %vm1390, 1, 0
        %v1423 = vsel %vm1391, 1, 0
        %v1424 = vsel %vm1392, 1, 0
        %v1425 = vsel %vm1393, 1, 0
        %v1426 = vsel %vm1394, 1, 0
        %v1427 = vsel %vm1395, 1, 0
        %v1428 = vsel %vm1396, 1, 0
        %v1429 = vsel %vm1397, 1, 0
        %v1430 = vsel %vm1398, 1, 0
        %v1431 = vsel %vm1399, 1, 0
        %v1432 = vsel %vm1400, 1, 0
        %v1433 = vsel %vm1401, 1, 0
        %v1434 = vsel %vm1402, 1, 0
        %v1435 = vsel %vm1403, 1, 0
        %v1436 = vsel %vm1404, 1, 0
        %v1437 = vcvt.s32.f32 %v1405
        %v1438 = vcvt.s32.f32 %v1406
        %v1439 = vcvt.s32.f32 %v1407
        %v1440 = vcvt.s32.f32 %v1408
        %v1441 = vcvt.s32.f32 %v1409
        %v1442 = vcvt.s32.f32 %v1410
        %v1443 = vcvt.s32.f32 %v1411
        %v1444 = vcvt.s32.f32 %v1412
        %v1445 = vcvt.s32.f32 %v1413
        %v1446 = vcvt.s32.f32 %v1414
        %v1447 = vcvt.s32.f32 %v1415
        %v1448 = vcvt.s32.f32 %v1416
        %v1449 = vcvt.s32.f32 %v1417
        %v1450 = vcvt.s32.f32 %v1418
        %v1451 = vcvt.s32.f32 %v1419
        %v1452 = vcvt.s32.f32 %v1420
        %v1453 = vcvt.s32.f32 %v1421
        %v1454 = vcvt.s32.f32 %v1422
        %v1455 = vcvt.s32.f32 %v1423
        %v1456 = vcvt.s32.f32 %v1424
        %v1457 = vcvt.s32.f32 %v1425
        %v1458 = vcvt.s32.f32 %v1426
        %v1459 = vcvt.s32.f32 %v1427
        %v1460 = vcvt.s32.f32 %v1428
        %v1461 = vcvt.s32.f32 %v1429
        %v1462 = vcvt.s32.f32 %v1430
        %v1463 = vcvt.s32.f32 %v1431
        %v1464 = vcvt.s32.f32 %v1432
        %v1465 = vcvt.s32.f32 %v1433
        %v1466 = vcvt.s32.f32 %v1434
        %v1467 = vcvt.s32.f32 %v1435
        %v1468 = vcvt.s32.f32 %v1436
        %1469 = vst [vmem:[#allocation3] sm:$0xff] 0.0
        %1470 = vst [vmem:[#allocation3 + $0x8] sm:$0xff] 0.0
        %1471 = vst [vmem:[#allocation3 + $0x10] sm:$0xff] 0.0
        %1472 = vst [vmem:[#allocation3 + $0x18] sm:$0xff] 0.0
        %1473 = vst [vmem:[#allocation3 + $0x20] sm:$0xff] 0.0
        %1474 = vst [vmem:[#allocation3 + $0x28] sm:$0xff] 0.0
        %1475 = vst [vmem:[#allocation3 + $0x30] sm:$0xff] 0.0
        %1476 = vst [vmem:[#allocation3 + $0x38] sm:$0xff] 0.0
        %1477 = vst [vmem:[#allocation3 + $0x40] sm:$0xff] 0.0
        %1478 = vst [vmem:[#allocation3 + $0x48] sm:$0xff] 0.0
        %1479 = vst [vmem:[#allocation3 + $0x50] sm:$0xff] 0.0
        %1480 = vst [vmem:[#allocation3 + $0x58] sm:$0xff] 0.0
        %1481 = vst [vmem:[#allocation3 + $0x60] sm:$0xff] 0.0
        %1482 = vst [vmem:[#allocation3 + $0x68] sm:$0xff] 0.0
        %1483 = vst [vmem:[#allocation3 + $0x70] sm:$0xff] 0.0
        %1484 = vst [vmem:[#allocation3 + $0x78] sm:$0xff] 0.0
        %1485 = vst [vmem:[#allocation3 + $0x80] sm:$0xff] 0.0
        %1486 = vst [vmem:[#allocation3 + $0x88] sm:$0xff] 0.0
        %1487 = vst [vmem:[#allocation3 + $0x90] sm:$0xff] 0.0
        %1488 = vst [vmem:[#allocation3 + $0x98] sm:$0xff] 0.0
        %1489 = vst [vmem:[#allocation3 + $0xa0] sm:$0xff] 0.0
        %1490 = vst [vmem:[#allocation3 + $0xa8] sm:$0xff] 0.0
        %1491 = vst [vmem:[#allocation3 + $0xb0] sm:$0xff] 0.0
        %1492 = vst [vmem:[#allocation3 + $0xb8] sm:$0xff] 0.0
        %1493 = vst [vmem:[#allocation3 + $0xc0] sm:$0xff] 0.0
        %1494 = vst [vmem:[#allocation3 + $0xc8] sm:$0xff] 0.0
        %1495 = vst [vmem:[#allocation3 + $0xd0] sm:$0xff] 0.0
        %1496 = vst [vmem:[#allocation3 + $0xd8] sm:$0xff] 0.0
        %1497 = vst [vmem:[#allocation3 + $0xe0] sm:$0xff] 0.0
        %1498 = vst [vmem:[#allocation3 + $0xe8] sm:$0xff] 0.0
        %1499 = vst [vmem:[#allocation3 + $0xf0] sm:$0xff] 0.0
        %1500 = vst [vmem:[#allocation3 + $0xf8] sm:$0xff] 0.0
        loop: start=0, step=1, limit=3
        $region77: #{tpu_custom_call.1} parent=59 // loop_pre_header
          _
        $region78: #{tpu_custom_call.1} parent=59 // loop_header
          %s1502 = sphi 0, %s1506
          %p1503 = scmp.ge.s32.totalorder %s1502, 3
        $region79: #{tpu_custom_call.1} parent=59 // loop_header_branch
          %1505 = sbr.rel (%p1503) target = $region83
        $region80: #{tpu_custom_call.1} parent=59 // loop_body
          %s1507 = ssub.s32 %s1502, 1
          %s1508 = smul.u32 %s1507, 16
          %s1509 = sadd.s32 %s1508, 32
          %s1510 = sadd.s32 %s1508, 31
          %s1511 = scalar_lea.vmem [#allocation2], %s1510
          %v1512 = vld [vmem:[%s1511] sm:$0xff]
          %v1513 = vld [vmem:[%s1511 + $0x8] sm:$0xff]
          %v1514 = vld [vmem:[%s1511 + $0x10] sm:$0xff]
          %v1515 = vld [vmem:[%s1511 + $0x18] sm:$0xff]
          %v1516 = vld [vmem:[%s1511 + $0x20] sm:$0xff]
          %v1517 = vld [vmem:[%s1511 + $0x28] sm:$0xff]
          %v1518 = vld [vmem:[%s1511 + $0x30] sm:$0xff]
          %v1519 = vld [vmem:[%s1511 + $0x38] sm:$0xff]
          %v1520 = vld [vmem:[%s1511 + $0x40] sm:$0xff]
          %v1521 = vld [vmem:[%s1511 + $0x48] sm:$0xff]
          %v1522 = vld [vmem:[%s1511 + $0x50] sm:$0xff]
          %v1523 = vld [vmem:[%s1511 + $0x58] sm:$0xff]
          %v1524 = vld [vmem:[%s1511 + $0x60] sm:$0xff]
          %v1525 = vld [vmem:[%s1511 + $0x68] sm:$0xff]
          %v1526 = vld [vmem:[%s1511 + $0x70] sm:$0xff]
          %v1527 = vld [vmem:[%s1511 + $0x78] sm:$0xff]
          %v1528 = vld [vmem:[%s1511 + $0x80] sm:$0xff]
          %v1529 = vld [vmem:[%s1511 + $0x88] sm:$0xff]
          %v1530 = vld [vmem:[%s1511 + $0x90] sm:$0xff]
          %v1531 = vld [vmem:[%s1511 + $0x98] sm:$0xff]
          %v1532 = vld [vmem:[%s1511 + $0xa0] sm:$0xff]
          %v1533 = vld [vmem:[%s1511 + $0xa8] sm:$0xff]
          %v1534 = vld [vmem:[%s1511 + $0xb0] sm:$0xff]
          %v1535 = vld [vmem:[%s1511 + $0xb8] sm:$0xff]
          %v1536 = vld [vmem:[%s1511 + $0xc0] sm:$0xff]
          %v1537 = vld [vmem:[%s1511 + $0xc8] sm:$0xff]
          %v1538 = vld [vmem:[%s1511 + $0xd0] sm:$0xff]
          %v1539 = vld [vmem:[%s1511 + $0xd8] sm:$0xff]
          %v1540 = vld [vmem:[%s1511 + $0xe0] sm:$0xff]
          %v1541 = vld [vmem:[%s1511 + $0xe8] sm:$0xff]
          %v1542 = vld [vmem:[%s1511 + $0xf0] sm:$0xff]
          %v1543 = vld [vmem:[%s1511 + $0xf8] sm:$0xff]
          %v1544 = vmul.f32 %v1512, %v1341
          %v1545 = vmul.f32 %v1513, %v1342
          %v1546 = vmul.f32 %v1514, %v1343
          %v1547 = vmul.f32 %v1515, %v1344
          %v1548 = vmul.f32 %v1516, %v1345
          %v1549 = vmul.f32 %v1517, %v1346
          %v1550 = vmul.f32 %v1518, %v1347
          %v1551 = vmul.f32 %v1519, %v1348
          %v1552 = vmul.f32 %v1520, %v1349
          %v1553 = vmul.f32 %v1521, %v1350
          %v1554 = vmul.f32 %v1522, %v1351
          %v1555 = vmul.f32 %v1523, %v1352
          %v1556 = vmul.f32 %v1524, %v1353
          %v1557 = vmul.f32 %v1525, %v1354
          %v1558 = vmul.f32 %v1526, %v1355
          %v1559 = vmul.f32 %v1527, %v1356
          %v1560 = vmul.f32 %v1528, %v1357
          %v1561 = vmul.f32 %v1529, %v1358
          %v1562 = vmul.f32 %v1530, %v1359
          %v1563 = vmul.f32 %v1531, %v1360
          %v1564 = vmul.f32 %v1532, %v1361
          %v1565 = vmul.f32 %v1533, %v1362
          %v1566 = vmul.f32 %v1534, %v1363
          %v1567 = vmul.f32 %v1535, %v1364
          %v1568 = vmul.f32 %v1536, %v1365
          %v1569 = vmul.f32 %v1537, %v1366
          %v1570 = vmul.f32 %v1538, %v1367
          %v1571 = vmul.f32 %v1539, %v1368
          %v1572 = vmul.f32 %v1540, %v1369
          %v1573 = vmul.f32 %v1541, %v1370
          %v1574 = vmul.f32 %v1542, %v1371
          %v1575 = vmul.f32 %v1543, %v1372
          %s1576 = scalar_lea.vmem [#allocation2], %s1509
          %v1577 = vld [vmem:[%s1576] sm:$0xff]
          %v1578 = vld [vmem:[%s1576 + $0x8] sm:$0xff]
          %v1579 = vld [vmem:[%s1576 + $0x10] sm:$0xff]
          %v1580 = vld [vmem:[%s1576 + $0x18] sm:$0xff]
          %v1581 = vld [vmem:[%s1576 + $0x20] sm:$0xff]
          %v1582 = vld [vmem:[%s1576 + $0x28] sm:$0xff]
          %v1583 = vld [vmem:[%s1576 + $0x30] sm:$0xff]
          %v1584 = vld [vmem:[%s1576 + $0x38] sm:$0xff]
          %v1585 = vld [vmem:[%s1576 + $0x40] sm:$0xff]
          %v1586 = vld [vmem:[%s1576 + $0x48] sm:$0xff]
          %v1587 = vld [vmem:[%s1576 + $0x50] sm:$0xff]
          %v1588 = vld [vmem:[%s1576 + $0x58] sm:$0xff]
          %v1589 = vld [vmem:[%s1576 + $0x60] sm:$0xff]
          %v1590 = vld [vmem:[%s1576 + $0x68] sm:$0xff]
          %v1591 = vld [vmem:[%s1576 + $0x70] sm:$0xff]
          %v1592 = vld [vmem:[%s1576 + $0x78] sm:$0xff]
          %v1593 = vld [vmem:[%s1576 + $0x80] sm:$0xff]
          %v1594 = vld [vmem:[%s1576 + $0x88] sm:$0xff]
          %v1595 = vld [vmem:[%s1576 + $0x90] sm:$0xff]
          %v1596 = vld [vmem:[%s1576 + $0x98] sm:$0xff]
          %v1597 = vld [vmem:[%s1576 + $0xa0] sm:$0xff]
          %v1598 = vld [vmem:[%s1576 + $0xa8] sm:$0xff]
          %v1599 = vld [vmem:[%s1576 + $0xb0] sm:$0xff]
          %v1600 = vld [vmem:[%s1576 + $0xb8] sm:$0xff]
          %v1601 = vld [vmem:[%s1576 + $0xc0] sm:$0xff]
          %v1602 = vld [vmem:[%s1576 + $0xc8] sm:$0xff]
          %v1603 = vld [vmem:[%s1576 + $0xd0] sm:$0xff]
          %v1604 = vld [vmem:[%s1576 + $0xd8] sm:$0xff]
          %v1605 = vld [vmem:[%s1576 + $0xe0] sm:$0xff]
          %v1606 = vld [vmem:[%s1576 + $0xe8] sm:$0xff]
          %v1607 = vld [vmem:[%s1576 + $0xf0] sm:$0xff]
          %v1608 = vld [vmem:[%s1576 + $0xf8] sm:$0xff]
          %s1609 = sadd.s32 %s1508, 33
          %s1610 = scalar_lea.vmem [#allocation2], %s1609
          %v1611 = vld [vmem:[%s1610] sm:$0xff]
          %v1612 = vld [vmem:[%s1610 + $0x8] sm:$0xff]
          %v1613 = vld [vmem:[%s1610 + $0x10] sm:$0xff]
          %v1614 = vld [vmem:[%s1610 + $0x18] sm:$0xff]
          %v1615 = vld [vmem:[%s1610 + $0x20] sm:$0xff]
          %v1616 = vld [vmem:[%s1610 + $0x28] sm:$0xff]
          %v1617 = vld [vmem:[%s1610 + $0x30] sm:$0xff]
          %v1618 = vld [vmem:[%s1610 + $0x38] sm:$0xff]
          %v1619 = vld [vmem:[%s1610 + $0x40] sm:$0xff]
          %v1620 = vld [vmem:[%s1610 + $0x48] sm:$0xff]
          %v1621 = vld [vmem:[%s1610 + $0x50] sm:$0xff]
          %v1622 = vld [vmem:[%s1610 + $0x58] sm:$0xff]
          %v1623 = vld [vmem:[%s1610 + $0x60] sm:$0xff]
          %v1624 = vld [vmem:[%s1610 + $0x68] sm:$0xff]
          %v1625 = vld [vmem:[%s1610 + $0x70] sm:$0xff]
          %v1626 = vld [vmem:[%s1610 + $0x78] sm:$0xff]
          %v1627 = vld [vmem:[%s1610 + $0x80] sm:$0xff]
          %v1628 = vld [vmem:[%s1610 + $0x88] sm:$0xff]
          %v1629 = vld [vmem:[%s1610 + $0x90] sm:$0xff]
          %v1630 = vld [vmem:[%s1610 + $0x98] sm:$0xff]
          %v1631 = vld [vmem:[%s1610 + $0xa0] sm:$0xff]
          %v1632 = vld [vmem:[%s1610 + $0xa8] sm:$0xff]
          %v1633 = vld [vmem:[%s1610 + $0xb0] sm:$0xff]
          %v1634 = vld [vmem:[%s1610 + $0xb8] sm:$0xff]
          %v1635 = vld [vmem:[%s1610 + $0xc0] sm:$0xff]
          %v1636 = vld [vmem:[%s1610 + $0xc8] sm:$0xff]
          %v1637 = vld [vmem:[%s1610 + $0xd0] sm:$0xff]
          %v1638 = vld [vmem:[%s1610 + $0xd8] sm:$0xff]
          %v1639 = vld [vmem:[%s1610 + $0xe0] sm:$0xff]
          %v1640 = vld [vmem:[%s1610 + $0xe8] sm:$0xff]
          %v1641 = vld [vmem:[%s1610 + $0xf0] sm:$0xff]
          %v1642 = vld [vmem:[%s1610 + $0xf8] sm:$0xff]
          %v1643 = vmul.f32 %v1611, %v1437
          %v1644 = vmul.f32 %v1612, %v1438
          %v1645 = vmul.f32 %v1613, %v1439
          %v1646 = vmul.f32 %v1614, %v1440
          %v1647 = vmul.f32 %v1615, %v1441
          %v1648 = vmul.f32 %v1616, %v1442
          %v1649 = vmul.f32 %v1617, %v1443
          %v1650 = vmul.f32 %v1618, %v1444
          %v1651 = vmul.f32 %v1619, %v1445
          %v1652 = vmul.f32 %v1620, %v1446
          %v1653 = vmul.f32 %v1621, %v1447
          %v1654 = vmul.f32 %v1622, %v1448
          %v1655 = vmul.f32 %v1623, %v1449
          %v1656 = vmul.f32 %v1624, %v1450
          %v1657 = vmul.f32 %v1625, %v1451
          %v1658 = vmul.f32 %v1626, %v1452
          %v1659 = vmul.f32 %v1627, %v1453
          %v1660 = vmul.f32 %v1628, %v1454
          %v1661 = vmul.f32 %v1629, %v1455
          %v1662 = vmul.f32 %v1630, %v1456
          %v1663 = vmul.f32 %v1631, %v1457
          %v1664 = vmul.f32 %v1632, %v1458
          %v1665 = vmul.f32 %v1633, %v1459
          %v1666 = vmul.f32 %v1634, %v1460
          %v1667 = vmul.f32 %v1635, %v1461
          %v1668 = vmul.f32 %v1636, %v1462
          %v1669 = vmul.f32 %v1637, %v1463
          %v1670 = vmul.f32 %v1638, %v1464
          %v1671 = vmul.f32 %v1639, %v1465
          %v1672 = vmul.f32 %v1640, %v1466
          %v1673 = vmul.f32 %v1641, %v1467
          %v1674 = vmul.f32 %v1642, %v1468
          %s1675 = smul.u32 %s1502, 384
          %v1676 = vld [vmem:[#allocation3] sm:$0xff]
          %v1677 = vld [vmem:[#allocation3 + $0x8] sm:$0xff]
          %v1678 = vld [vmem:[#allocation3 + $0x10] sm:$0xff]
          %v1679 = vld [vmem:[#allocation3 + $0x18] sm:$0xff]
          %v1680 = vld [vmem:[#allocation3 + $0x20] sm:$0xff]
          %v1681 = vld [vmem:[#allocation3 + $0x28] sm:$0xff]
          %v1682 = vld [vmem:[#allocation3 + $0x30] sm:$0xff]
          %v1683 = vld [vmem:[#allocation3 + $0x38] sm:$0xff]
          %v1684 = vld [vmem:[#allocation3 + $0x40] sm:$0xff]
          %v1685 = vld [vmem:[#allocation3 + $0x48] sm:$0xff]
          %v1686 = vld [vmem:[#allocation3 + $0x50] sm:$0xff]
          %v1687 = vld [vmem:[#allocation3 + $0x58] sm:$0xff]
          %v1688 = vld [vmem:[#allocation3 + $0x60] sm:$0xff]
          %v1689 = vld [vmem:[#allocation3 + $0x68] sm:$0xff]
          %v1690 = vld [vmem:[#allocation3 + $0x70] sm:$0xff]
          %v1691 = vld [vmem:[#allocation3 + $0x78] sm:$0xff]
          %v1692 = vld [vmem:[#allocation3 + $0x80] sm:$0xff]
          %v1693 = vld [vmem:[#allocation3 + $0x88] sm:$0xff]
          %v1694 = vld [vmem:[#allocation3 + $0x90] sm:$0xff]
          %v1695 = vld [vmem:[#allocation3 + $0x98] sm:$0xff]
          %v1696 = vld [vmem:[#allocation3 + $0xa0] sm:$0xff]
          %v1697 = vld [vmem:[#allocation3 + $0xa8] sm:$0xff]
          %v1698 = vld [vmem:[#allocation3 + $0xb0] sm:$0xff]
          %v1699 = vld [vmem:[#allocation3 + $0xb8] sm:$0xff]
          %v1700 = vld [vmem:[#allocation3 + $0xc0] sm:$0xff]
          %v1701 = vld [vmem:[#allocation3 + $0xc8] sm:$0xff]
          %v1702 = vld [vmem:[#allocation3 + $0xd0] sm:$0xff]
          %v1703 = vld [vmem:[#allocation3 + $0xd8] sm:$0xff]
          %v1704 = vld [vmem:[#allocation3 + $0xe0] sm:$0xff]
          %v1705 = vld [vmem:[#allocation3 + $0xe8] sm:$0xff]
          %v1706 = vld [vmem:[#allocation3 + $0xf0] sm:$0xff]
          %v1707 = vld [vmem:[#allocation3 + $0xf8] sm:$0xff]
          %s1708 = scalar_lea.vmem [#allocation9], %s1675
          %v1709 = vld [vmem:[%s1708] sm:$0xff]
          %v1710 = vld [vmem:[%s1708 + $0x8] sm:$0xff]
          %v1711 = vld [vmem:[%s1708 + $0x10] sm:$0xff]
          %v1712 = vld [vmem:[%s1708 + $0x18] sm:$0xff]
          %v1713 = vld [vmem:[%s1708 + $0x20] sm:$0xff]
          %v1714 = vld [vmem:[%s1708 + $0x28] sm:$0xff]
          %v1715 = vld [vmem:[%s1708 + $0x30] sm:$0xff]
          %v1716 = vld [vmem:[%s1708 + $0x38] sm:$0xff]
          %v1717 = vld [vmem:[%s1708 + $0x40] sm:$0xff]
          %v1718 = vld [vmem:[%s1708 + $0x48] sm:$0xff]
          %v1719 = vld [vmem:[%s1708 + $0x50] sm:$0xff]
          %v1720 = vld [vmem:[%s1708 + $0x58] sm:$0xff]
          %v1721 = vld [vmem:[%s1708 + $0x60] sm:$0xff]
          %v1722 = vld [vmem:[%s1708 + $0x68] sm:$0xff]
          %v1723 = vld [vmem:[%s1708 + $0x70] sm:$0xff]
          %v1724 = vld [vmem:[%s1708 + $0x78] sm:$0xff]
          %v1725 = vld [vmem:[%s1708 + $0x80] sm:$0xff]
          %v1726 = vld [vmem:[%s1708 + $0x88] sm:$0xff]
          %v1727 = vld [vmem:[%s1708 + $0x90] sm:$0xff]
          %v1728 = vld [vmem:[%s1708 + $0x98] sm:$0xff]
          %v1729 = vld [vmem:[%s1708 + $0xa0] sm:$0xff]
          %v1730 = vld [vmem:[%s1708 + $0xa8] sm:$0xff]
          %v1731 = vld [vmem:[%s1708 + $0xb0] sm:$0xff]
          %v1732 = vld [vmem:[%s1708 + $0xb8] sm:$0xff]
          %v1733 = vld [vmem:[%s1708 + $0xc0] sm:$0xff]
          %v1734 = vld [vmem:[%s1708 + $0xc8] sm:$0xff]
          %v1735 = vld [vmem:[%s1708 + $0xd0] sm:$0xff]
          %v1736 = vld [vmem:[%s1708 + $0xd8] sm:$0xff]
          %v1737 = vld [vmem:[%s1708 + $0xe0] sm:$0xff]
          %v1738 = vld [vmem:[%s1708 + $0xe8] sm:$0xff]
          %v1739 = vld [vmem:[%s1708 + $0xf0] sm:$0xff]
          %v1740 = vld [vmem:[%s1708 + $0xf8] sm:$0xff]
          %v1741 = vld [vmem:[%s1708 + $0x100] sm:$0xff]
          %v1742 = vld [vmem:[%s1708 + $0x108] sm:$0xff]
          %v1743 = vld [vmem:[%s1708 + $0x110] sm:$0xff]
          %v1744 = vld [vmem:[%s1708 + $0x118] sm:$0xff]
          %v1745 = vld [vmem:[%s1708 + $0x120] sm:$0xff]
          %v1746 = vld [vmem:[%s1708 + $0x128] sm:$0xff]
          %v1747 = vld [vmem:[%s1708 + $0x130] sm:$0xff]
          %v1748 = vld [vmem:[%s1708 + $0x138] sm:$0xff]
          %v1749 = vld [vmem:[%s1708 + $0x140] sm:$0xff]
          %v1750 = vld [vmem:[%s1708 + $0x148] sm:$0xff]
          %v1751 = vld [vmem:[%s1708 + $0x150] sm:$0xff]
          %v1752 = vld [vmem:[%s1708 + $0x158] sm:$0xff]
          %v1753 = vld [vmem:[%s1708 + $0x160] sm:$0xff]
          %v1754 = vld [vmem:[%s1708 + $0x168] sm:$0xff]
          %v1755 = vld [vmem:[%s1708 + $0x170] sm:$0xff]
          %v1756 = vld [vmem:[%s1708 + $0x178] sm:$0xff]
          %1757 = vmatpush.msra.mxu0 %v1724
          %1758 = vmatpush.msra.mxu0 %v1723
          %1759 = vmatpush.msra.mxu0 %v1722
          %1760 = vmatpush.msra.mxu0 %v1721
          %1761 = vmatpush.msra.mxu0 %v1720
          %1762 = vmatpush.msra.mxu0 %v1719
          %1763 = vmatpush.msra.mxu0 %v1718
          %1764 = vmatpush.msra.mxu0 %v1717
          %1765 = vmatpush.msra.mxu0 %v1716
          %1766 = vmatpush.msra.mxu0 %v1715
          %1767 = vmatpush.msra.mxu0 %v1714
          %1768 = vmatpush.msra.mxu0 %v1713
          %1769 = vmatpush.msra.mxu0 %v1712
          %1770 = vmatpush.msra.mxu0 %v1711
          %1771 = vmatpush.msra.mxu0 %v1710
          %1772 = vmatpush.msra.mxu0 %v1709
          %1773 = vmatmul.f32.gmra.mxu0 %v1544
          %v1774 = vpop.f32.mrf.mxu0
          %v1775 = vadd.f32 0.0, %v1774
          %1776 = vmatmul.f32.gmra.mxu0 %v1545
          %v1777 = vpop.f32.mrf.mxu0
          %v1778 = vadd.f32 0.0, %v1777
          %1779 = vmatmul.f32.gmra.mxu0 %v1546
          %v1780 = vpop.f32.mrf.mxu0
          %v1781 = vadd.f32 0.0, %v1780
          %1782 = vmatmul.f32.gmra.mxu0 %v1547
          %v1783 = vpop.f32.mrf.mxu0
          %v1784 = vadd.f32 0.0, %v1783
          %1785 = vmatmul.f32.gmra.mxu0 %v1548
          %v1786 = vpop.f32.mrf.mxu0
          %v1787 = vadd.f32 0.0, %v1786
          %1788 = vmatmul.f32.gmra.mxu0 %v1549
          %v1789 = vpop.f32.mrf.mxu0
          %v1790 = vadd.f32 0.0, %v1789
          %1791 = vmatmul.f32.gmra.mxu0 %v1550
          %v1792 = vpop.f32.mrf.mxu0
          %v1793 = vadd.f32 0.0, %v1792
          %1794 = vmatmul.f32.gmra.mxu0 %v1551
          %v1795 = vpop.f32.mrf.mxu0
          %v1796 = vadd.f32 0.0, %v1795
          %1797 = vmatmul.f32.gmra.mxu0 %v1552
          %v1798 = vpop.f32.mrf.mxu0
          %v1799 = vadd.f32 0.0, %v1798
          %1800 = vmatmul.f32.gmra.mxu0 %v1553
          %v1801 = vpop.f32.mrf.mxu0
          %v1802 = vadd.f32 0.0, %v1801
          %1803 = vmatmul.f32.gmra.mxu0 %v1554
          %v1804 = vpop.f32.mrf.mxu0
          %v1805 = vadd.f32 0.0, %v1804
          %1806 = vmatmul.f32.gmra.mxu0 %v1555
          %v1807 = vpop.f32.mrf.mxu0
          %v1808 = vadd.f32 0.0, %v1807
          %1809 = vmatmul.f32.gmra.mxu0 %v1556
          %v1810 = vpop.f32.mrf.mxu0
          %v1811 = vadd.f32 0.0, %v1810
          %1812 = vmatmul.f32.gmra.mxu0 %v1557
          %v1813 = vpop.f32.mrf.mxu0
          %v1814 = vadd.f32 0.0, %v1813
          %1815 = vmatmul.f32.gmra.mxu0 %v1558
          %v1816 = vpop.f32.mrf.mxu0
          %v1817 = vadd.f32 0.0, %v1816
          %1818 = vmatmul.f32.gmra.mxu0 %v1559
          %v1819 = vpop.f32.mrf.mxu0
          %v1820 = vadd.f32 0.0, %v1819
          %1821 = vmatmul.f32.gmra.mxu0 %v1560
          %v1822 = vpop.f32.mrf.mxu0
          %v1823 = vadd.f32 0.0, %v1822
          %1824 = vmatmul.f32.gmra.mxu0 %v1561
          %v1825 = vpop.f32.mrf.mxu0
          %v1826 = vadd.f32 0.0, %v1825
          %1827 = vmatmul.f32.gmra.mxu0 %v1562
          %v1828 = vpop.f32.mrf.mxu0
          %v1829 = vadd.f32 0.0, %v1828
          %1830 = vmatmul.f32.gmra.mxu0 %v1563
          %v1831 = vpop.f32.mrf.mxu0
          %v1832 = vadd.f32 0.0, %v1831
          %1833 = vmatmul.f32.gmra.mxu0 %v1564
          %v1834 = vpop.f32.mrf.mxu0
          %v1835 = vadd.f32 0.0, %v1834
          %1836 = vmatmul.f32.gmra.mxu0 %v1565
          %v1837 = vpop.f32.mrf.mxu0
          %v1838 = vadd.f32 0.0, %v1837
          %1839 = vmatmul.f32.gmra.mxu0 %v1566
          %v1840 = vpop.f32.mrf.mxu0
          %v1841 = vadd.f32 0.0, %v1840
          %1842 = vmatmul.f32.gmra.mxu0 %v1567
          %v1843 = vpop.f32.mrf.mxu0
          %v1844 = vadd.f32 0.0, %v1843
          %1845 = vmatmul.f32.gmra.mxu0 %v1568
          %v1846 = vpop.f32.mrf.mxu0
          %v1847 = vadd.f32 0.0, %v1846
          %1848 = vmatmul.f32.gmra.mxu0 %v1569
          %v1849 = vpop.f32.mrf.mxu0
          %v1850 = vadd.f32 0.0, %v1849
          %1851 = vmatmul.f32.gmra.mxu0 %v1570
          %v1852 = vpop.f32.mrf.mxu0
          %v1853 = vadd.f32 0.0, %v1852
          %1854 = vmatmul.f32.gmra.mxu0 %v1571
          %v1855 = vpop.f32.mrf.mxu0
          %v1856 = vadd.f32 0.0, %v1855
          %1857 = vmatmul.f32.gmra.mxu0 %v1572
          %v1858 = vpop.f32.mrf.mxu0
          %v1859 = vadd.f32 0.0, %v1858
          %1860 = vmatmul.f32.gmra.mxu0 %v1573
          %v1861 = vpop.f32.mrf.mxu0
          %v1862 = vadd.f32 0.0, %v1861
          %1863 = vmatmul.f32.gmra.mxu0 %v1574
          %v1864 = vpop.f32.mrf.mxu0
          %v1865 = vadd.f32 0.0, %v1864
          %1866 = vmatmul.f32.gmra.mxu0 %v1575
          %v1867 = vpop.f32.mrf.mxu0
          %v1868 = vadd.f32 0.0, %v1867
          %1869 = vdwg.mxu0
          %1870 = vmatpush.msra.mxu0 %v1740
          %1871 = vmatpush.msra.mxu0 %v1739
          %1872 = vmatpush.msra.mxu0 %v1738
          %1873 = vmatpush.msra.mxu0 %v1737
          %1874 = vmatpush.msra.mxu0 %v1736
          %1875 = vmatpush.msra.mxu0 %v1735
          %1876 = vmatpush.msra.mxu0 %v1734
          %1877 = vmatpush.msra.mxu0 %v1733
          %1878 = vmatpush.msra.mxu0 %v1732
          %1879 = vmatpush.msra.mxu0 %v1731
          %1880 = vmatpush.msra.mxu0 %v1730
          %1881 = vmatpush.msra.mxu0 %v1729
          %1882 = vmatpush.msra.mxu0 %v1728
          %1883 = vmatpush.msra.mxu0 %v1727
          %1884 = vmatpush.msra.mxu0 %v1726
          %1885 = vmatpush.msra.mxu0 %v1725
          %1886 = vmatmul.f32.gmra.mxu0 %v1577
          %v1887 = vpop.f32.mrf.mxu0
          %v1888 = vadd.f32 %v1775, %v1887
          %1889 = vmatmul.f32.gmra.mxu0 %v1578
          %v1890 = vpop.f32.mrf.mxu0
          %v1891 = vadd.f32 %v1778, %v1890
          %1892 = vmatmul.f32.gmra.mxu0 %v1579
          %v1893 = vpop.f32.mrf.mxu0
          %v1894 = vadd.f32 %v1781, %v1893
          %1895 = vmatmul.f32.gmra.mxu0 %v1580
          %v1896 = vpop.f32.mrf.mxu0
          %v1897 = vadd.f32 %v1784, %v1896
          %1898 = vmatmul.f32.gmra.mxu0 %v1581
          %v1899 = vpop.f32.mrf.mxu0
          %v1900 = vadd.f32 %v1787, %v1899
          %1901 = vmatmul.f32.gmra.mxu0 %v1582
          %v1902 = vpop.f32.mrf.mxu0
          %v1903 = vadd.f32 %v1790, %v1902
          %1904 = vmatmul.f32.gmra.mxu0 %v1583
          %v1905 = vpop.f32.mrf.mxu0
          %v1906 = vadd.f32 %v1793, %v1905
          %1907 = vmatmul.f32.gmra.mxu0 %v1584
          %v1908 = vpop.f32.mrf.mxu0
          %v1909 = vadd.f32 %v1796, %v1908
          %1910 = vmatmul.f32.gmra.mxu0 %v1585
          %v1911 = vpop.f32.mrf.mxu0
          %v1912 = vadd.f32 %v1799, %v1911
          %1913 = vmatmul.f32.gmra.mxu0 %v1586
          %v1914 = vpop.f32.mrf.mxu0
          %v1915 = vadd.f32 %v1802, %v1914
          %1916 = vmatmul.f32.gmra.mxu0 %v1587
          %v1917 = vpop.f32.mrf.mxu0
          %v1918 = vadd.f32 %v1805, %v1917
          %1919 = vmatmul.f32.gmra.mxu0 %v1588
          %v1920 = vpop.f32.mrf.mxu0
          %v1921 = vadd.f32 %v1808, %v1920
          %1922 = vmatmul.f32.gmra.mxu0 %v1589
          %v1923 = vpop.f32.mrf.mxu0
          %v1924 = vadd.f32 %v1811, %v1923
          %1925 = vmatmul.f32.gmra.mxu0 %v1590
          %v1926 = vpop.f32.mrf.mxu0
          %v1927 = vadd.f32 %v1814, %v1926
          %1928 = vmatmul.f32.gmra.mxu0 %v1591
          %v1929 = vpop.f32.mrf.mxu0
          %v1930 = vadd.f32 %v1817, %v1929
          %1931 = vmatmul.f32.gmra.mxu0 %v1592
          %v1932 = vpop.f32.mrf.mxu0
          %v1933 = vadd.f32 %v1820, %v1932
          %1934 = vmatmul.f32.gmra.mxu0 %v1593
          %v1935 = vpop.f32.mrf.mxu0
          %v1936 = vadd.f32 %v1823, %v1935
          %1937 = vmatmul.f32.gmra.mxu0 %v1594
          %v1938 = vpop.f32.mrf.mxu0
          %v1939 = vadd.f32 %v1826, %v1938
          %1940 = vmatmul.f32.gmra.mxu0 %v1595
          %v1941 = vpop.f32.mrf.mxu0
          %v1942 = vadd.f32 %v1829, %v1941
          %1943 = vmatmul.f32.gmra.mxu0 %v1596
          %v1944 = vpop.f32.mrf.mxu0
          %v1945 = vadd.f32 %v1832, %v1944
          %1946 = vmatmul.f32.gmra.mxu0 %v1597
          %v1947 = vpop.f32.mrf.mxu0
          %v1948 = vadd.f32 %v1835, %v1947
          %1949 = vmatmul.f32.gmra.mxu0 %v1598
          %v1950 = vpop.f32.mrf.mxu0
          %v1951 = vadd.f32 %v1838, %v1950
          %1952 = vmatmul.f32.gmra.mxu0 %v1599
          %v1953 = vpop.f32.mrf.mxu0
          %v1954 = vadd.f32 %v1841, %v1953
          %1955 = vmatmul.f32.gmra.mxu0 %v1600
          %v1956 = vpop.f32.mrf.mxu0
          %v1957 = vadd.f32 %v1844, %v1956
          %1958 = vmatmul.f32.gmra.mxu0 %v1601
          %v1959 = vpop.f32.mrf.mxu0
          %v1960 = vadd.f32 %v1847, %v1959
          %1961 = vmatmul.f32.gmra.mxu0 %v1602
          %v1962 = vpop.f32.mrf.mxu0
          %v1963 = vadd.f32 %v1850, %v1962
          %1964 = vmatmul.f32.gmra.mxu0 %v1603
          %v1965 = vpop.f32.mrf.mxu0
          %v1966 = vadd.f32 %v1853, %v1965
          %1967 = vmatmul.f32.gmra.mxu0 %v1604
          %v1968 = vpop.f32.mrf.mxu0
          %v1969 = vadd.f32 %v1856, %v1968
          %1970 = vmatmul.f32.gmra.mxu0 %v1605
          %v1971 = vpop.f32.mrf.mxu0
          %v1972 = vadd.f32 %v1859, %v1971
          %1973 = vmatmul.f32.gmra.mxu0 %v1606
          %v1974 = vpop.f32.mrf.mxu0
          %v1975 = vadd.f32 %v1862, %v1974
          %1976 = vmatmul.f32.gmra.mxu0 %v1607
          %v1977 = vpop.f32.mrf.mxu0
          %v1978 = vadd.f32 %v1865, %v1977
          %1979 = vmatmul.f32.gmra.mxu0 %v1608
          %v1980 = vpop.f32.mrf.mxu0
          %v1981 = vadd.f32 %v1868, %v1980
          %1982 = vdwg.mxu0
          %1983 = vmatpush.msra.mxu0 %v1756
          %1984 = vmatpush.msra.mxu0 %v1755
          %1985 = vmatpush.msra.mxu0 %v1754
          %1986 = vmatpush.msra.mxu0 %v1753
          %1987 = vmatpush.msra.mxu0 %v1752
          %1988 = vmatpush.msra.mxu0 %v1751
          %1989 = vmatpush.msra.mxu0 %v1750
          %1990 = vmatpush.msra.mxu0 %v1749
          %1991 = vmatpush.msra.mxu0 %v1748
          %1992 = vmatpush.msra.mxu0 %v1747
          %1993 = vmatpush.msra.mxu0 %v1746
          %1994 = vmatpush.msra.mxu0 %v1745
          %1995 = vmatpush.msra.mxu0 %v1744
          %1996 = vmatpush.msra.mxu0 %v1743
          %1997 = vmatpush.msra.mxu0 %v1742
          %1998 = vmatpush.msra.mxu0 %v1741
          %1999 = vmatmul.f32.gmra.mxu0 %v1643
          %v2000 = vpop.f32.mrf.mxu0
          %v2001 = vadd.f32 %v1888, %v2000
          %2002 = vmatmul.f32.gmra.mxu0 %v1644
          %v2003 = vpop.f32.mrf.mxu0
          %v2004 = vadd.f32 %v1891, %v2003
          %2005 = vmatmul.f32.gmra.mxu0 %v1645
          %v2006 = vpop.f32.mrf.mxu0
          %v2007 = vadd.f32 %v1894, %v2006
          %2008 = vmatmul.f32.gmra.mxu0 %v1646
          %v2009 = vpop.f32.mrf.mxu0
          %v2010 = vadd.f32 %v1897, %v2009
          %2011 = vmatmul.f32.gmra.mxu0 %v1647
          %v2012 = vpop.f32.mrf.mxu0
          %v2013 = vadd.f32 %v1900, %v2012
          %2014 = vmatmul.f32.gmra.mxu0 %v1648
          %v2015 = vpop.f32.mrf.mxu0
          %v2016 = vadd.f32 %v1903, %v2015
          %2017 = vmatmul.f32.gmra.mxu0 %v1649
          %v2018 = vpop.f32.mrf.mxu0
          %v2019 = vadd.f32 %v1906, %v2018
          %2020 = vmatmul.f32.gmra.mxu0 %v1650
          %v2021 = vpop.f32.mrf.mxu0
          %v2022 = vadd.f32 %v1909, %v2021
          %2023 = vmatmul.f32.gmra.mxu0 %v1651
          %v2024 = vpop.f32.mrf.mxu0
          %v2025 = vadd.f32 %v1912, %v2024
          %2026 = vmatmul.f32.gmra.mxu0 %v1652
          %v2027 = vpop.f32.mrf.mxu0
          %v2028 = vadd.f32 %v1915, %v2027
          %2029 = vmatmul.f32.gmra.mxu0 %v1653
          %v2030 = vpop.f32.mrf.mxu0
          %v2031 = vadd.f32 %v1918, %v2030
          %2032 = vmatmul.f32.gmra.mxu0 %v1654
          %v2033 = vpop.f32.mrf.mxu0
          %v2034 = vadd.f32 %v1921, %v2033
          %2035 = vmatmul.f32.gmra.mxu0 %v1655
          %v2036 = vpop.f32.mrf.mxu0
          %v2037 = vadd.f32 %v1924, %v2036
          %2038 = vmatmul.f32.gmra.mxu0 %v1656
          %v2039 = vpop.f32.mrf.mxu0
          %v2040 = vadd.f32 %v1927, %v2039
          %2041 = vmatmul.f32.gmra.mxu0 %v1657
          %v2042 = vpop.f32.mrf.mxu0
          %v2043 = vadd.f32 %v1930, %v2042
          %2044 = vmatmul.f32.gmra.mxu0 %v1658
          %v2045 = vpop.f32.mrf.mxu0
          %v2046 = vadd.f32 %v1933, %v2045
          %2047 = vmatmul.f32.gmra.mxu0 %v1659
          %v2048 = vpop.f32.mrf.mxu0
          %v2049 = vadd.f32 %v1936, %v2048
          %2050 = vmatmul.f32.gmra.mxu0 %v1660
          %v2051 = vpop.f32.mrf.mxu0
          %v2052 = vadd.f32 %v1939, %v2051
          %2053 = vmatmul.f32.gmra.mxu0 %v1661
          %v2054 = vpop.f32.mrf.mxu0
          %v2055 = vadd.f32 %v1942, %v2054
          %2056 = vmatmul.f32.gmra.mxu0 %v1662
          %v2057 = vpop.f32.mrf.mxu0
          %v2058 = vadd.f32 %v1945, %v2057
          %2059 = vmatmul.f32.gmra.mxu0 %v1663
          %v2060 = vpop.f32.mrf.mxu0
          %v2061 = vadd.f32 %v1948, %v2060
          %2062 = vmatmul.f32.gmra.mxu0 %v1664
          %v2063 = vpop.f32.mrf.mxu0
          %v2064 = vadd.f32 %v1951, %v2063
          %2065 = vmatmul.f32.gmra.mxu0 %v1665
          %v2066 = vpop.f32.mrf.mxu0
          %v2067 = vadd.f32 %v1954, %v2066
          %2068 = vmatmul.f32.gmra.mxu0 %v1666
          %v2069 = vpop.f32.mrf.mxu0
          %v2070 = vadd.f32 %v1957, %v2069
          %2071 = vmatmul.f32.gmra.mxu0 %v1667
          %v2072 = vpop.f32.mrf.mxu0
          %v2073 = vadd.f32 %v1960, %v2072
          %2074 = vmatmul.f32.gmra.mxu0 %v1668
          %v2075 = vpop.f32.mrf.mxu0
          %v2076 = vadd.f32 %v1963, %v2075
          %2077 = vmatmul.f32.gmra.mxu0 %v1669
          %v2078 = vpop.f32.mrf.mxu0
          %v2079 = vadd.f32 %v1966, %v2078
          %2080 = vmatmul.f32.gmra.mxu0 %v1670
          %v2081 = vpop.f32.mrf.mxu0
          %v2082 = vadd.f32 %v1969, %v2081
          %2083 = vmatmul.f32.gmra.mxu0 %v1671
          %v2084 = vpop.f32.mrf.mxu0
          %v2085 = vadd.f32 %v1972, %v2084
          %2086 = vmatmul.f32.gmra.mxu0 %v1672
          %v2087 = vpop.f32.mrf.mxu0
          %v2088 = vadd.f32 %v1975, %v2087
          %2089 = vmatmul.f32.gmra.mxu0 %v1673
          %v2090 = vpop.f32.mrf.mxu0
          %v2091 = vadd.f32 %v1978, %v2090
          %2092 = vmatmul.f32.gmra.mxu0 %v1674
          %v2093 = vpop.f32.mrf.mxu0
          %v2094 = vadd.f32 %v1981, %v2093
          %2095 = vdwg.mxu0
          %v2096 = vadd.f32 %v1676, %v2001
          %v2097 = vadd.f32 %v1677, %v2004
          %v2098 = vadd.f32 %v1678, %v2007
          %v2099 = vadd.f32 %v1679, %v2010
          %v2100 = vadd.f32 %v1680, %v2013
          %v2101 = vadd.f32 %v1681, %v2016
          %v2102 = vadd.f32 %v1682, %v2019
          %v2103 = vadd.f32 %v1683, %v2022
          %v2104 = vadd.f32 %v1684, %v2025
          %v2105 = vadd.f32 %v1685, %v2028
          %v2106 = vadd.f32 %v1686, %v2031
          %v2107 = vadd.f32 %v1687, %v2034
          %v2108 = vadd.f32 %v1688, %v2037
          %v2109 = vadd.f32 %v1689, %v2040
          %v2110 = vadd.f32 %v1690, %v2043
          %v2111 = vadd.f32 %v1691, %v2046
          %v2112 = vadd.f32 %v1692, %v2049
          %v2113 = vadd.f32 %v1693, %v2052
          %v2114 = vadd.f32 %v1694, %v2055
          %v2115 = vadd.f32 %v1695, %v2058
          %v2116 = vadd.f32 %v1696, %v2061
          %v2117 = vadd.f32 %v1697, %v2064
          %v2118 = vadd.f32 %v1698, %v2067
          %v2119 = vadd.f32 %v1699, %v2070
          %v2120 = vadd.f32 %v1700, %v2073
          %v2121 = vadd.f32 %v1701, %v2076
          %v2122 = vadd.f32 %v1702, %v2079
          %v2123 = vadd.f32 %v1703, %v2082
          %v2124 = vadd.f32 %v1704, %v2085
          %v2125 = vadd.f32 %v1705, %v2088
          %v2126 = vadd.f32 %v1706, %v2091
          %v2127 = vadd.f32 %v1707, %v2094
          %2128 = vst [vmem:[#allocation3] sm:$0xff] %v2096
          %2129 = vst [vmem:[#allocation3 + $0x8] sm:$0xff] %v2097
          %2130 = vst [vmem:[#allocation3 + $0x10] sm:$0xff] %v2098
          %2131 = vst [vmem:[#allocation3 + $0x18] sm:$0xff] %v2099
          %2132 = vst [vmem:[#allocation3 + $0x20] sm:$0xff] %v2100
          %2133 = vst [vmem:[#allocation3 + $0x28] sm:$0xff] %v2101
          %2134 = vst [vmem:[#allocation3 + $0x30] sm:$0xff] %v2102
          %2135 = vst [vmem:[#allocation3 + $0x38] sm:$0xff] %v2103
          %2136 = vst [vmem:[#allocation3 + $0x40] sm:$0xff] %v2104
          %2137 = vst [vmem:[#allocation3 + $0x48] sm:$0xff] %v2105
          %2138 = vst [vmem:[#allocation3 + $0x50] sm:$0xff] %v2106
          %2139 = vst [vmem:[#allocation3 + $0x58] sm:$0xff] %v2107
          %2140 = vst [vmem:[#allocation3 + $0x60] sm:$0xff] %v2108
          %2141 = vst [vmem:[#allocation3 + $0x68] sm:$0xff] %v2109
          %2142 = vst [vmem:[#allocation3 + $0x70] sm:$0xff] %v2110
          %2143 = vst [vmem:[#allocation3 + $0x78] sm:$0xff] %v2111
          %2144 = vst [vmem:[#allocation3 + $0x80] sm:$0xff] %v2112
          %2145 = vst [vmem:[#allocation3 + $0x88] sm:$0xff] %v2113
          %2146 = vst [vmem:[#allocation3 + $0x90] sm:$0xff] %v2114
          %2147 = vst [vmem:[#allocation3 + $0x98] sm:$0xff] %v2115
          %2148 = vst [vmem:[#allocation3 + $0xa0] sm:$0xff] %v2116
          %2149 = vst [vmem:[#allocation3 + $0xa8] sm:$0xff] %v2117
          %2150 = vst [vmem:[#allocation3 + $0xb0] sm:$0xff] %v2118
          %2151 = vst [vmem:[#allocation3 + $0xb8] sm:$0xff] %v2119
          %2152 = vst [vmem:[#allocation3 + $0xc0] sm:$0xff] %v2120
          %2153 = vst [vmem:[#allocation3 + $0xc8] sm:$0xff] %v2121
          %2154 = vst [vmem:[#allocation3 + $0xd0] sm:$0xff] %v2122
          %2155 = vst [vmem:[#allocation3 + $0xd8] sm:$0xff] %v2123
          %2156 = vst [vmem:[#allocation3 + $0xe0] sm:$0xff] %v2124
          %2157 = vst [vmem:[#allocation3 + $0xe8] sm:$0xff] %v2125
          %2158 = vst [vmem:[#allocation3 + $0xf0] sm:$0xff] %v2126
          %2159 = vst [vmem:[#allocation3 + $0xf8] sm:$0xff] %v2127
        $region81: #{tpu_custom_call.1} parent=59 // loop_footer
          %s1506 = sadd.s32 1, %s1502
        $region82: #{tpu_custom_call.1} parent=59 // loop_footer_branch
          %1501 = sbr.rel target = $region78
        $region83: #{tpu_custom_call.1} parent=59 // loop_exit
          _
        %v2160 = vld [vmem:[#allocation3] sm:$0xff]
        %v2161 = vld [vmem:[#allocation3 + $0x8] sm:$0xff]
        %v2162 = vld [vmem:[#allocation3 + $0x10] sm:$0xff]
        %v2163 = vld [vmem:[#allocation3 + $0x18] sm:$0xff]
        %v2164 = vld [vmem:[#allocation3 + $0x20] sm:$0xff]
        %v2165 = vld [vmem:[#allocation3 + $0x28] sm:$0xff]
        %v2166 = vld [vmem:[#allocation3 + $0x30] sm:$0xff]
        %v2167 = vld [vmem:[#allocation3 + $0x38] sm:$0xff]
        %v2168 = vld [vmem:[#allocation3 + $0x40] sm:$0xff]
        %v2169 = vld [vmem:[#allocation3 + $0x48] sm:$0xff]
        %v2170 = vld [vmem:[#allocation3 + $0x50] sm:$0xff]
        %v2171 = vld [vmem:[#allocation3 + $0x58] sm:$0xff]
        %v2172 = vld [vmem:[#allocation3 + $0x60] sm:$0xff]
        %v2173 = vld [vmem:[#allocation3 + $0x68] sm:$0xff]
        %v2174 = vld [vmem:[#allocation3 + $0x70] sm:$0xff]
        %v2175 = vld [vmem:[#allocation3 + $0x78] sm:$0xff]
        %v2176 = vld [vmem:[#allocation3 + $0x80] sm:$0xff]
        %v2177 = vld [vmem:[#allocation3 + $0x88] sm:$0xff]
        %v2178 = vld [vmem:[#allocation3 + $0x90] sm:$0xff]
        %v2179 = vld [vmem:[#allocation3 + $0x98] sm:$0xff]
        %v2180 = vld [vmem:[#allocation3 + $0xa0] sm:$0xff]
        %v2181 = vld [vmem:[#allocation3 + $0xa8] sm:$0xff]
        %v2182 = vld [vmem:[#allocation3 + $0xb0] sm:$0xff]
        %v2183 = vld [vmem:[#allocation3 + $0xb8] sm:$0xff]
        %v2184 = vld [vmem:[#allocation3 + $0xc0] sm:$0xff]
        %v2185 = vld [vmem:[#allocation3 + $0xc8] sm:$0xff]
        %v2186 = vld [vmem:[#allocation3 + $0xd0] sm:$0xff]
        %v2187 = vld [vmem:[#allocation3 + $0xd8] sm:$0xff]
        %v2188 = vld [vmem:[#allocation3 + $0xe0] sm:$0xff]
        %v2189 = vld [vmem:[#allocation3 + $0xe8] sm:$0xff]
        %v2190 = vld [vmem:[#allocation3 + $0xf0] sm:$0xff]
        %v2191 = vld [vmem:[#allocation3 + $0xf8] sm:$0xff]
        %v2192 = vld [vmem:[%s5] sm:$0x1]
        %v2193 = vld [vmem:[%s6] sm:$0x1]
        %v2194 = vadd.f32 %v2160, %v2161
        %v2195 = vadd.f32 %v2194, %v2162
        %v2196 = vadd.f32 %v2195, %v2163
        %v2197 = vadd.f32 %v2196, %v2164
        %v2198 = vadd.f32 %v2197, %v2165
        %v2199 = vadd.f32 %v2198, %v2166
        %v2200 = vadd.f32 %v2199, %v2167
        %v2201 = vadd.f32 %v2200, %v2168
        %v2202 = vadd.f32 %v2201, %v2169
        %v2203 = vadd.f32 %v2202, %v2170
        %v2204 = vadd.f32 %v2203, %v2171
        %v2205 = vadd.f32 %v2204, %v2172
        %v2206 = vadd.f32 %v2205, %v2173
        %v2207 = vadd.f32 %v2206, %v2174
        %v2208 = vadd.f32 %v2207, %v2175
        %v2209 = vadd.f32 %v2208, %v2176
        %v2210 = vadd.f32 %v2209, %v2177
        %v2211 = vadd.f32 %v2210, %v2178
        %v2212 = vadd.f32 %v2211, %v2179
        %v2213 = vadd.f32 %v2212, %v2180
        %v2214 = vadd.f32 %v2213, %v2181
        %v2215 = vadd.f32 %v2214, %v2182
        %v2216 = vadd.f32 %v2215, %v2183
        %v2217 = vadd.f32 %v2216, %v2184
        %v2218 = vadd.f32 %v2217, %v2185
        %v2219 = vadd.f32 %v2218, %v2186
        %v2220 = vadd.f32 %v2219, %v2187
        %v2221 = vadd.f32 %v2220, %v2188
        %v2222 = vadd.f32 %v2221, %v2189
        %v2223 = vadd.f32 %v2222, %v2190
        %v2224 = vadd.f32 %v2223, %v2191
        %v2225 = vrot.slane %v2224, 4
        %v2226 = vadd.f32 %v2224, %v2225
        %v2227 = vrot.slane %v2226, 2
        %v2228 = vadd.f32 %v2226, %v2227
        %v2229 = vrot.slane %v2228, 1
        %v2230 = vadd.f32 %v2228, %v2229
        %v2231 = vmul.f32 %v2160, %v2160
        %v2232 = vmul.f32 %v2161, %v2161
        %v2233 = vmul.f32 %v2162, %v2162
        %v2234 = vmul.f32 %v2163, %v2163
        %v2235 = vmul.f32 %v2164, %v2164
        %v2236 = vmul.f32 %v2165, %v2165
        %v2237 = vmul.f32 %v2166, %v2166
        %v2238 = vmul.f32 %v2167, %v2167
        %v2239 = vmul.f32 %v2168, %v2168
        %v2240 = vmul.f32 %v2169, %v2169
        %v2241 = vmul.f32 %v2170, %v2170
        %v2242 = vmul.f32 %v2171, %v2171
        %v2243 = vmul.f32 %v2172, %v2172
        %v2244 = vmul.f32 %v2173, %v2173
        %v2245 = vmul.f32 %v2174, %v2174
        %v2246 = vmul.f32 %v2175, %v2175
        %v2247 = vmul.f32 %v2176, %v2176
        %v2248 = vmul.f32 %v2177, %v2177
        %v2249 = vmul.f32 %v2178, %v2178
        %v2250 = vmul.f32 %v2179, %v2179
        %v2251 = vmul.f32 %v2180, %v2180
        %v2252 = vmul.f32 %v2181, %v2181
        %v2253 = vmul.f32 %v2182, %v2182
        %v2254 = vmul.f32 %v2183, %v2183
        %v2255 = vmul.f32 %v2184, %v2184
        %v2256 = vmul.f32 %v2185, %v2185
        %v2257 = vmul.f32 %v2186, %v2186
        %v2258 = vmul.f32 %v2187, %v2187
        %v2259 = vmul.f32 %v2188, %v2188
        %v2260 = vmul.f32 %v2189, %v2189
        %v2261 = vmul.f32 %v2190, %v2190
        %v2262 = vmul.f32 %v2191, %v2191
        %v2263 = vadd.f32 %v2231, %v2232
        %v2264 = vadd.f32 %v2263, %v2233
        %v2265 = vadd.f32 %v2264, %v2234
        %v2266 = vadd.f32 %v2265, %v2235
        %v2267 = vadd.f32 %v2266, %v2236
        %v2268 = vadd.f32 %v2267, %v2237
        %v2269 = vadd.f32 %v2268, %v2238
        %v2270 = vadd.f32 %v2269, %v2239
        %v2271 = vadd.f32 %v2270, %v2240
        %v2272 = vadd.f32 %v2271, %v2241
        %v2273 = vadd.f32 %v2272, %v2242
        %v2274 = vadd.f32 %v2273, %v2243
        %v2275 = vadd.f32 %v2274, %v2244
        %v2276 = vadd.f32 %v2275, %v2245
        %v2277 = vadd.f32 %v2276, %v2246
        %v2278 = vadd.f32 %v2277, %v2247
        %v2279 = vadd.f32 %v2278, %v2248
        %v2280 = vadd.f32 %v2279, %v2249
        %v2281 = vadd.f32 %v2280, %v2250
        %v2282 = vadd.f32 %v2281, %v2251
        %v2283 = vadd.f32 %v2282, %v2252
        %v2284 = vadd.f32 %v2283, %v2253
        %v2285 = vadd.f32 %v2284, %v2254
        %v2286 = vadd.f32 %v2285, %v2255
        %v2287 = vadd.f32 %v2286, %v2256
        %v2288 = vadd.f32 %v2287, %v2257
        %v2289 = vadd.f32 %v2288, %v2258
        %v2290 = vadd.f32 %v2289, %v2259
        %v2291 = vadd.f32 %v2290, %v2260
        %v2292 = vadd.f32 %v2291, %v2261
        %v2293 = vadd.f32 %v2292, %v2262
        %v2294 = vrot.slane %v2293, 4
        %v2295 = vadd.f32 %v2293, %v2294
        %v2296 = vrot.slane %v2295, 2
        %v2297 = vadd.f32 %v2295, %v2296
        %v2298 = vrot.slane %v2297, 1
        %v2299 = vadd.f32 %v2297, %v2298
        %v2300 = vmul.f32 %v2230, 0.00390625
        %v2301 = vmul.f32 %v2299, 0.00390625
        %v2302 = vmul.f32 %v2300, %v2300
        %v2303 = vsub.f32 %v2301, %v2302
        %v2304 = vmax.f32 %v2303, 0.0
        %v2305 = vadd.f32 %v2304, 1e-05
        %v2306 = vrsqrt.pop %v2305
        %v2307 = vmul.f32 %v2306, %v2305
        %v2308 = vmul.f32 %v2307, %v2306
        %v2309 = vmul.f32 0.5, %v2308
        %v2310 = vsub.f32 1.5, %v2309
        %v2311 = vmul.f32 %v2306, %v2310
        %vm2312 = vweird.f32 %v2305
        %vm2313 = vweird.f32 %v2306
        %vm2314 = vmor %vm2312, %vm2313
        %v2315 = vsel %vm2314, %v2306, %v2311
        %v2316 = vmul.f32 %v2192, %v2315
        %v2317 = vmul.f32 %v2300, %v2316
        %v2318 = vsub.f32 %v2193, %v2317
        %v2320 = vperm.slane %v2316, 0
        %v2322 = vmul.f32 %v2160, %v2320
        %v2323 = vmul.f32 %v2161, %v2320
        %v2324 = vmul.f32 %v2162, %v2320
        %v2325 = vmul.f32 %v2163, %v2320
        %v2326 = vmul.f32 %v2164, %v2320
        %v2327 = vmul.f32 %v2165, %v2320
        %v2328 = vmul.f32 %v2166, %v2320
        %v2329 = vmul.f32 %v2167, %v2320
        %v2330 = vmul.f32 %v2168, %v2320
        %v2331 = vmul.f32 %v2169, %v2320
        %v2332 = vmul.f32 %v2170, %v2320
        %v2333 = vmul.f32 %v2171, %v2320
        %v2334 = vmul.f32 %v2172, %v2320
        %v2335 = vmul.f32 %v2173, %v2320
        %v2336 = vmul.f32 %v2174, %v2320
        %v2337 = vmul.f32 %v2175, %v2320
        %v2338 = vmul.f32 %v2176, %v2320
        %v2339 = vmul.f32 %v2177, %v2320
        %v2340 = vmul.f32 %v2178, %v2320
        %v2341 = vmul.f32 %v2179, %v2320
        %v2342 = vmul.f32 %v2180, %v2320
        %v2343 = vmul.f32 %v2181, %v2320
        %v2344 = vmul.f32 %v2182, %v2320
        %v2345 = vmul.f32 %v2183, %v2320
        %v2346 = vmul.f32 %v2184, %v2320
        %v2347 = vmul.f32 %v2185, %v2320
        %v2348 = vmul.f32 %v2186, %v2320
        %v2349 = vmul.f32 %v2187, %v2320
        %v2350 = vmul.f32 %v2188, %v2320
        %v2351 = vmul.f32 %v2189, %v2320
        %v2352 = vmul.f32 %v2190, %v2320
        %v2353 = vmul.f32 %v2191, %v2320
        %v2355 = vperm.slane %v2318, 0
        %v2357 = vadd.f32 %v2322, %v2355
        %v2358 = vadd.f32 %v2323, %v2355
        %v2359 = vadd.f32 %v2324, %v2355
        %v2360 = vadd.f32 %v2325, %v2355
        %v2361 = vadd.f32 %v2326, %v2355
        %v2362 = vadd.f32 %v2327, %v2355
        %v2363 = vadd.f32 %v2328, %v2355
        %v2364 = vadd.f32 %v2329, %v2355
        %v2365 = vadd.f32 %v2330, %v2355
        %v2366 = vadd.f32 %v2331, %v2355
        %v2367 = vadd.f32 %v2332, %v2355
        %v2368 = vadd.f32 %v2333, %v2355
        %v2369 = vadd.f32 %v2334, %v2355
        %v2370 = vadd.f32 %v2335, %v2355
        %v2371 = vadd.f32 %v2336, %v2355
        %v2372 = vadd.f32 %v2337, %v2355
        %v2373 = vadd.f32 %v2338, %v2355
        %v2374 = vadd.f32 %v2339, %v2355
        %v2375 = vadd.f32 %v2340, %v2355
        %v2376 = vadd.f32 %v2341, %v2355
        %v2377 = vadd.f32 %v2342, %v2355
        %v2378 = vadd.f32 %v2343, %v2355
        %v2379 = vadd.f32 %v2344, %v2355
        %v2380 = vadd.f32 %v2345, %v2355
        %v2381 = vadd.f32 %v2346, %v2355
        %v2382 = vadd.f32 %v2347, %v2355
        %v2383 = vadd.f32 %v2348, %v2355
        %v2384 = vadd.f32 %v2349, %v2355
        %v2385 = vadd.f32 %v2350, %v2355
        %v2386 = vadd.f32 %v2351, %v2355
        %v2387 = vadd.f32 %v2352, %v2355
        %v2388 = vadd.f32 %v2353, %v2355
        %v2389 = vmax.f32 %v2357, 0.0
        %v2390 = vmax.f32 %v2358, 0.0
        %v2391 = vmax.f32 %v2359, 0.0
        %v2392 = vmax.f32 %v2360, 0.0
        %v2393 = vmax.f32 %v2361, 0.0
        %v2394 = vmax.f32 %v2362, 0.0
        %v2395 = vmax.f32 %v2363, 0.0
        %v2396 = vmax.f32 %v2364, 0.0
        %v2397 = vmax.f32 %v2365, 0.0
        %v2398 = vmax.f32 %v2366, 0.0
        %v2399 = vmax.f32 %v2367, 0.0
        %v2400 = vmax.f32 %v2368, 0.0
        %v2401 = vmax.f32 %v2369, 0.0
        %v2402 = vmax.f32 %v2370, 0.0
        %v2403 = vmax.f32 %v2371, 0.0
        %v2404 = vmax.f32 %v2372, 0.0
        %v2405 = vmax.f32 %v2373, 0.0
        %v2406 = vmax.f32 %v2374, 0.0
        %v2407 = vmax.f32 %v2375, 0.0
        %v2408 = vmax.f32 %v2376, 0.0
        %v2409 = vmax.f32 %v2377, 0.0
        %v2410 = vmax.f32 %v2378, 0.0
        %v2411 = vmax.f32 %v2379, 0.0
        %v2412 = vmax.f32 %v2380, 0.0
        %v2413 = vmax.f32 %v2381, 0.0
        %v2414 = vmax.f32 %v2382, 0.0
        %v2415 = vmax.f32 %v2383, 0.0
        %v2416 = vmax.f32 %v2384, 0.0
        %v2417 = vmax.f32 %v2385, 0.0
        %v2418 = vmax.f32 %v2386, 0.0
        %v2419 = vmax.f32 %v2387, 0.0
        %v2420 = vmax.f32 %v2388, 0.0
        %v2421 = vld [vmem:[#allocation10] sm:$0xff]
        %v2422 = vld [vmem:[#allocation10 + $0x8] sm:$0xff]
        %v2423 = vld [vmem:[#allocation10 + $0x10] sm:$0xff]
        %v2424 = vld [vmem:[#allocation10 + $0x18] sm:$0xff]
        %v2425 = vld [vmem:[#allocation10 + $0x20] sm:$0xff]
        %v2426 = vld [vmem:[#allocation10 + $0x28] sm:$0xff]
        %v2427 = vld [vmem:[#allocation10 + $0x30] sm:$0xff]
        %v2428 = vld [vmem:[#allocation10 + $0x38] sm:$0xff]
        %v2429 = vld [vmem:[#allocation10 + $0x40] sm:$0xff]
        %v2430 = vld [vmem:[#allocation10 + $0x48] sm:$0xff]
        %v2431 = vld [vmem:[#allocation10 + $0x50] sm:$0xff]
        %v2432 = vld [vmem:[#allocation10 + $0x58] sm:$0xff]
        %v2433 = vld [vmem:[#allocation10 + $0x60] sm:$0xff]
        %v2434 = vld [vmem:[#allocation10 + $0x68] sm:$0xff]
        %v2435 = vld [vmem:[#allocation10 + $0x70] sm:$0xff]
        %v2436 = vld [vmem:[#allocation10 + $0x78] sm:$0xff]
        %2437 = vmatpush.msra.mxu0 %v2436
        %2438 = vmatpush.msra.mxu0 %v2435
        %2439 = vmatpush.msra.mxu0 %v2434
        %2440 = vmatpush.msra.mxu0 %v2433
        %2441 = vmatpush.msra.mxu0 %v2432
        %2442 = vmatpush.msra.mxu0 %v2431
        %2443 = vmatpush.msra.mxu0 %v2430
        %2444 = vmatpush.msra.mxu0 %v2429
        %2445 = vmatpush.msra.mxu0 %v2428
        %2446 = vmatpush.msra.mxu0 %v2427
        %2447 = vmatpush.msra.mxu0 %v2426
        %2448 = vmatpush.msra.mxu0 %v2425
        %2449 = vmatpush.msra.mxu0 %v2424
        %2450 = vmatpush.msra.mxu0 %v2423
        %2451 = vmatpush.msra.mxu0 %v2422
        %2452 = vmatpush.msra.mxu0 %v2421
        %2453 = vmatmul.f32.gmra.mxu0 %v2389
        %v2454 = vpop.f32.mrf.mxu0
        %v2455 = vadd.f32 0.0, %v2454
        %2456 = vmatmul.f32.gmra.mxu0 %v2390
        %v2457 = vpop.f32.mrf.mxu0
        %v2458 = vadd.f32 0.0, %v2457
        %2459 = vmatmul.f32.gmra.mxu0 %v2391
        %v2460 = vpop.f32.mrf.mxu0
        %v2461 = vadd.f32 0.0, %v2460
        %2462 = vmatmul.f32.gmra.mxu0 %v2392
        %v2463 = vpop.f32.mrf.mxu0
        %v2464 = vadd.f32 0.0, %v2463
        %2465 = vmatmul.f32.gmra.mxu0 %v2393
        %v2466 = vpop.f32.mrf.mxu0
        %v2467 = vadd.f32 0.0, %v2466
        %2468 = vmatmul.f32.gmra.mxu0 %v2394
        %v2469 = vpop.f32.mrf.mxu0
        %v2470 = vadd.f32 0.0, %v2469
        %2471 = vmatmul.f32.gmra.mxu0 %v2395
        %v2472 = vpop.f32.mrf.mxu0
        %v2473 = vadd.f32 0.0, %v2472
        %2474 = vmatmul.f32.gmra.mxu0 %v2396
        %v2475 = vpop.f32.mrf.mxu0
        %v2476 = vadd.f32 0.0, %v2475
        %2477 = vmatmul.f32.gmra.mxu0 %v2397
        %v2478 = vpop.f32.mrf.mxu0
        %v2479 = vadd.f32 0.0, %v2478
        %2480 = vmatmul.f32.gmra.mxu0 %v2398
        %v2481 = vpop.f32.mrf.mxu0
        %v2482 = vadd.f32 0.0, %v2481
        %2483 = vmatmul.f32.gmra.mxu0 %v2399
        %v2484 = vpop.f32.mrf.mxu0
        %v2485 = vadd.f32 0.0, %v2484
        %2486 = vmatmul.f32.gmra.mxu0 %v2400
        %v2487 = vpop.f32.mrf.mxu0
        %v2488 = vadd.f32 0.0, %v2487
        %2489 = vmatmul.f32.gmra.mxu0 %v2401
        %v2490 = vpop.f32.mrf.mxu0
        %v2491 = vadd.f32 0.0, %v2490
        %2492 = vmatmul.f32.gmra.mxu0 %v2402
        %v2493 = vpop.f32.mrf.mxu0
        %v2494 = vadd.f32 0.0, %v2493
        %2495 = vmatmul.f32.gmra.mxu0 %v2403
        %v2496 = vpop.f32.mrf.mxu0
        %v2497 = vadd.f32 0.0, %v2496
        %2498 = vmatmul.f32.gmra.mxu0 %v2404
        %v2499 = vpop.f32.mrf.mxu0
        %v2500 = vadd.f32 0.0, %v2499
        %2501 = vmatmul.f32.gmra.mxu0 %v2405
        %v2502 = vpop.f32.mrf.mxu0
        %v2503 = vadd.f32 0.0, %v2502
        %2504 = vmatmul.f32.gmra.mxu0 %v2406
        %v2505 = vpop.f32.mrf.mxu0
        %v2506 = vadd.f32 0.0, %v2505
        %2507 = vmatmul.f32.gmra.mxu0 %v2407
        %v2508 = vpop.f32.mrf.mxu0
        %v2509 = vadd.f32 0.0, %v2508
        %2510 = vmatmul.f32.gmra.mxu0 %v2408
        %v2511 = vpop.f32.mrf.mxu0
        %v2512 = vadd.f32 0.0, %v2511
        %2513 = vmatmul.f32.gmra.mxu0 %v2409
        %v2514 = vpop.f32.mrf.mxu0
        %v2515 = vadd.f32 0.0, %v2514
        %2516 = vmatmul.f32.gmra.mxu0 %v2410
        %v2517 = vpop.f32.mrf.mxu0
        %v2518 = vadd.f32 0.0, %v2517
        %2519 = vmatmul.f32.gmra.mxu0 %v2411
        %v2520 = vpop.f32.mrf.mxu0
        %v2521 = vadd.f32 0.0, %v2520
        %2522 = vmatmul.f32.gmra.mxu0 %v2412
        %v2523 = vpop.f32.mrf.mxu0
        %v2524 = vadd.f32 0.0, %v2523
        %2525 = vmatmul.f32.gmra.mxu0 %v2413
        %v2526 = vpop.f32.mrf.mxu0
        %v2527 = vadd.f32 0.0, %v2526
        %2528 = vmatmul.f32.gmra.mxu0 %v2414
        %v2529 = vpop.f32.mrf.mxu0
        %v2530 = vadd.f32 0.0, %v2529
        %2531 = vmatmul.f32.gmra.mxu0 %v2415
        %v2532 = vpop.f32.mrf.mxu0
        %v2533 = vadd.f32 0.0, %v2532
        %2534 = vmatmul.f32.gmra.mxu0 %v2416
        %v2535 = vpop.f32.mrf.mxu0
        %v2536 = vadd.f32 0.0, %v2535
        %2537 = vmatmul.f32.gmra.mxu0 %v2417
        %v2538 = vpop.f32.mrf.mxu0
        %v2539 = vadd.f32 0.0, %v2538
        %2540 = vmatmul.f32.gmra.mxu0 %v2418
        %v2541 = vpop.f32.mrf.mxu0
        %v2542 = vadd.f32 0.0, %v2541
        %2543 = vmatmul.f32.gmra.mxu0 %v2419
        %v2544 = vpop.f32.mrf.mxu0
        %v2545 = vadd.f32 0.0, %v2544
        %2546 = vmatmul.f32.gmra.mxu0 %v2420
        %v2547 = vpop.f32.mrf.mxu0
        %v2548 = vadd.f32 0.0, %v2547
        %2549 = vdwg.mxu0
        %v2550 = vld [vmem:[%s8] sm:$0x1]
        %v2551 = vld [vmem:[%s9] sm:$0x1]
        %v2552 = vadd.f32 %v2455, %v2458
        %v2553 = vadd.f32 %v2552, %v2461
        %v2554 = vadd.f32 %v2553, %v2464
        %v2555 = vadd.f32 %v2554, %v2467
        %v2556 = vadd.f32 %v2555, %v2470
        %v2557 = vadd.f32 %v2556, %v2473
        %v2558 = vadd.f32 %v2557, %v2476
        %v2559 = vadd.f32 %v2558, %v2479
        %v2560 = vadd.f32 %v2559, %v2482
        %v2561 = vadd.f32 %v2560, %v2485
        %v2562 = vadd.f32 %v2561, %v2488
        %v2563 = vadd.f32 %v2562, %v2491
        %v2564 = vadd.f32 %v2563, %v2494
        %v2565 = vadd.f32 %v2564, %v2497
        %v2566 = vadd.f32 %v2565, %v2500
        %v2567 = vadd.f32 %v2566, %v2503
        %v2568 = vadd.f32 %v2567, %v2506
        %v2569 = vadd.f32 %v2568, %v2509
        %v2570 = vadd.f32 %v2569, %v2512
        %v2571 = vadd.f32 %v2570, %v2515
        %v2572 = vadd.f32 %v2571, %v2518
        %v2573 = vadd.f32 %v2572, %v2521
        %v2574 = vadd.f32 %v2573, %v2524
        %v2575 = vadd.f32 %v2574, %v2527
        %v2576 = vadd.f32 %v2575, %v2530
        %v2577 = vadd.f32 %v2576, %v2533
        %v2578 = vadd.f32 %v2577, %v2536
        %v2579 = vadd.f32 %v2578, %v2539
        %v2580 = vadd.f32 %v2579, %v2542
        %v2581 = vadd.f32 %v2580, %v2545
        %v2582 = vadd.f32 %v2581, %v2548
        %v2583 = vrot.slane %v2582, 4
        %v2584 = vadd.f32 %v2582, %v2583
        %v2585 = vrot.slane %v2584, 2
        %v2586 = vadd.f32 %v2584, %v2585
        %v2587 = vrot.slane %v2586, 1
        %v2588 = vadd.f32 %v2586, %v2587
        %v2589 = vmul.f32 %v2455, %v2455
        %v2590 = vmul.f32 %v2458, %v2458
        %v2591 = vmul.f32 %v2461, %v2461
        %v2592 = vmul.f32 %v2464, %v2464
        %v2593 = vmul.f32 %v2467, %v2467
        %v2594 = vmul.f32 %v2470, %v2470
        %v2595 = vmul.f32 %v2473, %v2473
        %v2596 = vmul.f32 %v2476, %v2476
        %v2597 = vmul.f32 %v2479, %v2479
        %v2598 = vmul.f32 %v2482, %v2482
        %v2599 = vmul.f32 %v2485, %v2485
        %v2600 = vmul.f32 %v2488, %v2488
        %v2601 = vmul.f32 %v2491, %v2491
        %v2602 = vmul.f32 %v2494, %v2494
        %v2603 = vmul.f32 %v2497, %v2497
        %v2604 = vmul.f32 %v2500, %v2500
        %v2605 = vmul.f32 %v2503, %v2503
        %v2606 = vmul.f32 %v2506, %v2506
        %v2607 = vmul.f32 %v2509, %v2509
        %v2608 = vmul.f32 %v2512, %v2512
        %v2609 = vmul.f32 %v2515, %v2515
        %v2610 = vmul.f32 %v2518, %v2518
        %v2611 = vmul.f32 %v2521, %v2521
        %v2612 = vmul.f32 %v2524, %v2524
        %v2613 = vmul.f32 %v2527, %v2527
        %v2614 = vmul.f32 %v2530, %v2530
        %v2615 = vmul.f32 %v2533, %v2533
        %v2616 = vmul.f32 %v2536, %v2536
        %v2617 = vmul.f32 %v2539, %v2539
        %v2618 = vmul.f32 %v2542, %v2542
        %v2619 = vmul.f32 %v2545, %v2545
        %v2620 = vmul.f32 %v2548, %v2548
        %v2621 = vadd.f32 %v2589, %v2590
        %v2622 = vadd.f32 %v2621, %v2591
        %v2623 = vadd.f32 %v2622, %v2592
        %v2624 = vadd.f32 %v2623, %v2593
        %v2625 = vadd.f32 %v2624, %v2594
        %v2626 = vadd.f32 %v2625, %v2595
        %v2627 = vadd.f32 %v2626, %v2596
        %v2628 = vadd.f32 %v2627, %v2597
        %v2629 = vadd.f32 %v2628, %v2598
        %v2630 = vadd.f32 %v2629, %v2599
        %v2631 = vadd.f32 %v2630, %v2600
        %v2632 = vadd.f32 %v2631, %v2601
        %v2633 = vadd.f32 %v2632, %v2602
        %v2634 = vadd.f32 %v2633, %v2603
        %v2635 = vadd.f32 %v2634, %v2604
        %v2636 = vadd.f32 %v2635, %v2605
        %v2637 = vadd.f32 %v2636, %v2606
        %v2638 = vadd.f32 %v2637, %v2607
        %v2639 = vadd.f32 %v2638, %v2608
        %v2640 = vadd.f32 %v2639, %v2609
        %v2641 = vadd.f32 %v2640, %v2610
        %v2642 = vadd.f32 %v2641, %v2611
        %v2643 = vadd.f32 %v2642, %v2612
        %v2644 = vadd.f32 %v2643, %v2613
        %v2645 = vadd.f32 %v2644, %v2614
        %v2646 = vadd.f32 %v2645, %v2615
        %v2647 = vadd.f32 %v2646, %v2616
        %v2648 = vadd.f32 %v2647, %v2617
        %v2649 = vadd.f32 %v2648, %v2618
        %v2650 = vadd.f32 %v2649, %v2619
        %v2651 = vadd.f32 %v2650, %v2620
        %v2652 = vrot.slane %v2651, 4
        %v2653 = vadd.f32 %v2651, %v2652
        %v2654 = vrot.slane %v2653, 2
        %v2655 = vadd.f32 %v2653, %v2654
        %v2656 = vrot.slane %v2655, 1
        %v2657 = vadd.f32 %v2655, %v2656
        %v2658 = vmul.f32 %v2588, 0.00390625
        %v2659 = vmul.f32 %v2657, 0.00390625
        %v2660 = vmul.f32 %v2658, %v2658
        %v2661 = vsub.f32 %v2659, %v2660
        %v2662 = vmax.f32 %v2661, 0.0
        %v2663 = vadd.f32 %v2662, 1e-05
        %v2664 = vrsqrt.pop %v2663
        %v2665 = vmul.f32 %v2664, %v2663
        %v2666 = vmul.f32 %v2665, %v2664
        %v2667 = vmul.f32 0.5, %v2666
        %v2668 = vsub.f32 1.5, %v2667
        %v2669 = vmul.f32 %v2664, %v2668
        %vm2670 = vweird.f32 %v2663
        %vm2671 = vweird.f32 %v2664
        %vm2672 = vmor %vm2670, %vm2671
        %v2673 = vsel %vm2672, %v2664, %v2669
        %v2674 = vmul.f32 %v2550, %v2673
        %v2675 = vmul.f32 %v2658, %v2674
        %v2676 = vsub.f32 %v2551, %v2675
        %v2678 = vperm.slane %v2674, 0
        %v2680 = vmul.f32 %v2455, %v2678
        %v2681 = vmul.f32 %v2458, %v2678
        %v2682 = vmul.f32 %v2461, %v2678
        %v2683 = vmul.f32 %v2464, %v2678
        %v2684 = vmul.f32 %v2467, %v2678
        %v2685 = vmul.f32 %v2470, %v2678
        %v2686 = vmul.f32 %v2473, %v2678
        %v2687 = vmul.f32 %v2476, %v2678
        %v2688 = vmul.f32 %v2479, %v2678
        %v2689 = vmul.f32 %v2482, %v2678
        %v2690 = vmul.f32 %v2485, %v2678
        %v2691 = vmul.f32 %v2488, %v2678
        %v2692 = vmul.f32 %v2491, %v2678
        %v2693 = vmul.f32 %v2494, %v2678
        %v2694 = vmul.f32 %v2497, %v2678
        %v2695 = vmul.f32 %v2500, %v2678
        %v2696 = vmul.f32 %v2503, %v2678
        %v2697 = vmul.f32 %v2506, %v2678
        %v2698 = vmul.f32 %v2509, %v2678
        %v2699 = vmul.f32 %v2512, %v2678
        %v2700 = vmul.f32 %v2515, %v2678
        %v2701 = vmul.f32 %v2518, %v2678
        %v2702 = vmul.f32 %v2521, %v2678
        %v2703 = vmul.f32 %v2524, %v2678
        %v2704 = vmul.f32 %v2527, %v2678
        %v2705 = vmul.f32 %v2530, %v2678
        %v2706 = vmul.f32 %v2533, %v2678
        %v2707 = vmul.f32 %v2536, %v2678
        %v2708 = vmul.f32 %v2539, %v2678
        %v2709 = vmul.f32 %v2542, %v2678
        %v2710 = vmul.f32 %v2545, %v2678
        %v2711 = vmul.f32 %v2548, %v2678
        %v2713 = vperm.slane %v2676, 0
        %v2715 = vadd.f32 %v2680, %v2713
        %v2716 = vadd.f32 %v2681, %v2713
        %v2717 = vadd.f32 %v2682, %v2713
        %v2718 = vadd.f32 %v2683, %v2713
        %v2719 = vadd.f32 %v2684, %v2713
        %v2720 = vadd.f32 %v2685, %v2713
        %v2721 = vadd.f32 %v2686, %v2713
        %v2722 = vadd.f32 %v2687, %v2713
        %v2723 = vadd.f32 %v2688, %v2713
        %v2724 = vadd.f32 %v2689, %v2713
        %v2725 = vadd.f32 %v2690, %v2713
        %v2726 = vadd.f32 %v2691, %v2713
        %v2727 = vadd.f32 %v2692, %v2713
        %v2728 = vadd.f32 %v2693, %v2713
        %v2729 = vadd.f32 %v2694, %v2713
        %v2730 = vadd.f32 %v2695, %v2713
        %v2731 = vadd.f32 %v2696, %v2713
        %v2732 = vadd.f32 %v2697, %v2713
        %v2733 = vadd.f32 %v2698, %v2713
        %v2734 = vadd.f32 %v2699, %v2713
        %v2735 = vadd.f32 %v2700, %v2713
        %v2736 = vadd.f32 %v2701, %v2713
        %v2737 = vadd.f32 %v2702, %v2713
        %v2738 = vadd.f32 %v2703, %v2713
        %v2739 = vadd.f32 %v2704, %v2713
        %v2740 = vadd.f32 %v2705, %v2713
        %v2741 = vadd.f32 %v2706, %v2713
        %v2742 = vadd.f32 %v2707, %v2713
        %v2743 = vadd.f32 %v2708, %v2713
        %v2744 = vadd.f32 %v2709, %v2713
        %v2745 = vadd.f32 %v2710, %v2713
        %v2746 = vadd.f32 %v2711, %v2713
        %v2747 = vadd.f32 %v2715, %v430
        %v2748 = vadd.f32 %v2716, %v431
        %v2749 = vadd.f32 %v2717, %v432
        %v2750 = vadd.f32 %v2718, %v433
        %v2751 = vadd.f32 %v2719, %v434
        %v2752 = vadd.f32 %v2720, %v435
        %v2753 = vadd.f32 %v2721, %v436
        %v2754 = vadd.f32 %v2722, %v437
        %v2755 = vadd.f32 %v2723, %v438
        %v2756 = vadd.f32 %v2724, %v439
        %v2757 = vadd.f32 %v2725, %v440
        %v2758 = vadd.f32 %v2726, %v441
        %v2759 = vadd.f32 %v2727, %v442
        %v2760 = vadd.f32 %v2728, %v443
        %v2761 = vadd.f32 %v2729, %v444
        %v2762 = vadd.f32 %v2730, %v445
        %v2763 = vadd.f32 %v2731, %v446
        %v2764 = vadd.f32 %v2732, %v447
        %v2765 = vadd.f32 %v2733, %v448
        %v2766 = vadd.f32 %v2734, %v449
        %v2767 = vadd.f32 %v2735, %v450
        %v2768 = vadd.f32 %v2736, %v451
        %v2769 = vadd.f32 %v2737, %v452
        %v2770 = vadd.f32 %v2738, %v453
        %v2771 = vadd.f32 %v2739, %v454
        %v2772 = vadd.f32 %v2740, %v455
        %v2773 = vadd.f32 %v2741, %v456
        %v2774 = vadd.f32 %v2742, %v457
        %v2775 = vadd.f32 %v2743, %v458
        %v2776 = vadd.f32 %v2744, %v459
        %v2777 = vadd.f32 %v2745, %v460
        %v2778 = vadd.f32 %v2746, %v461
        %v2779 = vmax.f32 %v2747, 0.0
        %v2780 = vmax.f32 %v2748, 0.0
        %v2781 = vmax.f32 %v2749, 0.0
        %v2782 = vmax.f32 %v2750, 0.0
        %v2783 = vmax.f32 %v2751, 0.0
        %v2784 = vmax.f32 %v2752, 0.0
        %v2785 = vmax.f32 %v2753, 0.0
        %v2786 = vmax.f32 %v2754, 0.0
        %v2787 = vmax.f32 %v2755, 0.0
        %v2788 = vmax.f32 %v2756, 0.0
        %v2789 = vmax.f32 %v2757, 0.0
        %v2790 = vmax.f32 %v2758, 0.0
        %v2791 = vmax.f32 %v2759, 0.0
        %v2792 = vmax.f32 %v2760, 0.0
        %v2793 = vmax.f32 %v2761, 0.0
        %v2794 = vmax.f32 %v2762, 0.0
        %v2795 = vmax.f32 %v2763, 0.0
        %v2796 = vmax.f32 %v2764, 0.0
        %v2797 = vmax.f32 %v2765, 0.0
        %v2798 = vmax.f32 %v2766, 0.0
        %v2799 = vmax.f32 %v2767, 0.0
        %v2800 = vmax.f32 %v2768, 0.0
        %v2801 = vmax.f32 %v2769, 0.0
        %v2802 = vmax.f32 %v2770, 0.0
        %v2803 = vmax.f32 %v2771, 0.0
        %v2804 = vmax.f32 %v2772, 0.0
        %v2805 = vmax.f32 %v2773, 0.0
        %v2806 = vmax.f32 %v2774, 0.0
        %v2807 = vmax.f32 %v2775, 0.0
        %v2808 = vmax.f32 %v2776, 0.0
        %v2809 = vmax.f32 %v2777, 0.0
        %v2810 = vmax.f32 %v2778, 0.0
        %2811 = vst [vmem:[%s429] sm:$0xff] %v2779
        %2812 = vst [vmem:[%s429 + $0x8] sm:$0xff] %v2780
        %2813 = vst [vmem:[%s429 + $0x10] sm:$0xff] %v2781
        %2814 = vst [vmem:[%s429 + $0x18] sm:$0xff] %v2782
        %2815 = vst [vmem:[%s429 + $0x20] sm:$0xff] %v2783
        %2816 = vst [vmem:[%s429 + $0x28] sm:$0xff] %v2784
        %2817 = vst [vmem:[%s429 + $0x30] sm:$0xff] %v2785
        %2818 = vst [vmem:[%s429 + $0x38] sm:$0xff] %v2786
        %2819 = vst [vmem:[%s429 + $0x40] sm:$0xff] %v2787
        %2820 = vst [vmem:[%s429 + $0x48] sm:$0xff] %v2788
        %2821 = vst [vmem:[%s429 + $0x50] sm:$0xff] %v2789
        %2822 = vst [vmem:[%s429 + $0x58] sm:$0xff] %v2790
        %2823 = vst [vmem:[%s429 + $0x60] sm:$0xff] %v2791
        %2824 = vst [vmem:[%s429 + $0x68] sm:$0xff] %v2792
        %2825 = vst [vmem:[%s429 + $0x70] sm:$0xff] %v2793
        %2826 = vst [vmem:[%s429 + $0x78] sm:$0xff] %v2794
        %2827 = vst [vmem:[%s429 + $0x80] sm:$0xff] %v2795
        %2828 = vst [vmem:[%s429 + $0x88] sm:$0xff] %v2796
        %2829 = vst [vmem:[%s429 + $0x90] sm:$0xff] %v2797
        %2830 = vst [vmem:[%s429 + $0x98] sm:$0xff] %v2798
        %2831 = vst [vmem:[%s429 + $0xa0] sm:$0xff] %v2799
        %2832 = vst [vmem:[%s429 + $0xa8] sm:$0xff] %v2800
        %2833 = vst [vmem:[%s429 + $0xb0] sm:$0xff] %v2801
        %2834 = vst [vmem:[%s429 + $0xb8] sm:$0xff] %v2802
        %2835 = vst [vmem:[%s429 + $0xc0] sm:$0xff] %v2803
        %2836 = vst [vmem:[%s429 + $0xc8] sm:$0xff] %v2804
        %2837 = vst [vmem:[%s429 + $0xd0] sm:$0xff] %v2805
        %2838 = vst [vmem:[%s429 + $0xd8] sm:$0xff] %v2806
        %2839 = vst [vmem:[%s429 + $0xe0] sm:$0xff] %v2807
        %2840 = vst [vmem:[%s429 + $0xe8] sm:$0xff] %v2808
        %2841 = vst [vmem:[%s429 + $0xf0] sm:$0xff] %v2809
        %2842 = vst [vmem:[%s429 + $0xf8] sm:$0xff] %v2810
        %s2843 = sand.u32 %s252, 1
        %s2844 = scalar_lea.sflag [#allocation6], %s2843
        %s2845 = sand.u32 %s252, 1
        %s2846 = smul.addr %s2845, 256
        %s2847 = scalar_lea.vmem [#allocation12], %s2846
        // Predicated region
        $region84: #{tpu_custom_call.1} parent=59 // pred_check
          %p2848 = pneg %p262
        $region85: #{tpu_custom_call.1} parent=59 // pred_check_branch
          %2850 = sbr.rel (%p2848) target = $region87
        $region86: #{tpu_custom_call.1} parent=59 // pred_region
          %2852 = vsyncadd %s2844, 0
          %s2853 = smul.addr %s29, 32
          %s2854 = smul.addr %s2853, 8
          %s2855 = scalar_lea.hbm %s10, %s2854
          %s2856 = sshll.u32 %s2847, 4
          %s2857 = int_to_ptr.vmem [resolvable:$true] %s2856
          %s2858 = sshll.u32 %s2855, 4
          %s2859 = int_to_ptr.hbm [resolvable:$true] %s2858
          %2864 = dma.vmem_to_hbm [thread:$0]  %s2857, 4096, %s2859, %s2844, 128, 128, 8
        $region87: #{tpu_custom_call.1} parent=59 // pred_fallthru
          _
      $region60: #{tpu_custom_call.1} parent=5 // pred_fallthru
        _
      %p2865 = scmp.le.s32.totalorder 2, %s24
      // Predicated region
      $region88: #{tpu_custom_call.1} parent=5 // pred_check
        %p2866 = pneg %p2865
      $region89: #{tpu_custom_call.1} parent=5 // pred_check_branch
        %2868 = sbr.rel (%p2866) target = $region91
      $region90: #{tpu_custom_call.1} parent=5 // pred_region
        %s2869 = ssub.s32 %s24, 2
        // Predicated region
        $region92: #{tpu_custom_call.1} parent=90 // pred_check
          %p2870 = pneg %p268
        $region93: #{tpu_custom_call.1} parent=90 // pred_check_branch
          %2872 = sbr.rel (%p2870) target = $region95
        $region94: #{tpu_custom_call.1} parent=90 // pred_region
          %s2873 = sand.u32 %s253, 1
          %s2874 = scalar_lea.sflag [#allocation6], %s2873
          %s2875 = sand.u32 %s253, 1
          %s2876 = smul.addr %s2875, 256
          %s2877 = scalar_lea.vmem [#allocation12], %s2876
          %2879 = dma.done %s2874, 4096
        $region95: #{tpu_custom_call.1} parent=90 // pred_fallthru
          _
      $region91: #{tpu_custom_call.1} parent=5 // pred_fallthru
        _
    $region6: #{tpu_custom_call.1} parent=1 // loop_footer
      %s28 = sadd.s32 1, %s24
    $region7: #{tpu_custom_call.1} parent=1 // loop_footer_branch
      %23 = sbr.rel target = $region3
    $region8: #{tpu_custom_call.1} parent=1 // loop_exit
      _
    %2880 = vsyncpa [#allocation5], 1
    %s2881 = scalar_lea.sflag [#allocation5], 1
    %2882 = vsyncpa %s2881, 1
    %2883 = vsyncpa [#allocation8], 1
    %2884 = vsyncpa [#allocation11], 1
    %2885 = vsyncpa [#allocation6], 1
    %s2886 = scalar_lea.sflag [#allocation6], 1
    %2887 = vsyncpa %s2886, 1

</llo_original>
